<compile_context>
chip_gen: v7x
topology: tpu7x:2x2x1
jax: 0.10.0
libtpu: 0.0.40
codegen_flags: <defaults>
</compile_context>

<pallas_src>
import functools

import jax
import jax.numpy as jnp
from jax import lax
from jax.experimental import pallas as pl
from jax.experimental.pallas import tpu as pltpu


def _phys_attn_kernel(x_ref, cmask_ref, wconv_ref, bconv_ref,
                      wsl_ref, bsl_ref, wqkv_ref, wo_ref, bo_ref,
                      out_ref,
                      xpad_ref, conv_ref, outx_ref,
                      *, Hh, Ww, heads, dim_head, slice_num, ksize):
    N = Hh * Ww
    C = x_ref.shape[-1]
    D = dim_head
    G = slice_num
    HD = heads * D
    half = ksize // 2
    PAD = half * (Ww + 1)
    f32 = jnp.float32
    bf16 = jnp.bfloat16

    # ---- stage the flattened mesh into a zero-padded VMEM scratch -----------
    xpad_ref[0:PAD, :] = jnp.zeros((PAD, C), f32)
    xpad_ref[PAD:PAD + N, :] = x_ref[0]
    xpad_ref[PAD + N:PAD + N + PAD, :] = jnp.zeros((PAD, C), f32)

    # ---- fused 3x3 convs (in_project_fx | in_project_x), all heads at once --
    conv = jnp.zeros((N, 2 * HD), f32)
    for ky in range(ksize):
        for kx in range(ksize):
            dy, dx = ky - half, kx - half
            off = dy * Ww + dx
            tap = xpad_ref[PAD + off:PAD + off + N, :]          # (N, C) f32
            if dx != 0:
                # kill cross-row wraparound of the flat shift
                tap = tap * cmask_ref[kx]
            conv = conv + jnp.dot(tap.astype(bf16),
                                  wconv_ref[ky * ksize + kx],
                                  preferred_element_type=f32)
    conv_ref[...] = conv + bconv_ref[...]                        # (N, 2HD) f32

    # ---- per-head slice attention (heads is small -> static unroll) ---------
    for h in range(heads):
        fx_h = conv_ref[:, h * D:(h + 1) * D]                    # (N, D) f32
        xm_h = conv_ref[:, HD + h * D:HD + (h + 1) * D]          # (N, D) f32

        # slice weights: softmax(x_mid @ (Wsl/temp_h) + bsl/temp_h)
        logits = jnp.dot(xm_h.astype(bf16), wsl_ref[h],
                         preferred_element_type=f32) + bsl_ref[h]   # (N, G)
        logits = logits - jnp.max(logits, axis=-1, keepdims=True)
        e = jnp.exp(logits)
        sw = e * pl.reciprocal(jnp.sum(e, axis=-1, keepdims=True), approx=True)

        # slice_token with 1/(slice_norm + eps) folded into sw before the
        # N-contraction (no (G,1) transpose needed).
        snorm = jnp.sum(sw, axis=0, keepdims=True)                   # (1, G)
        sw_n = sw * pl.reciprocal(snorm + 1e-5, approx=True)         # (N, G)
        st = lax.dot_general(
            sw_n.astype(bf16), fx_h.astype(bf16),
            dimension_numbers=(((0,), (0,)), ((), ())),
            preferred_element_type=f32)                              # (G, D)

        # q/k/v (scale pre-folded into Wq); read slices of the fused weight ref
        st_b = st.astype(bf16)
        q = jnp.dot(st_b, wqkv_ref[:, 0:D], preferred_element_type=f32)
        k = jnp.dot(st_b, wqkv_ref[:, D:2 * D], preferred_element_type=f32)
        v = jnp.dot(st_b, wqkv_ref[:, 2 * D:3 * D], preferred_element_type=f32)

        dots = lax.dot_general(q, k, (((1,), (1,)), ((), ())),
                               preferred_element_type=f32)           # (G, G)
        dots = dots - jnp.max(dots, axis=-1, keepdims=True)
        ea = jnp.exp(dots)
        attn = ea * pl.reciprocal(jnp.sum(ea, axis=-1, keepdims=True),
                                  approx=True)
        # TODO(synk): dropout on attn / to_out is a no-op (p=0.0, eval mode).
        out_st = jnp.dot(attn, v, preferred_element_type=f32)        # (G, D)

        # de-slice back to tokens for this head
        out_h = jnp.dot(sw.astype(bf16), out_st.astype(bf16),
                        preferred_element_type=f32)                   # (N, D)
        outx_ref[:, h * D:(h + 1) * D] = out_h

    # ---- to_out: single wide (N, H*D) x (H*D, C) matmul + bias ---------------
    y = jnp.dot(outx_ref[...].astype(bf16), wo_ref[...],
                preferred_element_type=f32) + bo_ref[...]
    out_ref[0] = y.astype(out_ref.dtype)


def physics_attention_pallas(x, params, *, heads, dim_head, slice_num,
                             Hh, Ww, ksize=3):
    B, N, C = x.shape
    assert N == Hh * Ww, "token count must equal H*W of the structured mesh"
    D, G = dim_head, slice_num
    HD = heads * D
    half = ksize // 2
    scale = dim_head ** -0.5
    f32, bf16 = jnp.float32, jnp.bfloat16

    # ---- parameter folding / fusion (done once, in HBM) ---------------------
    w_conv = jnp.concatenate([params["w_fx"], params["w_x"]], axis=-1)
    w_conv = w_conv.reshape(ksize * ksize, C, 2 * HD).astype(bf16)
    b_conv = jnp.concatenate([params["b_fx"], params["b_x"]])[None, :].astype(f32)

    temp = jnp.clip(params["temperature"], 0.1, 5.0)                  # (H,)
    wsl = (params["w_slice"][None] / temp[:, None, None]).astype(bf16)        # (H, D, G)
    bsl = (params["b_slice"][None, None, :] / temp[:, None, None]).astype(f32)  # (H, 1, G)

    wqkv = jnp.concatenate([params["wq"] * scale, params["wk"], params["wv"]],
                           axis=1).astype(bf16)                       # (D, 3D)
    wo = params["w_out"].astype(bf16)                                 # (HD, C)
    bo = params["b_out"][None, :].astype(f32)                         # (1, C)

    # column-validity masks for the flat conv-tap shifts (per horizontal tap)
    j = jnp.arange(N) % Ww
    cmask = jnp.stack(
        [((j + (kx - half) >= 0) & (j + (kx - half) <= Ww - 1)).astype(f32)
         for kx in range(ksize)])[:, :, None]                         # (k, N, 1)

    kernel = functools.partial(
        _phys_attn_kernel, Hh=Hh, Ww=Ww, heads=heads, dim_head=dim_head,
        slice_num=slice_num, ksize=ksize)

    grid_spec = pltpu.PrefetchScalarGridSpec(
        num_scalar_prefetch=0,
        grid=(B,),
        in_specs=[
            pl.BlockSpec((1, N, C), lambda b: (b, 0, 0)),                 # x
            pl.BlockSpec((ksize, N, 1), lambda b: (0, 0, 0)),             # col masks
            pl.BlockSpec((ksize * ksize, C, 2 * HD), lambda b: (0, 0, 0)),  # fused conv W
            pl.BlockSpec((1, 2 * HD), lambda b: (0, 0)),                  # fused conv b
            pl.BlockSpec((heads, D, G), lambda b: (0, 0, 0)),             # slice W (temp folded)
            pl.BlockSpec((heads, 1, G), lambda b: (0, 0, 0)),             # slice b (temp folded)
            pl.BlockSpec((D, 3 * D), lambda b: (0, 0)),                   # fused Wq|Wk|Wv
            pl.BlockSpec((HD, C), lambda b: (0, 0)),                      # to_out W
            pl.BlockSpec((1, C), lambda b: (0, 0)),                       # to_out b
        ],
        out_specs=pl.BlockSpec((1, N, C), lambda b: (b, 0, 0)),
        scratch_shapes=[
            pltpu.VMEM((N + 2 * half * (Ww + 1), C), jnp.float32),  # zero-padded x
            pltpu.VMEM((N, 2 * HD), jnp.float32),                   # fused conv output
            pltpu.VMEM((N, HD), jnp.float32),                       # de-sliced per-head out
        ],
    )

    return pl.pallas_call(
        kernel,
        out_shape=jax.ShapeDtypeStruct((B, N, C), jnp.float32),
        grid_spec=grid_spec,
        compiler_params=pltpu.CompilerParams(
            dimension_semantics=("parallel",)),
    )(x.astype(f32), cmask, w_conv, b_conv, wsl, bsl, wqkv, wo, bo)


def physics_attention_ref(x, params, *, heads, dim_head, slice_num, Hh, Ww):
    """Pure-JAX (f32) reference mirroring the PyTorch forward."""
    B, N, C = x.shape
    D, G, HD = dim_head, slice_num, heads * dim_head
    scale = dim_head ** -0.5

    xg = x.reshape(B, Hh, Ww, C)
    dn = ("NHWC", "HWIO", "NHWC")
    fx = lax.conv_general_dilated(xg, params["w_fx"], (1, 1), "SAME",
                                  dimension_numbers=dn) + params["b_fx"]
    xm = lax.conv_general_dilated(xg, params["w_x"], (1, 1), "SAME",
                                  dimension_numbers=dn) + params["b_x"]
    fx = fx.reshape(B, N, heads, D).transpose(0, 2, 1, 3)   # (B,H,N,D)
    xm = xm.reshape(B, N, heads, D).transpose(0, 2, 1, 3)

    temp = jnp.clip(params["temperature"], 0.1, 5.0)
    logits = (jnp.einsum("bhnd,dg->bhng", xm, params["w_slice"])
              + params["b_slice"]) / temp[None, :, None, None]
    sw = jax.nn.softmax(logits, axis=-1)                     # (B,H,N,G)
    snorm = sw.sum(axis=2)                                   # (B,H,G)
    st = jnp.einsum("bhnd,bhng->bhgd", fx, sw)
    st = st / (snorm[..., None] + 1e-5)
    q = st @ params["wq"]
    k = st @ params["wk"]
    v = st @ params["wv"]
    dots = jnp.einsum("bhgd,bhkd->bhgk", q, k) * scale
    attn = jax.nn.softmax(dots, axis=-1)
    out_st = attn @ v                                        # (B,H,G,D)
    out_x = jnp.einsum("bhgd,bhng->bhnd", out_st, sw)        # (B,H,N,D)
    out_x = out_x.transpose(0, 2, 1, 3).reshape(B, N, HD)
    return out_x @ params["w_out"] + params["b_out"]


def make_params(key, dim, heads, dim_head, slice_num, ksize=3):
    C, D, G = dim, dim_head, slice_num
    HD = heads * D
    ks = jax.random.split(key, 10)
    s = 0.1
    return {
        # conv weights stored HWIO (PyTorch Conv2d(dim, inner_dim, 3, 1, 1))
        "w_fx": jax.random.normal(ks[0], (ksize, ksize, C, HD), jnp.float32) * s,
        "b_fx": jax.random.normal(ks[1], (HD,), jnp.float32) * s,
        "w_x": jax.random.normal(ks[2], (ksize, ksize, C, HD), jnp.float32) * s,
        "b_x": jax.random.normal(ks[3], (HD,), jnp.float32) * s,
        # TODO(synk): torch uses orthogonal init for in_project_slice; plain
        # normal init is used here (init detail only, forward math unchanged).
        "w_slice": jax.random.normal(ks[4], (D, G), jnp.float32) * s,
        "b_slice": jax.random.normal(ks[5], (G,), jnp.float32) * s,
        "temperature": jnp.full((heads,), 0.5, jnp.float32),
        "wq": jax.random.normal(ks[6], (D, D), jnp.float32) * s,
        "wk": jax.random.normal(ks[7], (D, D), jnp.float32) * s,
        "wv": jax.random.normal(ks[8], (D, D), jnp.float32) * s,
        "w_out": jax.random.normal(ks[9], (HD, C), jnp.float32) * s,
        "b_out": jnp.zeros((C,), jnp.float32),
    }


if __name__ == "__main__":
    B = 2
    Hh, Ww = 8, 16           # structured mesh -> N = H*W = 128 tokens
    dim = 32                  # channels C
    heads, dim_head, slice_num = 4, 16, 8

    key = jax.random.PRNGKey(0)
    kx, kp = jax.random.split(key)
    N = Hh * Ww
    x = jax.random.normal(kx, (B, N, dim), jnp.float32)
    params = make_params(kp, dim, heads, dim_head, slice_num)

    out = physics_attention_pallas(
        x, params, heads=heads, dim_head=dim_head, slice_num=slice_num,
        Hh=Hh, Ww=Ww)
    out = jax.block_until_ready(out)

    ref = physics_attention_ref(
        x, params, heads=heads, dim_head=dim_head, slice_num=slice_num,
        Hh=Hh, Ww=Ww)
    ref = jax.block_until_ready(ref)

    assert out.shape == (B, N, dim)
    # bf16 matmul operands (f32 accumulation) vs f32 reference -> relaxed tol.
    assert jnp.allclose(out, ref, rtol=5e-2, atol=5e-2), (
        f"max abs err {jnp.max(jnp.abs(out - ref))}")
    print("KERNEL_OK")
</pallas_src>

<mosaic_0001>
module attributes {stable_mosaic.version = 11 : i64} {
  func.func @_phys_attn_kernel(%arg0: i32, %arg1: memref<1x128x32xf32, #tpu.memory_space<vmem>>, %arg2: memref<3x128x1xf32, #tpu.memory_space<vmem>>, %arg3: memref<9x32x128xbf16, #tpu.memory_space<vmem>>, %arg4: memref<1x128xf32, #tpu.memory_space<vmem>>, %arg5: memref<4x16x8xbf16, #tpu.memory_space<vmem>>, %arg6: memref<4x1x8xf32, #tpu.memory_space<vmem>>, %arg7: memref<16x48xbf16, #tpu.memory_space<vmem>>, %arg8: memref<64x32xbf16, #tpu.memory_space<vmem>>, %arg9: memref<1x32xf32, #tpu.memory_space<vmem>>, %arg10: memref<1x128x32xf32, #tpu.memory_space<vmem>>, %arg11: memref<162x32xf32, #tpu.memory_space<vmem>>, %arg12: memref<128x128xf32, #tpu.memory_space<vmem>>, %arg13: memref<128x64xf32, #tpu.memory_space<vmem>>) attributes {dimension_semantics = [#tpu.dimension_semantics<parallel>], iteration_bounds = array<i64: 2>, scalar_prefetch = 0 : i64, scratch_operands = 3 : i64, tpu.core_type = #tpu.core_type<tc>, window_params = [{transform_indices = @transform_0, window_bounds = array<i64: 1, 128, 32>}, {pipeline_mode = #tpu.pipeline_mode<synchronous>, transform_indices = @transform_1, window_bounds = array<i64: 3, 128, 1>}, {pipeline_mode = #tpu.pipeline_mode<synchronous>, transform_indices = @transform_2, window_bounds = array<i64: 9, 32, 128>}, {pipeline_mode = #tpu.pipeline_mode<synchronous>, transform_indices = @transform_3, window_bounds = array<i64: 1, 128>}, {pipeline_mode = #tpu.pipeline_mode<synchronous>, transform_indices = @transform_4, window_bounds = array<i64: 4, 16, 8>}, {pipeline_mode = #tpu.pipeline_mode<synchronous>, transform_indices = @transform_5, window_bounds = array<i64: 4, 1, 8>}, {pipeline_mode = #tpu.pipeline_mode<synchronous>, transform_indices = @transform_6, window_bounds = array<i64: 16, 48>}, {pipeline_mode = #tpu.pipeline_mode<synchronous>, transform_indices = @transform_7, window_bounds = array<i64: 64, 32>}, {pipeline_mode = #tpu.pipeline_mode<synchronous>, transform_indices = @transform_8, window_bounds = array<i64: 1, 32>}, {transform_indices = @transform_9, window_bounds = array<i64: 1, 128, 32>}]} {
    %cst = arith.constant 0.000000e+00 : f32
    %0 = vector.broadcast %cst : f32 to vector<17x32xf32>
    %c0 = arith.constant 0 : index
    %c0_0 = arith.constant 0 : index
    %1 = vector.load %arg11[%c0, %c0_0] : memref<162x32xf32, #tpu.memory_space<vmem>>, vector<17x32xf32>
    tpu.vector_store %arg11[%c0, %c0_0], %0 {strides = array<i32>} : memref<162x32xf32, #tpu.memory_space<vmem>>, vector<17x32xf32>,
    %c0_1 = arith.constant 0 : index
    %c0_2 = arith.constant 0 : index
    %c0_3 = arith.constant 0 : index
    %2 = vector.load %arg1[%c0_1, %c0_2, %c0_3] : memref<1x128x32xf32, #tpu.memory_space<vmem>>, vector<1x128x32xf32>
    %3 = vector.shape_cast %2 : vector<1x128x32xf32> to vector<128x32xf32>
    %c17 = arith.constant 17 : index
    %c0_4 = arith.constant 0 : index
    %4 = vector.load %arg11[%c17, %c0_4] : memref<162x32xf32, #tpu.memory_space<vmem>>, vector<128x32xf32>
    tpu.vector_store %arg11[%c17, %c0_4], %3 {strides = array<i32>} : memref<162x32xf32, #tpu.memory_space<vmem>>, vector<128x32xf32>,
    %cst_5 = arith.constant 0.000000e+00 : f32
    %5 = vector.broadcast %cst_5 : f32 to vector<17x32xf32>
    %c145 = arith.constant 145 : index
    %c0_6 = arith.constant 0 : index
    %6 = vector.load %arg11[%c145, %c0_6] : memref<162x32xf32, #tpu.memory_space<vmem>>, vector<17x32xf32>
    tpu.vector_store %arg11[%c145, %c0_6], %5 {strides = array<i32>} : memref<162x32xf32, #tpu.memory_space<vmem>>, vector<17x32xf32>,
    %cst_7 = arith.constant 0.000000e+00 : f32
    %7 = vector.broadcast %cst_7 : f32 to vector<128x128xf32>
    %c0_8 = arith.constant 0 : index
    %c0_9 = arith.constant 0 : index
    %8 = vector.load %arg11[%c0_8, %c0_9] : memref<162x32xf32, #tpu.memory_space<vmem>>, vector<128x32xf32>
    %c0_10 = arith.constant 0 : index
    %c0_11 = arith.constant 0 : index
    %c0_12 = arith.constant 0 : index
    %9 = vector.load %arg2[%c0_10, %c0_11, %c0_12] : memref<3x128x1xf32, #tpu.memory_space<vmem>>, vector<1x128x1xf32>
    %10 = vector.shape_cast %9 : vector<1x128x1xf32> to vector<128x1xf32>
    %11 = vector.broadcast %10 : vector<128x1xf32> to vector<128x32xf32>
    %12 = arith.mulf %8, %11 : vector<128x32xf32>
    %13 = arith.truncf %12 : vector<128x32xf32> to vector<128x32xbf16>
    %c0_13 = arith.constant 0 : index
    %c0_14 = arith.constant 0 : index
    %c0_15 = arith.constant 0 : index
    %14 = vector.load %arg3[%c0_13, %c0_14, %c0_15] : memref<9x32x128xbf16, #tpu.memory_space<vmem>>, vector<1x32x128xbf16>
    %15 = vector.shape_cast %14 : vector<1x32x128xbf16> to vector<32x128xbf16>
    %cst_16 = arith.constant dense<0.000000e+00> : vector<128x128xf32>
    %16 = tpu.matmul %13, %15, %cst_16 {dimension_numbers = #tpu.dot_dimension_numbers<[1], [0], [0], [1], [0, 0, 1, 1], [], []>} : vector<128x32xbf16>, vector<32x128xbf16>, vector<128x128xf32> -> vector<128x128xf32>
    %17 = arith.addf %7, %16 : vector<128x128xf32>
    %c1 = arith.constant 1 : index
    %c0_17 = arith.constant 0 : index
    %18 = vector.load %arg11[%c1, %c0_17] : memref<162x32xf32, #tpu.memory_space<vmem>>, vector<128x32xf32>
    %19 = arith.truncf %18 : vector<128x32xf32> to vector<128x32xbf16>
    %c1_18 = arith.constant 1 : index
    %c0_19 = arith.constant 0 : index
    %c0_20 = arith.constant 0 : index
    %20 = vector.load %arg3[%c1_18, %c0_19, %c0_20] : memref<9x32x128xbf16, #tpu.memory_space<vmem>>, vector<1x32x128xbf16>
    %21 = vector.shape_cast %20 : vector<1x32x128xbf16> to vector<32x128xbf16>
    %cst_21 = arith.constant dense<0.000000e+00> : vector<128x128xf32>
    %22 = tpu.matmul %19, %21, %cst_21 {dimension_numbers = #tpu.dot_dimension_numbers<[1], [0], [0], [1], [0, 0, 1, 1], [], []>} : vector<128x32xbf16>, vector<32x128xbf16>, vector<128x128xf32> -> vector<128x128xf32>
    %23 = arith.addf %17, %22 : vector<128x128xf32>
    %c2 = arith.constant 2 : index
    %c0_22 = arith.constant 0 : index
    %24 = vector.load %arg11[%c2, %c0_22] : memref<162x32xf32, #tpu.memory_space<vmem>>, vector<128x32xf32>
    %c2_23 = arith.constant 2 : index
    %c0_24 = arith.constant 0 : index
    %c0_25 = arith.constant 0 : index
    %25 = vector.load %arg2[%c2_23, %c0_24, %c0_25] : memref<3x128x1xf32, #tpu.memory_space<vmem>>, vector<1x128x1xf32>
    %26 = vector.shape_cast %25 : vector<1x128x1xf32> to vector<128x1xf32>
    %27 = vector.broadcast %26 : vector<128x1xf32> to vector<128x32xf32>
    %28 = arith.mulf %24, %27 : vector<128x32xf32>
    %29 = arith.truncf %28 : vector<128x32xf32> to vector<128x32xbf16>
    %c2_26 = arith.constant 2 : index
    %c0_27 = arith.constant 0 : index
    %c0_28 = arith.constant 0 : index
    %30 = vector.load %arg3[%c2_26, %c0_27, %c0_28] : memref<9x32x128xbf16, #tpu.memory_space<vmem>>, vector<1x32x128xbf16>
    %31 = vector.shape_cast %30 : vector<1x32x128xbf16> to vector<32x128xbf16>
    %cst_29 = arith.constant dense<0.000000e+00> : vector<128x128xf32>
    %32 = tpu.matmul %29, %31, %cst_29 {dimension_numbers = #tpu.dot_dimension_numbers<[1], [0], [0], [1], [0, 0, 1, 1], [], []>} : vector<128x32xbf16>, vector<32x128xbf16>, vector<128x128xf32> -> vector<128x128xf32>
    %33 = arith.addf %23, %32 : vector<128x128xf32>
    %c16 = arith.constant 16 : index
    %c0_30 = arith.constant 0 : index
    %34 = vector.load %arg11[%c16, %c0_30] : memref<162x32xf32, #tpu.memory_space<vmem>>, vector<128x32xf32>
    %c0_31 = arith.constant 0 : index
    %c0_32 = arith.constant 0 : index
    %c0_33 = arith.constant 0 : index
    %35 = vector.load %arg2[%c0_31, %c0_32, %c0_33] : memref<3x128x1xf32, #tpu.memory_space<vmem>>, vector<1x128x1xf32>
    %36 = vector.shape_cast %35 : vector<1x128x1xf32> to vector<128x1xf32>
    %37 = vector.broadcast %36 : vector<128x1xf32> to vector<128x32xf32>
    %38 = arith.mulf %34, %37 : vector<128x32xf32>
    %39 = arith.truncf %38 : vector<128x32xf32> to vector<128x32xbf16>
    %c3 = arith.constant 3 : index
    %c0_34 = arith.constant 0 : index
    %c0_35 = arith.constant 0 : index
    %40 = vector.load %arg3[%c3, %c0_34, %c0_35] : memref<9x32x128xbf16, #tpu.memory_space<vmem>>, vector<1x32x128xbf16>
    %41 = vector.shape_cast %40 : vector<1x32x128xbf16> to vector<32x128xbf16>
    %cst_36 = arith.constant dense<0.000000e+00> : vector<128x128xf32>
    %42 = tpu.matmul %39, %41, %cst_36 {dimension_numbers = #tpu.dot_dimension_numbers<[1], [0], [0], [1], [0, 0, 1, 1], [], []>} : vector<128x32xbf16>, vector<32x128xbf16>, vector<128x128xf32> -> vector<128x128xf32>
    %43 = arith.addf %33, %42 : vector<128x128xf32>
    %c17_37 = arith.constant 17 : index
    %c0_38 = arith.constant 0 : index
    %44 = vector.load %arg11[%c17_37, %c0_38] : memref<162x32xf32, #tpu.memory_space<vmem>>, vector<128x32xf32>
    %45 = arith.truncf %44 : vector<128x32xf32> to vector<128x32xbf16>
    %c4 = arith.constant 4 : index
    %c0_39 = arith.constant 0 : index
    %c0_40 = arith.constant 0 : index
    %46 = vector.load %arg3[%c4, %c0_39, %c0_40] : memref<9x32x128xbf16, #tpu.memory_space<vmem>>, vector<1x32x128xbf16>
    %47 = vector.shape_cast %46 : vector<1x32x128xbf16> to vector<32x128xbf16>
    %cst_41 = arith.constant dense<0.000000e+00> : vector<128x128xf32>
    %48 = tpu.matmul %45, %47, %cst_41 {dimension_numbers = #tpu.dot_dimension_numbers<[1], [0], [0], [1], [0, 0, 1, 1], [], []>} : vector<128x32xbf16>, vector<32x128xbf16>, vector<128x128xf32> -> vector<128x128xf32>
    %49 = arith.addf %43, %48 : vector<128x128xf32>
    %c18 = arith.constant 18 : index
    %c0_42 = arith.constant 0 : index
    %50 = vector.load %arg11[%c18, %c0_42] : memref<162x32xf32, #tpu.memory_space<vmem>>, vector<128x32xf32>
    %c2_43 = arith.constant 2 : index
    %c0_44 = arith.constant 0 : index
    %c0_45 = arith.constant 0 : index
    %51 = vector.load %arg2[%c2_43, %c0_44, %c0_45] : memref<3x128x1xf32, #tpu.memory_space<vmem>>, vector<1x128x1xf32>
    %52 = vector.shape_cast %51 : vector<1x128x1xf32> to vector<128x1xf32>
    %53 = vector.broadcast %52 : vector<128x1xf32> to vector<128x32xf32>
    %54 = arith.mulf %50, %53 : vector<128x32xf32>
    %55 = arith.truncf %54 : vector<128x32xf32> to vector<128x32xbf16>
    %c5 = arith.constant 5 : index
    %c0_46 = arith.constant 0 : index
    %c0_47 = arith.constant 0 : index
    %56 = vector.load %arg3[%c5, %c0_46, %c0_47] : memref<9x32x128xbf16, #tpu.memory_space<vmem>>, vector<1x32x128xbf16>
    %57 = vector.shape_cast %56 : vector<1x32x128xbf16> to vector<32x128xbf16>
    %cst_48 = arith.constant dense<0.000000e+00> : vector<128x128xf32>
    %58 = tpu.matmul %55, %57, %cst_48 {dimension_numbers = #tpu.dot_dimension_numbers<[1], [0], [0], [1], [0, 0, 1, 1], [], []>} : vector<128x32xbf16>, vector<32x128xbf16>, vector<128x128xf32> -> vector<128x128xf32>
    %59 = arith.addf %49, %58 : vector<128x128xf32>
    %c32 = arith.constant 32 : index
    %c0_49 = arith.constant 0 : index
    %60 = vector.load %arg11[%c32, %c0_49] : memref<162x32xf32, #tpu.memory_space<vmem>>, vector<128x32xf32>
    %c0_50 = arith.constant 0 : index
    %c0_51 = arith.constant 0 : index
    %c0_52 = arith.constant 0 : index
    %61 = vector.load %arg2[%c0_50, %c0_51, %c0_52] : memref<3x128x1xf32, #tpu.memory_space<vmem>>, vector<1x128x1xf32>
    %62 = vector.shape_cast %61 : vector<1x128x1xf32> to vector<128x1xf32>
    %63 = vector.broadcast %62 : vector<128x1xf32> to vector<128x32xf32>
    %64 = arith.mulf %60, %63 : vector<128x32xf32>
    %65 = arith.truncf %64 : vector<128x32xf32> to vector<128x32xbf16>
    %c6 = arith.constant 6 : index
    %c0_53 = arith.constant 0 : index
    %c0_54 = arith.constant 0 : index
    %66 = vector.load %arg3[%c6, %c0_53, %c0_54] : memref<9x32x128xbf16, #tpu.memory_space<vmem>>, vector<1x32x128xbf16>
    %67 = vector.shape_cast %66 : vector<1x32x128xbf16> to vector<32x128xbf16>
    %cst_55 = arith.constant dense<0.000000e+00> : vector<128x128xf32>
    %68 = tpu.matmul %65, %67, %cst_55 {dimension_numbers = #tpu.dot_dimension_numbers<[1], [0], [0], [1], [0, 0, 1, 1], [], []>} : vector<128x32xbf16>, vector<32x128xbf16>, vector<128x128xf32> -> vector<128x128xf32>
    %69 = arith.addf %59, %68 : vector<128x128xf32>
    %c33 = arith.constant 33 : index
    %c0_56 = arith.constant 0 : index
    %70 = vector.load %arg11[%c33, %c0_56] : memref<162x32xf32, #tpu.memory_space<vmem>>, vector<128x32xf32>
    %71 = arith.truncf %70 : vector<128x32xf32> to vector<128x32xbf16>
    %c7 = arith.constant 7 : index
    %c0_57 = arith.constant 0 : index
    %c0_58 = arith.constant 0 : index
    %72 = vector.load %arg3[%c7, %c0_57, %c0_58] : memref<9x32x128xbf16, #tpu.memory_space<vmem>>, vector<1x32x128xbf16>
    %73 = vector.shape_cast %72 : vector<1x32x128xbf16> to vector<32x128xbf16>
    %cst_59 = arith.constant dense<0.000000e+00> : vector<128x128xf32>
    %74 = tpu.matmul %71, %73, %cst_59 {dimension_numbers = #tpu.dot_dimension_numbers<[1], [0], [0], [1], [0, 0, 1, 1], [], []>} : vector<128x32xbf16>, vector<32x128xbf16>, vector<128x128xf32> -> vector<128x128xf32>
    %75 = arith.addf %69, %74 : vector<128x128xf32>
    %c34 = arith.constant 34 : index
    %c0_60 = arith.constant 0 : index
    %76 = vector.load %arg11[%c34, %c0_60] : memref<162x32xf32, #tpu.memory_space<vmem>>, vector<128x32xf32>
    %c2_61 = arith.constant 2 : index
    %c0_62 = arith.constant 0 : index
    %c0_63 = arith.constant 0 : index
    %77 = vector.load %arg2[%c2_61, %c0_62, %c0_63] : memref<3x128x1xf32, #tpu.memory_space<vmem>>, vector<1x128x1xf32>
    %78 = vector.shape_cast %77 : vector<1x128x1xf32> to vector<128x1xf32>
    %79 = vector.broadcast %78 : vector<128x1xf32> to vector<128x32xf32>
    %80 = arith.mulf %76, %79 : vector<128x32xf32>
    %81 = arith.truncf %80 : vector<128x32xf32> to vector<128x32xbf16>
    %c8 = arith.constant 8 : index
    %c0_64 = arith.constant 0 : index
    %c0_65 = arith.constant 0 : index
    %82 = vector.load %arg3[%c8, %c0_64, %c0_65] : memref<9x32x128xbf16, #tpu.memory_space<vmem>>, vector<1x32x128xbf16>
    %83 = vector.shape_cast %82 : vector<1x32x128xbf16> to vector<32x128xbf16>
    %cst_66 = arith.constant dense<0.000000e+00> : vector<128x128xf32>
    %84 = tpu.matmul %81, %83, %cst_66 {dimension_numbers = #tpu.dot_dimension_numbers<[1], [0], [0], [1], [0, 0, 1, 1], [], []>} : vector<128x32xbf16>, vector<32x128xbf16>, vector<128x128xf32> -> vector<128x128xf32>
    %85 = arith.addf %75, %84 : vector<128x128xf32>
    %c0_67 = arith.constant 0 : index
    %c0_68 = arith.constant 0 : index
    %86 = vector.load %arg4[%c0_67, %c0_68] : memref<1x128xf32, #tpu.memory_space<vmem>>, vector<1x128xf32>
    %87 = vector.broadcast %86 : vector<1x128xf32> to vector<128x128xf32>
    %88 = arith.addf %85, %87 : vector<128x128xf32>
    %c0_69 = arith.constant 0 : index
    %c0_70 = arith.constant 0 : index
    %89 = vector.load %arg12[%c0_69, %c0_70] : memref<128x128xf32, #tpu.memory_space<vmem>>, vector<128x128xf32>
    tpu.vector_store %arg12[%c0_69, %c0_70], %88 {strides = array<i32>} : memref<128x128xf32, #tpu.memory_space<vmem>>, vector<128x128xf32>,
    %c0_71 = arith.constant 0 : index
    %c0_72 = arith.constant 0 : index
    %90 = vector.load %arg12[%c0_71, %c0_72] : memref<128x128xf32, #tpu.memory_space<vmem>>, vector<128x16xf32>
    %c0_73 = arith.constant 0 : index
    %c64 = arith.constant 64 : index
    %91 = vector.load %arg12[%c0_73, %c64] : memref<128x128xf32, #tpu.memory_space<vmem>>, vector<128x16xf32>
    %92 = arith.truncf %91 : vector<128x16xf32> to vector<128x16xbf16>
    %c0_74 = arith.constant 0 : index
    %c0_75 = arith.constant 0 : index
    %c0_76 = arith.constant 0 : index
    %93 = vector.load %arg5[%c0_74, %c0_75, %c0_76] : memref<4x16x8xbf16, #tpu.memory_space<vmem>>, vector<1x16x8xbf16>
    %94 = vector.shape_cast %93 : vector<1x16x8xbf16> to vector<16x8xbf16>
    %cst_77 = arith.constant dense<0.000000e+00> : vector<128x8xf32>
    %95 = tpu.matmul %92, %94, %cst_77 {dimension_numbers = #tpu.dot_dimension_numbers<[1], [0], [0], [1], [0, 0, 1, 1], [], []>} : vector<128x16xbf16>, vector<16x8xbf16>, vector<128x8xf32> -> vector<128x8xf32>
    %c0_78 = arith.constant 0 : index
    %c0_79 = arith.constant 0 : index
    %c0_80 = arith.constant 0 : index
    %96 = vector.load %arg6[%c0_78, %c0_79, %c0_80] : memref<4x1x8xf32, #tpu.memory_space<vmem>>, vector<1x1x8xf32>
    %97 = vector.shape_cast %96 : vector<1x1x8xf32> to vector<1x8xf32>
    %98 = vector.broadcast %97 : vector<1x8xf32> to vector<128x8xf32>
    %99 = arith.addf %95, %98 : vector<128x8xf32>
    %cst_81 = arith.constant dense<0xFF800000> : vector<128xf32>
    %100 = vector.multi_reduction <maximumf>, %99, %cst_81 [1] : vector<128x8xf32> to vector<128xf32>
    %101 = vector.shape_cast %100 : vector<128xf32> to vector<128x1xf32>
    %102 = vector.broadcast %101 : vector<128x1xf32> to vector<128x8xf32>
    %103 = arith.subf %99, %102 : vector<128x8xf32>
    %104 = math.exp %103 : vector<128x8xf32>
    %cst_82 = arith.constant dense<0.000000e+00> : vector<128xf32>
    %105 = vector.multi_reduction <add>, %104, %cst_82 [1] : vector<128x8xf32> to vector<128xf32>
    %106 = vector.shape_cast %105 : vector<128xf32> to vector<128x1xf32>
    %107 = tpu.reciprocal %106 {approx = true} : vector<128x1xf32> -> vector<128x1xf32>
    %108 = vector.broadcast %107 : vector<128x1xf32> to vector<128x8xf32>
    %109 = arith.mulf %104, %108 : vector<128x8xf32>
    %cst_83 = arith.constant dense<0.000000e+00> : vector<8xf32>
    %110 = vector.multi_reduction <add>, %109, %cst_83 [0] : vector<128x8xf32> to vector<8xf32>
    %111 = vector.shape_cast %110 : vector<8xf32> to vector<1x8xf32>
    %cst_84 = arith.constant 9.99999974E-6 : f32
    %112 = vector.broadcast %cst_84 : f32 to vector<1x8xf32>
    %113 = arith.addf %111, %112 : vector<1x8xf32>
    %114 = tpu.reciprocal %113 {approx = true} : vector<1x8xf32> -> vector<1x8xf32>
    %115 = vector.broadcast %114 : vector<1x8xf32> to vector<128x8xf32>
    %116 = arith.mulf %109, %115 : vector<128x8xf32>
    %117 = arith.truncf %116 : vector<128x8xf32> to vector<128x8xbf16>
    %118 = arith.truncf %90 : vector<128x16xf32> to vector<128x16xbf16>
    %cst_85 = arith.constant dense<0.000000e+00> : vector<8x16xf32>
    %119 = tpu.matmul %117, %118, %cst_85 {dimension_numbers = #tpu.dot_dimension_numbers<[0], [0], [1], [1], [0, 1, 1, 1], [], []>} : vector<128x8xbf16>, vector<128x16xbf16>, vector<8x16xf32> -> vector<8x16xf32>
    %120 = arith.truncf %119 : vector<8x16xf32> to vector<8x16xbf16>
    %c0_86 = arith.constant 0 : index
    %c0_87 = arith.constant 0 : index
    %121 = vector.load %arg7[%c0_86, %c0_87] : memref<16x48xbf16, #tpu.memory_space<vmem>>, vector<16x16xbf16>
    %cst_88 = arith.constant dense<0.000000e+00> : vector<8x16xf32>
    %122 = tpu.matmul %120, %121, %cst_88 {dimension_numbers = #tpu.dot_dimension_numbers<[1], [0], [0], [1], [0, 0, 1, 1], [], []>} : vector<8x16xbf16>, vector<16x16xbf16>, vector<8x16xf32> -> vector<8x16xf32>
    %c0_89 = arith.constant 0 : index
    %c16_90 = arith.constant 16 : index
    %123 = vector.load %arg7[%c0_89, %c16_90] : memref<16x48xbf16, #tpu.memory_space<vmem>>, vector<16x16xbf16>
    %cst_91 = arith.constant dense<0.000000e+00> : vector<8x16xf32>
    %124 = tpu.matmul %120, %123, %cst_91 {dimension_numbers = #tpu.dot_dimension_numbers<[1], [0], [0], [1], [0, 0, 1, 1], [], []>} : vector<8x16xbf16>, vector<16x16xbf16>, vector<8x16xf32> -> vector<8x16xf32>
    %c0_92 = arith.constant 0 : index
    %c32_93 = arith.constant 32 : index
    %125 = vector.load %arg7[%c0_92, %c32_93] : memref<16x48xbf16, #tpu.memory_space<vmem>>, vector<16x16xbf16>
    %cst_94 = arith.constant dense<0.000000e+00> : vector<8x16xf32>
    %126 = tpu.matmul %120, %125, %cst_94 {dimension_numbers = #tpu.dot_dimension_numbers<[1], [0], [0], [1], [0, 0, 1, 1], [], []>} : vector<8x16xbf16>, vector<16x16xbf16>, vector<8x16xf32> -> vector<8x16xf32>
    %cst_95 = arith.constant dense<0.000000e+00> : vector<8x8xf32>
    %127 = tpu.matmul %122, %124, %cst_95 {dimension_numbers = #tpu.dot_dimension_numbers<[1], [1], [0], [0], [0, 0, 1, 0], [], []>} : vector<8x16xf32>, vector<8x16xf32>, vector<8x8xf32> -> vector<8x8xf32>
    %cst_96 = arith.constant dense<0xFF800000> : vector<8xf32>
    %128 = vector.multi_reduction <maximumf>, %127, %cst_96 [1] : vector<8x8xf32> to vector<8xf32>
    %129 = vector.shape_cast %128 : vector<8xf32> to vector<8x1xf32>
    %130 = vector.broadcast %129 : vector<8x1xf32> to vector<8x8xf32>
    %131 = arith.subf %127, %130 : vector<8x8xf32>
    %132 = math.exp %131 : vector<8x8xf32>
    %cst_97 = arith.constant dense<0.000000e+00> : vector<8xf32>
    %133 = vector.multi_reduction <add>, %132, %cst_97 [1] : vector<8x8xf32> to vector<8xf32>
    %134 = vector.shape_cast %133 : vector<8xf32> to vector<8x1xf32>
    %135 = tpu.reciprocal %134 {approx = true} : vector<8x1xf32> -> vector<8x1xf32>
    %136 = vector.broadcast %135 : vector<8x1xf32> to vector<8x8xf32>
    %137 = arith.mulf %132, %136 : vector<8x8xf32>
    %cst_98 = arith.constant dense<0.000000e+00> : vector<8x16xf32>
    %138 = tpu.matmul %137, %126, %cst_98 {dimension_numbers = #tpu.dot_dimension_numbers<[1], [0], [0], [1], [0, 0, 1, 1], [], []>} : vector<8x8xf32>, vector<8x16xf32>, vector<8x16xf32> -> vector<8x16xf32>
    %139 = arith.truncf %109 : vector<128x8xf32> to vector<128x8xbf16>
    %140 = arith.truncf %138 : vector<8x16xf32> to vector<8x16xbf16>
    %cst_99 = arith.constant dense<0.000000e+00> : vector<128x16xf32>
    %141 = tpu.matmul %139, %140, %cst_99 {dimension_numbers = #tpu.dot_dimension_numbers<[1], [0], [0], [1], [0, 0, 1, 1], [], []>} : vector<128x8xbf16>, vector<8x16xbf16>, vector<128x16xf32> -> vector<128x16xf32>
    %c0_100 = arith.constant 0 : index
    %c0_101 = arith.constant 0 : index
    %142 = vector.load %arg13[%c0_100, %c0_101] : memref<128x64xf32, #tpu.memory_space<vmem>>, vector<128x16xf32>
    tpu.vector_store %arg13[%c0_100, %c0_101], %141 {strides = array<i32>} : memref<128x64xf32, #tpu.memory_space<vmem>>, vector<128x16xf32>,
    %c0_102 = arith.constant 0 : index
    %c16_103 = arith.constant 16 : index
    %143 = vector.load %arg12[%c0_102, %c16_103] : memref<128x128xf32, #tpu.memory_space<vmem>>, vector<128x16xf32>
    %c0_104 = arith.constant 0 : index
    %c80 = arith.constant 80 : index
    %144 = vector.load %arg12[%c0_104, %c80] : memref<128x128xf32, #tpu.memory_space<vmem>>, vector<128x16xf32>
    %145 = arith.truncf %144 : vector<128x16xf32> to vector<128x16xbf16>
    %c1_105 = arith.constant 1 : index
    %c0_106 = arith.constant 0 : index
    %c0_107 = arith.constant 0 : index
    %146 = vector.load %arg5[%c1_105, %c0_106, %c0_107] : memref<4x16x8xbf16, #tpu.memory_space<vmem>>, vector<1x16x8xbf16>
    %147 = vector.shape_cast %146 : vector<1x16x8xbf16> to vector<16x8xbf16>
    %cst_108 = arith.constant dense<0.000000e+00> : vector<128x8xf32>
    %148 = tpu.matmul %145, %147, %cst_108 {dimension_numbers = #tpu.dot_dimension_numbers<[1], [0], [0], [1], [0, 0, 1, 1], [], []>} : vector<128x16xbf16>, vector<16x8xbf16>, vector<128x8xf32> -> vector<128x8xf32>
    %c1_109 = arith.constant 1 : index
    %c0_110 = arith.constant 0 : index
    %c0_111 = arith.constant 0 : index
    %149 = vector.load %arg6[%c1_109, %c0_110, %c0_111] : memref<4x1x8xf32, #tpu.memory_space<vmem>>, vector<1x1x8xf32>
    %150 = vector.shape_cast %149 : vector<1x1x8xf32> to vector<1x8xf32>
    %151 = vector.broadcast %150 : vector<1x8xf32> to vector<128x8xf32>
    %152 = arith.addf %148, %151 : vector<128x8xf32>
    %cst_112 = arith.constant dense<0xFF800000> : vector<128xf32>
    %153 = vector.multi_reduction <maximumf>, %152, %cst_112 [1] : vector<128x8xf32> to vector<128xf32>
    %154 = vector.shape_cast %153 : vector<128xf32> to vector<128x1xf32>
    %155 = vector.broadcast %154 : vector<128x1xf32> to vector<128x8xf32>
    %156 = arith.subf %152, %155 : vector<128x8xf32>
    %157 = math.exp %156 : vector<128x8xf32>
    %cst_113 = arith.constant dense<0.000000e+00> : vector<128xf32>
    %158 = vector.multi_reduction <add>, %157, %cst_113 [1] : vector<128x8xf32> to vector<128xf32>
    %159 = vector.shape_cast %158 : vector<128xf32> to vector<128x1xf32>
    %160 = tpu.reciprocal %159 {approx = true} : vector<128x1xf32> -> vector<128x1xf32>
    %161 = vector.broadcast %160 : vector<128x1xf32> to vector<128x8xf32>
    %162 = arith.mulf %157, %161 : vector<128x8xf32>
    %cst_114 = arith.constant dense<0.000000e+00> : vector<8xf32>
    %163 = vector.multi_reduction <add>, %162, %cst_114 [0] : vector<128x8xf32> to vector<8xf32>
    %164 = vector.shape_cast %163 : vector<8xf32> to vector<1x8xf32>
    %cst_115 = arith.constant 9.99999974E-6 : f32
    %165 = vector.broadcast %cst_115 : f32 to vector<1x8xf32>
    %166 = arith.addf %164, %165 : vector<1x8xf32>
    %167 = tpu.reciprocal %166 {approx = true} : vector<1x8xf32> -> vector<1x8xf32>
    %168 = vector.broadcast %167 : vector<1x8xf32> to vector<128x8xf32>
    %169 = arith.mulf %162, %168 : vector<128x8xf32>
    %170 = arith.truncf %169 : vector<128x8xf32> to vector<128x8xbf16>
    %171 = arith.truncf %143 : vector<128x16xf32> to vector<128x16xbf16>
    %cst_116 = arith.constant dense<0.000000e+00> : vector<8x16xf32>
    %172 = tpu.matmul %170, %171, %cst_116 {dimension_numbers = #tpu.dot_dimension_numbers<[0], [0], [1], [1], [0, 1, 1, 1], [], []>} : vector<128x8xbf16>, vector<128x16xbf16>, vector<8x16xf32> -> vector<8x16xf32>
    %173 = arith.truncf %172 : vector<8x16xf32> to vector<8x16xbf16>
    %c0_117 = arith.constant 0 : index
    %c0_118 = arith.constant 0 : index
    %174 = vector.load %arg7[%c0_117, %c0_118] : memref<16x48xbf16, #tpu.memory_space<vmem>>, vector<16x16xbf16>
    %cst_119 = arith.constant dense<0.000000e+00> : vector<8x16xf32>
    %175 = tpu.matmul %173, %174, %cst_119 {dimension_numbers = #tpu.dot_dimension_numbers<[1], [0], [0], [1], [0, 0, 1, 1], [], []>} : vector<8x16xbf16>, vector<16x16xbf16>, vector<8x16xf32> -> vector<8x16xf32>
    %c0_120 = arith.constant 0 : index
    %c16_121 = arith.constant 16 : index
    %176 = vector.load %arg7[%c0_120, %c16_121] : memref<16x48xbf16, #tpu.memory_space<vmem>>, vector<16x16xbf16>
    %cst_122 = arith.constant dense<0.000000e+00> : vector<8x16xf32>
    %177 = tpu.matmul %173, %176, %cst_122 {dimension_numbers = #tpu.dot_dimension_numbers<[1], [0], [0], [1], [0, 0, 1, 1], [], []>} : vector<8x16xbf16>, vector<16x16xbf16>, vector<8x16xf32> -> vector<8x16xf32>
    %c0_123 = arith.constant 0 : index
    %c32_124 = arith.constant 32 : index
    %178 = vector.load %arg7[%c0_123, %c32_124] : memref<16x48xbf16, #tpu.memory_space<vmem>>, vector<16x16xbf16>
    %cst_125 = arith.constant dense<0.000000e+00> : vector<8x16xf32>
    %179 = tpu.matmul %173, %178, %cst_125 {dimension_numbers = #tpu.dot_dimension_numbers<[1], [0], [0], [1], [0, 0, 1, 1], [], []>} : vector<8x16xbf16>, vector<16x16xbf16>, vector<8x16xf32> -> vector<8x16xf32>
    %cst_126 = arith.constant dense<0.000000e+00> : vector<8x8xf32>
    %180 = tpu.matmul %175, %177, %cst_126 {dimension_numbers = #tpu.dot_dimension_numbers<[1], [1], [0], [0], [0, 0, 1, 0], [], []>} : vector<8x16xf32>, vector<8x16xf32>, vector<8x8xf32> -> vector<8x8xf32>
    %cst_127 = arith.constant dense<0xFF800000> : vector<8xf32>
    %181 = vector.multi_reduction <maximumf>, %180, %cst_127 [1] : vector<8x8xf32> to vector<8xf32>
    %182 = vector.shape_cast %181 : vector<8xf32> to vector<8x1xf32>
    %183 = vector.broadcast %182 : vector<8x1xf32> to vector<8x8xf32>
    %184 = arith.subf %180, %183 : vector<8x8xf32>
    %185 = math.exp %184 : vector<8x8xf32>
    %cst_128 = arith.constant dense<0.000000e+00> : vector<8xf32>
    %186 = vector.multi_reduction <add>, %185, %cst_128 [1] : vector<8x8xf32> to vector<8xf32>
    %187 = vector.shape_cast %186 : vector<8xf32> to vector<8x1xf32>
    %188 = tpu.reciprocal %187 {approx = true} : vector<8x1xf32> -> vector<8x1xf32>
    %189 = vector.broadcast %188 : vector<8x1xf32> to vector<8x8xf32>
    %190 = arith.mulf %185, %189 : vector<8x8xf32>
    %cst_129 = arith.constant dense<0.000000e+00> : vector<8x16xf32>
    %191 = tpu.matmul %190, %179, %cst_129 {dimension_numbers = #tpu.dot_dimension_numbers<[1], [0], [0], [1], [0, 0, 1, 1], [], []>} : vector<8x8xf32>, vector<8x16xf32>, vector<8x16xf32> -> vector<8x16xf32>
    %192 = arith.truncf %162 : vector<128x8xf32> to vector<128x8xbf16>
    %193 = arith.truncf %191 : vector<8x16xf32> to vector<8x16xbf16>
    %cst_130 = arith.constant dense<0.000000e+00> : vector<128x16xf32>
    %194 = tpu.matmul %192, %193, %cst_130 {dimension_numbers = #tpu.dot_dimension_numbers<[1], [0], [0], [1], [0, 0, 1, 1], [], []>} : vector<128x8xbf16>, vector<8x16xbf16>, vector<128x16xf32> -> vector<128x16xf32>
    %c0_131 = arith.constant 0 : index
    %c16_132 = arith.constant 16 : index
    %195 = vector.load %arg13[%c0_131, %c16_132] : memref<128x64xf32, #tpu.memory_space<vmem>>, vector<128x16xf32>
    tpu.vector_store %arg13[%c0_131, %c16_132], %194 {strides = array<i32>} : memref<128x64xf32, #tpu.memory_space<vmem>>, vector<128x16xf32>,
    %c0_133 = arith.constant 0 : index
    %c32_134 = arith.constant 32 : index
    %196 = vector.load %arg12[%c0_133, %c32_134] : memref<128x128xf32, #tpu.memory_space<vmem>>, vector<128x16xf32>
    %c0_135 = arith.constant 0 : index
    %c96 = arith.constant 96 : index
    %197 = vector.load %arg12[%c0_135, %c96] : memref<128x128xf32, #tpu.memory_space<vmem>>, vector<128x16xf32>
    %198 = arith.truncf %197 : vector<128x16xf32> to vector<128x16xbf16>
    %c2_136 = arith.constant 2 : index
    %c0_137 = arith.constant 0 : index
    %c0_138 = arith.constant 0 : index
    %199 = vector.load %arg5[%c2_136, %c0_137, %c0_138] : memref<4x16x8xbf16, #tpu.memory_space<vmem>>, vector<1x16x8xbf16>
    %200 = vector.shape_cast %199 : vector<1x16x8xbf16> to vector<16x8xbf16>
    %cst_139 = arith.constant dense<0.000000e+00> : vector<128x8xf32>
    %201 = tpu.matmul %198, %200, %cst_139 {dimension_numbers = #tpu.dot_dimension_numbers<[1], [0], [0], [1], [0, 0, 1, 1], [], []>} : vector<128x16xbf16>, vector<16x8xbf16>, vector<128x8xf32> -> vector<128x8xf32>
    %c2_140 = arith.constant 2 : index
    %c0_141 = arith.constant 0 : index
    %c0_142 = arith.constant 0 : index
    %202 = vector.load %arg6[%c2_140, %c0_141, %c0_142] : memref<4x1x8xf32, #tpu.memory_space<vmem>>, vector<1x1x8xf32>
    %203 = vector.shape_cast %202 : vector<1x1x8xf32> to vector<1x8xf32>
    %204 = vector.broadcast %203 : vector<1x8xf32> to vector<128x8xf32>
    %205 = arith.addf %201, %204 : vector<128x8xf32>
    %cst_143 = arith.constant dense<0xFF800000> : vector<128xf32>
    %206 = vector.multi_reduction <maximumf>, %205, %cst_143 [1] : vector<128x8xf32> to vector<128xf32>
    %207 = vector.shape_cast %206 : vector<128xf32> to vector<128x1xf32>
    %208 = vector.broadcast %207 : vector<128x1xf32> to vector<128x8xf32>
    %209 = arith.subf %205, %208 : vector<128x8xf32>
    %210 = math.exp %209 : vector<128x8xf32>
    %cst_144 = arith.constant dense<0.000000e+00> : vector<128xf32>
    %211 = vector.multi_reduction <add>, %210, %cst_144 [1] : vector<128x8xf32> to vector<128xf32>
    %212 = vector.shape_cast %211 : vector<128xf32> to vector<128x1xf32>
    %213 = tpu.reciprocal %212 {approx = true} : vector<128x1xf32> -> vector<128x1xf32>
    %214 = vector.broadcast %213 : vector<128x1xf32> to vector<128x8xf32>
    %215 = arith.mulf %210, %214 : vector<128x8xf32>
    %cst_145 = arith.constant dense<0.000000e+00> : vector<8xf32>
    %216 = vector.multi_reduction <add>, %215, %cst_145 [0] : vector<128x8xf32> to vector<8xf32>
    %217 = vector.shape_cast %216 : vector<8xf32> to vector<1x8xf32>
    %cst_146 = arith.constant 9.99999974E-6 : f32
    %218 = vector.broadcast %cst_146 : f32 to vector<1x8xf32>
    %219 = arith.addf %217, %218 : vector<1x8xf32>
    %220 = tpu.reciprocal %219 {approx = true} : vector<1x8xf32> -> vector<1x8xf32>
    %221 = vector.broadcast %220 : vector<1x8xf32> to vector<128x8xf32>
    %222 = arith.mulf %215, %221 : vector<128x8xf32>
    %223 = arith.truncf %222 : vector<128x8xf32> to vector<128x8xbf16>
    %224 = arith.truncf %196 : vector<128x16xf32> to vector<128x16xbf16>
    %cst_147 = arith.constant dense<0.000000e+00> : vector<8x16xf32>
    %225 = tpu.matmul %223, %224, %cst_147 {dimension_numbers = #tpu.dot_dimension_numbers<[0], [0], [1], [1], [0, 1, 1, 1], [], []>} : vector<128x8xbf16>, vector<128x16xbf16>, vector<8x16xf32> -> vector<8x16xf32>
    %226 = arith.truncf %225 : vector<8x16xf32> to vector<8x16xbf16>
    %c0_148 = arith.constant 0 : index
    %c0_149 = arith.constant 0 : index
    %227 = vector.load %arg7[%c0_148, %c0_149] : memref<16x48xbf16, #tpu.memory_space<vmem>>, vector<16x16xbf16>
    %cst_150 = arith.constant dense<0.000000e+00> : vector<8x16xf32>
    %228 = tpu.matmul %226, %227, %cst_150 {dimension_numbers = #tpu.dot_dimension_numbers<[1], [0], [0], [1], [0, 0, 1, 1], [], []>} : vector<8x16xbf16>, vector<16x16xbf16>, vector<8x16xf32> -> vector<8x16xf32>
    %c0_151 = arith.constant 0 : index
    %c16_152 = arith.constant 16 : index
    %229 = vector.load %arg7[%c0_151, %c16_152] : memref<16x48xbf16, #tpu.memory_space<vmem>>, vector<16x16xbf16>
    %cst_153 = arith.constant dense<0.000000e+00> : vector<8x16xf32>
    %230 = tpu.matmul %226, %229, %cst_153 {dimension_numbers = #tpu.dot_dimension_numbers<[1], [0], [0], [1], [0, 0, 1, 1], [], []>} : vector<8x16xbf16>, vector<16x16xbf16>, vector<8x16xf32> -> vector<8x16xf32>
    %c0_154 = arith.constant 0 : index
    %c32_155 = arith.constant 32 : index
    %231 = vector.load %arg7[%c0_154, %c32_155] : memref<16x48xbf16, #tpu.memory_space<vmem>>, vector<16x16xbf16>
    %cst_156 = arith.constant dense<0.000000e+00> : vector<8x16xf32>
    %232 = tpu.matmul %226, %231, %cst_156 {dimension_numbers = #tpu.dot_dimension_numbers<[1], [0], [0], [1], [0, 0, 1, 1], [], []>} : vector<8x16xbf16>, vector<16x16xbf16>, vector<8x16xf32> -> vector<8x16xf32>
    %cst_157 = arith.constant dense<0.000000e+00> : vector<8x8xf32>
    %233 = tpu.matmul %228, %230, %cst_157 {dimension_numbers = #tpu.dot_dimension_numbers<[1], [1], [0], [0], [0, 0, 1, 0], [], []>} : vector<8x16xf32>, vector<8x16xf32>, vector<8x8xf32> -> vector<8x8xf32>
    %cst_158 = arith.constant dense<0xFF800000> : vector<8xf32>
    %234 = vector.multi_reduction <maximumf>, %233, %cst_158 [1] : vector<8x8xf32> to vector<8xf32>
    %235 = vector.shape_cast %234 : vector<8xf32> to vector<8x1xf32>
    %236 = vector.broadcast %235 : vector<8x1xf32> to vector<8x8xf32>
    %237 = arith.subf %233, %236 : vector<8x8xf32>
    %238 = math.exp %237 : vector<8x8xf32>
    %cst_159 = arith.constant dense<0.000000e+00> : vector<8xf32>
    %239 = vector.multi_reduction <add>, %238, %cst_159 [1] : vector<8x8xf32> to vector<8xf32>
    %240 = vector.shape_cast %239 : vector<8xf32> to vector<8x1xf32>
    %241 = tpu.reciprocal %240 {approx = true} : vector<8x1xf32> -> vector<8x1xf32>
    %242 = vector.broadcast %241 : vector<8x1xf32> to vector<8x8xf32>
    %243 = arith.mulf %238, %242 : vector<8x8xf32>
    %cst_160 = arith.constant dense<0.000000e+00> : vector<8x16xf32>
    %244 = tpu.matmul %243, %232, %cst_160 {dimension_numbers = #tpu.dot_dimension_numbers<[1], [0], [0], [1], [0, 0, 1, 1], [], []>} : vector<8x8xf32>, vector<8x16xf32>, vector<8x16xf32> -> vector<8x16xf32>
    %245 = arith.truncf %215 : vector<128x8xf32> to vector<128x8xbf16>
    %246 = arith.truncf %244 : vector<8x16xf32> to vector<8x16xbf16>
    %cst_161 = arith.constant dense<0.000000e+00> : vector<128x16xf32>
    %247 = tpu.matmul %245, %246, %cst_161 {dimension_numbers = #tpu.dot_dimension_numbers<[1], [0], [0], [1], [0, 0, 1, 1], [], []>} : vector<128x8xbf16>, vector<8x16xbf16>, vector<128x16xf32> -> vector<128x16xf32>
    %c0_162 = arith.constant 0 : index
    %c32_163 = arith.constant 32 : index
    %248 = vector.load %arg13[%c0_162, %c32_163] : memref<128x64xf32, #tpu.memory_space<vmem>>, vector<128x16xf32>
    tpu.vector_store %arg13[%c0_162, %c32_163], %247 {strides = array<i32>} : memref<128x64xf32, #tpu.memory_space<vmem>>, vector<128x16xf32>,
    %c0_164 = arith.constant 0 : index
    %c48 = arith.constant 48 : index
    %249 = vector.load %arg12[%c0_164, %c48] : memref<128x128xf32, #tpu.memory_space<vmem>>, vector<128x16xf32>
    %c0_165 = arith.constant 0 : index
    %c112 = arith.constant 112 : index
    %250 = vector.load %arg12[%c0_165, %c112] : memref<128x128xf32, #tpu.memory_space<vmem>>, vector<128x16xf32>
    %251 = arith.truncf %250 : vector<128x16xf32> to vector<128x16xbf16>
    %c3_166 = arith.constant 3 : index
    %c0_167 = arith.constant 0 : index
    %c0_168 = arith.constant 0 : index
    %252 = vector.load %arg5[%c3_166, %c0_167, %c0_168] : memref<4x16x8xbf16, #tpu.memory_space<vmem>>, vector<1x16x8xbf16>
    %253 = vector.shape_cast %252 : vector<1x16x8xbf16> to vector<16x8xbf16>
    %cst_169 = arith.constant dense<0.000000e+00> : vector<128x8xf32>
    %254 = tpu.matmul %251, %253, %cst_169 {dimension_numbers = #tpu.dot_dimension_numbers<[1], [0], [0], [1], [0, 0, 1, 1], [], []>} : vector<128x16xbf16>, vector<16x8xbf16>, vector<128x8xf32> -> vector<128x8xf32>
    %c3_170 = arith.constant 3 : index
    %c0_171 = arith.constant 0 : index
    %c0_172 = arith.constant 0 : index
    %255 = vector.load %arg6[%c3_170, %c0_171, %c0_172] : memref<4x1x8xf32, #tpu.memory_space<vmem>>, vector<1x1x8xf32>
    %256 = vector.shape_cast %255 : vector<1x1x8xf32> to vector<1x8xf32>
    %257 = vector.broadcast %256 : vector<1x8xf32> to vector<128x8xf32>
    %258 = arith.addf %254, %257 : vector<128x8xf32>
    %cst_173 = arith.constant dense<0xFF800000> : vector<128xf32>
    %259 = vector.multi_reduction <maximumf>, %258, %cst_173 [1] : vector<128x8xf32> to vector<128xf32>
    %260 = vector.shape_cast %259 : vector<128xf32> to vector<128x1xf32>
    %261 = vector.broadcast %260 : vector<128x1xf32> to vector<128x8xf32>
    %262 = arith.subf %258, %261 : vector<128x8xf32>
    %263 = math.exp %262 : vector<128x8xf32>
    %cst_174 = arith.constant dense<0.000000e+00> : vector<128xf32>
    %264 = vector.multi_reduction <add>, %263, %cst_174 [1] : vector<128x8xf32> to vector<128xf32>
    %265 = vector.shape_cast %264 : vector<128xf32> to vector<128x1xf32>
    %266 = tpu.reciprocal %265 {approx = true} : vector<128x1xf32> -> vector<128x1xf32>
    %267 = vector.broadcast %266 : vector<128x1xf32> to vector<128x8xf32>
    %268 = arith.mulf %263, %267 : vector<128x8xf32>
    %cst_175 = arith.constant dense<0.000000e+00> : vector<8xf32>
    %269 = vector.multi_reduction <add>, %268, %cst_175 [0] : vector<128x8xf32> to vector<8xf32>
    %270 = vector.shape_cast %269 : vector<8xf32> to vector<1x8xf32>
    %cst_176 = arith.constant 9.99999974E-6 : f32
    %271 = vector.broadcast %cst_176 : f32 to vector<1x8xf32>
    %272 = arith.addf %270, %271 : vector<1x8xf32>
    %273 = tpu.reciprocal %272 {approx = true} : vector<1x8xf32> -> vector<1x8xf32>
    %274 = vector.broadcast %273 : vector<1x8xf32> to vector<128x8xf32>
    %275 = arith.mulf %268, %274 : vector<128x8xf32>
    %276 = arith.truncf %275 : vector<128x8xf32> to vector<128x8xbf16>
    %277 = arith.truncf %249 : vector<128x16xf32> to vector<128x16xbf16>
    %cst_177 = arith.constant dense<0.000000e+00> : vector<8x16xf32>
    %278 = tpu.matmul %276, %277, %cst_177 {dimension_numbers = #tpu.dot_dimension_numbers<[0], [0], [1], [1], [0, 1, 1, 1], [], []>} : vector<128x8xbf16>, vector<128x16xbf16>, vector<8x16xf32> -> vector<8x16xf32>
    %279 = arith.truncf %278 : vector<8x16xf32> to vector<8x16xbf16>
    %c0_178 = arith.constant 0 : index
    %c0_179 = arith.constant 0 : index
    %280 = vector.load %arg7[%c0_178, %c0_179] : memref<16x48xbf16, #tpu.memory_space<vmem>>, vector<16x16xbf16>
    %cst_180 = arith.constant dense<0.000000e+00> : vector<8x16xf32>
    %281 = tpu.matmul %279, %280, %cst_180 {dimension_numbers = #tpu.dot_dimension_numbers<[1], [0], [0], [1], [0, 0, 1, 1], [], []>} : vector<8x16xbf16>, vector<16x16xbf16>, vector<8x16xf32> -> vector<8x16xf32>
    %c0_181 = arith.constant 0 : index
    %c16_182 = arith.constant 16 : index
    %282 = vector.load %arg7[%c0_181, %c16_182] : memref<16x48xbf16, #tpu.memory_space<vmem>>, vector<16x16xbf16>
    %cst_183 = arith.constant dense<0.000000e+00> : vector<8x16xf32>
    %283 = tpu.matmul %279, %282, %cst_183 {dimension_numbers = #tpu.dot_dimension_numbers<[1], [0], [0], [1], [0, 0, 1, 1], [], []>} : vector<8x16xbf16>, vector<16x16xbf16>, vector<8x16xf32> -> vector<8x16xf32>
    %c0_184 = arith.constant 0 : index
    %c32_185 = arith.constant 32 : index
    %284 = vector.load %arg7[%c0_184, %c32_185] : memref<16x48xbf16, #tpu.memory_space<vmem>>, vector<16x16xbf16>
    %cst_186 = arith.constant dense<0.000000e+00> : vector<8x16xf32>
    %285 = tpu.matmul %279, %284, %cst_186 {dimension_numbers = #tpu.dot_dimension_numbers<[1], [0], [0], [1], [0, 0, 1, 1], [], []>} : vector<8x16xbf16>, vector<16x16xbf16>, vector<8x16xf32> -> vector<8x16xf32>
    %cst_187 = arith.constant dense<0.000000e+00> : vector<8x8xf32>
    %286 = tpu.matmul %281, %283, %cst_187 {dimension_numbers = #tpu.dot_dimension_numbers<[1], [1], [0], [0], [0, 0, 1, 0], [], []>} : vector<8x16xf32>, vector<8x16xf32>, vector<8x8xf32> -> vector<8x8xf32>
    %cst_188 = arith.constant dense<0xFF800000> : vector<8xf32>
    %287 = vector.multi_reduction <maximumf>, %286, %cst_188 [1] : vector<8x8xf32> to vector<8xf32>
    %288 = vector.shape_cast %287 : vector<8xf32> to vector<8x1xf32>
    %289 = vector.broadcast %288 : vector<8x1xf32> to vector<8x8xf32>
    %290 = arith.subf %286, %289 : vector<8x8xf32>
    %291 = math.exp %290 : vector<8x8xf32>
    %cst_189 = arith.constant dense<0.000000e+00> : vector<8xf32>
    %292 = vector.multi_reduction <add>, %291, %cst_189 [1] : vector<8x8xf32> to vector<8xf32>
    %293 = vector.shape_cast %292 : vector<8xf32> to vector<8x1xf32>
    %294 = tpu.reciprocal %293 {approx = true} : vector<8x1xf32> -> vector<8x1xf32>
    %295 = vector.broadcast %294 : vector<8x1xf32> to vector<8x8xf32>
    %296 = arith.mulf %291, %295 : vector<8x8xf32>
    %cst_190 = arith.constant dense<0.000000e+00> : vector<8x16xf32>
    %297 = tpu.matmul %296, %285, %cst_190 {dimension_numbers = #tpu.dot_dimension_numbers<[1], [0], [0], [1], [0, 0, 1, 1], [], []>} : vector<8x8xf32>, vector<8x16xf32>, vector<8x16xf32> -> vector<8x16xf32>
    %298 = arith.truncf %268 : vector<128x8xf32> to vector<128x8xbf16>
    %299 = arith.truncf %297 : vector<8x16xf32> to vector<8x16xbf16>
    %cst_191 = arith.constant dense<0.000000e+00> : vector<128x16xf32>
    %300 = tpu.matmul %298, %299, %cst_191 {dimension_numbers = #tpu.dot_dimension_numbers<[1], [0], [0], [1], [0, 0, 1, 1], [], []>} : vector<128x8xbf16>, vector<8x16xbf16>, vector<128x16xf32> -> vector<128x16xf32>
    %c0_192 = arith.constant 0 : index
    %c48_193 = arith.constant 48 : index
    %301 = vector.load %arg13[%c0_192, %c48_193] : memref<128x64xf32, #tpu.memory_space<vmem>>, vector<128x16xf32>
    tpu.vector_store %arg13[%c0_192, %c48_193], %300 {strides = array<i32>} : memref<128x64xf32, #tpu.memory_space<vmem>>, vector<128x16xf32>,
    %c0_194 = arith.constant 0 : index
    %c0_195 = arith.constant 0 : index
    %302 = vector.load %arg13[%c0_194, %c0_195] : memref<128x64xf32, #tpu.memory_space<vmem>>, vector<128x64xf32>
    %303 = arith.truncf %302 : vector<128x64xf32> to vector<128x64xbf16>
    %c0_196 = arith.constant 0 : index
    %c0_197 = arith.constant 0 : index
    %304 = vector.load %arg8[%c0_196, %c0_197] : memref<64x32xbf16, #tpu.memory_space<vmem>>, vector<64x32xbf16>
    %cst_198 = arith.constant dense<0.000000e+00> : vector<128x32xf32>
    %305 = tpu.matmul %303, %304, %cst_198 {dimension_numbers = #tpu.dot_dimension_numbers<[1], [0], [0], [1], [0, 0, 1, 1], [], []>} : vector<128x64xbf16>, vector<64x32xbf16>, vector<128x32xf32> -> vector<128x32xf32>
    %c0_199 = arith.constant 0 : index
    %c0_200 = arith.constant 0 : index
    %306 = vector.load %arg9[%c0_199, %c0_200] : memref<1x32xf32, #tpu.memory_space<vmem>>, vector<1x32xf32>
    %307 = vector.broadcast %306 : vector<1x32xf32> to vector<128x32xf32>
    %308 = arith.addf %305, %307 : vector<128x32xf32>
    %c0_201 = arith.constant 0 : index
    %c0_202 = arith.constant 0 : index
    %c0_203 = arith.constant 0 : index
    %309 = vector.load %arg10[%c0_201, %c0_202, %c0_203] : memref<1x128x32xf32, #tpu.memory_space<vmem>>, vector<1x128x32xf32>
    %310 = vector.shape_cast %309 : vector<1x128x32xf32> to vector<128x32xf32>
    %311 = vector.shape_cast %308 : vector<128x32xf32> to vector<1x128x32xf32>
    tpu.vector_store %arg10[%c0_201, %c0_202, %c0_203], %311 {strides = array<i32>} : memref<1x128x32xf32, #tpu.memory_space<vmem>>, vector<1x128x32xf32>,
    return
  }
  func.func @transform_0(%arg0: i32) -> (i32, i32, i32) {
    %c0_i32 = arith.constant 0 : i32
    %c0_i32_0 = arith.constant 0 : i32
    %c0_i32_1 = arith.constant 0 : i32
    return %arg0, %c0_i32, %c0_i32_0 : i32, i32, i32
  }
  func.func @transform_1(%arg0: i32) -> (i32, i32, i32) {
    %c0_i32 = arith.constant 0 : i32
    %c0_i32_0 = arith.constant 0 : i32
    %c0_i32_1 = arith.constant 0 : i32
    %c0_i32_2 = arith.constant 0 : i32
    return %c0_i32, %c0_i32_0, %c0_i32_1 : i32, i32, i32
  }
  func.func @transform_2(%arg0: i32) -> (i32, i32, i32) {
    %c0_i32 = arith.constant 0 : i32
    %c0_i32_0 = arith.constant 0 : i32
    %c0_i32_1 = arith.constant 0 : i32
    %c0_i32_2 = arith.constant 0 : i32
    return %c0_i32, %c0_i32_0, %c0_i32_1 : i32, i32, i32
  }
  func.func @transform_3(%arg0: i32) -> (i32, i32) {
    %c0_i32 = arith.constant 0 : i32
    %c0_i32_0 = arith.constant 0 : i32
    %c0_i32_1 = arith.constant 0 : i32
    return %c0_i32, %c0_i32_0 : i32, i32
  }
  func.func @transform_4(%arg0: i32) -> (i32, i32, i32) {
    %c0_i32 = arith.constant 0 : i32
    %c0_i32_0 = arith.constant 0 : i32
    %c0_i32_1 = arith.constant 0 : i32
    %c0_i32_2 = arith.constant 0 : i32
    return %c0_i32, %c0_i32_0, %c0_i32_1 : i32, i32, i32
  }
  func.func @transform_5(%arg0: i32) -> (i32, i32, i32) {
    %c0_i32 = arith.constant 0 : i32
    %c0_i32_0 = arith.constant 0 : i32
    %c0_i32_1 = arith.constant 0 : i32
    %c0_i32_2 = arith.constant 0 : i32
    return %c0_i32, %c0_i32_0, %c0_i32_1 : i32, i32, i32
  }
  func.func @transform_6(%arg0: i32) -> (i32, i32) {
    %c0_i32 = arith.constant 0 : i32
    %c0_i32_0 = arith.constant 0 : i32
    %c0_i32_1 = arith.constant 0 : i32
    return %c0_i32, %c0_i32_0 : i32, i32
  }
  func.func @transform_7(%arg0: i32) -> (i32, i32) {
    %c0_i32 = arith.constant 0 : i32
    %c0_i32_0 = arith.constant 0 : i32
    %c0_i32_1 = arith.constant 0 : i32
    return %c0_i32, %c0_i32_0 : i32, i32
  }
  func.func @transform_8(%arg0: i32) -> (i32, i32) {
    %c0_i32 = arith.constant 0 : i32
    %c0_i32_0 = arith.constant 0 : i32
    %c0_i32_1 = arith.constant 0 : i32
    return %c0_i32, %c0_i32_0 : i32, i32
  }
  func.func @transform_9(%arg0: i32) -> (i32, i32, i32) {
    %c0_i32 = arith.constant 0 : i32
    %c0_i32_0 = arith.constant 0 : i32
    %c0_i32_1 = arith.constant 0 : i32
    return %arg0, %c0_i32, %c0_i32_0 : i32, i32, i32
  }
}

</mosaic_0001>

<llo_original>
// kernel: tpu_custom_call.1
$region0: #{tpu_custom_call.1}
  #allocation0 [shape = 'u32[]', space=smem, size = 0x4, offset = 0x4, fixed_abs, tag = 'smem constant byte address 0x4 - core index']
  #allocation1 [shape = 'u32[144,128]{1,0:T(1,128)}', space=vmem, size = 0x12000, scoped, tag = 'internal scratch']
  #allocation2 [shape = 'f32[162,32]{1,0:T(8,128)}', space=vmem, size = 0x15000, scoped, tag = 'scratch operand']
  #allocation3 [shape = 'f32[128,128]{1,0:T(8,128)}', space=vmem, size = 0x10000, scoped, tag = 'scratch operand']
  #allocation4 [shape = 'f32[128,64]{1,0:T(8,128)}', space=vmem, size = 0x10000, scoped, tag = 'scratch operand']
  %s0 = inlined_call_operand.vmem [shape: f32[2,128,32], index: 0, kind: input, shape index: {}]
  %s1 = inlined_call_operand.vmem [shape: f32[3,128,1], index: 1, kind: input, shape index: {}]
  %s2 = inlined_call_operand.vmem [shape: bf16[9,32,128], index: 2, kind: input, shape index: {}]
  %s3 = inlined_call_operand.vmem [shape: f32[1,128], index: 3, kind: input, shape index: {}]
  %s4 = inlined_call_operand.vmem [shape: bf16[4,16,8], index: 4, kind: input, shape index: {}]
  %s5 = inlined_call_operand.vmem [shape: f32[4,1,8], index: 5, kind: input, shape index: {}]
  %s6 = inlined_call_operand.vmem [shape: bf16[16,48], index: 6, kind: input, shape index: {}]
  %s7 = inlined_call_operand.vmem [shape: bf16[64,32], index: 7, kind: input, shape index: {}]
  %s8 = inlined_call_operand.vmem [shape: f32[1,32], index: 8, kind: input, shape index: {}]
  %s9 = inlined_call_operand.vmem [shape: f32[2,128,32], index: 9, kind: output, shape index: {}]
  %s10 = sld [smem:[#allocation0]]
  $region69: #{tpu_custom_call.1} parent=0
    _
  %s12 = ssub.s32 1, %s10
  %s13 = scalar_select 0, %s12, %s10
  loop: start=0, step=1, limit=4
  $region2: #{tpu_custom_call.1} parent=0 // loop_pre_header
    _
  $region3: #{tpu_custom_call.1} parent=0 // loop_header
    %s15 = sphi 0, %s19
    %p16 = scmp.ge.s32.totalorder %s15, 4
    %s25 = sphi 0, %s27
    %s28 = sphi 0, %s25
    %s29 = sphi 0, %s28
    %s45 = sphi 0, %s29
    %s49 = sphi 0, %s49
    %s51 = sphi 0, %s49
    %s52 = sphi 0, %s51
    %s66 = sphi 0, %s52
    %s70 = sphi 0, %s70
    %s72 = sphi 0, %s70
    %s73 = sphi 0, %s72
    %s87 = sphi 0, %s73
    %s91 = sphi 0, %s91
    %s93 = sphi 0, %s91
    %s94 = sphi 0, %s93
    %s108 = sphi 0, %s94
    %s112 = sphi 0, %s112
    %s114 = sphi 0, %s112
    %s115 = sphi 0, %s114
    %s129 = sphi 0, %s115
    %s133 = sphi 0, %s133
    %s135 = sphi 0, %s133
    %s136 = sphi 0, %s135
    %s150 = sphi 0, %s136
    %s154 = sphi 0, %s154
    %s156 = sphi 0, %s154
    %s157 = sphi 0, %s156
    %s171 = sphi 0, %s157
    %s175 = sphi 0, %s175
    %s177 = sphi 0, %s175
    %s178 = sphi 0, %s177
    %s192 = sphi 0, %s178
    %s196 = sphi 0, %s196
    %s198 = sphi 0, %s196
    %s199 = sphi 0, %s198
    %s213 = sphi 0, %s199
    %s219 = sphi 0, %s221
    %s222 = sphi 0, %s219
    %s223 = sphi 0, %s222
    %s239 = sphi 0, %s223
  $region4: #{tpu_custom_call.1} parent=0 // loop_header_branch
    %18 = sbr.rel (%p16) target = $region8
  $region5: #{tpu_custom_call.1} parent=0 // loop_body
    %s20 = ssub.s32 %s15, 1
    %s21 = ssub.s32 %s15, 2
    %s22 = sadd.s32 %s15, 1
    %s23 = ssub.s32 %s15, %s22
    %p24 = scmp.eq.s32.totalorder %s23, 0
    %s26 = sadd.s32 %s25, 1
    %s27 = scalar_select %p24, %s25, %s26
    %p30 = pneg %p24
    %p31 = scmp.eq.s32.totalorder %s15, 1
    %p32 = por %p30, %p31
    %p33 = scmp.ne.s32.totalorder %s25, %s28
    %p34 = scmp.eq.s32.totalorder %s15, 0
    %p35 = por %p33, %p34
    %p36 = scmp.ne.s32.totalorder %s25, %s28
    %p37 = scmp.eq.s32.totalorder %s20, 1
    %p38 = por %p36, %p37
    %p39 = scmp.ne.s32.totalorder %s28, %s29
    %p40 = scmp.eq.s32.totalorder %s20, 0
    %p41 = por %p39, %p40
    %p42 = scmp.ne.s32.totalorder %s28, %s29
    %p43 = scmp.eq.s32.totalorder %s21, 1
    %p44 = por %p42, %p43
    %p46 = scmp.ne.s32.totalorder %s29, %s45
    %p47 = scmp.eq.s32.totalorder %s21, 0
    %p48 = por %p46, %p47
    %s50 = sadd.s32 %s49, 1
    %p53 = scmp.eq.s32.totalorder %s15, 1
    %p54 = scmp.ne.s32.totalorder %s49, %s51
    %p55 = scmp.eq.s32.totalorder %s15, 0
    %p56 = por %p54, %p55
    %p57 = scmp.ne.s32.totalorder %s49, %s51
    %p58 = scmp.eq.s32.totalorder %s20, 1
    %p59 = por %p57, %p58
    %p60 = scmp.ne.s32.totalorder %s51, %s52
    %p61 = scmp.eq.s32.totalorder %s20, 0
    %p62 = por %p60, %p61
    %p63 = scmp.ne.s32.totalorder %s51, %s52
    %p64 = scmp.eq.s32.totalorder %s21, 1
    %p65 = por %p63, %p64
    %p67 = scmp.ne.s32.totalorder %s52, %s66
    %p68 = scmp.eq.s32.totalorder %s21, 0
    %p69 = por %p67, %p68
    %s71 = sadd.s32 %s70, 1
    %p74 = scmp.eq.s32.totalorder %s15, 1
    %p75 = scmp.ne.s32.totalorder %s70, %s72
    %p76 = scmp.eq.s32.totalorder %s15, 0
    %p77 = por %p75, %p76
    %p78 = scmp.ne.s32.totalorder %s70, %s72
    %p79 = scmp.eq.s32.totalorder %s20, 1
    %p80 = por %p78, %p79
    %p81 = scmp.ne.s32.totalorder %s72, %s73
    %p82 = scmp.eq.s32.totalorder %s20, 0
    %p83 = por %p81, %p82
    %p84 = scmp.ne.s32.totalorder %s72, %s73
    %p85 = scmp.eq.s32.totalorder %s21, 1
    %p86 = por %p84, %p85
    %p88 = scmp.ne.s32.totalorder %s73, %s87
    %p89 = scmp.eq.s32.totalorder %s21, 0
    %p90 = por %p88, %p89
    %s92 = sadd.s32 %s91, 1
    %p95 = scmp.eq.s32.totalorder %s15, 1
    %p96 = scmp.ne.s32.totalorder %s91, %s93
    %p97 = scmp.eq.s32.totalorder %s15, 0
    %p98 = por %p96, %p97
    %p99 = scmp.ne.s32.totalorder %s91, %s93
    %p100 = scmp.eq.s32.totalorder %s20, 1
    %p101 = por %p99, %p100
    %p102 = scmp.ne.s32.totalorder %s93, %s94
    %p103 = scmp.eq.s32.totalorder %s20, 0
    %p104 = por %p102, %p103
    %p105 = scmp.ne.s32.totalorder %s93, %s94
    %p106 = scmp.eq.s32.totalorder %s21, 1
    %p107 = por %p105, %p106
    %p109 = scmp.ne.s32.totalorder %s94, %s108
    %p110 = scmp.eq.s32.totalorder %s21, 0
    %p111 = por %p109, %p110
    %s113 = sadd.s32 %s112, 1
    %p116 = scmp.eq.s32.totalorder %s15, 1
    %p117 = scmp.ne.s32.totalorder %s112, %s114
    %p118 = scmp.eq.s32.totalorder %s15, 0
    %p119 = por %p117, %p118
    %p120 = scmp.ne.s32.totalorder %s112, %s114
    %p121 = scmp.eq.s32.totalorder %s20, 1
    %p122 = por %p120, %p121
    %p123 = scmp.ne.s32.totalorder %s114, %s115
    %p124 = scmp.eq.s32.totalorder %s20, 0
    %p125 = por %p123, %p124
    %p126 = scmp.ne.s32.totalorder %s114, %s115
    %p127 = scmp.eq.s32.totalorder %s21, 1
    %p128 = por %p126, %p127
    %p130 = scmp.ne.s32.totalorder %s115, %s129
    %p131 = scmp.eq.s32.totalorder %s21, 0
    %p132 = por %p130, %p131
    %s134 = sadd.s32 %s133, 1
    %p137 = scmp.eq.s32.totalorder %s15, 1
    %p138 = scmp.ne.s32.totalorder %s133, %s135
    %p139 = scmp.eq.s32.totalorder %s15, 0
    %p140 = por %p138, %p139
    %p141 = scmp.ne.s32.totalorder %s133, %s135
    %p142 = scmp.eq.s32.totalorder %s20, 1
    %p143 = por %p141, %p142
    %p144 = scmp.ne.s32.totalorder %s135, %s136
    %p145 = scmp.eq.s32.totalorder %s20, 0
    %p146 = por %p144, %p145
    %p147 = scmp.ne.s32.totalorder %s135, %s136
    %p148 = scmp.eq.s32.totalorder %s21, 1
    %p149 = por %p147, %p148
    %p151 = scmp.ne.s32.totalorder %s136, %s150
    %p152 = scmp.eq.s32.totalorder %s21, 0
    %p153 = por %p151, %p152
    %s155 = sadd.s32 %s154, 1
    %p158 = scmp.eq.s32.totalorder %s15, 1
    %p159 = scmp.ne.s32.totalorder %s154, %s156
    %p160 = scmp.eq.s32.totalorder %s15, 0
    %p161 = por %p159, %p160
    %p162 = scmp.ne.s32.totalorder %s154, %s156
    %p163 = scmp.eq.s32.totalorder %s20, 1
    %p164 = por %p162, %p163
    %p165 = scmp.ne.s32.totalorder %s156, %s157
    %p166 = scmp.eq.s32.totalorder %s20, 0
    %p167 = por %p165, %p166
    %p168 = scmp.ne.s32.totalorder %s156, %s157
    %p169 = scmp.eq.s32.totalorder %s21, 1
    %p170 = por %p168, %p169
    %p172 = scmp.ne.s32.totalorder %s157, %s171
    %p173 = scmp.eq.s32.totalorder %s21, 0
    %p174 = por %p172, %p173
    %s176 = sadd.s32 %s175, 1
    %p179 = scmp.eq.s32.totalorder %s15, 1
    %p180 = scmp.ne.s32.totalorder %s175, %s177
    %p181 = scmp.eq.s32.totalorder %s15, 0
    %p182 = por %p180, %p181
    %p183 = scmp.ne.s32.totalorder %s175, %s177
    %p184 = scmp.eq.s32.totalorder %s20, 1
    %p185 = por %p183, %p184
    %p186 = scmp.ne.s32.totalorder %s177, %s178
    %p187 = scmp.eq.s32.totalorder %s20, 0
    %p188 = por %p186, %p187
    %p189 = scmp.ne.s32.totalorder %s177, %s178
    %p190 = scmp.eq.s32.totalorder %s21, 1
    %p191 = por %p189, %p190
    %p193 = scmp.ne.s32.totalorder %s178, %s192
    %p194 = scmp.eq.s32.totalorder %s21, 0
    %p195 = por %p193, %p194
    %s197 = sadd.s32 %s196, 1
    %p200 = scmp.eq.s32.totalorder %s15, 1
    %p201 = scmp.ne.s32.totalorder %s196, %s198
    %p202 = scmp.eq.s32.totalorder %s15, 0
    %p203 = por %p201, %p202
    %p204 = scmp.ne.s32.totalorder %s196, %s198
    %p205 = scmp.eq.s32.totalorder %s20, 1
    %p206 = por %p204, %p205
    %p207 = scmp.ne.s32.totalorder %s198, %s199
    %p208 = scmp.eq.s32.totalorder %s20, 0
    %p209 = por %p207, %p208
    %p210 = scmp.ne.s32.totalorder %s198, %s199
    %p211 = scmp.eq.s32.totalorder %s21, 1
    %p212 = por %p210, %p211
    %p214 = scmp.ne.s32.totalorder %s199, %s213
    %p215 = scmp.eq.s32.totalorder %s21, 0
    %p216 = por %p214, %p215
    %s217 = ssub.s32 %s15, %s22
    %p218 = scmp.eq.s32.totalorder %s217, 0
    %s220 = sadd.s32 %s219, 1
    %s221 = scalar_select %p218, %s219, %s220
    %p224 = pneg %p218
    %p225 = scmp.eq.s32.totalorder %s15, 1
    %p226 = por %p224, %p225
    %p227 = scmp.ne.s32.totalorder %s219, %s222
    %p228 = scmp.eq.s32.totalorder %s15, 0
    %p229 = por %p227, %p228
    %p230 = scmp.ne.s32.totalorder %s219, %s222
    %p231 = scmp.eq.s32.totalorder %s20, 1
    %p232 = por %p230, %p231
    %p233 = scmp.ne.s32.totalorder %s222, %s223
    %p234 = scmp.eq.s32.totalorder %s20, 0
    %p235 = por %p233, %p234
    %p236 = scmp.ne.s32.totalorder %s222, %s223
    %p237 = scmp.eq.s32.totalorder %s21, 1
    %p238 = por %p236, %p237
    %p240 = scmp.ne.s32.totalorder %s223, %s239
    %p241 = scmp.eq.s32.totalorder %s21, 0
    %p242 = por %p240, %p241
    %p243 = scmp.le.s32.totalorder 1, %s15
    %p244 = scmp.lt.s32.totalorder %s15, 3
    %p245 = pnand %p243, %p244
    %p246 = pneg %p245
    // Predicated region
    $region9: #{tpu_custom_call.1} parent=5 // pred_check
      _
    $region10: #{tpu_custom_call.1} parent=5 // pred_check_branch
      %248 = sbr.rel (%p245) target = $region12
    $region11: #{tpu_custom_call.1} parent=5 // pred_region
      %s249 = ssub.s32 %s15, 1
      // Predicated region
      $region13: #{tpu_custom_call.1} parent=11 // pred_check
        %p250 = pneg %p62
      $region14: #{tpu_custom_call.1} parent=11 // pred_check_branch
        %252 = sbr.rel (%p250) target = $region16
      $region15: #{tpu_custom_call.1} parent=11 // pred_region
        _
      $region16: #{tpu_custom_call.1} parent=11 // pred_fallthru
        _
      // Predicated region
      $region17: #{tpu_custom_call.1} parent=11 // pred_check
        %p253 = pneg %p83
      $region18: #{tpu_custom_call.1} parent=11 // pred_check_branch
        %255 = sbr.rel (%p253) target = $region20
      $region19: #{tpu_custom_call.1} parent=11 // pred_region
        _
      $region20: #{tpu_custom_call.1} parent=11 // pred_fallthru
        _
      // Predicated region
      $region21: #{tpu_custom_call.1} parent=11 // pred_check
        %p256 = pneg %p104
      $region22: #{tpu_custom_call.1} parent=11 // pred_check_branch
        %258 = sbr.rel (%p256) target = $region24
      $region23: #{tpu_custom_call.1} parent=11 // pred_region
        _
      $region24: #{tpu_custom_call.1} parent=11 // pred_fallthru
        _
      // Predicated region
      $region25: #{tpu_custom_call.1} parent=11 // pred_check
        %p259 = pneg %p125
      $region26: #{tpu_custom_call.1} parent=11 // pred_check_branch
        %261 = sbr.rel (%p259) target = $region28
      $region27: #{tpu_custom_call.1} parent=11 // pred_region
        _
      $region28: #{tpu_custom_call.1} parent=11 // pred_fallthru
        _
      // Predicated region
      $region29: #{tpu_custom_call.1} parent=11 // pred_check
        %p262 = pneg %p146
      $region30: #{tpu_custom_call.1} parent=11 // pred_check_branch
        %264 = sbr.rel (%p262) target = $region32
      $region31: #{tpu_custom_call.1} parent=11 // pred_region
        _
      $region32: #{tpu_custom_call.1} parent=11 // pred_fallthru
        _
      // Predicated region
      $region33: #{tpu_custom_call.1} parent=11 // pred_check
        %p265 = pneg %p167
      $region34: #{tpu_custom_call.1} parent=11 // pred_check_branch
        %267 = sbr.rel (%p265) target = $region36
      $region35: #{tpu_custom_call.1} parent=11 // pred_region
        _
      $region36: #{tpu_custom_call.1} parent=11 // pred_fallthru
        _
      // Predicated region
      $region37: #{tpu_custom_call.1} parent=11 // pred_check
        %p268 = pneg %p188
      $region38: #{tpu_custom_call.1} parent=11 // pred_check_branch
        %270 = sbr.rel (%p268) target = $region40
      $region39: #{tpu_custom_call.1} parent=11 // pred_region
        _
      $region40: #{tpu_custom_call.1} parent=11 // pred_fallthru
        _
      // Predicated region
      $region41: #{tpu_custom_call.1} parent=11 // pred_check
        %p271 = pneg %p209
      $region42: #{tpu_custom_call.1} parent=11 // pred_check_branch
        %273 = sbr.rel (%p271) target = $region44
      $region43: #{tpu_custom_call.1} parent=11 // pred_region
        _
      $region44: #{tpu_custom_call.1} parent=11 // pred_fallthru
        _
    $region12: #{tpu_custom_call.1} parent=5 // pred_fallthru
      _
    %p274 = scmp.lt.s32.totalorder %s15, 2
    // Predicated region
    $region45: #{tpu_custom_call.1} parent=5 // pred_check
      %p275 = pneg %p274
    $region46: #{tpu_custom_call.1} parent=5 // pred_check_branch
      %277 = sbr.rel (%p275) target = $region48
    $region47: #{tpu_custom_call.1} parent=5 // pred_region
      // Predicated region
      $region49: #{tpu_custom_call.1} parent=47 // pred_check
        %p278 = pneg %p35
      $region50: #{tpu_custom_call.1} parent=47 // pred_check_branch
        %280 = sbr.rel (%p278) target = $region52
      $region51: #{tpu_custom_call.1} parent=47 // pred_region
        %p281 = scmp.lt.s32.totalorder %s15, 1
        %s282 = scalar_select %p281, %s15, 1
        %s283 = smul.addr %s282, 16
        %s284 = smul.addr %s283, 8
        %s285 = scalar_lea.vmem %s0, %s284
      $region52: #{tpu_custom_call.1} parent=47 // pred_fallthru
        _
    $region48: #{tpu_custom_call.1} parent=5 // pred_fallthru
      _
    %p286 = scmp.le.s32.totalorder 1, %s15
    %p287 = scmp.lt.s32.totalorder %s15, 3
    %p288 = pnand %p286, %p287
    %p289 = pneg %p288
    // Predicated region
    $region53: #{tpu_custom_call.1} parent=5 // pred_check
      _
    $region54: #{tpu_custom_call.1} parent=5 // pred_check_branch
      %291 = sbr.rel (%p288) target = $region56
    $region55: #{tpu_custom_call.1} parent=5 // pred_region
      %s292 = ssub.s32 %s15, 1
      %p293 = scmp.lt.s32.totalorder %s20, 1
      %s294 = scalar_select %p293, %s20, 1
      %s295 = smul.addr %s294, 16
      %s296 = smul.addr %s295, 8
      %s297 = scalar_lea.vmem %s0, %s296
      %p298 = pneg %p41
      %p299 = pneg %p38
      %p300 = pneg %p62
      %p301 = pneg %p59
      %p302 = pneg %p83
      %p303 = pneg %p80
      %p304 = pneg %p104
      %p305 = pneg %p101
      %p306 = pneg %p125
      %p307 = pneg %p122
      %p308 = pneg %p146
      %p309 = pneg %p143
      %p310 = pneg %p167
      %p311 = pneg %p164
      %p312 = pneg %p188
      %p313 = pneg %p185
      %p314 = pneg %p209
      %p315 = pneg %p206
      %p316 = pneg %p235
      %p317 = pneg %p232
      %p318 = scmp.lt.s32.totalorder %s20, 1
      %s319 = scalar_select %p318, %s20, 1
      %s320 = smul.addr %s319, 16
      %s321 = smul.addr %s320, 8
      %s322 = scalar_lea.vmem %s9, %s321
      %p323 = scmp.lt.s32.totalorder %s20, 1
      %s324 = scalar_select %p323, %s20, 1
      %s325 = smul.addr %s324, 16
      %s326 = smul.addr %s325, 8
      %s327 = scalar_lea.vmem %s0, %s326
      %p328 = scmp.lt.s32.totalorder %s20, 1
      %s329 = scalar_select %p328, %s20, 1
      %s330 = smul.addr %s329, 16
      %s331 = smul.addr %s330, 8
      %s332 = scalar_lea.vmem %s9, %s331
      %vm334 = vcmask 261120
      %335 = vst.msk [vmem:[#allocation2] sm:$0xff] %vm334, 0.0
      %336 = vst.msk [vmem:[#allocation2 + $0x8] sm:$0xff] %vm334, 0.0
      %vm337 = vcmask 253952
      %338 = vst.msk [vmem:[#allocation2 + $0x10] sm:$0x1] %vm337, 0.0
      %v339 = vld [vmem:[%s327] sm:$0xff]
      %v340 = vld [vmem:[%s327 + $0x8] sm:$0xff]
      %v341 = vld [vmem:[%s327 + $0x10] sm:$0xff]
      %v342 = vld [vmem:[%s327 + $0x18] sm:$0xff]
      %v343 = vld [vmem:[%s327 + $0x20] sm:$0xff]
      %v344 = vld [vmem:[%s327 + $0x28] sm:$0xff]
      %v345 = vld [vmem:[%s327 + $0x30] sm:$0xff]
      %v346 = vld [vmem:[%s327 + $0x38] sm:$0xff]
      %v347 = vld [vmem:[%s327 + $0x40] sm:$0xff]
      %v348 = vld [vmem:[%s327 + $0x48] sm:$0xff]
      %v349 = vld [vmem:[%s327 + $0x50] sm:$0xff]
      %v350 = vld [vmem:[%s327 + $0x58] sm:$0xff]
      %v351 = vld [vmem:[%s327 + $0x60] sm:$0xff]
      %v352 = vld [vmem:[%s327 + $0x68] sm:$0xff]
      %v353 = vld [vmem:[%s327 + $0x70] sm:$0xff]
      %v354 = vld [vmem:[%s327 + $0x78] sm:$0xff]
      %355 = vst.msk [vmem:[#allocation2 + $0x11] sm:$0xff] %vm334, %v339
      %356 = vst.msk [vmem:[#allocation2 + $0x19] sm:$0xff] %vm334, %v340
      %357 = vst.msk [vmem:[#allocation2 + $0x21] sm:$0xff] %vm334, %v341
      %358 = vst.msk [vmem:[#allocation2 + $0x29] sm:$0xff] %vm334, %v342
      %359 = vst.msk [vmem:[#allocation2 + $0x31] sm:$0xff] %vm334, %v343
      %360 = vst.msk [vmem:[#allocation2 + $0x39] sm:$0xff] %vm334, %v344
      %361 = vst.msk [vmem:[#allocation2 + $0x41] sm:$0xff] %vm334, %v345
      %362 = vst.msk [vmem:[#allocation2 + $0x49] sm:$0xff] %vm334, %v346
      %363 = vst.msk [vmem:[#allocation2 + $0x51] sm:$0xff] %vm334, %v347
      %364 = vst.msk [vmem:[#allocation2 + $0x59] sm:$0xff] %vm334, %v348
      %365 = vst.msk [vmem:[#allocation2 + $0x61] sm:$0xff] %vm334, %v349
      %366 = vst.msk [vmem:[#allocation2 + $0x69] sm:$0xff] %vm334, %v350
      %367 = vst.msk [vmem:[#allocation2 + $0x71] sm:$0xff] %vm334, %v351
      %368 = vst.msk [vmem:[#allocation2 + $0x79] sm:$0xff] %vm334, %v352
      %369 = vst.msk [vmem:[#allocation2 + $0x81] sm:$0xff] %vm334, %v353
      %370 = vst.msk [vmem:[#allocation2 + $0x89] sm:$0xff] %vm334, %v354
      %371 = vst.msk [vmem:[#allocation2 + $0x91] sm:$0xff] %vm334, 0.0
      %372 = vst.msk [vmem:[#allocation2 + $0x99] sm:$0xff] %vm334, 0.0
      %373 = vst.msk [vmem:[#allocation2 + $0xa1] sm:$0x1] %vm337, 0.0
      %v374 = vld [vmem:[#allocation2] sm:$0xff]
      %v375 = vld [vmem:[#allocation2 + $0x8] sm:$0xff]
      %v376 = vld [vmem:[#allocation2 + $0x10] sm:$0xff]
      %v377 = vld [vmem:[#allocation2 + $0x18] sm:$0xff]
      %v378 = vld [vmem:[#allocation2 + $0x20] sm:$0xff]
      %v379 = vld [vmem:[#allocation2 + $0x28] sm:$0xff]
      %v380 = vld [vmem:[#allocation2 + $0x30] sm:$0xff]
      %v381 = vld [vmem:[#allocation2 + $0x38] sm:$0xff]
      %v382 = vld [vmem:[#allocation2 + $0x40] sm:$0xff]
      %v383 = vld [vmem:[#allocation2 + $0x48] sm:$0xff]
      %v384 = vld [vmem:[#allocation2 + $0x50] sm:$0xff]
      %v385 = vld [vmem:[#allocation2 + $0x58] sm:$0xff]
      %v386 = vld [vmem:[#allocation2 + $0x60] sm:$0xff]
      %v387 = vld [vmem:[#allocation2 + $0x68] sm:$0xff]
      %v388 = vld [vmem:[#allocation2 + $0x70] sm:$0xff]
      %v389 = vld [vmem:[#allocation2 + $0x78] sm:$0xff]
      %v390 = vld [vmem:[%s1] sm:$0xff]
      %v391 = vld [vmem:[%s1 + $0x8] sm:$0xff]
      %v392 = vld [vmem:[%s1 + $0x10] sm:$0xff]
      %v393 = vld [vmem:[%s1 + $0x18] sm:$0xff]
      %v394 = vld [vmem:[%s1 + $0x20] sm:$0xff]
      %v395 = vld [vmem:[%s1 + $0x28] sm:$0xff]
      %v396 = vld [vmem:[%s1 + $0x30] sm:$0xff]
      %v397 = vld [vmem:[%s1 + $0x38] sm:$0xff]
      %v398 = vld [vmem:[%s1 + $0x40] sm:$0xff]
      %v399 = vld [vmem:[%s1 + $0x48] sm:$0xff]
      %v400 = vld [vmem:[%s1 + $0x50] sm:$0xff]
      %v401 = vld [vmem:[%s1 + $0x58] sm:$0xff]
      %v402 = vld [vmem:[%s1 + $0x60] sm:$0xff]
      %v403 = vld [vmem:[%s1 + $0x68] sm:$0xff]
      %v404 = vld [vmem:[%s1 + $0x70] sm:$0xff]
      %v405 = vld [vmem:[%s1 + $0x78] sm:$0xff]
      %407 = vset.pattern.permute.xlu0 0
      %408 = vperm.xlu0 %407, %v390
      %v409 = vpop.permute.xlu0 %408
      %412 = vset.pattern.permute.xlu0 0
      %413 = vperm.xlu0 %412, %v391
      %v414 = vpop.permute.xlu0 %413
      %417 = vset.pattern.permute.xlu0 0
      %418 = vperm.xlu0 %417, %v392
      %v419 = vpop.permute.xlu0 %418
      %422 = vset.pattern.permute.xlu0 0
      %423 = vperm.xlu0 %422, %v393
      %v424 = vpop.permute.xlu0 %423
      %427 = vset.pattern.permute.xlu0 0
      %428 = vperm.xlu0 %427, %v394
      %v429 = vpop.permute.xlu0 %428
      %432 = vset.pattern.permute.xlu0 0
      %433 = vperm.xlu0 %432, %v395
      %v434 = vpop.permute.xlu0 %433
      %437 = vset.pattern.permute.xlu0 0
      %438 = vperm.xlu0 %437, %v396
      %v439 = vpop.permute.xlu0 %438
      %442 = vset.pattern.permute.xlu0 0
      %443 = vperm.xlu0 %442, %v397
      %v444 = vpop.permute.xlu0 %443
      %447 = vset.pattern.permute.xlu0 0
      %448 = vperm.xlu0 %447, %v398
      %v449 = vpop.permute.xlu0 %448
      %452 = vset.pattern.permute.xlu0 0
      %453 = vperm.xlu0 %452, %v399
      %v454 = vpop.permute.xlu0 %453
      %457 = vset.pattern.permute.xlu0 0
      %458 = vperm.xlu0 %457, %v400
      %v459 = vpop.permute.xlu0 %458
      %462 = vset.pattern.permute.xlu0 0
      %463 = vperm.xlu0 %462, %v401
      %v464 = vpop.permute.xlu0 %463
      %467 = vset.pattern.permute.xlu0 0
      %468 = vperm.xlu0 %467, %v402
      %v469 = vpop.permute.xlu0 %468
      %472 = vset.pattern.permute.xlu0 0
      %473 = vperm.xlu0 %472, %v403
      %v474 = vpop.permute.xlu0 %473
      %477 = vset.pattern.permute.xlu0 0
      %478 = vperm.xlu0 %477, %v404
      %v479 = vpop.permute.xlu0 %478
      %482 = vset.pattern.permute.xlu0 0
      %483 = vperm.xlu0 %482, %v405
      %v484 = vpop.permute.xlu0 %483
      %v486 = vmul.f32 %v374, %v409
      %v487 = vmul.f32 %v375, %v414
      %v488 = vmul.f32 %v376, %v419
      %v489 = vmul.f32 %v377, %v424
      %v490 = vmul.f32 %v378, %v429
      %v491 = vmul.f32 %v379, %v434
      %v492 = vmul.f32 %v380, %v439
      %v493 = vmul.f32 %v381, %v444
      %v494 = vmul.f32 %v382, %v449
      %v495 = vmul.f32 %v383, %v454
      %v496 = vmul.f32 %v384, %v459
      %v497 = vmul.f32 %v385, %v464
      %v498 = vmul.f32 %v386, %v469
      %v499 = vmul.f32 %v387, %v474
      %v500 = vmul.f32 %v388, %v479
      %v501 = vmul.f32 %v389, %v484
      %v502 = vpack.c.bf16 %v487, %v486
      %v503 = vpack.c.bf16 %v489, %v488
      %v504 = vpack.c.bf16 %v491, %v490
      %v505 = vpack.c.bf16 %v493, %v492
      %v506 = vpack.c.bf16 %v495, %v494
      %v507 = vpack.c.bf16 %v497, %v496
      %v508 = vpack.c.bf16 %v499, %v498
      %v509 = vpack.c.bf16 %v501, %v500
      %v510 = vld [vmem:[%s2] sm:$0xf]
      %v511 = vld [vmem:[%s2 + $0x4] sm:$0xf]
      %v512 = vld [vmem:[%s2 + $0x8] sm:$0xf]
      %v513 = vld [vmem:[%s2 + $0xc] sm:$0xf]
      %v514 = vld [vmem:[#allocation2 + $0x1] sm:$0xff]
      %v515 = vld [vmem:[#allocation2 + $0x9] sm:$0xff]
      %v516 = vld [vmem:[#allocation2 + $0x11] sm:$0xff]
      %v517 = vld [vmem:[#allocation2 + $0x19] sm:$0xff]
      %v518 = vld [vmem:[#allocation2 + $0x21] sm:$0xff]
      %v519 = vld [vmem:[#allocation2 + $0x29] sm:$0xff]
      %v520 = vld [vmem:[#allocation2 + $0x31] sm:$0xff]
      %v521 = vld [vmem:[#allocation2 + $0x39] sm:$0xff]
      %v522 = vld [vmem:[#allocation2 + $0x41] sm:$0xff]
      %v523 = vld [vmem:[#allocation2 + $0x49] sm:$0xff]
      %v524 = vld [vmem:[#allocation2 + $0x51] sm:$0xff]
      %v525 = vld [vmem:[#allocation2 + $0x59] sm:$0xff]
      %v526 = vld [vmem:[#allocation2 + $0x61] sm:$0xff]
      %v527 = vld [vmem:[#allocation2 + $0x69] sm:$0xff]
      %v528 = vld [vmem:[#allocation2 + $0x71] sm:$0xff]
      %v529 = vld [vmem:[#allocation2 + $0x79] sm:$0xff]
      %v530 = vpack.c.bf16 %v515, %v514
      %v531 = vpack.c.bf16 %v517, %v516
      %v532 = vpack.c.bf16 %v519, %v518
      %v533 = vpack.c.bf16 %v521, %v520
      %v534 = vpack.c.bf16 %v523, %v522
      %v535 = vpack.c.bf16 %v525, %v524
      %v536 = vpack.c.bf16 %v527, %v526
      %v537 = vpack.c.bf16 %v529, %v528
      %s538 = scalar_lea.vmem %s2, 16
      %v539 = vld [vmem:[%s538] sm:$0xf]
      %v540 = vld [vmem:[%s538 + $0x4] sm:$0xf]
      %v541 = vld [vmem:[%s538 + $0x8] sm:$0xf]
      %v542 = vld [vmem:[%s538 + $0xc] sm:$0xf]
      %v547 = vunpack.c.l.b16 %v539
      %v548 = vunpack.c.l.b16 %v540
      %v549 = vunpack.c.l.b16 %v541
      %v550 = vunpack.c.l.b16 %v542
      %v551 = vpack.c.b16 %v548, %v547
      %v552 = vpack.c.b16 %v550, %v549
      %v556 = vsel %vm334, %v530, 0
      %v559 = vsel %vm334, %v531, 0
      %v562 = vsel %vm334, %v532, 0
      %v565 = vsel %vm334, %v533, 0
      %v568 = vsel %vm334, %v534, 0
      %v571 = vsel %vm334, %v535, 0
      %v574 = vsel %vm334, %v536, 0
      %v577 = vsel %vm334, %v537, 0
      %579 = vmatprep.subr.bf16.mxu0 0
      %580 = vmatpush1.bf16.msra.mxu0 %v551
      %581 = vmatprep.subr.bf16.mxu0 0
      %582 = vmatpush1.bf16.msra.mxu0 %v552
      %583 = vmatprep.subr.bf16.mxu0 0
      %584 = vmatpush1.bf16.msra.mxu0 0
      %585 = vmatprep.subr.bf16.mxu0 0
      %586 = vmatpush1.bf16.msra.mxu0 0
      %587 = vmatprep.subr.bf16.mxu0 0
      %588 = vmatpush1.bf16.msra.mxu0 0
      %589 = vmatprep.subr.bf16.mxu0 0
      %590 = vmatpush1.bf16.msra.mxu0 0
      %591 = vmatprep.subr.bf16.mxu0 0
      %592 = vmatpush1.bf16.msra.mxu0 0
      %593 = vmatprep.subr.bf16.mxu0 0
      %594 = vmatpush1.bf16.msra.mxu0 0
      %595 = vmatprep.subr.bf16.mxu0 0
      %596 = vmatpush1.bf16.msra.mxu0 0
      %597 = vmatprep.subr.bf16.mxu0 0
      %598 = vmatpush1.bf16.msra.mxu0 0
      %599 = vmatprep.subr.bf16.mxu0 0
      %600 = vmatpush1.bf16.msra.mxu0 0
      %601 = vmatprep.subr.bf16.mxu0 0
      %602 = vmatpush1.bf16.msra.mxu0 0
      %603 = vmatprep.subr.bf16.mxu0 0
      %604 = vmatpush1.bf16.msra.mxu0 0
      %605 = vmatprep.subr.bf16.mxu0 0
      %606 = vmatpush1.bf16.msra.mxu0 0
      %607 = vmatprep.subr.bf16.mxu0 0
      %608 = vmatpush1.bf16.msra.mxu0 0
      %609 = vmatprep.subr.bf16.mxu0 0
      %610 = vmatpush1.bf16.msra.mxu0 0
      %611 = vmatprep.mubr.bf16.mxu0 0
      %612 = vmatmul.mubr.bf16.gmra.mrb[0].mxu0 %v556
      %v613 = vpop.f32.mrb[0].mxu0
      %v614 = vadd.f32 0.0, %v613
      %v615 = vpop.f32.mrb[0].mxu0
      %v616 = vpop.f32.mrb[0].mxu0
      %v617 = vadd.f32 0.0, %v616
      %v618 = vpop.f32.mrb[0].mxu0
      %619 = vmatprep.mubr.bf16.mxu0 0
      %620 = vmatmul.mubr.bf16.gmra.mrb[0].mxu0 %v559
      %v621 = vpop.f32.mrb[0].mxu0
      %v622 = vadd.f32 0.0, %v621
      %v623 = vpop.f32.mrb[0].mxu0
      %v624 = vpop.f32.mrb[0].mxu0
      %v625 = vadd.f32 0.0, %v624
      %v626 = vpop.f32.mrb[0].mxu0
      %627 = vmatprep.mubr.bf16.mxu0 0
      %628 = vmatmul.mubr.bf16.gmra.mrb[0].mxu0 %v562
      %v629 = vpop.f32.mrb[0].mxu0
      %v630 = vadd.f32 0.0, %v629
      %v631 = vpop.f32.mrb[0].mxu0
      %v632 = vpop.f32.mrb[0].mxu0
      %v633 = vadd.f32 0.0, %v632
      %v634 = vpop.f32.mrb[0].mxu0
      %635 = vmatprep.mubr.bf16.mxu0 0
      %636 = vmatmul.mubr.bf16.gmra.mrb[0].mxu0 %v565
      %v637 = vpop.f32.mrb[0].mxu0
      %v638 = vadd.f32 0.0, %v637
      %v639 = vpop.f32.mrb[0].mxu0
      %v640 = vpop.f32.mrb[0].mxu0
      %v641 = vadd.f32 0.0, %v640
      %v642 = vpop.f32.mrb[0].mxu0
      %643 = vmatprep.mubr.bf16.mxu0 0
      %644 = vmatmul.mubr.bf16.gmra.mrb[0].mxu0 %v568
      %v645 = vpop.f32.mrb[0].mxu0
      %v646 = vadd.f32 0.0, %v645
      %v647 = vpop.f32.mrb[0].mxu0
      %v648 = vpop.f32.mrb[0].mxu0
      %v649 = vadd.f32 0.0, %v648
      %v650 = vpop.f32.mrb[0].mxu0
      %651 = vmatprep.mubr.bf16.mxu0 0
      %652 = vmatmul.mubr.bf16.gmra.mrb[0].mxu0 %v571
      %v653 = vpop.f32.mrb[0].mxu0
      %v654 = vadd.f32 0.0, %v653
      %v655 = vpop.f32.mrb[0].mxu0
      %v656 = vpop.f32.mrb[0].mxu0
      %v657 = vadd.f32 0.0, %v656
      %v658 = vpop.f32.mrb[0].mxu0
      %659 = vmatprep.mubr.bf16.mxu0 0
      %660 = vmatmul.mubr.bf16.gmra.mrb[0].mxu0 %v574
      %v661 = vpop.f32.mrb[0].mxu0
      %v662 = vadd.f32 0.0, %v661
      %v663 = vpop.f32.mrb[0].mxu0
      %v664 = vpop.f32.mrb[0].mxu0
      %v665 = vadd.f32 0.0, %v664
      %v666 = vpop.f32.mrb[0].mxu0
      %667 = vmatprep.mubr.bf16.mxu0 0
      %668 = vmatmul.mubr.bf16.gmra.mrb[0].mxu0 %v577
      %v669 = vpop.f32.mrb[0].mxu0
      %v670 = vadd.f32 0.0, %v669
      %v671 = vpop.f32.mrb[0].mxu0
      %v672 = vpop.f32.mrb[0].mxu0
      %v673 = vadd.f32 0.0, %v672
      %v674 = vpop.f32.mrb[0].mxu0
      %675 = vdwg.mxu0
      %v680 = vunpack.c.l.b16 %v510
      %v681 = vunpack.c.l.b16 %v511
      %v682 = vunpack.c.l.b16 %v512
      %v683 = vunpack.c.l.b16 %v513
      %v684 = vpack.c.b16 %v681, %v680
      %v685 = vpack.c.b16 %v683, %v682
      %v689 = vsel %vm334, %v502, 0
      %v692 = vsel %vm334, %v503, 0
      %v695 = vsel %vm334, %v504, 0
      %v698 = vsel %vm334, %v505, 0
      %v701 = vsel %vm334, %v506, 0
      %v704 = vsel %vm334, %v507, 0
      %v707 = vsel %vm334, %v508, 0
      %v710 = vsel %vm334, %v509, 0
      %712 = vmatprep.subr.bf16.mxu0 0
      %713 = vmatpush1.bf16.msra.mxu0 %v684
      %714 = vmatprep.subr.bf16.mxu0 0
      %715 = vmatpush1.bf16.msra.mxu0 %v685
      %716 = vmatprep.subr.bf16.mxu0 0
      %717 = vmatpush1.bf16.msra.mxu0 0
      %718 = vmatprep.subr.bf16.mxu0 0
      %719 = vmatpush1.bf16.msra.mxu0 0
      %720 = vmatprep.subr.bf16.mxu0 0
      %721 = vmatpush1.bf16.msra.mxu0 0
      %722 = vmatprep.subr.bf16.mxu0 0
      %723 = vmatpush1.bf16.msra.mxu0 0
      %724 = vmatprep.subr.bf16.mxu0 0
      %725 = vmatpush1.bf16.msra.mxu0 0
      %726 = vmatprep.subr.bf16.mxu0 0
      %727 = vmatpush1.bf16.msra.mxu0 0
      %728 = vmatprep.subr.bf16.mxu0 0
      %729 = vmatpush1.bf16.msra.mxu0 0
      %730 = vmatprep.subr.bf16.mxu0 0
      %731 = vmatpush1.bf16.msra.mxu0 0
      %732 = vmatprep.subr.bf16.mxu0 0
      %733 = vmatpush1.bf16.msra.mxu0 0
      %734 = vmatprep.subr.bf16.mxu0 0
      %735 = vmatpush1.bf16.msra.mxu0 0
      %736 = vmatprep.subr.bf16.mxu0 0
      %737 = vmatpush1.bf16.msra.mxu0 0
      %738 = vmatprep.subr.bf16.mxu0 0
      %739 = vmatpush1.bf16.msra.mxu0 0
      %740 = vmatprep.subr.bf16.mxu0 0
      %741 = vmatpush1.bf16.msra.mxu0 0
      %742 = vmatprep.subr.bf16.mxu0 0
      %743 = vmatpush1.bf16.msra.mxu0 0
      %744 = vmatprep.mubr.bf16.mxu0 0
      %745 = vmatmul.mubr.bf16.gmra.mrb[0].mxu0 %v689
      %v746 = vpop.f32.mrb[0].mxu0
      %v747 = vadd.f32 %v614, %v746
      %v748 = vpop.f32.mrb[0].mxu0
      %v749 = vpop.f32.mrb[0].mxu0
      %v750 = vadd.f32 %v617, %v749
      %v751 = vpop.f32.mrb[0].mxu0
      %752 = vmatprep.mubr.bf16.mxu0 0
      %753 = vmatmul.mubr.bf16.gmra.mrb[0].mxu0 %v692
      %v754 = vpop.f32.mrb[0].mxu0
      %v755 = vadd.f32 %v622, %v754
      %v756 = vpop.f32.mrb[0].mxu0
      %v757 = vpop.f32.mrb[0].mxu0
      %v758 = vadd.f32 %v625, %v757
      %v759 = vpop.f32.mrb[0].mxu0
      %760 = vmatprep.mubr.bf16.mxu0 0
      %761 = vmatmul.mubr.bf16.gmra.mrb[0].mxu0 %v695
      %v762 = vpop.f32.mrb[0].mxu0
      %v763 = vadd.f32 %v630, %v762
      %v764 = vpop.f32.mrb[0].mxu0
      %v765 = vpop.f32.mrb[0].mxu0
      %v766 = vadd.f32 %v633, %v765
      %v767 = vpop.f32.mrb[0].mxu0
      %768 = vmatprep.mubr.bf16.mxu0 0
      %769 = vmatmul.mubr.bf16.gmra.mrb[0].mxu0 %v698
      %v770 = vpop.f32.mrb[0].mxu0
      %v771 = vadd.f32 %v638, %v770
      %v772 = vpop.f32.mrb[0].mxu0
      %v773 = vpop.f32.mrb[0].mxu0
      %v774 = vadd.f32 %v641, %v773
      %v775 = vpop.f32.mrb[0].mxu0
      %776 = vmatprep.mubr.bf16.mxu0 0
      %777 = vmatmul.mubr.bf16.gmra.mrb[0].mxu0 %v701
      %v778 = vpop.f32.mrb[0].mxu0
      %v779 = vadd.f32 %v646, %v778
      %v780 = vpop.f32.mrb[0].mxu0
      %v781 = vpop.f32.mrb[0].mxu0
      %v782 = vadd.f32 %v649, %v781
      %v783 = vpop.f32.mrb[0].mxu0
      %784 = vmatprep.mubr.bf16.mxu0 0
      %785 = vmatmul.mubr.bf16.gmra.mrb[0].mxu0 %v704
      %v786 = vpop.f32.mrb[0].mxu0
      %v787 = vadd.f32 %v654, %v786
      %v788 = vpop.f32.mrb[0].mxu0
      %v789 = vpop.f32.mrb[0].mxu0
      %v790 = vadd.f32 %v657, %v789
      %v791 = vpop.f32.mrb[0].mxu0
      %792 = vmatprep.mubr.bf16.mxu0 0
      %793 = vmatmul.mubr.bf16.gmra.mrb[0].mxu0 %v707
      %v794 = vpop.f32.mrb[0].mxu0
      %v795 = vadd.f32 %v662, %v794
      %v796 = vpop.f32.mrb[0].mxu0
      %v797 = vpop.f32.mrb[0].mxu0
      %v798 = vadd.f32 %v665, %v797
      %v799 = vpop.f32.mrb[0].mxu0
      %800 = vmatprep.mubr.bf16.mxu0 0
      %801 = vmatmul.mubr.bf16.gmra.mrb[0].mxu0 %v710
      %v802 = vpop.f32.mrb[0].mxu0
      %v803 = vadd.f32 %v670, %v802
      %v804 = vpop.f32.mrb[0].mxu0
      %v805 = vpop.f32.mrb[0].mxu0
      %v806 = vadd.f32 %v673, %v805
      %v807 = vpop.f32.mrb[0].mxu0
      %808 = vdwg.mxu0
      %v809 = vld [vmem:[#allocation2 + $0x2] sm:$0xff]
      %v810 = vld [vmem:[#allocation2 + $0xa] sm:$0xff]
      %v811 = vld [vmem:[#allocation2 + $0x12] sm:$0xff]
      %v812 = vld [vmem:[#allocation2 + $0x1a] sm:$0xff]
      %v813 = vld [vmem:[#allocation2 + $0x22] sm:$0xff]
      %v814 = vld [vmem:[#allocation2 + $0x2a] sm:$0xff]
      %v815 = vld [vmem:[#allocation2 + $0x32] sm:$0xff]
      %v816 = vld [vmem:[#allocation2 + $0x3a] sm:$0xff]
      %v817 = vld [vmem:[#allocation2 + $0x42] sm:$0xff]
      %v818 = vld [vmem:[#allocation2 + $0x4a] sm:$0xff]
      %v819 = vld [vmem:[#allocation2 + $0x52] sm:$0xff]
      %v820 = vld [vmem:[#allocation2 + $0x5a] sm:$0xff]
      %v821 = vld [vmem:[#allocation2 + $0x62] sm:$0xff]
      %v822 = vld [vmem:[#allocation2 + $0x6a] sm:$0xff]
      %v823 = vld [vmem:[#allocation2 + $0x72] sm:$0xff]
      %v824 = vld [vmem:[#allocation2 + $0x7a] sm:$0xff]
      %s825 = scalar_lea.vmem %s1, 256
      %v826 = vld [vmem:[%s825] sm:$0xff]
      %v827 = vld [vmem:[%s825 + $0x8] sm:$0xff]
      %v828 = vld [vmem:[%s825 + $0x10] sm:$0xff]
      %v829 = vld [vmem:[%s825 + $0x18] sm:$0xff]
      %v830 = vld [vmem:[%s825 + $0x20] sm:$0xff]
      %v831 = vld [vmem:[%s825 + $0x28] sm:$0xff]
      %v832 = vld [vmem:[%s825 + $0x30] sm:$0xff]
      %v833 = vld [vmem:[%s825 + $0x38] sm:$0xff]
      %v834 = vld [vmem:[%s825 + $0x40] sm:$0xff]
      %v835 = vld [vmem:[%s825 + $0x48] sm:$0xff]
      %v836 = vld [vmem:[%s825 + $0x50] sm:$0xff]
      %v837 = vld [vmem:[%s825 + $0x58] sm:$0xff]
      %v838 = vld [vmem:[%s825 + $0x60] sm:$0xff]
      %v839 = vld [vmem:[%s825 + $0x68] sm:$0xff]
      %v840 = vld [vmem:[%s825 + $0x70] sm:$0xff]
      %v841 = vld [vmem:[%s825 + $0x78] sm:$0xff]
      %843 = vset.pattern.permute.xlu0 0
      %844 = vperm.xlu0 %843, %v826
      %v845 = vpop.permute.xlu0 %844
      %848 = vset.pattern.permute.xlu0 0
      %849 = vperm.xlu0 %848, %v827
      %v850 = vpop.permute.xlu0 %849
      %853 = vset.pattern.permute.xlu0 0
      %854 = vperm.xlu0 %853, %v828
      %v855 = vpop.permute.xlu0 %854
      %858 = vset.pattern.permute.xlu0 0
      %859 = vperm.xlu0 %858, %v829
      %v860 = vpop.permute.xlu0 %859
      %863 = vset.pattern.permute.xlu0 0
      %864 = vperm.xlu0 %863, %v830
      %v865 = vpop.permute.xlu0 %864
      %868 = vset.pattern.permute.xlu0 0
      %869 = vperm.xlu0 %868, %v831
      %v870 = vpop.permute.xlu0 %869
      %873 = vset.pattern.permute.xlu0 0
      %874 = vperm.xlu0 %873, %v832
      %v875 = vpop.permute.xlu0 %874
      %878 = vset.pattern.permute.xlu0 0
      %879 = vperm.xlu0 %878, %v833
      %v880 = vpop.permute.xlu0 %879
      %883 = vset.pattern.permute.xlu0 0
      %884 = vperm.xlu0 %883, %v834
      %v885 = vpop.permute.xlu0 %884
      %888 = vset.pattern.permute.xlu0 0
      %889 = vperm.xlu0 %888, %v835
      %v890 = vpop.permute.xlu0 %889
      %893 = vset.pattern.permute.xlu0 0
      %894 = vperm.xlu0 %893, %v836
      %v895 = vpop.permute.xlu0 %894
      %898 = vset.pattern.permute.xlu0 0
      %899 = vperm.xlu0 %898, %v837
      %v900 = vpop.permute.xlu0 %899
      %903 = vset.pattern.permute.xlu0 0
      %904 = vperm.xlu0 %903, %v838
      %v905 = vpop.permute.xlu0 %904
      %908 = vset.pattern.permute.xlu0 0
      %909 = vperm.xlu0 %908, %v839
      %v910 = vpop.permute.xlu0 %909
      %913 = vset.pattern.permute.xlu0 0
      %914 = vperm.xlu0 %913, %v840
      %v915 = vpop.permute.xlu0 %914
      %918 = vset.pattern.permute.xlu0 0
      %919 = vperm.xlu0 %918, %v841
      %v920 = vpop.permute.xlu0 %919
      %v922 = vmul.f32 %v809, %v845
      %v923 = vmul.f32 %v810, %v850
      %v924 = vmul.f32 %v811, %v855
      %v925 = vmul.f32 %v812, %v860
      %v926 = vmul.f32 %v813, %v865
      %v927 = vmul.f32 %v814, %v870
      %v928 = vmul.f32 %v815, %v875
      %v929 = vmul.f32 %v816, %v880
      %v930 = vmul.f32 %v817, %v885
      %v931 = vmul.f32 %v818, %v890
      %v932 = vmul.f32 %v819, %v895
      %v933 = vmul.f32 %v820, %v900
      %v934 = vmul.f32 %v821, %v905
      %v935 = vmul.f32 %v822, %v910
      %v936 = vmul.f32 %v823, %v915
      %v937 = vmul.f32 %v824, %v920
      %v938 = vpack.c.bf16 %v923, %v922
      %v939 = vpack.c.bf16 %v925, %v924
      %v940 = vpack.c.bf16 %v927, %v926
      %v941 = vpack.c.bf16 %v929, %v928
      %v942 = vpack.c.bf16 %v931, %v930
      %v943 = vpack.c.bf16 %v933, %v932
      %v944 = vpack.c.bf16 %v935, %v934
      %v945 = vpack.c.bf16 %v937, %v936
      %s946 = scalar_lea.vmem %s2, 32
      %v947 = vld [vmem:[%s946] sm:$0xf]
      %v948 = vld [vmem:[%s946 + $0x4] sm:$0xf]
      %v949 = vld [vmem:[%s946 + $0x8] sm:$0xf]
      %v950 = vld [vmem:[%s946 + $0xc] sm:$0xf]
      %v955 = vunpack.c.l.b16 %v947
      %v956 = vunpack.c.l.b16 %v948
      %v957 = vunpack.c.l.b16 %v949
      %v958 = vunpack.c.l.b16 %v950
      %v959 = vpack.c.b16 %v956, %v955
      %v960 = vpack.c.b16 %v958, %v957
      %v964 = vsel %vm334, %v938, 0
      %v967 = vsel %vm334, %v939, 0
      %v970 = vsel %vm334, %v940, 0
      %v973 = vsel %vm334, %v941, 0
      %v976 = vsel %vm334, %v942, 0
      %v979 = vsel %vm334, %v943, 0
      %v982 = vsel %vm334, %v944, 0
      %v985 = vsel %vm334, %v945, 0
      %987 = vmatprep.subr.bf16.mxu0 0
      %988 = vmatpush1.bf16.msra.mxu0 %v959
      %989 = vmatprep.subr.bf16.mxu0 0
      %990 = vmatpush1.bf16.msra.mxu0 %v960
      %991 = vmatprep.subr.bf16.mxu0 0
      %992 = vmatpush1.bf16.msra.mxu0 0
      %993 = vmatprep.subr.bf16.mxu0 0
      %994 = vmatpush1.bf16.msra.mxu0 0
      %995 = vmatprep.subr.bf16.mxu0 0
      %996 = vmatpush1.bf16.msra.mxu0 0
      %997 = vmatprep.subr.bf16.mxu0 0
      %998 = vmatpush1.bf16.msra.mxu0 0
      %999 = vmatprep.subr.bf16.mxu0 0
      %1000 = vmatpush1.bf16.msra.mxu0 0
      %1001 = vmatprep.subr.bf16.mxu0 0
      %1002 = vmatpush1.bf16.msra.mxu0 0
      %1003 = vmatprep.subr.bf16.mxu0 0
      %1004 = vmatpush1.bf16.msra.mxu0 0
      %1005 = vmatprep.subr.bf16.mxu0 0
      %1006 = vmatpush1.bf16.msra.mxu0 0
      %1007 = vmatprep.subr.bf16.mxu0 0
      %1008 = vmatpush1.bf16.msra.mxu0 0
      %1009 = vmatprep.subr.bf16.mxu0 0
      %1010 = vmatpush1.bf16.msra.mxu0 0
      %1011 = vmatprep.subr.bf16.mxu0 0
      %1012 = vmatpush1.bf16.msra.mxu0 0
      %1013 = vmatprep.subr.bf16.mxu0 0
      %1014 = vmatpush1.bf16.msra.mxu0 0
      %1015 = vmatprep.subr.bf16.mxu0 0
      %1016 = vmatpush1.bf16.msra.mxu0 0
      %1017 = vmatprep.subr.bf16.mxu0 0
      %1018 = vmatpush1.bf16.msra.mxu0 0
      %1019 = vmatprep.mubr.bf16.mxu0 0
      %1020 = vmatmul.mubr.bf16.gmra.mrb[0].mxu0 %v964
      %v1021 = vpop.f32.mrb[0].mxu0
      %v1022 = vadd.f32 0.0, %v1021
      %v1023 = vpop.f32.mrb[0].mxu0
      %v1024 = vpop.f32.mrb[0].mxu0
      %v1025 = vadd.f32 0.0, %v1024
      %v1026 = vpop.f32.mrb[0].mxu0
      %1027 = vmatprep.mubr.bf16.mxu0 0
      %1028 = vmatmul.mubr.bf16.gmra.mrb[0].mxu0 %v967
      %v1029 = vpop.f32.mrb[0].mxu0
      %v1030 = vadd.f32 0.0, %v1029
      %v1031 = vpop.f32.mrb[0].mxu0
      %v1032 = vpop.f32.mrb[0].mxu0
      %v1033 = vadd.f32 0.0, %v1032
      %v1034 = vpop.f32.mrb[0].mxu0
      %1035 = vmatprep.mubr.bf16.mxu0 0
      %1036 = vmatmul.mubr.bf16.gmra.mrb[0].mxu0 %v970
      %v1037 = vpop.f32.mrb[0].mxu0
      %v1038 = vadd.f32 0.0, %v1037
      %v1039 = vpop.f32.mrb[0].mxu0
      %v1040 = vpop.f32.mrb[0].mxu0
      %v1041 = vadd.f32 0.0, %v1040
      %v1042 = vpop.f32.mrb[0].mxu0
      %1043 = vmatprep.mubr.bf16.mxu0 0
      %1044 = vmatmul.mubr.bf16.gmra.mrb[0].mxu0 %v973
      %v1045 = vpop.f32.mrb[0].mxu0
      %v1046 = vadd.f32 0.0, %v1045
      %v1047 = vpop.f32.mrb[0].mxu0
      %v1048 = vpop.f32.mrb[0].mxu0
      %v1049 = vadd.f32 0.0, %v1048
      %v1050 = vpop.f32.mrb[0].mxu0
      %1051 = vmatprep.mubr.bf16.mxu0 0
      %1052 = vmatmul.mubr.bf16.gmra.mrb[0].mxu0 %v976
      %v1053 = vpop.f32.mrb[0].mxu0
      %v1054 = vadd.f32 0.0, %v1053
      %v1055 = vpop.f32.mrb[0].mxu0
      %v1056 = vpop.f32.mrb[0].mxu0
      %v1057 = vadd.f32 0.0, %v1056
      %v1058 = vpop.f32.mrb[0].mxu0
      %1059 = vmatprep.mubr.bf16.mxu0 0
      %1060 = vmatmul.mubr.bf16.gmra.mrb[0].mxu0 %v979
      %v1061 = vpop.f32.mrb[0].mxu0
      %v1062 = vadd.f32 0.0, %v1061
      %v1063 = vpop.f32.mrb[0].mxu0
      %v1064 = vpop.f32.mrb[0].mxu0
      %v1065 = vadd.f32 0.0, %v1064
      %v1066 = vpop.f32.mrb[0].mxu0
      %1067 = vmatprep.mubr.bf16.mxu0 0
      %1068 = vmatmul.mubr.bf16.gmra.mrb[0].mxu0 %v982
      %v1069 = vpop.f32.mrb[0].mxu0
      %v1070 = vadd.f32 0.0, %v1069
      %v1071 = vpop.f32.mrb[0].mxu0
      %v1072 = vpop.f32.mrb[0].mxu0
      %v1073 = vadd.f32 0.0, %v1072
      %v1074 = vpop.f32.mrb[0].mxu0
      %1075 = vmatprep.mubr.bf16.mxu0 0
      %1076 = vmatmul.mubr.bf16.gmra.mrb[0].mxu0 %v985
      %v1077 = vpop.f32.mrb[0].mxu0
      %v1078 = vadd.f32 0.0, %v1077
      %v1079 = vpop.f32.mrb[0].mxu0
      %v1080 = vpop.f32.mrb[0].mxu0
      %v1081 = vadd.f32 0.0, %v1080
      %v1082 = vpop.f32.mrb[0].mxu0
      %1083 = vdwg.mxu0
      %v1084 = vadd.f32 %v747, %v1022
      %v1085 = vadd.f32 %v750, %v1025
      %v1086 = vadd.f32 %v755, %v1030
      %v1087 = vadd.f32 %v758, %v1033
      %v1088 = vadd.f32 %v763, %v1038
      %v1089 = vadd.f32 %v766, %v1041
      %v1090 = vadd.f32 %v771, %v1046
      %v1091 = vadd.f32 %v774, %v1049
      %v1092 = vadd.f32 %v779, %v1054
      %v1093 = vadd.f32 %v782, %v1057
      %v1094 = vadd.f32 %v787, %v1062
      %v1095 = vadd.f32 %v790, %v1065
      %v1096 = vadd.f32 %v795, %v1070
      %v1097 = vadd.f32 %v798, %v1073
      %v1098 = vadd.f32 %v803, %v1078
      %v1099 = vadd.f32 %v806, %v1081
      %v1100 = vld [vmem:[#allocation2 + $0x10] sm:$0xff]
      %v1101 = vld [vmem:[#allocation2 + $0x18] sm:$0xff]
      %v1102 = vld [vmem:[#allocation2 + $0x20] sm:$0xff]
      %v1103 = vld [vmem:[#allocation2 + $0x28] sm:$0xff]
      %v1104 = vld [vmem:[#allocation2 + $0x30] sm:$0xff]
      %v1105 = vld [vmem:[#allocation2 + $0x38] sm:$0xff]
      %v1106 = vld [vmem:[#allocation2 + $0x40] sm:$0xff]
      %v1107 = vld [vmem:[#allocation2 + $0x48] sm:$0xff]
      %v1108 = vld [vmem:[#allocation2 + $0x50] sm:$0xff]
      %v1109 = vld [vmem:[#allocation2 + $0x58] sm:$0xff]
      %v1110 = vld [vmem:[#allocation2 + $0x60] sm:$0xff]
      %v1111 = vld [vmem:[#allocation2 + $0x68] sm:$0xff]
      %v1112 = vld [vmem:[#allocation2 + $0x70] sm:$0xff]
      %v1113 = vld [vmem:[#allocation2 + $0x78] sm:$0xff]
      %v1114 = vld [vmem:[#allocation2 + $0x80] sm:$0xff]
      %v1115 = vld [vmem:[#allocation2 + $0x88] sm:$0xff]
      %v1116 = vmul.f32 %v1100, %v409
      %v1117 = vmul.f32 %v1101, %v414
      %v1118 = vmul.f32 %v1102, %v419
      %v1119 = vmul.f32 %v1103, %v424
      %v1120 = vmul.f32 %v1104, %v429
      %v1121 = vmul.f32 %v1105, %v434
      %v1122 = vmul.f32 %v1106, %v439
      %v1123 = vmul.f32 %v1107, %v444
      %v1124 = vmul.f32 %v1108, %v449
      %v1125 = vmul.f32 %v1109, %v454
      %v1126 = vmul.f32 %v1110, %v459
      %v1127 = vmul.f32 %v1111, %v464
      %v1128 = vmul.f32 %v1112, %v469
      %v1129 = vmul.f32 %v1113, %v474
      %v1130 = vmul.f32 %v1114, %v479
      %v1131 = vmul.f32 %v1115, %v484
      %v1132 = vpack.c.bf16 %v1117, %v1116
      %v1133 = vpack.c.bf16 %v1119, %v1118
      %v1134 = vpack.c.bf16 %v1121, %v1120
      %v1135 = vpack.c.bf16 %v1123, %v1122
      %v1136 = vpack.c.bf16 %v1125, %v1124
      %v1137 = vpack.c.bf16 %v1127, %v1126
      %v1138 = vpack.c.bf16 %v1129, %v1128
      %v1139 = vpack.c.bf16 %v1131, %v1130
      %s1140 = scalar_lea.vmem %s2, 48
      %v1141 = vld [vmem:[%s1140] sm:$0xf]
      %v1142 = vld [vmem:[%s1140 + $0x4] sm:$0xf]
      %v1143 = vld [vmem:[%s1140 + $0x8] sm:$0xf]
      %v1144 = vld [vmem:[%s1140 + $0xc] sm:$0xf]
      %v1149 = vunpack.c.l.b16 %v1141
      %v1150 = vunpack.c.l.b16 %v1142
      %v1151 = vunpack.c.l.b16 %v1143
      %v1152 = vunpack.c.l.b16 %v1144
      %v1153 = vpack.c.b16 %v1150, %v1149
      %v1154 = vpack.c.b16 %v1152, %v1151
      %v1158 = vsel %vm334, %v1132, 0
      %v1161 = vsel %vm334, %v1133, 0
      %v1164 = vsel %vm334, %v1134, 0
      %v1167 = vsel %vm334, %v1135, 0
      %v1170 = vsel %vm334, %v1136, 0
      %v1173 = vsel %vm334, %v1137, 0
      %v1176 = vsel %vm334, %v1138, 0
      %v1179 = vsel %vm334, %v1139, 0
      %1181 = vmatprep.subr.bf16.mxu0 0
      %1182 = vmatpush1.bf16.msra.mxu0 %v1153
      %1183 = vmatprep.subr.bf16.mxu0 0
      %1184 = vmatpush1.bf16.msra.mxu0 %v1154
      %1185 = vmatprep.subr.bf16.mxu0 0
      %1186 = vmatpush1.bf16.msra.mxu0 0
      %1187 = vmatprep.subr.bf16.mxu0 0
      %1188 = vmatpush1.bf16.msra.mxu0 0
      %1189 = vmatprep.subr.bf16.mxu0 0
      %1190 = vmatpush1.bf16.msra.mxu0 0
      %1191 = vmatprep.subr.bf16.mxu0 0
      %1192 = vmatpush1.bf16.msra.mxu0 0
      %1193 = vmatprep.subr.bf16.mxu0 0
      %1194 = vmatpush1.bf16.msra.mxu0 0
      %1195 = vmatprep.subr.bf16.mxu0 0
      %1196 = vmatpush1.bf16.msra.mxu0 0
      %1197 = vmatprep.subr.bf16.mxu0 0
      %1198 = vmatpush1.bf16.msra.mxu0 0
      %1199 = vmatprep.subr.bf16.mxu0 0
      %1200 = vmatpush1.bf16.msra.mxu0 0
      %1201 = vmatprep.subr.bf16.mxu0 0
      %1202 = vmatpush1.bf16.msra.mxu0 0
      %1203 = vmatprep.subr.bf16.mxu0 0
      %1204 = vmatpush1.bf16.msra.mxu0 0
      %1205 = vmatprep.subr.bf16.mxu0 0
      %1206 = vmatpush1.bf16.msra.mxu0 0
      %1207 = vmatprep.subr.bf16.mxu0 0
      %1208 = vmatpush1.bf16.msra.mxu0 0
      %1209 = vmatprep.subr.bf16.mxu0 0
      %1210 = vmatpush1.bf16.msra.mxu0 0
      %1211 = vmatprep.subr.bf16.mxu0 0
      %1212 = vmatpush1.bf16.msra.mxu0 0
      %1213 = vmatprep.mubr.bf16.mxu0 0
      %1214 = vmatmul.mubr.bf16.gmra.mrb[0].mxu0 %v1158
      %v1215 = vpop.f32.mrb[0].mxu0
      %v1216 = vadd.f32 0.0, %v1215
      %v1217 = vpop.f32.mrb[0].mxu0
      %v1218 = vpop.f32.mrb[0].mxu0
      %v1219 = vadd.f32 0.0, %v1218
      %v1220 = vpop.f32.mrb[0].mxu0
      %1221 = vmatprep.mubr.bf16.mxu0 0
      %1222 = vmatmul.mubr.bf16.gmra.mrb[0].mxu0 %v1161
      %v1223 = vpop.f32.mrb[0].mxu0
      %v1224 = vadd.f32 0.0, %v1223
      %v1225 = vpop.f32.mrb[0].mxu0
      %v1226 = vpop.f32.mrb[0].mxu0
      %v1227 = vadd.f32 0.0, %v1226
      %v1228 = vpop.f32.mrb[0].mxu0
      %1229 = vmatprep.mubr.bf16.mxu0 0
      %1230 = vmatmul.mubr.bf16.gmra.mrb[0].mxu0 %v1164
      %v1231 = vpop.f32.mrb[0].mxu0
      %v1232 = vadd.f32 0.0, %v1231
      %v1233 = vpop.f32.mrb[0].mxu0
      %v1234 = vpop.f32.mrb[0].mxu0
      %v1235 = vadd.f32 0.0, %v1234
      %v1236 = vpop.f32.mrb[0].mxu0
      %1237 = vmatprep.mubr.bf16.mxu0 0
      %1238 = vmatmul.mubr.bf16.gmra.mrb[0].mxu0 %v1167
      %v1239 = vpop.f32.mrb[0].mxu0
      %v1240 = vadd.f32 0.0, %v1239
      %v1241 = vpop.f32.mrb[0].mxu0
      %v1242 = vpop.f32.mrb[0].mxu0
      %v1243 = vadd.f32 0.0, %v1242
      %v1244 = vpop.f32.mrb[0].mxu0
      %1245 = vmatprep.mubr.bf16.mxu0 0
      %1246 = vmatmul.mubr.bf16.gmra.mrb[0].mxu0 %v1170
      %v1247 = vpop.f32.mrb[0].mxu0
      %v1248 = vadd.f32 0.0, %v1247
      %v1249 = vpop.f32.mrb[0].mxu0
      %v1250 = vpop.f32.mrb[0].mxu0
      %v1251 = vadd.f32 0.0, %v1250
      %v1252 = vpop.f32.mrb[0].mxu0
      %1253 = vmatprep.mubr.bf16.mxu0 0
      %1254 = vmatmul.mubr.bf16.gmra.mrb[0].mxu0 %v1173
      %v1255 = vpop.f32.mrb[0].mxu0
      %v1256 = vadd.f32 0.0, %v1255
      %v1257 = vpop.f32.mrb[0].mxu0
      %v1258 = vpop.f32.mrb[0].mxu0
      %v1259 = vadd.f32 0.0, %v1258
      %v1260 = vpop.f32.mrb[0].mxu0
      %1261 = vmatprep.mubr.bf16.mxu0 0
      %1262 = vmatmul.mubr.bf16.gmra.mrb[0].mxu0 %v1176
      %v1263 = vpop.f32.mrb[0].mxu0
      %v1264 = vadd.f32 0.0, %v1263
      %v1265 = vpop.f32.mrb[0].mxu0
      %v1266 = vpop.f32.mrb[0].mxu0
      %v1267 = vadd.f32 0.0, %v1266
      %v1268 = vpop.f32.mrb[0].mxu0
      %1269 = vmatprep.mubr.bf16.mxu0 0
      %1270 = vmatmul.mubr.bf16.gmra.mrb[0].mxu0 %v1179
      %v1271 = vpop.f32.mrb[0].mxu0
      %v1272 = vadd.f32 0.0, %v1271
      %v1273 = vpop.f32.mrb[0].mxu0
      %v1274 = vpop.f32.mrb[0].mxu0
      %v1275 = vadd.f32 0.0, %v1274
      %v1276 = vpop.f32.mrb[0].mxu0
      %1277 = vdwg.mxu0
      %v1278 = vadd.f32 %v1084, %v1216
      %v1279 = vadd.f32 %v1085, %v1219
      %v1280 = vadd.f32 %v1086, %v1224
      %v1281 = vadd.f32 %v1087, %v1227
      %v1282 = vadd.f32 %v1088, %v1232
      %v1283 = vadd.f32 %v1089, %v1235
      %v1284 = vadd.f32 %v1090, %v1240
      %v1285 = vadd.f32 %v1091, %v1243
      %v1286 = vadd.f32 %v1092, %v1248
      %v1287 = vadd.f32 %v1093, %v1251
      %v1288 = vadd.f32 %v1094, %v1256
      %v1289 = vadd.f32 %v1095, %v1259
      %v1290 = vadd.f32 %v1096, %v1264
      %v1291 = vadd.f32 %v1097, %v1267
      %v1292 = vadd.f32 %v1098, %v1272
      %v1293 = vadd.f32 %v1099, %v1275
      %v1294 = vld [vmem:[#allocation2 + $0x11] sm:$0xff]
      %v1295 = vld [vmem:[#allocation2 + $0x19] sm:$0xff]
      %v1296 = vld [vmem:[#allocation2 + $0x21] sm:$0xff]
      %v1297 = vld [vmem:[#allocation2 + $0x29] sm:$0xff]
      %v1298 = vld [vmem:[#allocation2 + $0x31] sm:$0xff]
      %v1299 = vld [vmem:[#allocation2 + $0x39] sm:$0xff]
      %v1300 = vld [vmem:[#allocation2 + $0x41] sm:$0xff]
      %v1301 = vld [vmem:[#allocation2 + $0x49] sm:$0xff]
      %v1302 = vld [vmem:[#allocation2 + $0x51] sm:$0xff]
      %v1303 = vld [vmem:[#allocation2 + $0x59] sm:$0xff]
      %v1304 = vld [vmem:[#allocation2 + $0x61] sm:$0xff]
      %v1305 = vld [vmem:[#allocation2 + $0x69] sm:$0xff]
      %v1306 = vld [vmem:[#allocation2 + $0x71] sm:$0xff]
      %v1307 = vld [vmem:[#allocation2 + $0x79] sm:$0xff]
      %v1308 = vld [vmem:[#allocation2 + $0x81] sm:$0xff]
      %v1309 = vld [vmem:[#allocation2 + $0x89] sm:$0xff]
      %v1310 = vpack.c.bf16 %v1295, %v1294
      %v1311 = vpack.c.bf16 %v1297, %v1296
      %v1312 = vpack.c.bf16 %v1299, %v1298
      %v1313 = vpack.c.bf16 %v1301, %v1300
      %v1314 = vpack.c.bf16 %v1303, %v1302
      %v1315 = vpack.c.bf16 %v1305, %v1304
      %v1316 = vpack.c.bf16 %v1307, %v1306
      %v1317 = vpack.c.bf16 %v1309, %v1308
      %s1318 = scalar_lea.vmem %s2, 64
      %v1319 = vld [vmem:[%s1318] sm:$0xf]
      %v1320 = vld [vmem:[%s1318 + $0x4] sm:$0xf]
      %v1321 = vld [vmem:[%s1318 + $0x8] sm:$0xf]
      %v1322 = vld [vmem:[%s1318 + $0xc] sm:$0xf]
      %v1327 = vunpack.c.l.b16 %v1319
      %v1328 = vunpack.c.l.b16 %v1320
      %v1329 = vunpack.c.l.b16 %v1321
      %v1330 = vunpack.c.l.b16 %v1322
      %v1331 = vpack.c.b16 %v1328, %v1327
      %v1332 = vpack.c.b16 %v1330, %v1329
      %v1336 = vsel %vm334, %v1310, 0
      %v1339 = vsel %vm334, %v1311, 0
      %v1342 = vsel %vm334, %v1312, 0
      %v1345 = vsel %vm334, %v1313, 0
      %v1348 = vsel %vm334, %v1314, 0
      %v1351 = vsel %vm334, %v1315, 0
      %v1354 = vsel %vm334, %v1316, 0
      %v1357 = vsel %vm334, %v1317, 0
      %1359 = vmatprep.subr.bf16.mxu0 0
      %1360 = vmatpush1.bf16.msra.mxu0 %v1331
      %1361 = vmatprep.subr.bf16.mxu0 0
      %1362 = vmatpush1.bf16.msra.mxu0 %v1332
      %1363 = vmatprep.subr.bf16.mxu0 0
      %1364 = vmatpush1.bf16.msra.mxu0 0
      %1365 = vmatprep.subr.bf16.mxu0 0
      %1366 = vmatpush1.bf16.msra.mxu0 0
      %1367 = vmatprep.subr.bf16.mxu0 0
      %1368 = vmatpush1.bf16.msra.mxu0 0
      %1369 = vmatprep.subr.bf16.mxu0 0
      %1370 = vmatpush1.bf16.msra.mxu0 0
      %1371 = vmatprep.subr.bf16.mxu0 0
      %1372 = vmatpush1.bf16.msra.mxu0 0
      %1373 = vmatprep.subr.bf16.mxu0 0
      %1374 = vmatpush1.bf16.msra.mxu0 0
      %1375 = vmatprep.subr.bf16.mxu0 0
      %1376 = vmatpush1.bf16.msra.mxu0 0
      %1377 = vmatprep.subr.bf16.mxu0 0
      %1378 = vmatpush1.bf16.msra.mxu0 0
      %1379 = vmatprep.subr.bf16.mxu0 0
      %1380 = vmatpush1.bf16.msra.mxu0 0
      %1381 = vmatprep.subr.bf16.mxu0 0
      %1382 = vmatpush1.bf16.msra.mxu0 0
      %1383 = vmatprep.subr.bf16.mxu0 0
      %1384 = vmatpush1.bf16.msra.mxu0 0
      %1385 = vmatprep.subr.bf16.mxu0 0
      %1386 = vmatpush1.bf16.msra.mxu0 0
      %1387 = vmatprep.subr.bf16.mxu0 0
      %1388 = vmatpush1.bf16.msra.mxu0 0
      %1389 = vmatprep.subr.bf16.mxu0 0
      %1390 = vmatpush1.bf16.msra.mxu0 0
      %1391 = vmatprep.mubr.bf16.mxu0 0
      %1392 = vmatmul.mubr.bf16.gmra.mrb[0].mxu0 %v1336
      %v1393 = vpop.f32.mrb[0].mxu0
      %v1394 = vadd.f32 0.0, %v1393
      %v1395 = vpop.f32.mrb[0].mxu0
      %v1396 = vpop.f32.mrb[0].mxu0
      %v1397 = vadd.f32 0.0, %v1396
      %v1398 = vpop.f32.mrb[0].mxu0
      %1399 = vmatprep.mubr.bf16.mxu0 0
      %1400 = vmatmul.mubr.bf16.gmra.mrb[0].mxu0 %v1339
      %v1401 = vpop.f32.mrb[0].mxu0
      %v1402 = vadd.f32 0.0, %v1401
      %v1403 = vpop.f32.mrb[0].mxu0
      %v1404 = vpop.f32.mrb[0].mxu0
      %v1405 = vadd.f32 0.0, %v1404
      %v1406 = vpop.f32.mrb[0].mxu0
      %1407 = vmatprep.mubr.bf16.mxu0 0
      %1408 = vmatmul.mubr.bf16.gmra.mrb[0].mxu0 %v1342
      %v1409 = vpop.f32.mrb[0].mxu0
      %v1410 = vadd.f32 0.0, %v1409
      %v1411 = vpop.f32.mrb[0].mxu0
      %v1412 = vpop.f32.mrb[0].mxu0
      %v1413 = vadd.f32 0.0, %v1412
      %v1414 = vpop.f32.mrb[0].mxu0
      %1415 = vmatprep.mubr.bf16.mxu0 0
      %1416 = vmatmul.mubr.bf16.gmra.mrb[0].mxu0 %v1345
      %v1417 = vpop.f32.mrb[0].mxu0
      %v1418 = vadd.f32 0.0, %v1417
      %v1419 = vpop.f32.mrb[0].mxu0
      %v1420 = vpop.f32.mrb[0].mxu0
      %v1421 = vadd.f32 0.0, %v1420
      %v1422 = vpop.f32.mrb[0].mxu0
      %1423 = vmatprep.mubr.bf16.mxu0 0
      %1424 = vmatmul.mubr.bf16.gmra.mrb[0].mxu0 %v1348
      %v1425 = vpop.f32.mrb[0].mxu0
      %v1426 = vadd.f32 0.0, %v1425
      %v1427 = vpop.f32.mrb[0].mxu0
      %v1428 = vpop.f32.mrb[0].mxu0
      %v1429 = vadd.f32 0.0, %v1428
      %v1430 = vpop.f32.mrb[0].mxu0
      %1431 = vmatprep.mubr.bf16.mxu0 0
      %1432 = vmatmul.mubr.bf16.gmra.mrb[0].mxu0 %v1351
      %v1433 = vpop.f32.mrb[0].mxu0
      %v1434 = vadd.f32 0.0, %v1433
      %v1435 = vpop.f32.mrb[0].mxu0
      %v1436 = vpop.f32.mrb[0].mxu0
      %v1437 = vadd.f32 0.0, %v1436
      %v1438 = vpop.f32.mrb[0].mxu0
      %1439 = vmatprep.mubr.bf16.mxu0 0
      %1440 = vmatmul.mubr.bf16.gmra.mrb[0].mxu0 %v1354
      %v1441 = vpop.f32.mrb[0].mxu0
      %v1442 = vadd.f32 0.0, %v1441
      %v1443 = vpop.f32.mrb[0].mxu0
      %v1444 = vpop.f32.mrb[0].mxu0
      %v1445 = vadd.f32 0.0, %v1444
      %v1446 = vpop.f32.mrb[0].mxu0
      %1447 = vmatprep.mubr.bf16.mxu0 0
      %1448 = vmatmul.mubr.bf16.gmra.mrb[0].mxu0 %v1357
      %v1449 = vpop.f32.mrb[0].mxu0
      %v1450 = vadd.f32 0.0, %v1449
      %v1451 = vpop.f32.mrb[0].mxu0
      %v1452 = vpop.f32.mrb[0].mxu0
      %v1453 = vadd.f32 0.0, %v1452
      %v1454 = vpop.f32.mrb[0].mxu0
      %1455 = vdwg.mxu0
      %v1456 = vadd.f32 %v1278, %v1394
      %v1457 = vadd.f32 %v1279, %v1397
      %v1458 = vadd.f32 %v1280, %v1402
      %v1459 = vadd.f32 %v1281, %v1405
      %v1460 = vadd.f32 %v1282, %v1410
      %v1461 = vadd.f32 %v1283, %v1413
      %v1462 = vadd.f32 %v1284, %v1418
      %v1463 = vadd.f32 %v1285, %v1421
      %v1464 = vadd.f32 %v1286, %v1426
      %v1465 = vadd.f32 %v1287, %v1429
      %v1466 = vadd.f32 %v1288, %v1434
      %v1467 = vadd.f32 %v1289, %v1437
      %v1468 = vadd.f32 %v1290, %v1442
      %v1469 = vadd.f32 %v1291, %v1445
      %v1470 = vadd.f32 %v1292, %v1450
      %v1471 = vadd.f32 %v1293, %v1453
      %v1472 = vld [vmem:[#allocation2 + $0x12] sm:$0xff]
      %v1473 = vld [vmem:[#allocation2 + $0x1a] sm:$0xff]
      %v1474 = vld [vmem:[#allocation2 + $0x22] sm:$0xff]
      %v1475 = vld [vmem:[#allocation2 + $0x2a] sm:$0xff]
      %v1476 = vld [vmem:[#allocation2 + $0x32] sm:$0xff]
      %v1477 = vld [vmem:[#allocation2 + $0x3a] sm:$0xff]
      %v1478 = vld [vmem:[#allocation2 + $0x42] sm:$0xff]
      %v1479 = vld [vmem:[#allocation2 + $0x4a] sm:$0xff]
      %v1480 = vld [vmem:[#allocation2 + $0x52] sm:$0xff]
      %v1481 = vld [vmem:[#allocation2 + $0x5a] sm:$0xff]
      %v1482 = vld [vmem:[#allocation2 + $0x62] sm:$0xff]
      %v1483 = vld [vmem:[#allocation2 + $0x6a] sm:$0xff]
      %v1484 = vld [vmem:[#allocation2 + $0x72] sm:$0xff]
      %v1485 = vld [vmem:[#allocation2 + $0x7a] sm:$0xff]
      %v1486 = vld [vmem:[#allocation2 + $0x82] sm:$0xff]
      %v1487 = vld [vmem:[#allocation2 + $0x8a] sm:$0xff]
      %v1488 = vmul.f32 %v1472, %v845
      %v1489 = vmul.f32 %v1473, %v850
      %v1490 = vmul.f32 %v1474, %v855
      %v1491 = vmul.f32 %v1475, %v860
      %v1492 = vmul.f32 %v1476, %v865
      %v1493 = vmul.f32 %v1477, %v870
      %v1494 = vmul.f32 %v1478, %v875
      %v1495 = vmul.f32 %v1479, %v880
      %v1496 = vmul.f32 %v1480, %v885
      %v1497 = vmul.f32 %v1481, %v890
      %v1498 = vmul.f32 %v1482, %v895
      %v1499 = vmul.f32 %v1483, %v900
      %v1500 = vmul.f32 %v1484, %v905
      %v1501 = vmul.f32 %v1485, %v910
      %v1502 = vmul.f32 %v1486, %v915
      %v1503 = vmul.f32 %v1487, %v920
      %v1504 = vpack.c.bf16 %v1489, %v1488
      %v1505 = vpack.c.bf16 %v1491, %v1490
      %v1506 = vpack.c.bf16 %v1493, %v1492
      %v1507 = vpack.c.bf16 %v1495, %v1494
      %v1508 = vpack.c.bf16 %v1497, %v1496
      %v1509 = vpack.c.bf16 %v1499, %v1498
      %v1510 = vpack.c.bf16 %v1501, %v1500
      %v1511 = vpack.c.bf16 %v1503, %v1502
      %s1512 = scalar_lea.vmem %s2, 80
      %v1513 = vld [vmem:[%s1512] sm:$0xf]
      %v1514 = vld [vmem:[%s1512 + $0x4] sm:$0xf]
      %v1515 = vld [vmem:[%s1512 + $0x8] sm:$0xf]
      %v1516 = vld [vmem:[%s1512 + $0xc] sm:$0xf]
      %v1521 = vunpack.c.l.b16 %v1513
      %v1522 = vunpack.c.l.b16 %v1514
      %v1523 = vunpack.c.l.b16 %v1515
      %v1524 = vunpack.c.l.b16 %v1516
      %v1525 = vpack.c.b16 %v1522, %v1521
      %v1526 = vpack.c.b16 %v1524, %v1523
      %v1530 = vsel %vm334, %v1504, 0
      %v1533 = vsel %vm334, %v1505, 0
      %v1536 = vsel %vm334, %v1506, 0
      %v1539 = vsel %vm334, %v1507, 0
      %v1542 = vsel %vm334, %v1508, 0
      %v1545 = vsel %vm334, %v1509, 0
      %v1548 = vsel %vm334, %v1510, 0
      %v1551 = vsel %vm334, %v1511, 0
      %1553 = vmatprep.subr.bf16.mxu0 0
      %1554 = vmatpush1.bf16.msra.mxu0 %v1525
      %1555 = vmatprep.subr.bf16.mxu0 0
      %1556 = vmatpush1.bf16.msra.mxu0 %v1526
      %1557 = vmatprep.subr.bf16.mxu0 0
      %1558 = vmatpush1.bf16.msra.mxu0 0
      %1559 = vmatprep.subr.bf16.mxu0 0
      %1560 = vmatpush1.bf16.msra.mxu0 0
      %1561 = vmatprep.subr.bf16.mxu0 0
      %1562 = vmatpush1.bf16.msra.mxu0 0
      %1563 = vmatprep.subr.bf16.mxu0 0
      %1564 = vmatpush1.bf16.msra.mxu0 0
      %1565 = vmatprep.subr.bf16.mxu0 0
      %1566 = vmatpush1.bf16.msra.mxu0 0
      %1567 = vmatprep.subr.bf16.mxu0 0
      %1568 = vmatpush1.bf16.msra.mxu0 0
      %1569 = vmatprep.subr.bf16.mxu0 0
      %1570 = vmatpush1.bf16.msra.mxu0 0
      %1571 = vmatprep.subr.bf16.mxu0 0
      %1572 = vmatpush1.bf16.msra.mxu0 0
      %1573 = vmatprep.subr.bf16.mxu0 0
      %1574 = vmatpush1.bf16.msra.mxu0 0
      %1575 = vmatprep.subr.bf16.mxu0 0
      %1576 = vmatpush1.bf16.msra.mxu0 0
      %1577 = vmatprep.subr.bf16.mxu0 0
      %1578 = vmatpush1.bf16.msra.mxu0 0
      %1579 = vmatprep.subr.bf16.mxu0 0
      %1580 = vmatpush1.bf16.msra.mxu0 0
      %1581 = vmatprep.subr.bf16.mxu0 0
      %1582 = vmatpush1.bf16.msra.mxu0 0
      %1583 = vmatprep.subr.bf16.mxu0 0
      %1584 = vmatpush1.bf16.msra.mxu0 0
      %1585 = vmatprep.mubr.bf16.mxu0 0
      %1586 = vmatmul.mubr.bf16.gmra.mrb[0].mxu0 %v1530
      %v1587 = vpop.f32.mrb[0].mxu0
      %v1588 = vadd.f32 0.0, %v1587
      %v1589 = vpop.f32.mrb[0].mxu0
      %v1590 = vpop.f32.mrb[0].mxu0
      %v1591 = vadd.f32 0.0, %v1590
      %v1592 = vpop.f32.mrb[0].mxu0
      %1593 = vmatprep.mubr.bf16.mxu0 0
      %1594 = vmatmul.mubr.bf16.gmra.mrb[0].mxu0 %v1533
      %v1595 = vpop.f32.mrb[0].mxu0
      %v1596 = vadd.f32 0.0, %v1595
      %v1597 = vpop.f32.mrb[0].mxu0
      %v1598 = vpop.f32.mrb[0].mxu0
      %v1599 = vadd.f32 0.0, %v1598
      %v1600 = vpop.f32.mrb[0].mxu0
      %1601 = vmatprep.mubr.bf16.mxu0 0
      %1602 = vmatmul.mubr.bf16.gmra.mrb[0].mxu0 %v1536
      %v1603 = vpop.f32.mrb[0].mxu0
      %v1604 = vadd.f32 0.0, %v1603
      %v1605 = vpop.f32.mrb[0].mxu0
      %v1606 = vpop.f32.mrb[0].mxu0
      %v1607 = vadd.f32 0.0, %v1606
      %v1608 = vpop.f32.mrb[0].mxu0
      %1609 = vmatprep.mubr.bf16.mxu0 0
      %1610 = vmatmul.mubr.bf16.gmra.mrb[0].mxu0 %v1539
      %v1611 = vpop.f32.mrb[0].mxu0
      %v1612 = vadd.f32 0.0, %v1611
      %v1613 = vpop.f32.mrb[0].mxu0
      %v1614 = vpop.f32.mrb[0].mxu0
      %v1615 = vadd.f32 0.0, %v1614
      %v1616 = vpop.f32.mrb[0].mxu0
      %1617 = vmatprep.mubr.bf16.mxu0 0
      %1618 = vmatmul.mubr.bf16.gmra.mrb[0].mxu0 %v1542
      %v1619 = vpop.f32.mrb[0].mxu0
      %v1620 = vadd.f32 0.0, %v1619
      %v1621 = vpop.f32.mrb[0].mxu0
      %v1622 = vpop.f32.mrb[0].mxu0
      %v1623 = vadd.f32 0.0, %v1622
      %v1624 = vpop.f32.mrb[0].mxu0
      %1625 = vmatprep.mubr.bf16.mxu0 0
      %1626 = vmatmul.mubr.bf16.gmra.mrb[0].mxu0 %v1545
      %v1627 = vpop.f32.mrb[0].mxu0
      %v1628 = vadd.f32 0.0, %v1627
      %v1629 = vpop.f32.mrb[0].mxu0
      %v1630 = vpop.f32.mrb[0].mxu0
      %v1631 = vadd.f32 0.0, %v1630
      %v1632 = vpop.f32.mrb[0].mxu0
      %1633 = vmatprep.mubr.bf16.mxu0 0
      %1634 = vmatmul.mubr.bf16.gmra.mrb[0].mxu0 %v1548
      %v1635 = vpop.f32.mrb[0].mxu0
      %v1636 = vadd.f32 0.0, %v1635
      %v1637 = vpop.f32.mrb[0].mxu0
      %v1638 = vpop.f32.mrb[0].mxu0
      %v1639 = vadd.f32 0.0, %v1638
      %v1640 = vpop.f32.mrb[0].mxu0
      %1641 = vmatprep.mubr.bf16.mxu0 0
      %1642 = vmatmul.mubr.bf16.gmra.mrb[0].mxu0 %v1551
      %v1643 = vpop.f32.mrb[0].mxu0
      %v1644 = vadd.f32 0.0, %v1643
      %v1645 = vpop.f32.mrb[0].mxu0
      %v1646 = vpop.f32.mrb[0].mxu0
      %v1647 = vadd.f32 0.0, %v1646
      %v1648 = vpop.f32.mrb[0].mxu0
      %1649 = vdwg.mxu0
      %v1650 = vadd.f32 %v1456, %v1588
      %v1651 = vadd.f32 %v1457, %v1591
      %v1652 = vadd.f32 %v1458, %v1596
      %v1653 = vadd.f32 %v1459, %v1599
      %v1654 = vadd.f32 %v1460, %v1604
      %v1655 = vadd.f32 %v1461, %v1607
      %v1656 = vadd.f32 %v1462, %v1612
      %v1657 = vadd.f32 %v1463, %v1615
      %v1658 = vadd.f32 %v1464, %v1620
      %v1659 = vadd.f32 %v1465, %v1623
      %v1660 = vadd.f32 %v1466, %v1628
      %v1661 = vadd.f32 %v1467, %v1631
      %v1662 = vadd.f32 %v1468, %v1636
      %v1663 = vadd.f32 %v1469, %v1639
      %v1664 = vadd.f32 %v1470, %v1644
      %v1665 = vadd.f32 %v1471, %v1647
      %v1666 = vld [vmem:[#allocation2 + $0x20] sm:$0xff]
      %v1667 = vld [vmem:[#allocation2 + $0x28] sm:$0xff]
      %v1668 = vld [vmem:[#allocation2 + $0x30] sm:$0xff]
      %v1669 = vld [vmem:[#allocation2 + $0x38] sm:$0xff]
      %v1670 = vld [vmem:[#allocation2 + $0x40] sm:$0xff]
      %v1671 = vld [vmem:[#allocation2 + $0x48] sm:$0xff]
      %v1672 = vld [vmem:[#allocation2 + $0x50] sm:$0xff]
      %v1673 = vld [vmem:[#allocation2 + $0x58] sm:$0xff]
      %v1674 = vld [vmem:[#allocation2 + $0x60] sm:$0xff]
      %v1675 = vld [vmem:[#allocation2 + $0x68] sm:$0xff]
      %v1676 = vld [vmem:[#allocation2 + $0x70] sm:$0xff]
      %v1677 = vld [vmem:[#allocation2 + $0x78] sm:$0xff]
      %v1678 = vld [vmem:[#allocation2 + $0x80] sm:$0xff]
      %v1679 = vld [vmem:[#allocation2 + $0x88] sm:$0xff]
      %v1680 = vld [vmem:[#allocation2 + $0x90] sm:$0xff]
      %v1681 = vld [vmem:[#allocation2 + $0x98] sm:$0xff]
      %v1682 = vmul.f32 %v1666, %v409
      %v1683 = vmul.f32 %v1667, %v414
      %v1684 = vmul.f32 %v1668, %v419
      %v1685 = vmul.f32 %v1669, %v424
      %v1686 = vmul.f32 %v1670, %v429
      %v1687 = vmul.f32 %v1671, %v434
      %v1688 = vmul.f32 %v1672, %v439
      %v1689 = vmul.f32 %v1673, %v444
      %v1690 = vmul.f32 %v1674, %v449
      %v1691 = vmul.f32 %v1675, %v454
      %v1692 = vmul.f32 %v1676, %v459
      %v1693 = vmul.f32 %v1677, %v464
      %v1694 = vmul.f32 %v1678, %v469
      %v1695 = vmul.f32 %v1679, %v474
      %v1696 = vmul.f32 %v1680, %v479
      %v1697 = vmul.f32 %v1681, %v484
      %v1698 = vpack.c.bf16 %v1683, %v1682
      %v1699 = vpack.c.bf16 %v1685, %v1684
      %v1700 = vpack.c.bf16 %v1687, %v1686
      %v1701 = vpack.c.bf16 %v1689, %v1688
      %v1702 = vpack.c.bf16 %v1691, %v1690
      %v1703 = vpack.c.bf16 %v1693, %v1692
      %v1704 = vpack.c.bf16 %v1695, %v1694
      %v1705 = vpack.c.bf16 %v1697, %v1696
      %s1706 = scalar_lea.vmem %s2, 96
      %v1707 = vld [vmem:[%s1706] sm:$0xf]
      %v1708 = vld [vmem:[%s1706 + $0x4] sm:$0xf]
      %v1709 = vld [vmem:[%s1706 + $0x8] sm:$0xf]
      %v1710 = vld [vmem:[%s1706 + $0xc] sm:$0xf]
      %v1715 = vunpack.c.l.b16 %v1707
      %v1716 = vunpack.c.l.b16 %v1708
      %v1717 = vunpack.c.l.b16 %v1709
      %v1718 = vunpack.c.l.b16 %v1710
      %v1719 = vpack.c.b16 %v1716, %v1715
      %v1720 = vpack.c.b16 %v1718, %v1717
      %v1724 = vsel %vm334, %v1698, 0
      %v1727 = vsel %vm334, %v1699, 0
      %v1730 = vsel %vm334, %v1700, 0
      %v1733 = vsel %vm334, %v1701, 0
      %v1736 = vsel %vm334, %v1702, 0
      %v1739 = vsel %vm334, %v1703, 0
      %v1742 = vsel %vm334, %v1704, 0
      %v1745 = vsel %vm334, %v1705, 0
      %1747 = vmatprep.subr.bf16.mxu0 0
      %1748 = vmatpush1.bf16.msra.mxu0 %v1719
      %1749 = vmatprep.subr.bf16.mxu0 0
      %1750 = vmatpush1.bf16.msra.mxu0 %v1720
      %1751 = vmatprep.subr.bf16.mxu0 0
      %1752 = vmatpush1.bf16.msra.mxu0 0
      %1753 = vmatprep.subr.bf16.mxu0 0
      %1754 = vmatpush1.bf16.msra.mxu0 0
      %1755 = vmatprep.subr.bf16.mxu0 0
      %1756 = vmatpush1.bf16.msra.mxu0 0
      %1757 = vmatprep.subr.bf16.mxu0 0
      %1758 = vmatpush1.bf16.msra.mxu0 0
      %1759 = vmatprep.subr.bf16.mxu0 0
      %1760 = vmatpush1.bf16.msra.mxu0 0
      %1761 = vmatprep.subr.bf16.mxu0 0
      %1762 = vmatpush1.bf16.msra.mxu0 0
      %1763 = vmatprep.subr.bf16.mxu0 0
      %1764 = vmatpush1.bf16.msra.mxu0 0
      %1765 = vmatprep.subr.bf16.mxu0 0
      %1766 = vmatpush1.bf16.msra.mxu0 0
      %1767 = vmatprep.subr.bf16.mxu0 0
      %1768 = vmatpush1.bf16.msra.mxu0 0
      %1769 = vmatprep.subr.bf16.mxu0 0
      %1770 = vmatpush1.bf16.msra.mxu0 0
      %1771 = vmatprep.subr.bf16.mxu0 0
      %1772 = vmatpush1.bf16.msra.mxu0 0
      %1773 = vmatprep.subr.bf16.mxu0 0
      %1774 = vmatpush1.bf16.msra.mxu0 0
      %1775 = vmatprep.subr.bf16.mxu0 0
      %1776 = vmatpush1.bf16.msra.mxu0 0
      %1777 = vmatprep.subr.bf16.mxu0 0
      %1778 = vmatpush1.bf16.msra.mxu0 0
      %1779 = vmatprep.mubr.bf16.mxu0 0
      %1780 = vmatmul.mubr.bf16.gmra.mrb[0].mxu0 %v1724
      %v1781 = vpop.f32.mrb[0].mxu0
      %v1782 = vadd.f32 0.0, %v1781
      %v1783 = vpop.f32.mrb[0].mxu0
      %v1784 = vpop.f32.mrb[0].mxu0
      %v1785 = vadd.f32 0.0, %v1784
      %v1786 = vpop.f32.mrb[0].mxu0
      %1787 = vmatprep.mubr.bf16.mxu0 0
      %1788 = vmatmul.mubr.bf16.gmra.mrb[0].mxu0 %v1727
      %v1789 = vpop.f32.mrb[0].mxu0
      %v1790 = vadd.f32 0.0, %v1789
      %v1791 = vpop.f32.mrb[0].mxu0
      %v1792 = vpop.f32.mrb[0].mxu0
      %v1793 = vadd.f32 0.0, %v1792
      %v1794 = vpop.f32.mrb[0].mxu0
      %1795 = vmatprep.mubr.bf16.mxu0 0
      %1796 = vmatmul.mubr.bf16.gmra.mrb[0].mxu0 %v1730
      %v1797 = vpop.f32.mrb[0].mxu0
      %v1798 = vadd.f32 0.0, %v1797
      %v1799 = vpop.f32.mrb[0].mxu0
      %v1800 = vpop.f32.mrb[0].mxu0
      %v1801 = vadd.f32 0.0, %v1800
      %v1802 = vpop.f32.mrb[0].mxu0
      %1803 = vmatprep.mubr.bf16.mxu0 0
      %1804 = vmatmul.mubr.bf16.gmra.mrb[0].mxu0 %v1733
      %v1805 = vpop.f32.mrb[0].mxu0
      %v1806 = vadd.f32 0.0, %v1805
      %v1807 = vpop.f32.mrb[0].mxu0
      %v1808 = vpop.f32.mrb[0].mxu0
      %v1809 = vadd.f32 0.0, %v1808
      %v1810 = vpop.f32.mrb[0].mxu0
      %1811 = vmatprep.mubr.bf16.mxu0 0
      %1812 = vmatmul.mubr.bf16.gmra.mrb[0].mxu0 %v1736
      %v1813 = vpop.f32.mrb[0].mxu0
      %v1814 = vadd.f32 0.0, %v1813
      %v1815 = vpop.f32.mrb[0].mxu0
      %v1816 = vpop.f32.mrb[0].mxu0
      %v1817 = vadd.f32 0.0, %v1816
      %v1818 = vpop.f32.mrb[0].mxu0
      %1819 = vmatprep.mubr.bf16.mxu0 0
      %1820 = vmatmul.mubr.bf16.gmra.mrb[0].mxu0 %v1739
      %v1821 = vpop.f32.mrb[0].mxu0
      %v1822 = vadd.f32 0.0, %v1821
      %v1823 = vpop.f32.mrb[0].mxu0
      %v1824 = vpop.f32.mrb[0].mxu0
      %v1825 = vadd.f32 0.0, %v1824
      %v1826 = vpop.f32.mrb[0].mxu0
      %1827 = vmatprep.mubr.bf16.mxu0 0
      %1828 = vmatmul.mubr.bf16.gmra.mrb[0].mxu0 %v1742
      %v1829 = vpop.f32.mrb[0].mxu0
      %v1830 = vadd.f32 0.0, %v1829
      %v1831 = vpop.f32.mrb[0].mxu0
      %v1832 = vpop.f32.mrb[0].mxu0
      %v1833 = vadd.f32 0.0, %v1832
      %v1834 = vpop.f32.mrb[0].mxu0
      %1835 = vmatprep.mubr.bf16.mxu0 0
      %1836 = vmatmul.mubr.bf16.gmra.mrb[0].mxu0 %v1745
      %v1837 = vpop.f32.mrb[0].mxu0
      %v1838 = vadd.f32 0.0, %v1837
      %v1839 = vpop.f32.mrb[0].mxu0
      %v1840 = vpop.f32.mrb[0].mxu0
      %v1841 = vadd.f32 0.0, %v1840
      %v1842 = vpop.f32.mrb[0].mxu0
      %1843 = vdwg.mxu0
      %v1844 = vadd.f32 %v1650, %v1782
      %v1845 = vadd.f32 %v1651, %v1785
      %v1846 = vadd.f32 %v1652, %v1790
      %v1847 = vadd.f32 %v1653, %v1793
      %v1848 = vadd.f32 %v1654, %v1798
      %v1849 = vadd.f32 %v1655, %v1801
      %v1850 = vadd.f32 %v1656, %v1806
      %v1851 = vadd.f32 %v1657, %v1809
      %v1852 = vadd.f32 %v1658, %v1814
      %v1853 = vadd.f32 %v1659, %v1817
      %v1854 = vadd.f32 %v1660, %v1822
      %v1855 = vadd.f32 %v1661, %v1825
      %v1856 = vadd.f32 %v1662, %v1830
      %v1857 = vadd.f32 %v1663, %v1833
      %v1858 = vadd.f32 %v1664, %v1838
      %v1859 = vadd.f32 %v1665, %v1841
      %v1860 = vld [vmem:[#allocation2 + $0x21] sm:$0xff]
      %v1861 = vld [vmem:[#allocation2 + $0x29] sm:$0xff]
      %v1862 = vld [vmem:[#allocation2 + $0x31] sm:$0xff]
      %v1863 = vld [vmem:[#allocation2 + $0x39] sm:$0xff]
      %v1864 = vld [vmem:[#allocation2 + $0x41] sm:$0xff]
      %v1865 = vld [vmem:[#allocation2 + $0x49] sm:$0xff]
      %v1866 = vld [vmem:[#allocation2 + $0x51] sm:$0xff]
      %v1867 = vld [vmem:[#allocation2 + $0x59] sm:$0xff]
      %v1868 = vld [vmem:[#allocation2 + $0x61] sm:$0xff]
      %v1869 = vld [vmem:[#allocation2 + $0x69] sm:$0xff]
      %v1870 = vld [vmem:[#allocation2 + $0x71] sm:$0xff]
      %v1871 = vld [vmem:[#allocation2 + $0x79] sm:$0xff]
      %v1872 = vld [vmem:[#allocation2 + $0x81] sm:$0xff]
      %v1873 = vld [vmem:[#allocation2 + $0x89] sm:$0xff]
      %v1874 = vld [vmem:[#allocation2 + $0x91] sm:$0xff]
      %v1875 = vld [vmem:[#allocation2 + $0x99] sm:$0xff]
      %v1876 = vpack.c.bf16 %v1861, %v1860
      %v1877 = vpack.c.bf16 %v1863, %v1862
      %v1878 = vpack.c.bf16 %v1865, %v1864
      %v1879 = vpack.c.bf16 %v1867, %v1866
      %v1880 = vpack.c.bf16 %v1869, %v1868
      %v1881 = vpack.c.bf16 %v1871, %v1870
      %v1882 = vpack.c.bf16 %v1873, %v1872
      %v1883 = vpack.c.bf16 %v1875, %v1874
      %s1884 = scalar_lea.vmem %s2, 112
      %v1885 = vld [vmem:[%s1884] sm:$0xf]
      %v1886 = vld [vmem:[%s1884 + $0x4] sm:$0xf]
      %v1887 = vld [vmem:[%s1884 + $0x8] sm:$0xf]
      %v1888 = vld [vmem:[%s1884 + $0xc] sm:$0xf]
      %v1893 = vunpack.c.l.b16 %v1885
      %v1894 = vunpack.c.l.b16 %v1886
      %v1895 = vunpack.c.l.b16 %v1887
      %v1896 = vunpack.c.l.b16 %v1888
      %v1897 = vpack.c.b16 %v1894, %v1893
      %v1898 = vpack.c.b16 %v1896, %v1895
      %v1902 = vsel %vm334, %v1876, 0
      %v1905 = vsel %vm334, %v1877, 0
      %v1908 = vsel %vm334, %v1878, 0
      %v1911 = vsel %vm334, %v1879, 0
      %v1914 = vsel %vm334, %v1880, 0
      %v1917 = vsel %vm334, %v1881, 0
      %v1920 = vsel %vm334, %v1882, 0
      %v1923 = vsel %vm334, %v1883, 0
      %1925 = vmatprep.subr.bf16.mxu0 0
      %1926 = vmatpush1.bf16.msra.mxu0 %v1897
      %1927 = vmatprep.subr.bf16.mxu0 0
      %1928 = vmatpush1.bf16.msra.mxu0 %v1898
      %1929 = vmatprep.subr.bf16.mxu0 0
      %1930 = vmatpush1.bf16.msra.mxu0 0
      %1931 = vmatprep.subr.bf16.mxu0 0
      %1932 = vmatpush1.bf16.msra.mxu0 0
      %1933 = vmatprep.subr.bf16.mxu0 0
      %1934 = vmatpush1.bf16.msra.mxu0 0
      %1935 = vmatprep.subr.bf16.mxu0 0
      %1936 = vmatpush1.bf16.msra.mxu0 0
      %1937 = vmatprep.subr.bf16.mxu0 0
      %1938 = vmatpush1.bf16.msra.mxu0 0
      %1939 = vmatprep.subr.bf16.mxu0 0
      %1940 = vmatpush1.bf16.msra.mxu0 0
      %1941 = vmatprep.subr.bf16.mxu0 0
      %1942 = vmatpush1.bf16.msra.mxu0 0
      %1943 = vmatprep.subr.bf16.mxu0 0
      %1944 = vmatpush1.bf16.msra.mxu0 0
      %1945 = vmatprep.subr.bf16.mxu0 0
      %1946 = vmatpush1.bf16.msra.mxu0 0
      %1947 = vmatprep.subr.bf16.mxu0 0
      %1948 = vmatpush1.bf16.msra.mxu0 0
      %1949 = vmatprep.subr.bf16.mxu0 0
      %1950 = vmatpush1.bf16.msra.mxu0 0
      %1951 = vmatprep.subr.bf16.mxu0 0
      %1952 = vmatpush1.bf16.msra.mxu0 0
      %1953 = vmatprep.subr.bf16.mxu0 0
      %1954 = vmatpush1.bf16.msra.mxu0 0
      %1955 = vmatprep.subr.bf16.mxu0 0
      %1956 = vmatpush1.bf16.msra.mxu0 0
      %1957 = vmatprep.mubr.bf16.mxu0 0
      %1958 = vmatmul.mubr.bf16.gmra.mrb[0].mxu0 %v1902
      %v1959 = vpop.f32.mrb[0].mxu0
      %v1960 = vadd.f32 0.0, %v1959
      %v1961 = vpop.f32.mrb[0].mxu0
      %v1962 = vpop.f32.mrb[0].mxu0
      %v1963 = vadd.f32 0.0, %v1962
      %v1964 = vpop.f32.mrb[0].mxu0
      %1965 = vmatprep.mubr.bf16.mxu0 0
      %1966 = vmatmul.mubr.bf16.gmra.mrb[0].mxu0 %v1905
      %v1967 = vpop.f32.mrb[0].mxu0
      %v1968 = vadd.f32 0.0, %v1967
      %v1969 = vpop.f32.mrb[0].mxu0
      %v1970 = vpop.f32.mrb[0].mxu0
      %v1971 = vadd.f32 0.0, %v1970
      %v1972 = vpop.f32.mrb[0].mxu0
      %1973 = vmatprep.mubr.bf16.mxu0 0
      %1974 = vmatmul.mubr.bf16.gmra.mrb[0].mxu0 %v1908
      %v1975 = vpop.f32.mrb[0].mxu0
      %v1976 = vadd.f32 0.0, %v1975
      %v1977 = vpop.f32.mrb[0].mxu0
      %v1978 = vpop.f32.mrb[0].mxu0
      %v1979 = vadd.f32 0.0, %v1978
      %v1980 = vpop.f32.mrb[0].mxu0
      %1981 = vmatprep.mubr.bf16.mxu0 0
      %1982 = vmatmul.mubr.bf16.gmra.mrb[0].mxu0 %v1911
      %v1983 = vpop.f32.mrb[0].mxu0
      %v1984 = vadd.f32 0.0, %v1983
      %v1985 = vpop.f32.mrb[0].mxu0
      %v1986 = vpop.f32.mrb[0].mxu0
      %v1987 = vadd.f32 0.0, %v1986
      %v1988 = vpop.f32.mrb[0].mxu0
      %1989 = vmatprep.mubr.bf16.mxu0 0
      %1990 = vmatmul.mubr.bf16.gmra.mrb[0].mxu0 %v1914
      %v1991 = vpop.f32.mrb[0].mxu0
      %v1992 = vadd.f32 0.0, %v1991
      %v1993 = vpop.f32.mrb[0].mxu0
      %v1994 = vpop.f32.mrb[0].mxu0
      %v1995 = vadd.f32 0.0, %v1994
      %v1996 = vpop.f32.mrb[0].mxu0
      %1997 = vmatprep.mubr.bf16.mxu0 0
      %1998 = vmatmul.mubr.bf16.gmra.mrb[0].mxu0 %v1917
      %v1999 = vpop.f32.mrb[0].mxu0
      %v2000 = vadd.f32 0.0, %v1999
      %v2001 = vpop.f32.mrb[0].mxu0
      %v2002 = vpop.f32.mrb[0].mxu0
      %v2003 = vadd.f32 0.0, %v2002
      %v2004 = vpop.f32.mrb[0].mxu0
      %2005 = vmatprep.mubr.bf16.mxu0 0
      %2006 = vmatmul.mubr.bf16.gmra.mrb[0].mxu0 %v1920
      %v2007 = vpop.f32.mrb[0].mxu0
      %v2008 = vadd.f32 0.0, %v2007
      %v2009 = vpop.f32.mrb[0].mxu0
      %v2010 = vpop.f32.mrb[0].mxu0
      %v2011 = vadd.f32 0.0, %v2010
      %v2012 = vpop.f32.mrb[0].mxu0
      %2013 = vmatprep.mubr.bf16.mxu0 0
      %2014 = vmatmul.mubr.bf16.gmra.mrb[0].mxu0 %v1923
      %v2015 = vpop.f32.mrb[0].mxu0
      %v2016 = vadd.f32 0.0, %v2015
      %v2017 = vpop.f32.mrb[0].mxu0
      %v2018 = vpop.f32.mrb[0].mxu0
      %v2019 = vadd.f32 0.0, %v2018
      %v2020 = vpop.f32.mrb[0].mxu0
      %2021 = vdwg.mxu0
      %v2022 = vadd.f32 %v1844, %v1960
      %v2023 = vadd.f32 %v1845, %v1963
      %v2024 = vadd.f32 %v1846, %v1968
      %v2025 = vadd.f32 %v1847, %v1971
      %v2026 = vadd.f32 %v1848, %v1976
      %v2027 = vadd.f32 %v1849, %v1979
      %v2028 = vadd.f32 %v1850, %v1984
      %v2029 = vadd.f32 %v1851, %v1987
      %v2030 = vadd.f32 %v1852, %v1992
      %v2031 = vadd.f32 %v1853, %v1995
      %v2032 = vadd.f32 %v1854, %v2000
      %v2033 = vadd.f32 %v1855, %v2003
      %v2034 = vadd.f32 %v1856, %v2008
      %v2035 = vadd.f32 %v1857, %v2011
      %v2036 = vadd.f32 %v1858, %v2016
      %v2037 = vadd.f32 %v1859, %v2019
      %v2038 = vld [vmem:[#allocation2 + $0x22] sm:$0xff]
      %v2039 = vld [vmem:[#allocation2 + $0x2a] sm:$0xff]
      %v2040 = vld [vmem:[#allocation2 + $0x32] sm:$0xff]
      %v2041 = vld [vmem:[#allocation2 + $0x3a] sm:$0xff]
      %v2042 = vld [vmem:[#allocation2 + $0x42] sm:$0xff]
      %v2043 = vld [vmem:[#allocation2 + $0x4a] sm:$0xff]
      %v2044 = vld [vmem:[#allocation2 + $0x52] sm:$0xff]
      %v2045 = vld [vmem:[#allocation2 + $0x5a] sm:$0xff]
      %v2046 = vld [vmem:[#allocation2 + $0x62] sm:$0xff]
      %v2047 = vld [vmem:[#allocation2 + $0x6a] sm:$0xff]
      %v2048 = vld [vmem:[#allocation2 + $0x72] sm:$0xff]
      %v2049 = vld [vmem:[#allocation2 + $0x7a] sm:$0xff]
      %v2050 = vld [vmem:[#allocation2 + $0x82] sm:$0xff]
      %v2051 = vld [vmem:[#allocation2 + $0x8a] sm:$0xff]
      %v2052 = vld [vmem:[#allocation2 + $0x92] sm:$0xff]
      %v2053 = vld [vmem:[#allocation2 + $0x9a] sm:$0xff]
      %v2054 = vmul.f32 %v2038, %v845
      %v2055 = vmul.f32 %v2039, %v850
      %v2056 = vmul.f32 %v2040, %v855
      %v2057 = vmul.f32 %v2041, %v860
      %v2058 = vmul.f32 %v2042, %v865
      %v2059 = vmul.f32 %v2043, %v870
      %v2060 = vmul.f32 %v2044, %v875
      %v2061 = vmul.f32 %v2045, %v880
      %v2062 = vmul.f32 %v2046, %v885
      %v2063 = vmul.f32 %v2047, %v890
      %v2064 = vmul.f32 %v2048, %v895
      %v2065 = vmul.f32 %v2049, %v900
      %v2066 = vmul.f32 %v2050, %v905
      %v2067 = vmul.f32 %v2051, %v910
      %v2068 = vmul.f32 %v2052, %v915
      %v2069 = vmul.f32 %v2053, %v920
      %v2070 = vpack.c.bf16 %v2055, %v2054
      %v2071 = vpack.c.bf16 %v2057, %v2056
      %v2072 = vpack.c.bf16 %v2059, %v2058
      %v2073 = vpack.c.bf16 %v2061, %v2060
      %v2074 = vpack.c.bf16 %v2063, %v2062
      %v2075 = vpack.c.bf16 %v2065, %v2064
      %v2076 = vpack.c.bf16 %v2067, %v2066
      %v2077 = vpack.c.bf16 %v2069, %v2068
      %s2078 = scalar_lea.vmem %s2, 128
      %v2079 = vld [vmem:[%s2078] sm:$0xf]
      %v2080 = vld [vmem:[%s2078 + $0x4] sm:$0xf]
      %v2081 = vld [vmem:[%s2078 + $0x8] sm:$0xf]
      %v2082 = vld [vmem:[%s2078 + $0xc] sm:$0xf]
      %v2087 = vunpack.c.l.b16 %v2079
      %v2088 = vunpack.c.l.b16 %v2080
      %v2089 = vunpack.c.l.b16 %v2081
      %v2090 = vunpack.c.l.b16 %v2082
      %v2091 = vpack.c.b16 %v2088, %v2087
      %v2092 = vpack.c.b16 %v2090, %v2089
      %v2096 = vsel %vm334, %v2070, 0
      %v2099 = vsel %vm334, %v2071, 0
      %v2102 = vsel %vm334, %v2072, 0
      %v2105 = vsel %vm334, %v2073, 0
      %v2108 = vsel %vm334, %v2074, 0
      %v2111 = vsel %vm334, %v2075, 0
      %v2114 = vsel %vm334, %v2076, 0
      %v2117 = vsel %vm334, %v2077, 0
      %2119 = vmatprep.subr.bf16.mxu0 0
      %2120 = vmatpush1.bf16.msra.mxu0 %v2091
      %2121 = vmatprep.subr.bf16.mxu0 0
      %2122 = vmatpush1.bf16.msra.mxu0 %v2092
      %2123 = vmatprep.subr.bf16.mxu0 0
      %2124 = vmatpush1.bf16.msra.mxu0 0
      %2125 = vmatprep.subr.bf16.mxu0 0
      %2126 = vmatpush1.bf16.msra.mxu0 0
      %2127 = vmatprep.subr.bf16.mxu0 0
      %2128 = vmatpush1.bf16.msra.mxu0 0
      %2129 = vmatprep.subr.bf16.mxu0 0
      %2130 = vmatpush1.bf16.msra.mxu0 0
      %2131 = vmatprep.subr.bf16.mxu0 0
      %2132 = vmatpush1.bf16.msra.mxu0 0
      %2133 = vmatprep.subr.bf16.mxu0 0
      %2134 = vmatpush1.bf16.msra.mxu0 0
      %2135 = vmatprep.subr.bf16.mxu0 0
      %2136 = vmatpush1.bf16.msra.mxu0 0
      %2137 = vmatprep.subr.bf16.mxu0 0
      %2138 = vmatpush1.bf16.msra.mxu0 0
      %2139 = vmatprep.subr.bf16.mxu0 0
      %2140 = vmatpush1.bf16.msra.mxu0 0
      %2141 = vmatprep.subr.bf16.mxu0 0
      %2142 = vmatpush1.bf16.msra.mxu0 0
      %2143 = vmatprep.subr.bf16.mxu0 0
      %2144 = vmatpush1.bf16.msra.mxu0 0
      %2145 = vmatprep.subr.bf16.mxu0 0
      %2146 = vmatpush1.bf16.msra.mxu0 0
      %2147 = vmatprep.subr.bf16.mxu0 0
      %2148 = vmatpush1.bf16.msra.mxu0 0
      %2149 = vmatprep.subr.bf16.mxu0 0
      %2150 = vmatpush1.bf16.msra.mxu0 0
      %2151 = vmatprep.mubr.bf16.mxu0 0
      %2152 = vmatmul.mubr.bf16.gmra.mrb[0].mxu0 %v2096
      %v2153 = vpop.f32.mrb[0].mxu0
      %v2154 = vadd.f32 0.0, %v2153
      %v2155 = vpop.f32.mrb[0].mxu0
      %v2156 = vpop.f32.mrb[0].mxu0
      %v2157 = vadd.f32 0.0, %v2156
      %v2158 = vpop.f32.mrb[0].mxu0
      %2159 = vmatprep.mubr.bf16.mxu0 0
      %2160 = vmatmul.mubr.bf16.gmra.mrb[0].mxu0 %v2099
      %v2161 = vpop.f32.mrb[0].mxu0
      %v2162 = vadd.f32 0.0, %v2161
      %v2163 = vpop.f32.mrb[0].mxu0
      %v2164 = vpop.f32.mrb[0].mxu0
      %v2165 = vadd.f32 0.0, %v2164
      %v2166 = vpop.f32.mrb[0].mxu0
      %2167 = vmatprep.mubr.bf16.mxu0 0
      %2168 = vmatmul.mubr.bf16.gmra.mrb[0].mxu0 %v2102
      %v2169 = vpop.f32.mrb[0].mxu0
      %v2170 = vadd.f32 0.0, %v2169
      %v2171 = vpop.f32.mrb[0].mxu0
      %v2172 = vpop.f32.mrb[0].mxu0
      %v2173 = vadd.f32 0.0, %v2172
      %v2174 = vpop.f32.mrb[0].mxu0
      %2175 = vmatprep.mubr.bf16.mxu0 0
      %2176 = vmatmul.mubr.bf16.gmra.mrb[0].mxu0 %v2105
      %v2177 = vpop.f32.mrb[0].mxu0
      %v2178 = vadd.f32 0.0, %v2177
      %v2179 = vpop.f32.mrb[0].mxu0
      %v2180 = vpop.f32.mrb[0].mxu0
      %v2181 = vadd.f32 0.0, %v2180
      %v2182 = vpop.f32.mrb[0].mxu0
      %2183 = vmatprep.mubr.bf16.mxu0 0
      %2184 = vmatmul.mubr.bf16.gmra.mrb[0].mxu0 %v2108
      %v2185 = vpop.f32.mrb[0].mxu0
      %v2186 = vadd.f32 0.0, %v2185
      %v2187 = vpop.f32.mrb[0].mxu0
      %v2188 = vpop.f32.mrb[0].mxu0
      %v2189 = vadd.f32 0.0, %v2188
      %v2190 = vpop.f32.mrb[0].mxu0
      %2191 = vmatprep.mubr.bf16.mxu0 0
      %2192 = vmatmul.mubr.bf16.gmra.mrb[0].mxu0 %v2111
      %v2193 = vpop.f32.mrb[0].mxu0
      %v2194 = vadd.f32 0.0, %v2193
      %v2195 = vpop.f32.mrb[0].mxu0
      %v2196 = vpop.f32.mrb[0].mxu0
      %v2197 = vadd.f32 0.0, %v2196
      %v2198 = vpop.f32.mrb[0].mxu0
      %2199 = vmatprep.mubr.bf16.mxu0 0
      %2200 = vmatmul.mubr.bf16.gmra.mrb[0].mxu0 %v2114
      %v2201 = vpop.f32.mrb[0].mxu0
      %v2202 = vadd.f32 0.0, %v2201
      %v2203 = vpop.f32.mrb[0].mxu0
      %v2204 = vpop.f32.mrb[0].mxu0
      %v2205 = vadd.f32 0.0, %v2204
      %v2206 = vpop.f32.mrb[0].mxu0
      %2207 = vmatprep.mubr.bf16.mxu0 0
      %2208 = vmatmul.mubr.bf16.gmra.mrb[0].mxu0 %v2117
      %v2209 = vpop.f32.mrb[0].mxu0
      %v2210 = vadd.f32 0.0, %v2209
      %v2211 = vpop.f32.mrb[0].mxu0
      %v2212 = vpop.f32.mrb[0].mxu0
      %v2213 = vadd.f32 0.0, %v2212
      %v2214 = vpop.f32.mrb[0].mxu0
      %2215 = vdwg.mxu0
      %v2216 = vadd.f32 %v2022, %v2154
      %v2217 = vadd.f32 %v2023, %v2157
      %v2218 = vadd.f32 %v2024, %v2162
      %v2219 = vadd.f32 %v2025, %v2165
      %v2220 = vadd.f32 %v2026, %v2170
      %v2221 = vadd.f32 %v2027, %v2173
      %v2222 = vadd.f32 %v2028, %v2178
      %v2223 = vadd.f32 %v2029, %v2181
      %v2224 = vadd.f32 %v2030, %v2186
      %v2225 = vadd.f32 %v2031, %v2189
      %v2226 = vadd.f32 %v2032, %v2194
      %v2227 = vadd.f32 %v2033, %v2197
      %v2228 = vadd.f32 %v2034, %v2202
      %v2229 = vadd.f32 %v2035, %v2205
      %v2230 = vadd.f32 %v2036, %v2210
      %v2231 = vadd.f32 %v2037, %v2213
      %v2232 = vld [vmem:[%s3] sm:$0x1]
      %v2234 = vlaneseq
      %v2235 = vshrl.u32 %v2234, 7
      %v2236 = vsub.s32 0, %v2235
      %v2237 = vrot.slane %v2232, %v2236
      %v2239 = vadd.f32 %v2216, %v2237
      %v2240 = vadd.f32 %v2217, %v2237
      %v2241 = vadd.f32 %v2218, %v2237
      %v2242 = vadd.f32 %v2219, %v2237
      %v2243 = vadd.f32 %v2220, %v2237
      %v2244 = vadd.f32 %v2221, %v2237
      %v2245 = vadd.f32 %v2222, %v2237
      %v2246 = vadd.f32 %v2223, %v2237
      %v2247 = vadd.f32 %v2224, %v2237
      %v2248 = vadd.f32 %v2225, %v2237
      %v2249 = vadd.f32 %v2226, %v2237
      %v2250 = vadd.f32 %v2227, %v2237
      %v2251 = vadd.f32 %v2228, %v2237
      %v2252 = vadd.f32 %v2229, %v2237
      %v2253 = vadd.f32 %v2230, %v2237
      %v2254 = vadd.f32 %v2231, %v2237
      %2255 = vst [vmem:[#allocation3] sm:$0xff] %v2239
      %2256 = vst [vmem:[#allocation3 + $0x8] sm:$0xff] %v2240
      %2257 = vst [vmem:[#allocation3 + $0x10] sm:$0xff] %v2241
      %2258 = vst [vmem:[#allocation3 + $0x18] sm:$0xff] %v2242
      %2259 = vst [vmem:[#allocation3 + $0x20] sm:$0xff] %v2243
      %2260 = vst [vmem:[#allocation3 + $0x28] sm:$0xff] %v2244
      %2261 = vst [vmem:[#allocation3 + $0x30] sm:$0xff] %v2245
      %2262 = vst [vmem:[#allocation3 + $0x38] sm:$0xff] %v2246
      %2263 = vst [vmem:[#allocation3 + $0x40] sm:$0xff] %v2247
      %2264 = vst [vmem:[#allocation3 + $0x48] sm:$0xff] %v2248
      %2265 = vst [vmem:[#allocation3 + $0x50] sm:$0xff] %v2249
      %2266 = vst [vmem:[#allocation3 + $0x58] sm:$0xff] %v2250
      %2267 = vst [vmem:[#allocation3 + $0x60] sm:$0xff] %v2251
      %2268 = vst [vmem:[#allocation3 + $0x68] sm:$0xff] %v2252
      %2269 = vst [vmem:[#allocation3 + $0x70] sm:$0xff] %v2253
      %2270 = vst [vmem:[#allocation3 + $0x78] sm:$0xff] %v2254
      %v2271 = vld [vmem:[#allocation3] sm:$0xff]
      %v2272 = vld [vmem:[#allocation3 + $0x8] sm:$0xff]
      %v2273 = vld [vmem:[#allocation3 + $0x10] sm:$0xff]
      %v2274 = vld [vmem:[#allocation3 + $0x18] sm:$0xff]
      %v2275 = vld [vmem:[#allocation3 + $0x20] sm:$0xff]
      %v2276 = vld [vmem:[#allocation3 + $0x28] sm:$0xff]
      %v2277 = vld [vmem:[#allocation3 + $0x30] sm:$0xff]
      %v2278 = vld [vmem:[#allocation3 + $0x38] sm:$0xff]
      %v2279 = vld [vmem:[#allocation3 + $0x40] sm:$0xff]
      %v2280 = vld [vmem:[#allocation3 + $0x48] sm:$0xff]
      %v2281 = vld [vmem:[#allocation3 + $0x50] sm:$0xff]
      %v2282 = vld [vmem:[#allocation3 + $0x58] sm:$0xff]
      %v2283 = vld [vmem:[#allocation3 + $0x60] sm:$0xff]
      %v2284 = vld [vmem:[#allocation3 + $0x68] sm:$0xff]
      %v2285 = vld [vmem:[#allocation3 + $0x70] sm:$0xff]
      %v2286 = vld [vmem:[#allocation3 + $0x78] sm:$0xff]
      %v2287 = vpack.c.bf16 %v2272, %v2271
      %v2288 = vpack.c.bf16 %v2274, %v2273
      %v2289 = vpack.c.bf16 %v2276, %v2275
      %v2290 = vpack.c.bf16 %v2278, %v2277
      %v2291 = vpack.c.bf16 %v2280, %v2279
      %v2292 = vpack.c.bf16 %v2282, %v2281
      %v2293 = vpack.c.bf16 %v2284, %v2283
      %v2294 = vpack.c.bf16 %v2286, %v2285
      %v2295 = vld [vmem:[%s4] sm:$0xf]
      %v2296 = vld [vmem:[%s4 + $0x4] sm:$0xf]
      %v2297 = vld [vmem:[%s5] sm:$0x1]
      %v2299 = vlaneseq
      %v2300 = vshrl.u32 %v2299, 7
      %v2301 = vsub.s32 0, %v2300
      %v2302 = vrot.slane %v2297, %v2301
      %2312 = vrot.lane.b32.xlu0 %v2287, 64
      %v2313 = vpop.permute.xlu0 %2312
      %2314 = vrot.lane.b32.xlu0 %v2288, 64
      %v2315 = vpop.permute.xlu0 %2314
      %2316 = vrot.lane.b32.xlu0 %v2289, 64
      %v2317 = vpop.permute.xlu0 %2316
      %2318 = vrot.lane.b32.xlu0 %v2290, 64
      %v2319 = vpop.permute.xlu0 %2318
      %2320 = vrot.lane.b32.xlu0 %v2291, 64
      %v2321 = vpop.permute.xlu0 %2320
      %2322 = vrot.lane.b32.xlu0 %v2292, 64
      %v2323 = vpop.permute.xlu0 %2322
      %2324 = vrot.lane.b32.xlu0 %v2293, 64
      %v2325 = vpop.permute.xlu0 %2324
      %2326 = vrot.lane.b32.xlu0 %v2294, 64
      %v2327 = vpop.permute.xlu0 %2326
      %v2330 = vunpack.c.l.b16 %v2295
      %v2331 = vunpack.c.l.b16 %v2296
      %v2332 = vpack.c.b16 %v2331, %v2330
      %vm2334 = vcmask 130048
      %v2336 = vsel %vm2334, %v2313, 0
      %v2339 = vsel %vm2334, %v2315, 0
      %v2342 = vsel %vm2334, %v2317, 0
      %v2345 = vsel %vm2334, %v2319, 0
      %v2348 = vsel %vm2334, %v2321, 0
      %v2351 = vsel %vm2334, %v2323, 0
      %v2354 = vsel %vm2334, %v2325, 0
      %v2357 = vsel %vm2334, %v2327, 0
      %2359 = vmatprep.subr.bf16.mxu0 0
      %2360 = vmatpush1.bf16.msra.mxu0 %v2332
      %2361 = vmatprep.subr.bf16.mxu0 0
      %2362 = vmatpush1.bf16.msra.mxu0 0
      %2363 = vmatprep.subr.bf16.mxu0 0
      %2364 = vmatpush1.bf16.msra.mxu0 0
      %2365 = vmatprep.subr.bf16.mxu0 0
      %2366 = vmatpush1.bf16.msra.mxu0 0
      %2367 = vmatprep.subr.bf16.mxu0 0
      %2368 = vmatpush1.bf16.msra.mxu0 0
      %2369 = vmatprep.subr.bf16.mxu0 0
      %2370 = vmatpush1.bf16.msra.mxu0 0
      %2371 = vmatprep.subr.bf16.mxu0 0
      %2372 = vmatpush1.bf16.msra.mxu0 0
      %2373 = vmatprep.subr.bf16.mxu0 0
      %2374 = vmatpush1.bf16.msra.mxu0 0
      %2375 = vmatprep.subr.bf16.mxu0 0
      %2376 = vmatpush1.bf16.msra.mxu0 0
      %2377 = vmatprep.subr.bf16.mxu0 0
      %2378 = vmatpush1.bf16.msra.mxu0 0
      %2379 = vmatprep.subr.bf16.mxu0 0
      %2380 = vmatpush1.bf16.msra.mxu0 0
      %2381 = vmatprep.subr.bf16.mxu0 0
      %2382 = vmatpush1.bf16.msra.mxu0 0
      %2383 = vmatprep.subr.bf16.mxu0 0
      %2384 = vmatpush1.bf16.msra.mxu0 0
      %2385 = vmatprep.subr.bf16.mxu0 0
      %2386 = vmatpush1.bf16.msra.mxu0 0
      %2387 = vmatprep.subr.bf16.mxu0 0
      %2388 = vmatpush1.bf16.msra.mxu0 0
      %2389 = vmatprep.subr.bf16.mxu0 0
      %2390 = vmatpush1.bf16.msra.mxu0 0
      %2391 = vmatprep.mubr.bf16.mxu0 0
      %2392 = vmatmul.mubr.bf16.gmra.mrb[0].mxu0 %v2336
      %v2393 = vpop.f32.mrb[0].mxu0
      %v2394 = vadd.f32 %v2302, %v2393
      %v2395 = vpop.f32.mrb[0].mxu0
      %v2396 = vpop.f32.mrb[0].mxu0
      %v2397 = vadd.f32 %v2302, %v2396
      %v2398 = vpop.f32.mrb[0].mxu0
      %2399 = vmatprep.mubr.bf16.mxu0 0
      %2400 = vmatmul.mubr.bf16.gmra.mrb[0].mxu0 %v2339
      %v2401 = vpop.f32.mrb[0].mxu0
      %v2402 = vadd.f32 %v2302, %v2401
      %v2403 = vpop.f32.mrb[0].mxu0
      %v2404 = vpop.f32.mrb[0].mxu0
      %v2405 = vadd.f32 %v2302, %v2404
      %v2406 = vpop.f32.mrb[0].mxu0
      %2407 = vmatprep.mubr.bf16.mxu0 0
      %2408 = vmatmul.mubr.bf16.gmra.mrb[0].mxu0 %v2342
      %v2409 = vpop.f32.mrb[0].mxu0
      %v2410 = vadd.f32 %v2302, %v2409
      %v2411 = vpop.f32.mrb[0].mxu0
      %v2412 = vpop.f32.mrb[0].mxu0
      %v2413 = vadd.f32 %v2302, %v2412
      %v2414 = vpop.f32.mrb[0].mxu0
      %2415 = vmatprep.mubr.bf16.mxu0 0
      %2416 = vmatmul.mubr.bf16.gmra.mrb[0].mxu0 %v2345
      %v2417 = vpop.f32.mrb[0].mxu0
      %v2418 = vadd.f32 %v2302, %v2417
      %v2419 = vpop.f32.mrb[0].mxu0
      %v2420 = vpop.f32.mrb[0].mxu0
      %v2421 = vadd.f32 %v2302, %v2420
      %v2422 = vpop.f32.mrb[0].mxu0
      %2423 = vmatprep.mubr.bf16.mxu0 0
      %2424 = vmatmul.mubr.bf16.gmra.mrb[0].mxu0 %v2348
      %v2425 = vpop.f32.mrb[0].mxu0
      %v2426 = vadd.f32 %v2302, %v2425
      %v2427 = vpop.f32.mrb[0].mxu0
      %v2428 = vpop.f32.mrb[0].mxu0
      %v2429 = vadd.f32 %v2302, %v2428
      %v2430 = vpop.f32.mrb[0].mxu0
      %2431 = vmatprep.mubr.bf16.mxu0 0
      %2432 = vmatmul.mubr.bf16.gmra.mrb[0].mxu0 %v2351
      %v2433 = vpop.f32.mrb[0].mxu0
      %v2434 = vadd.f32 %v2302, %v2433
      %v2435 = vpop.f32.mrb[0].mxu0
      %v2436 = vpop.f32.mrb[0].mxu0
      %v2437 = vadd.f32 %v2302, %v2436
      %v2438 = vpop.f32.mrb[0].mxu0
      %2439 = vmatprep.mubr.bf16.mxu0 0
      %2440 = vmatmul.mubr.bf16.gmra.mrb[0].mxu0 %v2354
      %v2441 = vpop.f32.mrb[0].mxu0
      %v2442 = vadd.f32 %v2302, %v2441
      %v2443 = vpop.f32.mrb[0].mxu0
      %v2444 = vpop.f32.mrb[0].mxu0
      %v2445 = vadd.f32 %v2302, %v2444
      %v2446 = vpop.f32.mrb[0].mxu0
      %2447 = vmatprep.mubr.bf16.mxu0 0
      %2448 = vmatmul.mubr.bf16.gmra.mrb[0].mxu0 %v2357
      %v2449 = vpop.f32.mrb[0].mxu0
      %v2450 = vadd.f32 %v2302, %v2449
      %v2451 = vpop.f32.mrb[0].mxu0
      %v2452 = vpop.f32.mrb[0].mxu0
      %v2453 = vadd.f32 %v2302, %v2452
      %v2454 = vpop.f32.mrb[0].mxu0
      %2455 = vdwg.mxu0
      %vm2456 = vcmask 64512
      %v2457 = vsel %vm2456, %v2394, -inf
      %2458 = vmax.xlane.f32.xlu0 %v2457
      %v2459 = vpop.xlane.xlu0 %2458
      %v2460 = vsel %vm2456, %v2397, -inf
      %2461 = vmax.xlane.f32.xlu0 %v2460
      %v2462 = vpop.xlane.xlu0 %2461
      %v2463 = vsel %vm2456, %v2402, -inf
      %2464 = vmax.xlane.f32.xlu0 %v2463
      %v2465 = vpop.xlane.xlu0 %2464
      %v2466 = vsel %vm2456, %v2405, -inf
      %2467 = vmax.xlane.f32.xlu0 %v2466
      %v2468 = vpop.xlane.xlu0 %2467
      %v2469 = vsel %vm2456, %v2410, -inf
      %2470 = vmax.xlane.f32.xlu0 %v2469
      %v2471 = vpop.xlane.xlu0 %2470
      %v2472 = vsel %vm2456, %v2413, -inf
      %2473 = vmax.xlane.f32.xlu0 %v2472
      %v2474 = vpop.xlane.xlu0 %2473
      %v2475 = vsel %vm2456, %v2418, -inf
      %2476 = vmax.xlane.f32.xlu0 %v2475
      %v2477 = vpop.xlane.xlu0 %2476
      %v2478 = vsel %vm2456, %v2421, -inf
      %2479 = vmax.xlane.f32.xlu0 %v2478
      %v2480 = vpop.xlane.xlu0 %2479
      %v2481 = vsel %vm2456, %v2426, -inf
      %2482 = vmax.xlane.f32.xlu0 %v2481
      %v2483 = vpop.xlane.xlu0 %2482
      %v2484 = vsel %vm2456, %v2429, -inf
      %2485 = vmax.xlane.f32.xlu0 %v2484
      %v2486 = vpop.xlane.xlu0 %2485
      %v2487 = vsel %vm2456, %v2434, -inf
      %2488 = vmax.xlane.f32.xlu0 %v2487
      %v2489 = vpop.xlane.xlu0 %2488
      %v2490 = vsel %vm2456, %v2437, -inf
      %2491 = vmax.xlane.f32.xlu0 %v2490
      %v2492 = vpop.xlane.xlu0 %2491
      %v2493 = vsel %vm2456, %v2442, -inf
      %2494 = vmax.xlane.f32.xlu0 %v2493
      %v2495 = vpop.xlane.xlu0 %2494
      %v2496 = vsel %vm2456, %v2445, -inf
      %2497 = vmax.xlane.f32.xlu0 %v2496
      %v2498 = vpop.xlane.xlu0 %2497
      %v2499 = vsel %vm2456, %v2450, -inf
      %2500 = vmax.xlane.f32.xlu0 %v2499
      %v2501 = vpop.xlane.xlu0 %2500
      %v2502 = vsel %vm2456, %v2453, -inf
      %2503 = vmax.xlane.f32.xlu0 %v2502
      %v2504 = vpop.xlane.xlu0 %2503
      %v2505 = vsub.f32 %v2394, %v2459
      %v2506 = vsub.f32 %v2397, %v2462
      %v2507 = vsub.f32 %v2402, %v2465
      %v2508 = vsub.f32 %v2405, %v2468
      %v2509 = vsub.f32 %v2410, %v2471
      %v2510 = vsub.f32 %v2413, %v2474
      %v2511 = vsub.f32 %v2418, %v2477
      %v2512 = vsub.f32 %v2421, %v2480
      %v2513 = vsub.f32 %v2426, %v2483
      %v2514 = vsub.f32 %v2429, %v2486
      %v2515 = vsub.f32 %v2434, %v2489
      %v2516 = vsub.f32 %v2437, %v2492
      %v2517 = vsub.f32 %v2442, %v2495
      %v2518 = vsub.f32 %v2445, %v2498
      %v2519 = vsub.f32 %v2450, %v2501
      %v2520 = vsub.f32 %v2453, %v2504
      %v2521 = vmul.f32 %v2505, 1.442695
      %v2522 = vpow.pop %v2521
      %v2523 = vmul.f32 %v2506, 1.442695
      %v2524 = vpow.pop %v2523
      %v2525 = vmul.f32 %v2507, 1.442695
      %v2526 = vpow.pop %v2525
      %v2527 = vmul.f32 %v2508, 1.442695
      %v2528 = vpow.pop %v2527
      %v2529 = vmul.f32 %v2509, 1.442695
      %v2530 = vpow.pop %v2529
      %v2531 = vmul.f32 %v2510, 1.442695
      %v2532 = vpow.pop %v2531
      %v2533 = vmul.f32 %v2511, 1.442695
      %v2534 = vpow.pop %v2533
      %v2535 = vmul.f32 %v2512, 1.442695
      %v2536 = vpow.pop %v2535
      %v2537 = vmul.f32 %v2513, 1.442695
      %v2538 = vpow.pop %v2537
      %v2539 = vmul.f32 %v2514, 1.442695
      %v2540 = vpow.pop %v2539
      %v2541 = vmul.f32 %v2515, 1.442695
      %v2542 = vpow.pop %v2541
      %v2543 = vmul.f32 %v2516, 1.442695
      %v2544 = vpow.pop %v2543
      %v2545 = vmul.f32 %v2517, 1.442695
      %v2546 = vpow.pop %v2545
      %v2547 = vmul.f32 %v2518, 1.442695
      %v2548 = vpow.pop %v2547
      %v2549 = vmul.f32 %v2519, 1.442695
      %v2550 = vpow.pop %v2549
      %v2551 = vmul.f32 %v2520, 1.442695
      %v2552 = vpow.pop %v2551
      %v2553 = vsel %vm2456, %v2522, 0.0
      %2554 = vadd.xlane.f32.xlu0 %v2553
      %v2555 = vpop.xlane.xlu0 %2554
      %v2556 = vsel %vm2456, %v2524, 0.0
      %2557 = vadd.xlane.f32.xlu0 %v2556
      %v2558 = vpop.xlane.xlu0 %2557
      %v2559 = vsel %vm2456, %v2526, 0.0
      %2560 = vadd.xlane.f32.xlu0 %v2559
      %v2561 = vpop.xlane.xlu0 %2560
      %v2562 = vsel %vm2456, %v2528, 0.0
      %2563 = vadd.xlane.f32.xlu0 %v2562
      %v2564 = vpop.xlane.xlu0 %2563
      %v2565 = vsel %vm2456, %v2530, 0.0
      %2566 = vadd.xlane.f32.xlu0 %v2565
      %v2567 = vpop.xlane.xlu0 %2566
      %v2568 = vsel %vm2456, %v2532, 0.0
      %2569 = vadd.xlane.f32.xlu0 %v2568
      %v2570 = vpop.xlane.xlu0 %2569
      %v2571 = vsel %vm2456, %v2534, 0.0
      %2572 = vadd.xlane.f32.xlu0 %v2571
      %v2573 = vpop.xlane.xlu0 %2572
      %v2574 = vsel %vm2456, %v2536, 0.0
      %2575 = vadd.xlane.f32.xlu0 %v2574
      %v2576 = vpop.xlane.xlu0 %2575
      %v2577 = vsel %vm2456, %v2538, 0.0
      %2578 = vadd.xlane.f32.xlu0 %v2577
      %v2579 = vpop.xlane.xlu0 %2578
      %v2580 = vsel %vm2456, %v2540, 0.0
      %2581 = vadd.xlane.f32.xlu0 %v2580
      %v2582 = vpop.xlane.xlu0 %2581
      %v2583 = vsel %vm2456, %v2542, 0.0
      %2584 = vadd.xlane.f32.xlu0 %v2583
      %v2585 = vpop.xlane.xlu0 %2584
      %v2586 = vsel %vm2456, %v2544, 0.0
      %2587 = vadd.xlane.f32.xlu0 %v2586
      %v2588 = vpop.xlane.xlu0 %2587
      %v2589 = vsel %vm2456, %v2546, 0.0
      %2590 = vadd.xlane.f32.xlu0 %v2589
      %v2591 = vpop.xlane.xlu0 %2590
      %v2592 = vsel %vm2456, %v2548, 0.0
      %2593 = vadd.xlane.f32.xlu0 %v2592
      %v2594 = vpop.xlane.xlu0 %2593
      %v2595 = vsel %vm2456, %v2550, 0.0
      %2596 = vadd.xlane.f32.xlu0 %v2595
      %v2597 = vpop.xlane.xlu0 %2596
      %v2598 = vsel %vm2456, %v2552, 0.0
      %2599 = vadd.xlane.f32.xlu0 %v2598
      %v2600 = vpop.xlane.xlu0 %2599
      %v2601 = vrcp.pop %v2555
      %v2602 = vrcp.pop %v2558
      %v2603 = vrcp.pop %v2561
      %v2604 = vrcp.pop %v2564
      %v2605 = vrcp.pop %v2567
      %v2606 = vrcp.pop %v2570
      %v2607 = vrcp.pop %v2573
      %v2608 = vrcp.pop %v2576
      %v2609 = vrcp.pop %v2579
      %v2610 = vrcp.pop %v2582
      %v2611 = vrcp.pop %v2585
      %v2612 = vrcp.pop %v2588
      %v2613 = vrcp.pop %v2591
      %v2614 = vrcp.pop %v2594
      %v2615 = vrcp.pop %v2597
      %v2616 = vrcp.pop %v2600
      %v2617 = vmul.f32 %v2522, %v2601
      %v2618 = vmul.f32 %v2524, %v2602
      %v2619 = vmul.f32 %v2526, %v2603
      %v2620 = vmul.f32 %v2528, %v2604
      %v2621 = vmul.f32 %v2530, %v2605
      %v2622 = vmul.f32 %v2532, %v2606
      %v2623 = vmul.f32 %v2534, %v2607
      %v2624 = vmul.f32 %v2536, %v2608
      %v2625 = vmul.f32 %v2538, %v2609
      %v2626 = vmul.f32 %v2540, %v2610
      %v2627 = vmul.f32 %v2542, %v2611
      %v2628 = vmul.f32 %v2544, %v2612
      %v2629 = vmul.f32 %v2546, %v2613
      %v2630 = vmul.f32 %v2548, %v2614
      %v2631 = vmul.f32 %v2550, %v2615
      %v2632 = vmul.f32 %v2552, %v2616
      %v2633 = vsel %vm2456, %v2617, 0.0
      %v2634 = vsel %vm2456, %v2618, 0.0
      %v2635 = vadd.f32 %v2633, %v2634
      %v2636 = vsel %vm2456, %v2619, 0.0
      %v2637 = vadd.f32 %v2635, %v2636
      %v2638 = vsel %vm2456, %v2620, 0.0
      %v2639 = vadd.f32 %v2637, %v2638
      %v2640 = vsel %vm2456, %v2621, 0.0
      %v2641 = vadd.f32 %v2639, %v2640
      %v2642 = vsel %vm2456, %v2622, 0.0
      %v2643 = vadd.f32 %v2641, %v2642
      %v2644 = vsel %vm2456, %v2623, 0.0
      %v2645 = vadd.f32 %v2643, %v2644
      %v2646 = vsel %vm2456, %v2624, 0.0
      %v2647 = vadd.f32 %v2645, %v2646
      %v2648 = vsel %vm2456, %v2625, 0.0
      %v2649 = vadd.f32 %v2647, %v2648
      %v2650 = vsel %vm2456, %v2626, 0.0
      %v2651 = vadd.f32 %v2649, %v2650
      %v2652 = vsel %vm2456, %v2627, 0.0
      %v2653 = vadd.f32 %v2651, %v2652
      %v2654 = vsel %vm2456, %v2628, 0.0
      %v2655 = vadd.f32 %v2653, %v2654
      %v2656 = vsel %vm2456, %v2629, 0.0
      %v2657 = vadd.f32 %v2655, %v2656
      %v2658 = vsel %vm2456, %v2630, 0.0
      %v2659 = vadd.f32 %v2657, %v2658
      %v2660 = vsel %vm2456, %v2631, 0.0
      %v2661 = vadd.f32 %v2659, %v2660
      %v2662 = vsel %vm2456, %v2632, 0.0
      %v2663 = vadd.f32 %v2661, %v2662
      %v2664 = vrot.slane %v2663, 4
      %v2665 = vadd.f32 %v2663, %v2664
      %v2666 = vrot.slane %v2665, 2
      %v2667 = vadd.f32 %v2665, %v2666
      %v2668 = vrot.slane %v2667, 1
      %v2669 = vadd.f32 %v2667, %v2668
      %v2670 = vadd.f32 %v2669, 1e-05
      %v2671 = vrcp.pop %v2670
      %v2672 = vmul.f32 %v2617, %v2671
      %v2673 = vmul.f32 %v2618, %v2671
      %v2674 = vmul.f32 %v2619, %v2671
      %v2675 = vmul.f32 %v2620, %v2671
      %v2676 = vmul.f32 %v2621, %v2671
      %v2677 = vmul.f32 %v2622, %v2671
      %v2678 = vmul.f32 %v2623, %v2671
      %v2679 = vmul.f32 %v2624, %v2671
      %v2680 = vmul.f32 %v2625, %v2671
      %v2681 = vmul.f32 %v2626, %v2671
      %v2682 = vmul.f32 %v2627, %v2671
      %v2683 = vmul.f32 %v2628, %v2671
      %v2684 = vmul.f32 %v2629, %v2671
      %v2685 = vmul.f32 %v2630, %v2671
      %v2686 = vmul.f32 %v2631, %v2671
      %v2687 = vmul.f32 %v2632, %v2671
      %v2688 = vpack.c.bf16 %v2673, %v2672
      %v2689 = vpack.c.bf16 %v2675, %v2674
      %v2690 = vpack.c.bf16 %v2677, %v2676
      %v2691 = vpack.c.bf16 %v2679, %v2678
      %v2692 = vpack.c.bf16 %v2681, %v2680
      %v2693 = vpack.c.bf16 %v2683, %v2682
      %v2694 = vpack.c.bf16 %v2685, %v2684
      %v2695 = vpack.c.bf16 %v2687, %v2686
      %2696 = vxpose.xlu0.c.b16.start [1/8] %v2688, 128
      %2697 = vxpose.xlu0.c.b16.cont [2/8] %v2689, 128
      %2698 = vxpose.xlu0.c.b16.cont [3/8] %v2690, 128
      %2699 = vxpose.xlu0.c.b16.cont [4/8] %v2691, 128
      %2700 = vxpose.xlu0.c.b16.cont [5/8] %v2692, 128
      %2701 = vxpose.xlu0.c.b16.cont [6/8] %v2693, 128
      %2702 = vxpose.xlu0.c.b16.cont [7/8] %v2694, 128
      %2703 = vxpose.xlu0.c.b16.end [8/8] %v2695, 128
      %v2704 = vpop.trf.xlu0
      %v2705 = vpop.trf.xlu0
      %v2706 = vpop.trf.xlu0
      %v2707 = vpop.trf.xlu0
      %v2708 = vpop.trf.xlu0
      %v2709 = vpop.trf.xlu0
      %v2710 = vpop.trf.xlu0
      %v2711 = vpop.trf.xlu0
      %2712 = vmatprep.subr.bf16.mxu0 0
      %2713 = vmatpush1.bf16.msra.mxu0 %v2287
      %2714 = vmatprep.subr.bf16.mxu0 0
      %2715 = vmatpush1.bf16.msra.mxu0 %v2288
      %2716 = vmatprep.subr.bf16.mxu0 0
      %2717 = vmatpush1.bf16.msra.mxu0 %v2289
      %2718 = vmatprep.subr.bf16.mxu0 0
      %2719 = vmatpush1.bf16.msra.mxu0 %v2290
      %2720 = vmatprep.subr.bf16.mxu0 0
      %2721 = vmatpush1.bf16.msra.mxu0 %v2291
      %2722 = vmatprep.subr.bf16.mxu0 0
      %2723 = vmatpush1.bf16.msra.mxu0 %v2292
      %2724 = vmatprep.subr.bf16.mxu0 0
      %2725 = vmatpush1.bf16.msra.mxu0 %v2293
      %2726 = vmatprep.subr.bf16.mxu0 0
      %2727 = vmatpush1.bf16.msra.mxu0 %v2294
      %2728 = vmatprep.subr.bf16.mxu0 0
      %2729 = vmatpush1.bf16.msra.mxu0 0
      %2730 = vmatprep.subr.bf16.mxu0 0
      %2731 = vmatpush1.bf16.msra.mxu0 0
      %2732 = vmatprep.subr.bf16.mxu0 0
      %2733 = vmatpush1.bf16.msra.mxu0 0
      %2734 = vmatprep.subr.bf16.mxu0 0
      %2735 = vmatpush1.bf16.msra.mxu0 0
      %2736 = vmatprep.subr.bf16.mxu0 0
      %2737 = vmatpush1.bf16.msra.mxu0 0
      %2738 = vmatprep.subr.bf16.mxu0 0
      %2739 = vmatpush1.bf16.msra.mxu0 0
      %2740 = vmatprep.subr.bf16.mxu0 0
      %2741 = vmatpush1.bf16.msra.mxu0 0
      %2742 = vmatprep.subr.bf16.mxu0 0
      %2743 = vmatpush1.bf16.msra.mxu0 0
      %2744 = vmatprep.mubr.bf16.mxu0 0
      %2745 = vmatmul.mubr.bf16.gmra.mrb[0].mxu0 %v2704
      %v2746 = vpop.f32.mrb[0].mxu0
      %v2747 = vadd.f32 0.0, %v2746
      %v2748 = vpop.f32.mrb[0].mxu0
      %v2749 = vpop.f32.mrb[0].mxu0
      %v2750 = vpop.f32.mrb[0].mxu0
      %2751 = vdwg.mxu0
      %v2752 = vpack.c.bf16 %v2747, %v2747
      %v2753 = vld [vmem:[%s6] sm:$0xf]
      %v2754 = vld [vmem:[%s6 + $0x4] sm:$0xf]
      %v2757 = vunpack.c.l.b16 %v2753
      %v2758 = vunpack.c.l.b16 %v2754
      %v2759 = vpack.c.b16 %v2758, %v2757
      %v2762 = vsel %vm2334, %v2752, 0
      %2764 = vmatprep.subr.bf16.mxu0 0
      %2765 = vmatpush1.bf16.msra.mxu0 %v2759
      %2766 = vmatprep.subr.bf16.mxu0 0
      %2767 = vmatpush1.bf16.msra.mxu0 0
      %2768 = vmatprep.subr.bf16.mxu0 0
      %2769 = vmatpush1.bf16.msra.mxu0 0
      %2770 = vmatprep.subr.bf16.mxu0 0
      %2771 = vmatpush1.bf16.msra.mxu0 0
      %2772 = vmatprep.subr.bf16.mxu0 0
      %2773 = vmatpush1.bf16.msra.mxu0 0
      %2774 = vmatprep.subr.bf16.mxu0 0
      %2775 = vmatpush1.bf16.msra.mxu0 0
      %2776 = vmatprep.subr.bf16.mxu0 0
      %2777 = vmatpush1.bf16.msra.mxu0 0
      %2778 = vmatprep.subr.bf16.mxu0 0
      %2779 = vmatpush1.bf16.msra.mxu0 0
      %2780 = vmatprep.subr.bf16.mxu0 0
      %2781 = vmatpush1.bf16.msra.mxu0 0
      %2782 = vmatprep.subr.bf16.mxu0 0
      %2783 = vmatpush1.bf16.msra.mxu0 0
      %2784 = vmatprep.subr.bf16.mxu0 0
      %2785 = vmatpush1.bf16.msra.mxu0 0
      %2786 = vmatprep.subr.bf16.mxu0 0
      %2787 = vmatpush1.bf16.msra.mxu0 0
      %2788 = vmatprep.subr.bf16.mxu0 0
      %2789 = vmatpush1.bf16.msra.mxu0 0
      %2790 = vmatprep.subr.bf16.mxu0 0
      %2791 = vmatpush1.bf16.msra.mxu0 0
      %2792 = vmatprep.subr.bf16.mxu0 0
      %2793 = vmatpush1.bf16.msra.mxu0 0
      %2794 = vmatprep.subr.bf16.mxu0 0
      %2795 = vmatpush1.bf16.msra.mxu0 0
      %2796 = vmatprep.mubr.bf16.mxu0 0
      %2797 = vmatmul.mubr.bf16.gmra.mrb[0].mxu0 %v2762
      %v2798 = vpop.f32.mrb[0].mxu0
      %v2799 = vadd.f32 0.0, %v2798
      %v2800 = vpop.f32.mrb[0].mxu0
      %v2801 = vpop.f32.mrb[0].mxu0
      %v2802 = vpop.f32.mrb[0].mxu0
      %2803 = vdwg.mxu0
      %2804 = vrot.lane.b32.xlu0 %v2759, 112
      %v2805 = vpop.permute.xlu0 %2804
      %2807 = vmatprep.subr.bf16.mxu0 0
      %2808 = vmatpush1.bf16.msra.mxu0 %v2805
      %2809 = vmatprep.subr.bf16.mxu0 0
      %2810 = vmatpush1.bf16.msra.mxu0 0
      %2811 = vmatprep.subr.bf16.mxu0 0
      %2812 = vmatpush1.bf16.msra.mxu0 0
      %2813 = vmatprep.subr.bf16.mxu0 0
      %2814 = vmatpush1.bf16.msra.mxu0 0
      %2815 = vmatprep.subr.bf16.mxu0 0
      %2816 = vmatpush1.bf16.msra.mxu0 0
      %2817 = vmatprep.subr.bf16.mxu0 0
      %2818 = vmatpush1.bf16.msra.mxu0 0
      %2819 = vmatprep.subr.bf16.mxu0 0
      %2820 = vmatpush1.bf16.msra.mxu0 0
      %2821 = vmatprep.subr.bf16.mxu0 0
      %2822 = vmatpush1.bf16.msra.mxu0 0
      %2823 = vmatprep.subr.bf16.mxu0 0
      %2824 = vmatpush1.bf16.msra.mxu0 0
      %2825 = vmatprep.subr.bf16.mxu0 0
      %2826 = vmatpush1.bf16.msra.mxu0 0
      %2827 = vmatprep.subr.bf16.mxu0 0
      %2828 = vmatpush1.bf16.msra.mxu0 0
      %2829 = vmatprep.subr.bf16.mxu0 0
      %2830 = vmatpush1.bf16.msra.mxu0 0
      %2831 = vmatprep.subr.bf16.mxu0 0
      %2832 = vmatpush1.bf16.msra.mxu0 0
      %2833 = vmatprep.subr.bf16.mxu0 0
      %2834 = vmatpush1.bf16.msra.mxu0 0
      %2835 = vmatprep.subr.bf16.mxu0 0
      %2836 = vmatpush1.bf16.msra.mxu0 0
      %2837 = vmatprep.subr.bf16.mxu0 0
      %2838 = vmatpush1.bf16.msra.mxu0 0
      %2839 = vmatprep.mubr.bf16.mxu0 0
      %2840 = vmatmul.mubr.bf16.gmra.mrb[0].mxu0 %v2762
      %v2841 = vpop.f32.mrb[0].mxu0
      %v2842 = vadd.f32 0.0, %v2841
      %v2843 = vpop.f32.mrb[0].mxu0
      %v2844 = vpop.f32.mrb[0].mxu0
      %v2845 = vpop.f32.mrb[0].mxu0
      %2846 = vdwg.mxu0
      %2847 = vrot.lane.b32.xlu0 %v2759, 96
      %v2848 = vpop.permute.xlu0 %2847
      %2850 = vmatprep.subr.bf16.mxu0 0
      %2851 = vmatpush1.bf16.msra.mxu0 %v2848
      %2852 = vmatprep.subr.bf16.mxu0 0
      %2853 = vmatpush1.bf16.msra.mxu0 0
      %2854 = vmatprep.subr.bf16.mxu0 0
      %2855 = vmatpush1.bf16.msra.mxu0 0
      %2856 = vmatprep.subr.bf16.mxu0 0
      %2857 = vmatpush1.bf16.msra.mxu0 0
      %2858 = vmatprep.subr.bf16.mxu0 0
      %2859 = vmatpush1.bf16.msra.mxu0 0
      %2860 = vmatprep.subr.bf16.mxu0 0
      %2861 = vmatpush1.bf16.msra.mxu0 0
      %2862 = vmatprep.subr.bf16.mxu0 0
      %2863 = vmatpush1.bf16.msra.mxu0 0
      %2864 = vmatprep.subr.bf16.mxu0 0
      %2865 = vmatpush1.bf16.msra.mxu0 0
      %2866 = vmatprep.subr.bf16.mxu0 0
      %2867 = vmatpush1.bf16.msra.mxu0 0
      %2868 = vmatprep.subr.bf16.mxu0 0
      %2869 = vmatpush1.bf16.msra.mxu0 0
      %2870 = vmatprep.subr.bf16.mxu0 0
      %2871 = vmatpush1.bf16.msra.mxu0 0
      %2872 = vmatprep.subr.bf16.mxu0 0
      %2873 = vmatpush1.bf16.msra.mxu0 0
      %2874 = vmatprep.subr.bf16.mxu0 0
      %2875 = vmatpush1.bf16.msra.mxu0 0
      %2876 = vmatprep.subr.bf16.mxu0 0
      %2877 = vmatpush1.bf16.msra.mxu0 0
      %2878 = vmatprep.subr.bf16.mxu0 0
      %2879 = vmatpush1.bf16.msra.mxu0 0
      %2880 = vmatprep.subr.bf16.mxu0 0
      %2881 = vmatpush1.bf16.msra.mxu0 0
      %2882 = vmatprep.mubr.bf16.mxu0 0
      %2883 = vmatmul.mubr.bf16.gmra.mrb[0].mxu0 %v2762
      %v2884 = vpop.f32.mrb[0].mxu0
      %v2885 = vadd.f32 0.0, %v2884
      %v2886 = vpop.f32.mrb[0].mxu0
      %v2887 = vpop.f32.mrb[0].mxu0
      %v2888 = vpop.f32.mrb[0].mxu0
      %2889 = vdwg.mxu0
      %v2891 = vsel %vm2334, %v2799, 0
      %v2894 = vsel %vm2334, %v2842, 0
      %2896 = vmatprep.subr.mxu0 0.0
      %2897 = vmatpush1.xpose.msra.mxu0 %v2894
      %2898 = vmatprep.subr.mxu0 0.0
      %2899 = vmatpush1.xpose.msra.mxu0 0.0
      %2900 = vmatprep.subr.mxu0 0.0
      %2901 = vmatpush1.xpose.msra.mxu0 0.0
      %2902 = vmatprep.subr.mxu0 0.0
      %2903 = vmatpush1.xpose.msra.mxu0 0.0
      %2904 = vmatprep.subr.mxu0 0.0
      %2905 = vmatpush1.xpose.msra.mxu0 0.0
      %2906 = vmatprep.subr.mxu0 0.0
      %2907 = vmatpush1.xpose.msra.mxu0 0.0
      %2908 = vmatprep.subr.mxu0 0.0
      %2909 = vmatpush1.xpose.msra.mxu0 0.0
      %2910 = vmatprep.subr.mxu0 0.0
      %2911 = vmatpush1.xpose.msra.mxu0 0.0
      %2912 = vmatprep.subr.mxu0 0.0
      %2913 = vmatpush1.xpose.msra.mxu0 0.0
      %2914 = vmatprep.subr.mxu0 0.0
      %2915 = vmatpush1.xpose.msra.mxu0 0.0
      %2916 = vmatprep.subr.mxu0 0.0
      %2917 = vmatpush1.xpose.msra.mxu0 0.0
      %2918 = vmatprep.subr.mxu0 0.0
      %2919 = vmatpush1.xpose.msra.mxu0 0.0
      %2920 = vmatprep.subr.mxu0 0.0
      %2921 = vmatpush1.xpose.msra.mxu0 0.0
      %2922 = vmatprep.subr.mxu0 0.0
      %2923 = vmatpush1.xpose.msra.mxu0 0.0
      %2924 = vmatprep.subr.mxu0 0.0
      %2925 = vmatpush1.xpose.msra.mxu0 0.0
      %2926 = vmatprep.subr.mxu0 0.0
      %2927 = vmatpush1.xpose.msra.mxu0 0.0
      %2928 = vmatprep.subr.mxu0 0.0
      %2929 = vmatpush1.xpose.msra.mxu0 0.0
      %2930 = vmatprep.subr.mxu0 0.0
      %2931 = vmatpush1.xpose.msra.mxu0 0.0
      %2932 = vmatprep.subr.mxu0 0.0
      %2933 = vmatpush1.xpose.msra.mxu0 0.0
      %2934 = vmatprep.subr.mxu0 0.0
      %2935 = vmatpush1.xpose.msra.mxu0 0.0
      %2936 = vmatprep.subr.mxu0 0.0
      %2937 = vmatpush1.xpose.msra.mxu0 0.0
      %2938 = vmatprep.subr.mxu0 0.0
      %2939 = vmatpush1.xpose.msra.mxu0 0.0
      %2940 = vmatprep.subr.mxu0 0.0
      %2941 = vmatpush1.xpose.msra.mxu0 0.0
      %2942 = vmatprep.subr.mxu0 0.0
      %2943 = vmatpush1.xpose.msra.mxu0 0.0
      %2944 = vmatprep.subr.mxu0 0.0
      %2945 = vmatpush1.xpose.msra.mxu0 0.0
      %2946 = vmatprep.subr.mxu0 0.0
      %2947 = vmatpush1.xpose.msra.mxu0 0.0
      %2948 = vmatprep.subr.mxu0 0.0
      %2949 = vmatpush1.xpose.msra.mxu0 0.0
      %2950 = vmatprep.subr.mxu0 0.0
      %2951 = vmatpush1.xpose.msra.mxu0 0.0
      %2952 = vmatprep.subr.mxu0 0.0
      %2953 = vmatpush1.xpose.msra.mxu0 0.0
      %2954 = vmatprep.subr.mxu0 0.0
      %2955 = vmatpush1.xpose.msra.mxu0 0.0
      %2956 = vmatprep.subr.mxu0 0.0
      %2957 = vmatpush1.xpose.msra.mxu0 0.0
      %2958 = vmatprep.subr.mxu0 0.0
      %2959 = vmatpush1.xpose.msra.mxu0 0.0
      %2960 = vmatprep.mubr.f32.mxu0 0.0
      %2961 = vmatmul.mubr.f32.gmra.mrb[0].mxu0 %v2891
      %v2962 = vpop.f32.mrb[0].mxu0
      %v2963 = vadd.f32 0.0, %v2962
      %v2964 = vpop.f32.mrb[0].mxu0
      %2965 = vdwg.mxu0
      %v2966 = vsel %vm2456, %v2963, -inf
      %2967 = vmax.xlane.f32.xlu0 %v2966
      %v2968 = vpop.xlane.xlu0 %2967
      %v2969 = vsub.f32 %v2963, %v2968
      %v2970 = vmul.f32 %v2969, 1.442695
      %v2971 = vpow.pop %v2970
      %v2972 = vsel %vm2456, %v2971, 0.0
      %2973 = vadd.xlane.f32.xlu0 %v2972
      %v2974 = vpop.xlane.xlu0 %2973
      %v2975 = vrcp.pop %v2974
      %v2976 = vmul.f32 %v2971, %v2975
      %v2978 = vsel %vm2456, %v2976, 0
      %2980 = vmatprep.subr.mxu0 0.0
      %2981 = vmatpush1.msra.mxu0 %v2885
      %2982 = vmatprep.subr.mxu0 0.0
      %2983 = vmatpush1.msra.mxu0 0.0
      %2984 = vmatprep.subr.mxu0 0.0
      %2985 = vmatpush1.msra.mxu0 0.0
      %2986 = vmatprep.subr.mxu0 0.0
      %2987 = vmatpush1.msra.mxu0 0.0
      %2988 = vmatprep.subr.mxu0 0.0
      %2989 = vmatpush1.msra.mxu0 0.0
      %2990 = vmatprep.subr.mxu0 0.0
      %2991 = vmatpush1.msra.mxu0 0.0
      %2992 = vmatprep.subr.mxu0 0.0
      %2993 = vmatpush1.msra.mxu0 0.0
      %2994 = vmatprep.subr.mxu0 0.0
      %2995 = vmatpush1.msra.mxu0 0.0
      %2996 = vmatprep.subr.mxu0 0.0
      %2997 = vmatpush1.msra.mxu0 0.0
      %2998 = vmatprep.subr.mxu0 0.0
      %2999 = vmatpush1.msra.mxu0 0.0
      %3000 = vmatprep.subr.mxu0 0.0
      %3001 = vmatpush1.msra.mxu0 0.0
      %3002 = vmatprep.subr.mxu0 0.0
      %3003 = vmatpush1.msra.mxu0 0.0
      %3004 = vmatprep.subr.mxu0 0.0
      %3005 = vmatpush1.msra.mxu0 0.0
      %3006 = vmatprep.subr.mxu0 0.0
      %3007 = vmatpush1.msra.mxu0 0.0
      %3008 = vmatprep.subr.mxu0 0.0
      %3009 = vmatpush1.msra.mxu0 0.0
      %3010 = vmatprep.subr.mxu0 0.0
      %3011 = vmatpush1.msra.mxu0 0.0
      %3012 = vmatprep.subr.mxu0 0.0
      %3013 = vmatpush1.msra.mxu0 0.0
      %3014 = vmatprep.subr.mxu0 0.0
      %3015 = vmatpush1.msra.mxu0 0.0
      %3016 = vmatprep.subr.mxu0 0.0
      %3017 = vmatpush1.msra.mxu0 0.0
      %3018 = vmatprep.subr.mxu0 0.0
      %3019 = vmatpush1.msra.mxu0 0.0
      %3020 = vmatprep.subr.mxu0 0.0
      %3021 = vmatpush1.msra.mxu0 0.0
      %3022 = vmatprep.subr.mxu0 0.0
      %3023 = vmatpush1.msra.mxu0 0.0
      %3024 = vmatprep.subr.mxu0 0.0
      %3025 = vmatpush1.msra.mxu0 0.0
      %3026 = vmatprep.subr.mxu0 0.0
      %3027 = vmatpush1.msra.mxu0 0.0
      %3028 = vmatprep.subr.mxu0 0.0
      %3029 = vmatpush1.msra.mxu0 0.0
      %3030 = vmatprep.subr.mxu0 0.0
      %3031 = vmatpush1.msra.mxu0 0.0
      %3032 = vmatprep.subr.mxu0 0.0
      %3033 = vmatpush1.msra.mxu0 0.0
      %3034 = vmatprep.subr.mxu0 0.0
      %3035 = vmatpush1.msra.mxu0 0.0
      %3036 = vmatprep.subr.mxu0 0.0
      %3037 = vmatpush1.msra.mxu0 0.0
      %3038 = vmatprep.subr.mxu0 0.0
      %3039 = vmatpush1.msra.mxu0 0.0
      %3040 = vmatprep.subr.mxu0 0.0
      %3041 = vmatpush1.msra.mxu0 0.0
      %3042 = vmatprep.subr.mxu0 0.0
      %3043 = vmatpush1.msra.mxu0 0.0
      %3044 = vmatprep.mubr.f32.mxu0 0.0
      %3045 = vmatmul.mubr.f32.gmra.mrb[0].mxu0 %v2978
      %v3046 = vpop.f32.mrb[0].mxu0
      %v3047 = vadd.f32 0.0, %v3046
      %v3048 = vpop.f32.mrb[0].mxu0
      %3049 = vdwg.mxu0
      %v3050 = vpack.c.bf16 %v2618, %v2617
      %v3051 = vpack.c.bf16 %v2620, %v2619
      %v3052 = vpack.c.bf16 %v2622, %v2621
      %v3053 = vpack.c.bf16 %v2624, %v2623
      %v3054 = vpack.c.bf16 %v2626, %v2625
      %v3055 = vpack.c.bf16 %v2628, %v2627
      %v3056 = vpack.c.bf16 %v2630, %v2629
      %v3057 = vpack.c.bf16 %v2632, %v2631
      %v3058 = vpack.c.bf16 %v3047, %v3047
      %v3060 = vsel %vm2456, %v3050, 0
      %v3063 = vsel %vm2456, %v3051, 0
      %v3066 = vsel %vm2456, %v3052, 0
      %v3069 = vsel %vm2456, %v3053, 0
      %v3072 = vsel %vm2456, %v3054, 0
      %v3075 = vsel %vm2456, %v3055, 0
      %v3078 = vsel %vm2456, %v3056, 0
      %v3081 = vsel %vm2456, %v3057, 0
      %vm3083 = vcmask 1043456
      %v3085 = vsel %vm3083, %v3058, 0
      %3087 = vmatprep.subr.bf16.mxu0 0
      %3088 = vmatpush1.bf16.msra.mxu0 %v3085
      %3089 = vmatprep.subr.bf16.mxu0 0
      %3090 = vmatpush1.bf16.msra.mxu0 0
      %3091 = vmatprep.subr.bf16.mxu0 0
      %3092 = vmatpush1.bf16.msra.mxu0 0
      %3093 = vmatprep.subr.bf16.mxu0 0
      %3094 = vmatpush1.bf16.msra.mxu0 0
      %3095 = vmatprep.subr.bf16.mxu0 0
      %3096 = vmatpush1.bf16.msra.mxu0 0
      %3097 = vmatprep.subr.bf16.mxu0 0
      %3098 = vmatpush1.bf16.msra.mxu0 0
      %3099 = vmatprep.subr.bf16.mxu0 0
      %3100 = vmatpush1.bf16.msra.mxu0 0
      %3101 = vmatprep.subr.bf16.mxu0 0
      %3102 = vmatpush1.bf16.msra.mxu0 0
      %3103 = vmatprep.subr.bf16.mxu0 0
      %3104 = vmatpush1.bf16.msra.mxu0 0
      %3105 = vmatprep.subr.bf16.mxu0 0
      %3106 = vmatpush1.bf16.msra.mxu0 0
      %3107 = vmatprep.subr.bf16.mxu0 0
      %3108 = vmatpush1.bf16.msra.mxu0 0
      %3109 = vmatprep.subr.bf16.mxu0 0
      %3110 = vmatpush1.bf16.msra.mxu0 0
      %3111 = vmatprep.subr.bf16.mxu0 0
      %3112 = vmatpush1.bf16.msra.mxu0 0
      %3113 = vmatprep.subr.bf16.mxu0 0
      %3114 = vmatpush1.bf16.msra.mxu0 0
      %3115 = vmatprep.subr.bf16.mxu0 0
      %3116 = vmatpush1.bf16.msra.mxu0 0
      %3117 = vmatprep.subr.bf16.mxu0 0
      %3118 = vmatpush1.bf16.msra.mxu0 0
      %3119 = vmatprep.mubr.bf16.mxu0 0
      %3120 = vmatmul.mubr.bf16.gmra.mrb[0].mxu0 %v3060
      %v3121 = vpop.f32.mrb[0].mxu0
      %v3122 = vadd.f32 0.0, %v3121
      %v3123 = vpop.f32.mrb[0].mxu0
      %v3124 = vpop.f32.mrb[0].mxu0
      %v3125 = vadd.f32 0.0, %v3124
      %v3126 = vpop.f32.mrb[0].mxu0
      %3127 = vmatprep.mubr.bf16.mxu0 0
      %3128 = vmatmul.mubr.bf16.gmra.mrb[0].mxu0 %v3063
      %v3129 = vpop.f32.mrb[0].mxu0
      %v3130 = vadd.f32 0.0, %v3129
      %v3131 = vpop.f32.mrb[0].mxu0
      %v3132 = vpop.f32.mrb[0].mxu0
      %v3133 = vadd.f32 0.0, %v3132
      %v3134 = vpop.f32.mrb[0].mxu0
      %3135 = vmatprep.mubr.bf16.mxu0 0
      %3136 = vmatmul.mubr.bf16.gmra.mrb[0].mxu0 %v3066
      %v3137 = vpop.f32.mrb[0].mxu0
      %v3138 = vadd.f32 0.0, %v3137
      %v3139 = vpop.f32.mrb[0].mxu0
      %v3140 = vpop.f32.mrb[0].mxu0
      %v3141 = vadd.f32 0.0, %v3140
      %v3142 = vpop.f32.mrb[0].mxu0
      %3143 = vmatprep.mubr.bf16.mxu0 0
      %3144 = vmatmul.mubr.bf16.gmra.mrb[0].mxu0 %v3069
      %v3145 = vpop.f32.mrb[0].mxu0
      %v3146 = vadd.f32 0.0, %v3145
      %v3147 = vpop.f32.mrb[0].mxu0
      %v3148 = vpop.f32.mrb[0].mxu0
      %v3149 = vadd.f32 0.0, %v3148
      %v3150 = vpop.f32.mrb[0].mxu0
      %3151 = vmatprep.mubr.bf16.mxu0 0
      %3152 = vmatmul.mubr.bf16.gmra.mrb[0].mxu0 %v3072
      %v3153 = vpop.f32.mrb[0].mxu0
      %v3154 = vadd.f32 0.0, %v3153
      %v3155 = vpop.f32.mrb[0].mxu0
      %v3156 = vpop.f32.mrb[0].mxu0
      %v3157 = vadd.f32 0.0, %v3156
      %v3158 = vpop.f32.mrb[0].mxu0
      %3159 = vmatprep.mubr.bf16.mxu0 0
      %3160 = vmatmul.mubr.bf16.gmra.mrb[0].mxu0 %v3075
      %v3161 = vpop.f32.mrb[0].mxu0
      %v3162 = vadd.f32 0.0, %v3161
      %v3163 = vpop.f32.mrb[0].mxu0
      %v3164 = vpop.f32.mrb[0].mxu0
      %v3165 = vadd.f32 0.0, %v3164
      %v3166 = vpop.f32.mrb[0].mxu0
      %3167 = vmatprep.mubr.bf16.mxu0 0
      %3168 = vmatmul.mubr.bf16.gmra.mrb[0].mxu0 %v3078
      %v3169 = vpop.f32.mrb[0].mxu0
      %v3170 = vadd.f32 0.0, %v3169
      %v3171 = vpop.f32.mrb[0].mxu0
      %v3172 = vpop.f32.mrb[0].mxu0
      %v3173 = vadd.f32 0.0, %v3172
      %v3174 = vpop.f32.mrb[0].mxu0
      %3175 = vmatprep.mubr.bf16.mxu0 0
      %3176 = vmatmul.mubr.bf16.gmra.mrb[0].mxu0 %v3081
      %v3177 = vpop.f32.mrb[0].mxu0
      %v3178 = vadd.f32 0.0, %v3177
      %v3179 = vpop.f32.mrb[0].mxu0
      %v3180 = vpop.f32.mrb[0].mxu0
      %v3181 = vadd.f32 0.0, %v3180
      %v3182 = vpop.f32.mrb[0].mxu0
      %3183 = vdwg.mxu0
      %3184 = vst.msk [vmem:[#allocation4] sm:$0xff] %vm2334, %v3122
      %3185 = vst.msk [vmem:[#allocation4 + $0x8] sm:$0xff] %vm2334, %v3125
      %3186 = vst.msk [vmem:[#allocation4 + $0x10] sm:$0xff] %vm2334, %v3130
      %3187 = vst.msk [vmem:[#allocation4 + $0x18] sm:$0xff] %vm2334, %v3133
      %3188 = vst.msk [vmem:[#allocation4 + $0x20] sm:$0xff] %vm2334, %v3138
      %3189 = vst.msk [vmem:[#allocation4 + $0x28] sm:$0xff] %vm2334, %v3141
      %3190 = vst.msk [vmem:[#allocation4 + $0x30] sm:$0xff] %vm2334, %v3146
      %3191 = vst.msk [vmem:[#allocation4 + $0x38] sm:$0xff] %vm2334, %v3149
      %3192 = vst.msk [vmem:[#allocation4 + $0x40] sm:$0xff] %vm2334, %v3154
      %3193 = vst.msk [vmem:[#allocation4 + $0x48] sm:$0xff] %vm2334, %v3157
      %3194 = vst.msk [vmem:[#allocation4 + $0x50] sm:$0xff] %vm2334, %v3162
      %3195 = vst.msk [vmem:[#allocation4 + $0x58] sm:$0xff] %vm2334, %v3165
      %3196 = vst.msk [vmem:[#allocation4 + $0x60] sm:$0xff] %vm2334, %v3170
      %3197 = vst.msk [vmem:[#allocation4 + $0x68] sm:$0xff] %vm2334, %v3173
      %3198 = vst.msk [vmem:[#allocation4 + $0x70] sm:$0xff] %vm2334, %v3178
      %3199 = vst.msk [vmem:[#allocation4 + $0x78] sm:$0xff] %vm2334, %v3181
      %v3200 = vld [vmem:[#allocation3] sm:$0xff]
      %v3201 = vld [vmem:[#allocation3 + $0x8] sm:$0xff]
      %v3202 = vld [vmem:[#allocation3 + $0x10] sm:$0xff]
      %v3203 = vld [vmem:[#allocation3 + $0x18] sm:$0xff]
      %v3204 = vld [vmem:[#allocation3 + $0x20] sm:$0xff]
      %v3205 = vld [vmem:[#allocation3 + $0x28] sm:$0xff]
      %v3206 = vld [vmem:[#allocation3 + $0x30] sm:$0xff]
      %v3207 = vld [vmem:[#allocation3 + $0x38] sm:$0xff]
      %v3208 = vld [vmem:[#allocation3 + $0x40] sm:$0xff]
      %v3209 = vld [vmem:[#allocation3 + $0x48] sm:$0xff]
      %v3210 = vld [vmem:[#allocation3 + $0x50] sm:$0xff]
      %v3211 = vld [vmem:[#allocation3 + $0x58] sm:$0xff]
      %v3212 = vld [vmem:[#allocation3 + $0x60] sm:$0xff]
      %v3213 = vld [vmem:[#allocation3 + $0x68] sm:$0xff]
      %v3214 = vld [vmem:[#allocation3 + $0x70] sm:$0xff]
      %v3215 = vld [vmem:[#allocation3 + $0x78] sm:$0xff]
      %v3216 = vpack.c.bf16 %v3201, %v3200
      %v3217 = vpack.c.bf16 %v3203, %v3202
      %v3218 = vpack.c.bf16 %v3205, %v3204
      %v3219 = vpack.c.bf16 %v3207, %v3206
      %v3220 = vpack.c.bf16 %v3209, %v3208
      %v3221 = vpack.c.bf16 %v3211, %v3210
      %v3222 = vpack.c.bf16 %v3213, %v3212
      %v3223 = vpack.c.bf16 %v3215, %v3214
      %s3224 = scalar_lea.vmem %s4, 8
      %v3225 = vld [vmem:[%s3224] sm:$0xf]
      %v3226 = vld [vmem:[%s3224 + $0x4] sm:$0xf]
      %s3227 = scalar_lea.vmem %s5, 1
      %v3228 = vld [vmem:[%s3227] sm:$0x1]
      %v3230 = vlaneseq
      %v3231 = vshrl.u32 %v3230, 7
      %v3232 = vsub.s32 0, %v3231
      %v3233 = vrot.slane %v3228, %v3232
      %3243 = vrot.lane.b32.xlu0 %v3216, 48
      %v3244 = vpop.permute.xlu0 %3243
      %3245 = vrot.lane.b32.xlu0 %v3217, 48
      %v3246 = vpop.permute.xlu0 %3245
      %3247 = vrot.lane.b32.xlu0 %v3218, 48
      %v3248 = vpop.permute.xlu0 %3247
      %3249 = vrot.lane.b32.xlu0 %v3219, 48
      %v3250 = vpop.permute.xlu0 %3249
      %3251 = vrot.lane.b32.xlu0 %v3220, 48
      %v3252 = vpop.permute.xlu0 %3251
      %3253 = vrot.lane.b32.xlu0 %v3221, 48
      %v3254 = vpop.permute.xlu0 %3253
      %3255 = vrot.lane.b32.xlu0 %v3222, 48
      %v3256 = vpop.permute.xlu0 %3255
      %3257 = vrot.lane.b32.xlu0 %v3223, 48
      %v3258 = vpop.permute.xlu0 %3257
      %v3261 = vunpack.c.l.b16 %v3225
      %v3262 = vunpack.c.l.b16 %v3226
      %v3263 = vpack.c.b16 %v3262, %v3261
      %v3266 = vsel %vm2334, %v3244, 0
      %v3269 = vsel %vm2334, %v3246, 0
      %v3272 = vsel %vm2334, %v3248, 0
      %v3275 = vsel %vm2334, %v3250, 0
      %v3278 = vsel %vm2334, %v3252, 0
      %v3281 = vsel %vm2334, %v3254, 0
      %v3284 = vsel %vm2334, %v3256, 0
      %v3287 = vsel %vm2334, %v3258, 0
      %3289 = vmatprep.subr.bf16.mxu0 0
      %3290 = vmatpush1.bf16.msra.mxu0 %v3263
      %3291 = vmatprep.subr.bf16.mxu0 0
      %3292 = vmatpush1.bf16.msra.mxu0 0
      %3293 = vmatprep.subr.bf16.mxu0 0
      %3294 = vmatpush1.bf16.msra.mxu0 0
      %3295 = vmatprep.subr.bf16.mxu0 0
      %3296 = vmatpush1.bf16.msra.mxu0 0
      %3297 = vmatprep.subr.bf16.mxu0 0
      %3298 = vmatpush1.bf16.msra.mxu0 0
      %3299 = vmatprep.subr.bf16.mxu0 0
      %3300 = vmatpush1.bf16.msra.mxu0 0
      %3301 = vmatprep.subr.bf16.mxu0 0
      %3302 = vmatpush1.bf16.msra.mxu0 0
      %3303 = vmatprep.subr.bf16.mxu0 0
      %3304 = vmatpush1.bf16.msra.mxu0 0
      %3305 = vmatprep.subr.bf16.mxu0 0
      %3306 = vmatpush1.bf16.msra.mxu0 0
      %3307 = vmatprep.subr.bf16.mxu0 0
      %3308 = vmatpush1.bf16.msra.mxu0 0
      %3309 = vmatprep.subr.bf16.mxu0 0
      %3310 = vmatpush1.bf16.msra.mxu0 0
      %3311 = vmatprep.subr.bf16.mxu0 0
      %3312 = vmatpush1.bf16.msra.mxu0 0
      %3313 = vmatprep.subr.bf16.mxu0 0
      %3314 = vmatpush1.bf16.msra.mxu0 0
      %3315 = vmatprep.subr.bf16.mxu0 0
      %3316 = vmatpush1.bf16.msra.mxu0 0
      %3317 = vmatprep.subr.bf16.mxu0 0
      %3318 = vmatpush1.bf16.msra.mxu0 0
      %3319 = vmatprep.subr.bf16.mxu0 0
      %3320 = vmatpush1.bf16.msra.mxu0 0
      %3321 = vmatprep.mubr.bf16.mxu0 0
      %3322 = vmatmul.mubr.bf16.gmra.mrb[0].mxu0 %v3266
      %v3323 = vpop.f32.mrb[0].mxu0
      %v3324 = vadd.f32 %v3233, %v3323
      %v3325 = vpop.f32.mrb[0].mxu0
      %v3326 = vpop.f32.mrb[0].mxu0
      %v3327 = vadd.f32 %v3233, %v3326
      %v3328 = vpop.f32.mrb[0].mxu0
      %3329 = vmatprep.mubr.bf16.mxu0 0
      %3330 = vmatmul.mubr.bf16.gmra.mrb[0].mxu0 %v3269
      %v3331 = vpop.f32.mrb[0].mxu0
      %v3332 = vadd.f32 %v3233, %v3331
      %v3333 = vpop.f32.mrb[0].mxu0
      %v3334 = vpop.f32.mrb[0].mxu0
      %v3335 = vadd.f32 %v3233, %v3334
      %v3336 = vpop.f32.mrb[0].mxu0
      %3337 = vmatprep.mubr.bf16.mxu0 0
      %3338 = vmatmul.mubr.bf16.gmra.mrb[0].mxu0 %v3272
      %v3339 = vpop.f32.mrb[0].mxu0
      %v3340 = vadd.f32 %v3233, %v3339
      %v3341 = vpop.f32.mrb[0].mxu0
      %v3342 = vpop.f32.mrb[0].mxu0
      %v3343 = vadd.f32 %v3233, %v3342
      %v3344 = vpop.f32.mrb[0].mxu0
      %3345 = vmatprep.mubr.bf16.mxu0 0
      %3346 = vmatmul.mubr.bf16.gmra.mrb[0].mxu0 %v3275
      %v3347 = vpop.f32.mrb[0].mxu0
      %v3348 = vadd.f32 %v3233, %v3347
      %v3349 = vpop.f32.mrb[0].mxu0
      %v3350 = vpop.f32.mrb[0].mxu0
      %v3351 = vadd.f32 %v3233, %v3350
      %v3352 = vpop.f32.mrb[0].mxu0
      %3353 = vmatprep.mubr.bf16.mxu0 0
      %3354 = vmatmul.mubr.bf16.gmra.mrb[0].mxu0 %v3278
      %v3355 = vpop.f32.mrb[0].mxu0
      %v3356 = vadd.f32 %v3233, %v3355
      %v3357 = vpop.f32.mrb[0].mxu0
      %v3358 = vpop.f32.mrb[0].mxu0
      %v3359 = vadd.f32 %v3233, %v3358
      %v3360 = vpop.f32.mrb[0].mxu0
      %3361 = vmatprep.mubr.bf16.mxu0 0
      %3362 = vmatmul.mubr.bf16.gmra.mrb[0].mxu0 %v3281
      %v3363 = vpop.f32.mrb[0].mxu0
      %v3364 = vadd.f32 %v3233, %v3363
      %v3365 = vpop.f32.mrb[0].mxu0
      %v3366 = vpop.f32.mrb[0].mxu0
      %v3367 = vadd.f32 %v3233, %v3366
      %v3368 = vpop.f32.mrb[0].mxu0
      %3369 = vmatprep.mubr.bf16.mxu0 0
      %3370 = vmatmul.mubr.bf16.gmra.mrb[0].mxu0 %v3284
      %v3371 = vpop.f32.mrb[0].mxu0
      %v3372 = vadd.f32 %v3233, %v3371
      %v3373 = vpop.f32.mrb[0].mxu0
      %v3374 = vpop.f32.mrb[0].mxu0
      %v3375 = vadd.f32 %v3233, %v3374
      %v3376 = vpop.f32.mrb[0].mxu0
      %3377 = vmatprep.mubr.bf16.mxu0 0
      %3378 = vmatmul.mubr.bf16.gmra.mrb[0].mxu0 %v3287
      %v3379 = vpop.f32.mrb[0].mxu0
      %v3380 = vadd.f32 %v3233, %v3379
      %v3381 = vpop.f32.mrb[0].mxu0
      %v3382 = vpop.f32.mrb[0].mxu0
      %v3383 = vadd.f32 %v3233, %v3382
      %v3384 = vpop.f32.mrb[0].mxu0
      %3385 = vdwg.mxu0
      %v3386 = vsel %vm2456, %v3324, -inf
      %3387 = vmax.xlane.f32.xlu0 %v3386
      %v3388 = vpop.xlane.xlu0 %3387
      %v3389 = vsel %vm2456, %v3327, -inf
      %3390 = vmax.xlane.f32.xlu0 %v3389
      %v3391 = vpop.xlane.xlu0 %3390
      %v3392 = vsel %vm2456, %v3332, -inf
      %3393 = vmax.xlane.f32.xlu0 %v3392
      %v3394 = vpop.xlane.xlu0 %3393
      %v3395 = vsel %vm2456, %v3335, -inf
      %3396 = vmax.xlane.f32.xlu0 %v3395
      %v3397 = vpop.xlane.xlu0 %3396
      %v3398 = vsel %vm2456, %v3340, -inf
      %3399 = vmax.xlane.f32.xlu0 %v3398
      %v3400 = vpop.xlane.xlu0 %3399
      %v3401 = vsel %vm2456, %v3343, -inf
      %3402 = vmax.xlane.f32.xlu0 %v3401
      %v3403 = vpop.xlane.xlu0 %3402
      %v3404 = vsel %vm2456, %v3348, -inf
      %3405 = vmax.xlane.f32.xlu0 %v3404
      %v3406 = vpop.xlane.xlu0 %3405
      %v3407 = vsel %vm2456, %v3351, -inf
      %3408 = vmax.xlane.f32.xlu0 %v3407
      %v3409 = vpop.xlane.xlu0 %3408
      %v3410 = vsel %vm2456, %v3356, -inf
      %3411 = vmax.xlane.f32.xlu0 %v3410
      %v3412 = vpop.xlane.xlu0 %3411
      %v3413 = vsel %vm2456, %v3359, -inf
      %3414 = vmax.xlane.f32.xlu0 %v3413
      %v3415 = vpop.xlane.xlu0 %3414
      %v3416 = vsel %vm2456, %v3364, -inf
      %3417 = vmax.xlane.f32.xlu0 %v3416
      %v3418 = vpop.xlane.xlu0 %3417
      %v3419 = vsel %vm2456, %v3367, -inf
      %3420 = vmax.xlane.f32.xlu0 %v3419
      %v3421 = vpop.xlane.xlu0 %3420
      %v3422 = vsel %vm2456, %v3372, -inf
      %3423 = vmax.xlane.f32.xlu0 %v3422
      %v3424 = vpop.xlane.xlu0 %3423
      %v3425 = vsel %vm2456, %v3375, -inf
      %3426 = vmax.xlane.f32.xlu0 %v3425
      %v3427 = vpop.xlane.xlu0 %3426
      %v3428 = vsel %vm2456, %v3380, -inf
      %3429 = vmax.xlane.f32.xlu0 %v3428
      %v3430 = vpop.xlane.xlu0 %3429
      %v3431 = vsel %vm2456, %v3383, -inf
      %3432 = vmax.xlane.f32.xlu0 %v3431
      %v3433 = vpop.xlane.xlu0 %3432
      %v3434 = vsub.f32 %v3324, %v3388
      %v3435 = vsub.f32 %v3327, %v3391
      %v3436 = vsub.f32 %v3332, %v3394
      %v3437 = vsub.f32 %v3335, %v3397
      %v3438 = vsub.f32 %v3340, %v3400
      %v3439 = vsub.f32 %v3343, %v3403
      %v3440 = vsub.f32 %v3348, %v3406
      %v3441 = vsub.f32 %v3351, %v3409
      %v3442 = vsub.f32 %v3356, %v3412
      %v3443 = vsub.f32 %v3359, %v3415
      %v3444 = vsub.f32 %v3364, %v3418
      %v3445 = vsub.f32 %v3367, %v3421
      %v3446 = vsub.f32 %v3372, %v3424
      %v3447 = vsub.f32 %v3375, %v3427
      %v3448 = vsub.f32 %v3380, %v3430
      %v3449 = vsub.f32 %v3383, %v3433
      %v3450 = vmul.f32 %v3434, 1.442695
      %v3451 = vpow.pop %v3450
      %v3452 = vmul.f32 %v3435, 1.442695
      %v3453 = vpow.pop %v3452
      %v3454 = vmul.f32 %v3436, 1.442695
      %v3455 = vpow.pop %v3454
      %v3456 = vmul.f32 %v3437, 1.442695
      %v3457 = vpow.pop %v3456
      %v3458 = vmul.f32 %v3438, 1.442695
      %v3459 = vpow.pop %v3458
      %v3460 = vmul.f32 %v3439, 1.442695
      %v3461 = vpow.pop %v3460
      %v3462 = vmul.f32 %v3440, 1.442695
      %v3463 = vpow.pop %v3462
      %v3464 = vmul.f32 %v3441, 1.442695
      %v3465 = vpow.pop %v3464
      %v3466 = vmul.f32 %v3442, 1.442695
      %v3467 = vpow.pop %v3466
      %v3468 = vmul.f32 %v3443, 1.442695
      %v3469 = vpow.pop %v3468
      %v3470 = vmul.f32 %v3444, 1.442695
      %v3471 = vpow.pop %v3470
      %v3472 = vmul.f32 %v3445, 1.442695
      %v3473 = vpow.pop %v3472
      %v3474 = vmul.f32 %v3446, 1.442695
      %v3475 = vpow.pop %v3474
      %v3476 = vmul.f32 %v3447, 1.442695
      %v3477 = vpow.pop %v3476
      %v3478 = vmul.f32 %v3448, 1.442695
      %v3479 = vpow.pop %v3478
      %v3480 = vmul.f32 %v3449, 1.442695
      %v3481 = vpow.pop %v3480
      %v3482 = vsel %vm2456, %v3451, 0.0
      %3483 = vadd.xlane.f32.xlu0 %v3482
      %v3484 = vpop.xlane.xlu0 %3483
      %v3485 = vsel %vm2456, %v3453, 0.0
      %3486 = vadd.xlane.f32.xlu0 %v3485
      %v3487 = vpop.xlane.xlu0 %3486
      %v3488 = vsel %vm2456, %v3455, 0.0
      %3489 = vadd.xlane.f32.xlu0 %v3488
      %v3490 = vpop.xlane.xlu0 %3489
      %v3491 = vsel %vm2456, %v3457, 0.0
      %3492 = vadd.xlane.f32.xlu0 %v3491
      %v3493 = vpop.xlane.xlu0 %3492
      %v3494 = vsel %vm2456, %v3459, 0.0
      %3495 = vadd.xlane.f32.xlu0 %v3494
      %v3496 = vpop.xlane.xlu0 %3495
      %v3497 = vsel %vm2456, %v3461, 0.0
      %3498 = vadd.xlane.f32.xlu0 %v3497
      %v3499 = vpop.xlane.xlu0 %3498
      %v3500 = vsel %vm2456, %v3463, 0.0
      %3501 = vadd.xlane.f32.xlu0 %v3500
      %v3502 = vpop.xlane.xlu0 %3501
      %v3503 = vsel %vm2456, %v3465, 0.0
      %3504 = vadd.xlane.f32.xlu0 %v3503
      %v3505 = vpop.xlane.xlu0 %3504
      %v3506 = vsel %vm2456, %v3467, 0.0
      %3507 = vadd.xlane.f32.xlu0 %v3506
      %v3508 = vpop.xlane.xlu0 %3507
      %v3509 = vsel %vm2456, %v3469, 0.0
      %3510 = vadd.xlane.f32.xlu0 %v3509
      %v3511 = vpop.xlane.xlu0 %3510
      %v3512 = vsel %vm2456, %v3471, 0.0
      %3513 = vadd.xlane.f32.xlu0 %v3512
      %v3514 = vpop.xlane.xlu0 %3513
      %v3515 = vsel %vm2456, %v3473, 0.0
      %3516 = vadd.xlane.f32.xlu0 %v3515
      %v3517 = vpop.xlane.xlu0 %3516
      %v3518 = vsel %vm2456, %v3475, 0.0
      %3519 = vadd.xlane.f32.xlu0 %v3518
      %v3520 = vpop.xlane.xlu0 %3519
      %v3521 = vsel %vm2456, %v3477, 0.0
      %3522 = vadd.xlane.f32.xlu0 %v3521
      %v3523 = vpop.xlane.xlu0 %3522
      %v3524 = vsel %vm2456, %v3479, 0.0
      %3525 = vadd.xlane.f32.xlu0 %v3524
      %v3526 = vpop.xlane.xlu0 %3525
      %v3527 = vsel %vm2456, %v3481, 0.0
      %3528 = vadd.xlane.f32.xlu0 %v3527
      %v3529 = vpop.xlane.xlu0 %3528
      %v3530 = vrcp.pop %v3484
      %v3531 = vrcp.pop %v3487
      %v3532 = vrcp.pop %v3490
      %v3533 = vrcp.pop %v3493
      %v3534 = vrcp.pop %v3496
      %v3535 = vrcp.pop %v3499
      %v3536 = vrcp.pop %v3502
      %v3537 = vrcp.pop %v3505
      %v3538 = vrcp.pop %v3508
      %v3539 = vrcp.pop %v3511
      %v3540 = vrcp.pop %v3514
      %v3541 = vrcp.pop %v3517
      %v3542 = vrcp.pop %v3520
      %v3543 = vrcp.pop %v3523
      %v3544 = vrcp.pop %v3526
      %v3545 = vrcp.pop %v3529
      %v3546 = vmul.f32 %v3451, %v3530
      %v3547 = vmul.f32 %v3453, %v3531
      %v3548 = vmul.f32 %v3455, %v3532
      %v3549 = vmul.f32 %v3457, %v3533
      %v3550 = vmul.f32 %v3459, %v3534
      %v3551 = vmul.f32 %v3461, %v3535
      %v3552 = vmul.f32 %v3463, %v3536
      %v3553 = vmul.f32 %v3465, %v3537
      %v3554 = vmul.f32 %v3467, %v3538
      %v3555 = vmul.f32 %v3469, %v3539
      %v3556 = vmul.f32 %v3471, %v3540
      %v3557 = vmul.f32 %v3473, %v3541
      %v3558 = vmul.f32 %v3475, %v3542
      %v3559 = vmul.f32 %v3477, %v3543
      %v3560 = vmul.f32 %v3479, %v3544
      %v3561 = vmul.f32 %v3481, %v3545
      %v3562 = vsel %vm2456, %v3546, 0.0
      %v3563 = vsel %vm2456, %v3547, 0.0
      %v3564 = vadd.f32 %v3562, %v3563
      %v3565 = vsel %vm2456, %v3548, 0.0
      %v3566 = vadd.f32 %v3564, %v3565
      %v3567 = vsel %vm2456, %v3549, 0.0
      %v3568 = vadd.f32 %v3566, %v3567
      %v3569 = vsel %vm2456, %v3550, 0.0
      %v3570 = vadd.f32 %v3568, %v3569
      %v3571 = vsel %vm2456, %v3551, 0.0
      %v3572 = vadd.f32 %v3570, %v3571
      %v3573 = vsel %vm2456, %v3552, 0.0
      %v3574 = vadd.f32 %v3572, %v3573
      %v3575 = vsel %vm2456, %v3553, 0.0
      %v3576 = vadd.f32 %v3574, %v3575
      %v3577 = vsel %vm2456, %v3554, 0.0
      %v3578 = vadd.f32 %v3576, %v3577
      %v3579 = vsel %vm2456, %v3555, 0.0
      %v3580 = vadd.f32 %v3578, %v3579
      %v3581 = vsel %vm2456, %v3556, 0.0
      %v3582 = vadd.f32 %v3580, %v3581
      %v3583 = vsel %vm2456, %v3557, 0.0
      %v3584 = vadd.f32 %v3582, %v3583
      %v3585 = vsel %vm2456, %v3558, 0.0
      %v3586 = vadd.f32 %v3584, %v3585
      %v3587 = vsel %vm2456, %v3559, 0.0
      %v3588 = vadd.f32 %v3586, %v3587
      %v3589 = vsel %vm2456, %v3560, 0.0
      %v3590 = vadd.f32 %v3588, %v3589
      %v3591 = vsel %vm2456, %v3561, 0.0
      %v3592 = vadd.f32 %v3590, %v3591
      %v3593 = vrot.slane %v3592, 4
      %v3594 = vadd.f32 %v3592, %v3593
      %v3595 = vrot.slane %v3594, 2
      %v3596 = vadd.f32 %v3594, %v3595
      %v3597 = vrot.slane %v3596, 1
      %v3598 = vadd.f32 %v3596, %v3597
      %v3599 = vadd.f32 %v3598, 1e-05
      %v3600 = vrcp.pop %v3599
      %v3601 = vmul.f32 %v3546, %v3600
      %v3602 = vmul.f32 %v3547, %v3600
      %v3603 = vmul.f32 %v3548, %v3600
      %v3604 = vmul.f32 %v3549, %v3600
      %v3605 = vmul.f32 %v3550, %v3600
      %v3606 = vmul.f32 %v3551, %v3600
      %v3607 = vmul.f32 %v3552, %v3600
      %v3608 = vmul.f32 %v3553, %v3600
      %v3609 = vmul.f32 %v3554, %v3600
      %v3610 = vmul.f32 %v3555, %v3600
      %v3611 = vmul.f32 %v3556, %v3600
      %v3612 = vmul.f32 %v3557, %v3600
      %v3613 = vmul.f32 %v3558, %v3600
      %v3614 = vmul.f32 %v3559, %v3600
      %v3615 = vmul.f32 %v3560, %v3600
      %v3616 = vmul.f32 %v3561, %v3600
      %v3617 = vpack.c.bf16 %v3602, %v3601
      %v3618 = vpack.c.bf16 %v3604, %v3603
      %v3619 = vpack.c.bf16 %v3606, %v3605
      %v3620 = vpack.c.bf16 %v3608, %v3607
      %v3621 = vpack.c.bf16 %v3610, %v3609
      %v3622 = vpack.c.bf16 %v3612, %v3611
      %v3623 = vpack.c.bf16 %v3614, %v3613
      %v3624 = vpack.c.bf16 %v3616, %v3615
      %3625 = vxpose.xlu0.c.b16.start [1/8] %v3617, 128
      %3626 = vxpose.xlu0.c.b16.cont [2/8] %v3618, 128
      %3627 = vxpose.xlu0.c.b16.cont [3/8] %v3619, 128
      %3628 = vxpose.xlu0.c.b16.cont [4/8] %v3620, 128
      %3629 = vxpose.xlu0.c.b16.cont [5/8] %v3621, 128
      %3630 = vxpose.xlu0.c.b16.cont [6/8] %v3622, 128
      %3631 = vxpose.xlu0.c.b16.cont [7/8] %v3623, 128
      %3632 = vxpose.xlu0.c.b16.end [8/8] %v3624, 128
      %v3633 = vpop.trf.xlu0
      %v3634 = vpop.trf.xlu0
      %v3635 = vpop.trf.xlu0
      %v3636 = vpop.trf.xlu0
      %v3637 = vpop.trf.xlu0
      %v3638 = vpop.trf.xlu0
      %v3639 = vpop.trf.xlu0
      %v3640 = vpop.trf.xlu0
      %3641 = vrot.lane.b32.xlu0 %v3216, 112
      %v3642 = vpop.permute.xlu0 %3641
      %3643 = vrot.lane.b32.xlu0 %v3217, 112
      %v3644 = vpop.permute.xlu0 %3643
      %3645 = vrot.lane.b32.xlu0 %v3218, 112
      %v3646 = vpop.permute.xlu0 %3645
      %3647 = vrot.lane.b32.xlu0 %v3219, 112
      %v3648 = vpop.permute.xlu0 %3647
      %3649 = vrot.lane.b32.xlu0 %v3220, 112
      %v3650 = vpop.permute.xlu0 %3649
      %3651 = vrot.lane.b32.xlu0 %v3221, 112
      %v3652 = vpop.permute.xlu0 %3651
      %3653 = vrot.lane.b32.xlu0 %v3222, 112
      %v3654 = vpop.permute.xlu0 %3653
      %3655 = vrot.lane.b32.xlu0 %v3223, 112
      %v3656 = vpop.permute.xlu0 %3655
      %3665 = vmatprep.subr.bf16.mxu0 0
      %3666 = vmatpush1.bf16.msra.mxu0 %v3642
      %3667 = vmatprep.subr.bf16.mxu0 0
      %3668 = vmatpush1.bf16.msra.mxu0 %v3644
      %3669 = vmatprep.subr.bf16.mxu0 0
      %3670 = vmatpush1.bf16.msra.mxu0 %v3646
      %3671 = vmatprep.subr.bf16.mxu0 0
      %3672 = vmatpush1.bf16.msra.mxu0 %v3648
      %3673 = vmatprep.subr.bf16.mxu0 0
      %3674 = vmatpush1.bf16.msra.mxu0 %v3650
      %3675 = vmatprep.subr.bf16.mxu0 0
      %3676 = vmatpush1.bf16.msra.mxu0 %v3652
      %3677 = vmatprep.subr.bf16.mxu0 0
      %3678 = vmatpush1.bf16.msra.mxu0 %v3654
      %3679 = vmatprep.subr.bf16.mxu0 0
      %3680 = vmatpush1.bf16.msra.mxu0 %v3656
      %3681 = vmatprep.subr.bf16.mxu0 0
      %3682 = vmatpush1.bf16.msra.mxu0 0
      %3683 = vmatprep.subr.bf16.mxu0 0
      %3684 = vmatpush1.bf16.msra.mxu0 0
      %3685 = vmatprep.subr.bf16.mxu0 0
      %3686 = vmatpush1.bf16.msra.mxu0 0
      %3687 = vmatprep.subr.bf16.mxu0 0
      %3688 = vmatpush1.bf16.msra.mxu0 0
      %3689 = vmatprep.subr.bf16.mxu0 0
      %3690 = vmatpush1.bf16.msra.mxu0 0
      %3691 = vmatprep.subr.bf16.mxu0 0
      %3692 = vmatpush1.bf16.msra.mxu0 0
      %3693 = vmatprep.subr.bf16.mxu0 0
      %3694 = vmatpush1.bf16.msra.mxu0 0
      %3695 = vmatprep.subr.bf16.mxu0 0
      %3696 = vmatpush1.bf16.msra.mxu0 0
      %3697 = vmatprep.mubr.bf16.mxu0 0
      %3698 = vmatmul.mubr.bf16.gmra.mrb[0].mxu0 %v3633
      %v3699 = vpop.f32.mrb[0].mxu0
      %v3700 = vadd.f32 0.0, %v3699
      %v3701 = vpop.f32.mrb[0].mxu0
      %v3702 = vpop.f32.mrb[0].mxu0
      %v3703 = vpop.f32.mrb[0].mxu0
      %3704 = vdwg.mxu0
      %v3705 = vpack.c.bf16 %v3700, %v3700
      %v3706 = vld [vmem:[%s6] sm:$0xf]
      %v3707 = vld [vmem:[%s6 + $0x4] sm:$0xf]
      %v3710 = vunpack.c.l.b16 %v3706
      %v3711 = vunpack.c.l.b16 %v3707
      %v3712 = vpack.c.b16 %v3711, %v3710
      %v3715 = vsel %vm2334, %v3705, 0
      %3717 = vmatprep.subr.bf16.mxu0 0
      %3718 = vmatpush1.bf16.msra.mxu0 %v3712
      %3719 = vmatprep.subr.bf16.mxu0 0
      %3720 = vmatpush1.bf16.msra.mxu0 0
      %3721 = vmatprep.subr.bf16.mxu0 0
      %3722 = vmatpush1.bf16.msra.mxu0 0
      %3723 = vmatprep.subr.bf16.mxu0 0
      %3724 = vmatpush1.bf16.msra.mxu0 0
      %3725 = vmatprep.subr.bf16.mxu0 0
      %3726 = vmatpush1.bf16.msra.mxu0 0
      %3727 = vmatprep.subr.bf16.mxu0 0
      %3728 = vmatpush1.bf16.msra.mxu0 0
      %3729 = vmatprep.subr.bf16.mxu0 0
      %3730 = vmatpush1.bf16.msra.mxu0 0
      %3731 = vmatprep.subr.bf16.mxu0 0
      %3732 = vmatpush1.bf16.msra.mxu0 0
      %3733 = vmatprep.subr.bf16.mxu0 0
      %3734 = vmatpush1.bf16.msra.mxu0 0
      %3735 = vmatprep.subr.bf16.mxu0 0
      %3736 = vmatpush1.bf16.msra.mxu0 0
      %3737 = vmatprep.subr.bf16.mxu0 0
      %3738 = vmatpush1.bf16.msra.mxu0 0
      %3739 = vmatprep.subr.bf16.mxu0 0
      %3740 = vmatpush1.bf16.msra.mxu0 0
      %3741 = vmatprep.subr.bf16.mxu0 0
      %3742 = vmatpush1.bf16.msra.mxu0 0
      %3743 = vmatprep.subr.bf16.mxu0 0
      %3744 = vmatpush1.bf16.msra.mxu0 0
      %3745 = vmatprep.subr.bf16.mxu0 0
      %3746 = vmatpush1.bf16.msra.mxu0 0
      %3747 = vmatprep.subr.bf16.mxu0 0
      %3748 = vmatpush1.bf16.msra.mxu0 0
      %3749 = vmatprep.mubr.bf16.mxu0 0
      %3750 = vmatmul.mubr.bf16.gmra.mrb[0].mxu0 %v3715
      %v3751 = vpop.f32.mrb[0].mxu0
      %v3752 = vadd.f32 0.0, %v3751
      %v3753 = vpop.f32.mrb[0].mxu0
      %v3754 = vpop.f32.mrb[0].mxu0
      %v3755 = vpop.f32.mrb[0].mxu0
      %3756 = vdwg.mxu0
      %3757 = vrot.lane.b32.xlu0 %v3712, 112
      %v3758 = vpop.permute.xlu0 %3757
      %3760 = vmatprep.subr.bf16.mxu0 0
      %3761 = vmatpush1.bf16.msra.mxu0 %v3758
      %3762 = vmatprep.subr.bf16.mxu0 0
      %3763 = vmatpush1.bf16.msra.mxu0 0
      %3764 = vmatprep.subr.bf16.mxu0 0
      %3765 = vmatpush1.bf16.msra.mxu0 0
      %3766 = vmatprep.subr.bf16.mxu0 0
      %3767 = vmatpush1.bf16.msra.mxu0 0
      %3768 = vmatprep.subr.bf16.mxu0 0
      %3769 = vmatpush1.bf16.msra.mxu0 0
      %3770 = vmatprep.subr.bf16.mxu0 0
      %3771 = vmatpush1.bf16.msra.mxu0 0
      %3772 = vmatprep.subr.bf16.mxu0 0
      %3773 = vmatpush1.bf16.msra.mxu0 0
      %3774 = vmatprep.subr.bf16.mxu0 0
      %3775 = vmatpush1.bf16.msra.mxu0 0
      %3776 = vmatprep.subr.bf16.mxu0 0
      %3777 = vmatpush1.bf16.msra.mxu0 0
      %3778 = vmatprep.subr.bf16.mxu0 0
      %3779 = vmatpush1.bf16.msra.mxu0 0
      %3780 = vmatprep.subr.bf16.mxu0 0
      %3781 = vmatpush1.bf16.msra.mxu0 0
      %3782 = vmatprep.subr.bf16.mxu0 0
      %3783 = vmatpush1.bf16.msra.mxu0 0
      %3784 = vmatprep.subr.bf16.mxu0 0
      %3785 = vmatpush1.bf16.msra.mxu0 0
      %3786 = vmatprep.subr.bf16.mxu0 0
      %3787 = vmatpush1.bf16.msra.mxu0 0
      %3788 = vmatprep.subr.bf16.mxu0 0
      %3789 = vmatpush1.bf16.msra.mxu0 0
      %3790 = vmatprep.subr.bf16.mxu0 0
      %3791 = vmatpush1.bf16.msra.mxu0 0
      %3792 = vmatprep.mubr.bf16.mxu0 0
      %3793 = vmatmul.mubr.bf16.gmra.mrb[0].mxu0 %v3715
      %v3794 = vpop.f32.mrb[0].mxu0
      %v3795 = vadd.f32 0.0, %v3794
      %v3796 = vpop.f32.mrb[0].mxu0
      %v3797 = vpop.f32.mrb[0].mxu0
      %v3798 = vpop.f32.mrb[0].mxu0
      %3799 = vdwg.mxu0
      %3800 = vrot.lane.b32.xlu0 %v3712, 96
      %v3801 = vpop.permute.xlu0 %3800
      %3803 = vmatprep.subr.bf16.mxu0 0
      %3804 = vmatpush1.bf16.msra.mxu0 %v3801
      %3805 = vmatprep.subr.bf16.mxu0 0
      %3806 = vmatpush1.bf16.msra.mxu0 0
      %3807 = vmatprep.subr.bf16.mxu0 0
      %3808 = vmatpush1.bf16.msra.mxu0 0
      %3809 = vmatprep.subr.bf16.mxu0 0
      %3810 = vmatpush1.bf16.msra.mxu0 0
      %3811 = vmatprep.subr.bf16.mxu0 0
      %3812 = vmatpush1.bf16.msra.mxu0 0
      %3813 = vmatprep.subr.bf16.mxu0 0
      %3814 = vmatpush1.bf16.msra.mxu0 0
      %3815 = vmatprep.subr.bf16.mxu0 0
      %3816 = vmatpush1.bf16.msra.mxu0 0
      %3817 = vmatprep.subr.bf16.mxu0 0
      %3818 = vmatpush1.bf16.msra.mxu0 0
      %3819 = vmatprep.subr.bf16.mxu0 0
      %3820 = vmatpush1.bf16.msra.mxu0 0
      %3821 = vmatprep.subr.bf16.mxu0 0
      %3822 = vmatpush1.bf16.msra.mxu0 0
      %3823 = vmatprep.subr.bf16.mxu0 0
      %3824 = vmatpush1.bf16.msra.mxu0 0
      %3825 = vmatprep.subr.bf16.mxu0 0
      %3826 = vmatpush1.bf16.msra.mxu0 0
      %3827 = vmatprep.subr.bf16.mxu0 0
      %3828 = vmatpush1.bf16.msra.mxu0 0
      %3829 = vmatprep.subr.bf16.mxu0 0
      %3830 = vmatpush1.bf16.msra.mxu0 0
      %3831 = vmatprep.subr.bf16.mxu0 0
      %3832 = vmatpush1.bf16.msra.mxu0 0
      %3833 = vmatprep.subr.bf16.mxu0 0
      %3834 = vmatpush1.bf16.msra.mxu0 0
      %3835 = vmatprep.mubr.bf16.mxu0 0
      %3836 = vmatmul.mubr.bf16.gmra.mrb[0].mxu0 %v3715
      %v3837 = vpop.f32.mrb[0].mxu0
      %v3838 = vadd.f32 0.0, %v3837
      %v3839 = vpop.f32.mrb[0].mxu0
      %v3840 = vpop.f32.mrb[0].mxu0
      %v3841 = vpop.f32.mrb[0].mxu0
      %3842 = vdwg.mxu0
      %v3844 = vsel %vm2334, %v3752, 0
      %v3847 = vsel %vm2334, %v3795, 0
      %3849 = vmatprep.subr.mxu0 0.0
      %3850 = vmatpush1.xpose.msra.mxu0 %v3847
      %3851 = vmatprep.subr.mxu0 0.0
      %3852 = vmatpush1.xpose.msra.mxu0 0.0
      %3853 = vmatprep.subr.mxu0 0.0
      %3854 = vmatpush1.xpose.msra.mxu0 0.0
      %3855 = vmatprep.subr.mxu0 0.0
      %3856 = vmatpush1.xpose.msra.mxu0 0.0
      %3857 = vmatprep.subr.mxu0 0.0
      %3858 = vmatpush1.xpose.msra.mxu0 0.0
      %3859 = vmatprep.subr.mxu0 0.0
      %3860 = vmatpush1.xpose.msra.mxu0 0.0
      %3861 = vmatprep.subr.mxu0 0.0
      %3862 = vmatpush1.xpose.msra.mxu0 0.0
      %3863 = vmatprep.subr.mxu0 0.0
      %3864 = vmatpush1.xpose.msra.mxu0 0.0
      %3865 = vmatprep.subr.mxu0 0.0
      %3866 = vmatpush1.xpose.msra.mxu0 0.0
      %3867 = vmatprep.subr.mxu0 0.0
      %3868 = vmatpush1.xpose.msra.mxu0 0.0
      %3869 = vmatprep.subr.mxu0 0.0
      %3870 = vmatpush1.xpose.msra.mxu0 0.0
      %3871 = vmatprep.subr.mxu0 0.0
      %3872 = vmatpush1.xpose.msra.mxu0 0.0
      %3873 = vmatprep.subr.mxu0 0.0
      %3874 = vmatpush1.xpose.msra.mxu0 0.0
      %3875 = vmatprep.subr.mxu0 0.0
      %3876 = vmatpush1.xpose.msra.mxu0 0.0
      %3877 = vmatprep.subr.mxu0 0.0
      %3878 = vmatpush1.xpose.msra.mxu0 0.0
      %3879 = vmatprep.subr.mxu0 0.0
      %3880 = vmatpush1.xpose.msra.mxu0 0.0
      %3881 = vmatprep.subr.mxu0 0.0
      %3882 = vmatpush1.xpose.msra.mxu0 0.0
      %3883 = vmatprep.subr.mxu0 0.0
      %3884 = vmatpush1.xpose.msra.mxu0 0.0
      %3885 = vmatprep.subr.mxu0 0.0
      %3886 = vmatpush1.xpose.msra.mxu0 0.0
      %3887 = vmatprep.subr.mxu0 0.0
      %3888 = vmatpush1.xpose.msra.mxu0 0.0
      %3889 = vmatprep.subr.mxu0 0.0
      %3890 = vmatpush1.xpose.msra.mxu0 0.0
      %3891 = vmatprep.subr.mxu0 0.0
      %3892 = vmatpush1.xpose.msra.mxu0 0.0
      %3893 = vmatprep.subr.mxu0 0.0
      %3894 = vmatpush1.xpose.msra.mxu0 0.0
      %3895 = vmatprep.subr.mxu0 0.0
      %3896 = vmatpush1.xpose.msra.mxu0 0.0
      %3897 = vmatprep.subr.mxu0 0.0
      %3898 = vmatpush1.xpose.msra.mxu0 0.0
      %3899 = vmatprep.subr.mxu0 0.0
      %3900 = vmatpush1.xpose.msra.mxu0 0.0
      %3901 = vmatprep.subr.mxu0 0.0
      %3902 = vmatpush1.xpose.msra.mxu0 0.0
      %3903 = vmatprep.subr.mxu0 0.0
      %3904 = vmatpush1.xpose.msra.mxu0 0.0
      %3905 = vmatprep.subr.mxu0 0.0
      %3906 = vmatpush1.xpose.msra.mxu0 0.0
      %3907 = vmatprep.subr.mxu0 0.0
      %3908 = vmatpush1.xpose.msra.mxu0 0.0
      %3909 = vmatprep.subr.mxu0 0.0
      %3910 = vmatpush1.xpose.msra.mxu0 0.0
      %3911 = vmatprep.subr.mxu0 0.0
      %3912 = vmatpush1.xpose.msra.mxu0 0.0
      %3913 = vmatprep.mubr.f32.mxu0 0.0
      %3914 = vmatmul.mubr.f32.gmra.mrb[0].mxu0 %v3844
      %v3915 = vpop.f32.mrb[0].mxu0
      %v3916 = vadd.f32 0.0, %v3915
      %v3917 = vpop.f32.mrb[0].mxu0
      %3918 = vdwg.mxu0
      %v3919 = vsel %vm2456, %v3916, -inf
      %3920 = vmax.xlane.f32.xlu0 %v3919
      %v3921 = vpop.xlane.xlu0 %3920
      %v3922 = vsub.f32 %v3916, %v3921
      %v3923 = vmul.f32 %v3922, 1.442695
      %v3924 = vpow.pop %v3923
      %v3925 = vsel %vm2456, %v3924, 0.0
      %3926 = vadd.xlane.f32.xlu0 %v3925
      %v3927 = vpop.xlane.xlu0 %3926
      %v3928 = vrcp.pop %v3927
      %v3929 = vmul.f32 %v3924, %v3928
      %v3931 = vsel %vm2456, %v3929, 0
      %3933 = vmatprep.subr.mxu0 0.0
      %3934 = vmatpush1.msra.mxu0 %v3838
      %3935 = vmatprep.subr.mxu0 0.0
      %3936 = vmatpush1.msra.mxu0 0.0
      %3937 = vmatprep.subr.mxu0 0.0
      %3938 = vmatpush1.msra.mxu0 0.0
      %3939 = vmatprep.subr.mxu0 0.0
      %3940 = vmatpush1.msra.mxu0 0.0
      %3941 = vmatprep.subr.mxu0 0.0
      %3942 = vmatpush1.msra.mxu0 0.0
      %3943 = vmatprep.subr.mxu0 0.0
      %3944 = vmatpush1.msra.mxu0 0.0
      %3945 = vmatprep.subr.mxu0 0.0
      %3946 = vmatpush1.msra.mxu0 0.0
      %3947 = vmatprep.subr.mxu0 0.0
      %3948 = vmatpush1.msra.mxu0 0.0
      %3949 = vmatprep.subr.mxu0 0.0
      %3950 = vmatpush1.msra.mxu0 0.0
      %3951 = vmatprep.subr.mxu0 0.0
      %3952 = vmatpush1.msra.mxu0 0.0
      %3953 = vmatprep.subr.mxu0 0.0
      %3954 = vmatpush1.msra.mxu0 0.0
      %3955 = vmatprep.subr.mxu0 0.0
      %3956 = vmatpush1.msra.mxu0 0.0
      %3957 = vmatprep.subr.mxu0 0.0
      %3958 = vmatpush1.msra.mxu0 0.0
      %3959 = vmatprep.subr.mxu0 0.0
      %3960 = vmatpush1.msra.mxu0 0.0
      %3961 = vmatprep.subr.mxu0 0.0
      %3962 = vmatpush1.msra.mxu0 0.0
      %3963 = vmatprep.subr.mxu0 0.0
      %3964 = vmatpush1.msra.mxu0 0.0
      %3965 = vmatprep.subr.mxu0 0.0
      %3966 = vmatpush1.msra.mxu0 0.0
      %3967 = vmatprep.subr.mxu0 0.0
      %3968 = vmatpush1.msra.mxu0 0.0
      %3969 = vmatprep.subr.mxu0 0.0
      %3970 = vmatpush1.msra.mxu0 0.0
      %3971 = vmatprep.subr.mxu0 0.0
      %3972 = vmatpush1.msra.mxu0 0.0
      %3973 = vmatprep.subr.mxu0 0.0
      %3974 = vmatpush1.msra.mxu0 0.0
      %3975 = vmatprep.subr.mxu0 0.0
      %3976 = vmatpush1.msra.mxu0 0.0
      %3977 = vmatprep.subr.mxu0 0.0
      %3978 = vmatpush1.msra.mxu0 0.0
      %3979 = vmatprep.subr.mxu0 0.0
      %3980 = vmatpush1.msra.mxu0 0.0
      %3981 = vmatprep.subr.mxu0 0.0
      %3982 = vmatpush1.msra.mxu0 0.0
      %3983 = vmatprep.subr.mxu0 0.0
      %3984 = vmatpush1.msra.mxu0 0.0
      %3985 = vmatprep.subr.mxu0 0.0
      %3986 = vmatpush1.msra.mxu0 0.0
      %3987 = vmatprep.subr.mxu0 0.0
      %3988 = vmatpush1.msra.mxu0 0.0
      %3989 = vmatprep.subr.mxu0 0.0
      %3990 = vmatpush1.msra.mxu0 0.0
      %3991 = vmatprep.subr.mxu0 0.0
      %3992 = vmatpush1.msra.mxu0 0.0
      %3993 = vmatprep.subr.mxu0 0.0
      %3994 = vmatpush1.msra.mxu0 0.0
      %3995 = vmatprep.subr.mxu0 0.0
      %3996 = vmatpush1.msra.mxu0 0.0
      %3997 = vmatprep.mubr.f32.mxu0 0.0
      %3998 = vmatmul.mubr.f32.gmra.mrb[0].mxu0 %v3931
      %v3999 = vpop.f32.mrb[0].mxu0
      %v4000 = vadd.f32 0.0, %v3999
      %v4001 = vpop.f32.mrb[0].mxu0
      %4002 = vdwg.mxu0
      %v4003 = vpack.c.bf16 %v3547, %v3546
      %v4004 = vpack.c.bf16 %v3549, %v3548
      %v4005 = vpack.c.bf16 %v3551, %v3550
      %v4006 = vpack.c.bf16 %v3553, %v3552
      %v4007 = vpack.c.bf16 %v3555, %v3554
      %v4008 = vpack.c.bf16 %v3557, %v3556
      %v4009 = vpack.c.bf16 %v3559, %v3558
      %v4010 = vpack.c.bf16 %v3561, %v3560
      %v4011 = vpack.c.bf16 %v4000, %v4000
      %v4013 = vsel %vm2456, %v4003, 0
      %v4016 = vsel %vm2456, %v4004, 0
      %v4019 = vsel %vm2456, %v4005, 0
      %v4022 = vsel %vm2456, %v4006, 0
      %v4025 = vsel %vm2456, %v4007, 0
      %v4028 = vsel %vm2456, %v4008, 0
      %v4031 = vsel %vm2456, %v4009, 0
      %v4034 = vsel %vm2456, %v4010, 0
      %v4037 = vsel %vm3083, %v4011, 0
      %4039 = vmatprep.subr.bf16.mxu0 0
      %4040 = vmatpush1.bf16.msra.mxu0 %v4037
      %4041 = vmatprep.subr.bf16.mxu0 0
      %4042 = vmatpush1.bf16.msra.mxu0 0
      %4043 = vmatprep.subr.bf16.mxu0 0
      %4044 = vmatpush1.bf16.msra.mxu0 0
      %4045 = vmatprep.subr.bf16.mxu0 0
      %4046 = vmatpush1.bf16.msra.mxu0 0
      %4047 = vmatprep.subr.bf16.mxu0 0
      %4048 = vmatpush1.bf16.msra.mxu0 0
      %4049 = vmatprep.subr.bf16.mxu0 0
      %4050 = vmatpush1.bf16.msra.mxu0 0
      %4051 = vmatprep.subr.bf16.mxu0 0
      %4052 = vmatpush1.bf16.msra.mxu0 0
      %4053 = vmatprep.subr.bf16.mxu0 0
      %4054 = vmatpush1.bf16.msra.mxu0 0
      %4055 = vmatprep.subr.bf16.mxu0 0
      %4056 = vmatpush1.bf16.msra.mxu0 0
      %4057 = vmatprep.subr.bf16.mxu0 0
      %4058 = vmatpush1.bf16.msra.mxu0 0
      %4059 = vmatprep.subr.bf16.mxu0 0
      %4060 = vmatpush1.bf16.msra.mxu0 0
      %4061 = vmatprep.subr.bf16.mxu0 0
      %4062 = vmatpush1.bf16.msra.mxu0 0
      %4063 = vmatprep.subr.bf16.mxu0 0
      %4064 = vmatpush1.bf16.msra.mxu0 0
      %4065 = vmatprep.subr.bf16.mxu0 0
      %4066 = vmatpush1.bf16.msra.mxu0 0
      %4067 = vmatprep.subr.bf16.mxu0 0
      %4068 = vmatpush1.bf16.msra.mxu0 0
      %4069 = vmatprep.subr.bf16.mxu0 0
      %4070 = vmatpush1.bf16.msra.mxu0 0
      %4071 = vmatprep.mubr.bf16.mxu0 0
      %4072 = vmatmul.mubr.bf16.gmra.mrb[0].mxu0 %v4013
      %v4073 = vpop.f32.mrb[0].mxu0
      %v4074 = vadd.f32 0.0, %v4073
      %v4075 = vpop.f32.mrb[0].mxu0
      %v4076 = vpop.f32.mrb[0].mxu0
      %v4077 = vadd.f32 0.0, %v4076
      %v4078 = vpop.f32.mrb[0].mxu0
      %4079 = vmatprep.mubr.bf16.mxu0 0
      %4080 = vmatmul.mubr.bf16.gmra.mrb[0].mxu0 %v4016
      %v4081 = vpop.f32.mrb[0].mxu0
      %v4082 = vadd.f32 0.0, %v4081
      %v4083 = vpop.f32.mrb[0].mxu0
      %v4084 = vpop.f32.mrb[0].mxu0
      %v4085 = vadd.f32 0.0, %v4084
      %v4086 = vpop.f32.mrb[0].mxu0
      %4087 = vmatprep.mubr.bf16.mxu0 0
      %4088 = vmatmul.mubr.bf16.gmra.mrb[0].mxu0 %v4019
      %v4089 = vpop.f32.mrb[0].mxu0
      %v4090 = vadd.f32 0.0, %v4089
      %v4091 = vpop.f32.mrb[0].mxu0
      %v4092 = vpop.f32.mrb[0].mxu0
      %v4093 = vadd.f32 0.0, %v4092
      %v4094 = vpop.f32.mrb[0].mxu0
      %4095 = vmatprep.mubr.bf16.mxu0 0
      %4096 = vmatmul.mubr.bf16.gmra.mrb[0].mxu0 %v4022
      %v4097 = vpop.f32.mrb[0].mxu0
      %v4098 = vadd.f32 0.0, %v4097
      %v4099 = vpop.f32.mrb[0].mxu0
      %v4100 = vpop.f32.mrb[0].mxu0
      %v4101 = vadd.f32 0.0, %v4100
      %v4102 = vpop.f32.mrb[0].mxu0
      %4103 = vmatprep.mubr.bf16.mxu0 0
      %4104 = vmatmul.mubr.bf16.gmra.mrb[0].mxu0 %v4025
      %v4105 = vpop.f32.mrb[0].mxu0
      %v4106 = vadd.f32 0.0, %v4105
      %v4107 = vpop.f32.mrb[0].mxu0
      %v4108 = vpop.f32.mrb[0].mxu0
      %v4109 = vadd.f32 0.0, %v4108
      %v4110 = vpop.f32.mrb[0].mxu0
      %4111 = vmatprep.mubr.bf16.mxu0 0
      %4112 = vmatmul.mubr.bf16.gmra.mrb[0].mxu0 %v4028
      %v4113 = vpop.f32.mrb[0].mxu0
      %v4114 = vadd.f32 0.0, %v4113
      %v4115 = vpop.f32.mrb[0].mxu0
      %v4116 = vpop.f32.mrb[0].mxu0
      %v4117 = vadd.f32 0.0, %v4116
      %v4118 = vpop.f32.mrb[0].mxu0
      %4119 = vmatprep.mubr.bf16.mxu0 0
      %4120 = vmatmul.mubr.bf16.gmra.mrb[0].mxu0 %v4031
      %v4121 = vpop.f32.mrb[0].mxu0
      %v4122 = vadd.f32 0.0, %v4121
      %v4123 = vpop.f32.mrb[0].mxu0
      %v4124 = vpop.f32.mrb[0].mxu0
      %v4125 = vadd.f32 0.0, %v4124
      %v4126 = vpop.f32.mrb[0].mxu0
      %4127 = vmatprep.mubr.bf16.mxu0 0
      %4128 = vmatmul.mubr.bf16.gmra.mrb[0].mxu0 %v4034
      %v4129 = vpop.f32.mrb[0].mxu0
      %v4130 = vadd.f32 0.0, %v4129
      %v4131 = vpop.f32.mrb[0].mxu0
      %v4132 = vpop.f32.mrb[0].mxu0
      %v4133 = vadd.f32 0.0, %v4132
      %v4134 = vpop.f32.mrb[0].mxu0
      %4135 = vdwg.mxu0
      %4152 = vrot.lane.b32.xlu0 %v4074, 16
      %v4153 = vpop.permute.xlu0 %4152
      %4154 = vrot.lane.b32.xlu0 %v4077, 16
      %v4155 = vpop.permute.xlu0 %4154
      %4156 = vrot.lane.b32.xlu0 %v4082, 16
      %v4157 = vpop.permute.xlu0 %4156
      %4158 = vrot.lane.b32.xlu0 %v4085, 16
      %v4159 = vpop.permute.xlu0 %4158
      %4160 = vrot.lane.b32.xlu0 %v4090, 16
      %v4161 = vpop.permute.xlu0 %4160
      %4162 = vrot.lane.b32.xlu0 %v4093, 16
      %v4163 = vpop.permute.xlu0 %4162
      %4164 = vrot.lane.b32.xlu0 %v4098, 16
      %v4165 = vpop.permute.xlu0 %4164
      %4166 = vrot.lane.b32.xlu0 %v4101, 16
      %v4167 = vpop.permute.xlu0 %4166
      %4168 = vrot.lane.b32.xlu0 %v4106, 16
      %v4169 = vpop.permute.xlu0 %4168
      %4170 = vrot.lane.b32.xlu0 %v4109, 16
      %v4171 = vpop.permute.xlu0 %4170
      %4172 = vrot.lane.b32.xlu0 %v4114, 16
      %v4173 = vpop.permute.xlu0 %4172
      %4174 = vrot.lane.b32.xlu0 %v4117, 16
      %v4175 = vpop.permute.xlu0 %4174
      %4176 = vrot.lane.b32.xlu0 %v4122, 16
      %v4177 = vpop.permute.xlu0 %4176
      %4178 = vrot.lane.b32.xlu0 %v4125, 16
      %v4179 = vpop.permute.xlu0 %4178
      %4180 = vrot.lane.b32.xlu0 %v4130, 16
      %v4181 = vpop.permute.xlu0 %4180
      %4182 = vrot.lane.b32.xlu0 %v4133, 16
      %v4183 = vpop.permute.xlu0 %4182
      %vm4200 = vcmask 261248
      %4201 = vst.msk [vmem:[#allocation4] sm:$0xff] %vm4200, %v4153
      %4202 = vst.msk [vmem:[#allocation4 + $0x8] sm:$0xff] %vm4200, %v4155
      %4203 = vst.msk [vmem:[#allocation4 + $0x10] sm:$0xff] %vm4200, %v4157
      %4204 = vst.msk [vmem:[#allocation4 + $0x18] sm:$0xff] %vm4200, %v4159
      %4205 = vst.msk [vmem:[#allocation4 + $0x20] sm:$0xff] %vm4200, %v4161
      %4206 = vst.msk [vmem:[#allocation4 + $0x28] sm:$0xff] %vm4200, %v4163
      %4207 = vst.msk [vmem:[#allocation4 + $0x30] sm:$0xff] %vm4200, %v4165
      %4208 = vst.msk [vmem:[#allocation4 + $0x38] sm:$0xff] %vm4200, %v4167
      %4209 = vst.msk [vmem:[#allocation4 + $0x40] sm:$0xff] %vm4200, %v4169
      %4210 = vst.msk [vmem:[#allocation4 + $0x48] sm:$0xff] %vm4200, %v4171
      %4211 = vst.msk [vmem:[#allocation4 + $0x50] sm:$0xff] %vm4200, %v4173
      %4212 = vst.msk [vmem:[#allocation4 + $0x58] sm:$0xff] %vm4200, %v4175
      %4213 = vst.msk [vmem:[#allocation4 + $0x60] sm:$0xff] %vm4200, %v4177
      %4214 = vst.msk [vmem:[#allocation4 + $0x68] sm:$0xff] %vm4200, %v4179
      %4215 = vst.msk [vmem:[#allocation4 + $0x70] sm:$0xff] %vm4200, %v4181
      %4216 = vst.msk [vmem:[#allocation4 + $0x78] sm:$0xff] %vm4200, %v4183
      %v4217 = vld [vmem:[#allocation3] sm:$0xff]
      %v4218 = vld [vmem:[#allocation3 + $0x8] sm:$0xff]
      %v4219 = vld [vmem:[#allocation3 + $0x10] sm:$0xff]
      %v4220 = vld [vmem:[#allocation3 + $0x18] sm:$0xff]
      %v4221 = vld [vmem:[#allocation3 + $0x20] sm:$0xff]
      %v4222 = vld [vmem:[#allocation3 + $0x28] sm:$0xff]
      %v4223 = vld [vmem:[#allocation3 + $0x30] sm:$0xff]
      %v4224 = vld [vmem:[#allocation3 + $0x38] sm:$0xff]
      %v4225 = vld [vmem:[#allocation3 + $0x40] sm:$0xff]
      %v4226 = vld [vmem:[#allocation3 + $0x48] sm:$0xff]
      %v4227 = vld [vmem:[#allocation3 + $0x50] sm:$0xff]
      %v4228 = vld [vmem:[#allocation3 + $0x58] sm:$0xff]
      %v4229 = vld [vmem:[#allocation3 + $0x60] sm:$0xff]
      %v4230 = vld [vmem:[#allocation3 + $0x68] sm:$0xff]
      %v4231 = vld [vmem:[#allocation3 + $0x70] sm:$0xff]
      %v4232 = vld [vmem:[#allocation3 + $0x78] sm:$0xff]
      %v4233 = vpack.c.bf16 %v4218, %v4217
      %v4234 = vpack.c.bf16 %v4220, %v4219
      %v4235 = vpack.c.bf16 %v4222, %v4221
      %v4236 = vpack.c.bf16 %v4224, %v4223
      %v4237 = vpack.c.bf16 %v4226, %v4225
      %v4238 = vpack.c.bf16 %v4228, %v4227
      %v4239 = vpack.c.bf16 %v4230, %v4229
      %v4240 = vpack.c.bf16 %v4232, %v4231
      %s4241 = scalar_lea.vmem %s4, 16
      %v4242 = vld [vmem:[%s4241] sm:$0xf]
      %v4243 = vld [vmem:[%s4241 + $0x4] sm:$0xf]
      %s4244 = scalar_lea.vmem %s5, 2
      %v4245 = vld [vmem:[%s4244] sm:$0x1]
      %v4247 = vlaneseq
      %v4248 = vshrl.u32 %v4247, 7
      %v4249 = vsub.s32 0, %v4248
      %v4250 = vrot.slane %v4245, %v4249
      %4260 = vrot.lane.b32.xlu0 %v4233, 32
      %v4261 = vpop.permute.xlu0 %4260
      %4262 = vrot.lane.b32.xlu0 %v4234, 32
      %v4263 = vpop.permute.xlu0 %4262
      %4264 = vrot.lane.b32.xlu0 %v4235, 32
      %v4265 = vpop.permute.xlu0 %4264
      %4266 = vrot.lane.b32.xlu0 %v4236, 32
      %v4267 = vpop.permute.xlu0 %4266
      %4268 = vrot.lane.b32.xlu0 %v4237, 32
      %v4269 = vpop.permute.xlu0 %4268
      %4270 = vrot.lane.b32.xlu0 %v4238, 32
      %v4271 = vpop.permute.xlu0 %4270
      %4272 = vrot.lane.b32.xlu0 %v4239, 32
      %v4273 = vpop.permute.xlu0 %4272
      %4274 = vrot.lane.b32.xlu0 %v4240, 32
      %v4275 = vpop.permute.xlu0 %4274
      %v4278 = vunpack.c.l.b16 %v4242
      %v4279 = vunpack.c.l.b16 %v4243
      %v4280 = vpack.c.b16 %v4279, %v4278
      %v4283 = vsel %vm2334, %v4261, 0
      %v4286 = vsel %vm2334, %v4263, 0
      %v4289 = vsel %vm2334, %v4265, 0
      %v4292 = vsel %vm2334, %v4267, 0
      %v4295 = vsel %vm2334, %v4269, 0
      %v4298 = vsel %vm2334, %v4271, 0
      %v4301 = vsel %vm2334, %v4273, 0
      %v4304 = vsel %vm2334, %v4275, 0
      %4306 = vmatprep.subr.bf16.mxu0 0
      %4307 = vmatpush1.bf16.msra.mxu0 %v4280
      %4308 = vmatprep.subr.bf16.mxu0 0
      %4309 = vmatpush1.bf16.msra.mxu0 0
      %4310 = vmatprep.subr.bf16.mxu0 0
      %4311 = vmatpush1.bf16.msra.mxu0 0
      %4312 = vmatprep.subr.bf16.mxu0 0
      %4313 = vmatpush1.bf16.msra.mxu0 0
      %4314 = vmatprep.subr.bf16.mxu0 0
      %4315 = vmatpush1.bf16.msra.mxu0 0
      %4316 = vmatprep.subr.bf16.mxu0 0
      %4317 = vmatpush1.bf16.msra.mxu0 0
      %4318 = vmatprep.subr.bf16.mxu0 0
      %4319 = vmatpush1.bf16.msra.mxu0 0
      %4320 = vmatprep.subr.bf16.mxu0 0
      %4321 = vmatpush1.bf16.msra.mxu0 0
      %4322 = vmatprep.subr.bf16.mxu0 0
      %4323 = vmatpush1.bf16.msra.mxu0 0
      %4324 = vmatprep.subr.bf16.mxu0 0
      %4325 = vmatpush1.bf16.msra.mxu0 0
      %4326 = vmatprep.subr.bf16.mxu0 0
      %4327 = vmatpush1.bf16.msra.mxu0 0
      %4328 = vmatprep.subr.bf16.mxu0 0
      %4329 = vmatpush1.bf16.msra.mxu0 0
      %4330 = vmatprep.subr.bf16.mxu0 0
      %4331 = vmatpush1.bf16.msra.mxu0 0
      %4332 = vmatprep.subr.bf16.mxu0 0
      %4333 = vmatpush1.bf16.msra.mxu0 0
      %4334 = vmatprep.subr.bf16.mxu0 0
      %4335 = vmatpush1.bf16.msra.mxu0 0
      %4336 = vmatprep.subr.bf16.mxu0 0
      %4337 = vmatpush1.bf16.msra.mxu0 0
      %4338 = vmatprep.mubr.bf16.mxu0 0
      %4339 = vmatmul.mubr.bf16.gmra.mrb[0].mxu0 %v4283
      %v4340 = vpop.f32.mrb[0].mxu0
      %v4341 = vadd.f32 %v4250, %v4340
      %v4342 = vpop.f32.mrb[0].mxu0
      %v4343 = vpop.f32.mrb[0].mxu0
      %v4344 = vadd.f32 %v4250, %v4343
      %v4345 = vpop.f32.mrb[0].mxu0
      %4346 = vmatprep.mubr.bf16.mxu0 0
      %4347 = vmatmul.mubr.bf16.gmra.mrb[0].mxu0 %v4286
      %v4348 = vpop.f32.mrb[0].mxu0
      %v4349 = vadd.f32 %v4250, %v4348
      %v4350 = vpop.f32.mrb[0].mxu0
      %v4351 = vpop.f32.mrb[0].mxu0
      %v4352 = vadd.f32 %v4250, %v4351
      %v4353 = vpop.f32.mrb[0].mxu0
      %4354 = vmatprep.mubr.bf16.mxu0 0
      %4355 = vmatmul.mubr.bf16.gmra.mrb[0].mxu0 %v4289
      %v4356 = vpop.f32.mrb[0].mxu0
      %v4357 = vadd.f32 %v4250, %v4356
      %v4358 = vpop.f32.mrb[0].mxu0
      %v4359 = vpop.f32.mrb[0].mxu0
      %v4360 = vadd.f32 %v4250, %v4359
      %v4361 = vpop.f32.mrb[0].mxu0
      %4362 = vmatprep.mubr.bf16.mxu0 0
      %4363 = vmatmul.mubr.bf16.gmra.mrb[0].mxu0 %v4292
      %v4364 = vpop.f32.mrb[0].mxu0
      %v4365 = vadd.f32 %v4250, %v4364
      %v4366 = vpop.f32.mrb[0].mxu0
      %v4367 = vpop.f32.mrb[0].mxu0
      %v4368 = vadd.f32 %v4250, %v4367
      %v4369 = vpop.f32.mrb[0].mxu0
      %4370 = vmatprep.mubr.bf16.mxu0 0
      %4371 = vmatmul.mubr.bf16.gmra.mrb[0].mxu0 %v4295
      %v4372 = vpop.f32.mrb[0].mxu0
      %v4373 = vadd.f32 %v4250, %v4372
      %v4374 = vpop.f32.mrb[0].mxu0
      %v4375 = vpop.f32.mrb[0].mxu0
      %v4376 = vadd.f32 %v4250, %v4375
      %v4377 = vpop.f32.mrb[0].mxu0
      %4378 = vmatprep.mubr.bf16.mxu0 0
      %4379 = vmatmul.mubr.bf16.gmra.mrb[0].mxu0 %v4298
      %v4380 = vpop.f32.mrb[0].mxu0
      %v4381 = vadd.f32 %v4250, %v4380
      %v4382 = vpop.f32.mrb[0].mxu0
      %v4383 = vpop.f32.mrb[0].mxu0
      %v4384 = vadd.f32 %v4250, %v4383
      %v4385 = vpop.f32.mrb[0].mxu0
      %4386 = vmatprep.mubr.bf16.mxu0 0
      %4387 = vmatmul.mubr.bf16.gmra.mrb[0].mxu0 %v4301
      %v4388 = vpop.f32.mrb[0].mxu0
      %v4389 = vadd.f32 %v4250, %v4388
      %v4390 = vpop.f32.mrb[0].mxu0
      %v4391 = vpop.f32.mrb[0].mxu0
      %v4392 = vadd.f32 %v4250, %v4391
      %v4393 = vpop.f32.mrb[0].mxu0
      %4394 = vmatprep.mubr.bf16.mxu0 0
      %4395 = vmatmul.mubr.bf16.gmra.mrb[0].mxu0 %v4304
      %v4396 = vpop.f32.mrb[0].mxu0
      %v4397 = vadd.f32 %v4250, %v4396
      %v4398 = vpop.f32.mrb[0].mxu0
      %v4399 = vpop.f32.mrb[0].mxu0
      %v4400 = vadd.f32 %v4250, %v4399
      %v4401 = vpop.f32.mrb[0].mxu0
      %4402 = vdwg.mxu0
      %v4403 = vsel %vm2456, %v4341, -inf
      %4404 = vmax.xlane.f32.xlu0 %v4403
      %v4405 = vpop.xlane.xlu0 %4404
      %v4406 = vsel %vm2456, %v4344, -inf
      %4407 = vmax.xlane.f32.xlu0 %v4406
      %v4408 = vpop.xlane.xlu0 %4407
      %v4409 = vsel %vm2456, %v4349, -inf
      %4410 = vmax.xlane.f32.xlu0 %v4409
      %v4411 = vpop.xlane.xlu0 %4410
      %v4412 = vsel %vm2456, %v4352, -inf
      %4413 = vmax.xlane.f32.xlu0 %v4412
      %v4414 = vpop.xlane.xlu0 %4413
      %v4415 = vsel %vm2456, %v4357, -inf
      %4416 = vmax.xlane.f32.xlu0 %v4415
      %v4417 = vpop.xlane.xlu0 %4416
      %v4418 = vsel %vm2456, %v4360, -inf
      %4419 = vmax.xlane.f32.xlu0 %v4418
      %v4420 = vpop.xlane.xlu0 %4419
      %v4421 = vsel %vm2456, %v4365, -inf
      %4422 = vmax.xlane.f32.xlu0 %v4421
      %v4423 = vpop.xlane.xlu0 %4422
      %v4424 = vsel %vm2456, %v4368, -inf
      %4425 = vmax.xlane.f32.xlu0 %v4424
      %v4426 = vpop.xlane.xlu0 %4425
      %v4427 = vsel %vm2456, %v4373, -inf
      %4428 = vmax.xlane.f32.xlu0 %v4427
      %v4429 = vpop.xlane.xlu0 %4428
      %v4430 = vsel %vm2456, %v4376, -inf
      %4431 = vmax.xlane.f32.xlu0 %v4430
      %v4432 = vpop.xlane.xlu0 %4431
      %v4433 = vsel %vm2456, %v4381, -inf
      %4434 = vmax.xlane.f32.xlu0 %v4433
      %v4435 = vpop.xlane.xlu0 %4434
      %v4436 = vsel %vm2456, %v4384, -inf
      %4437 = vmax.xlane.f32.xlu0 %v4436
      %v4438 = vpop.xlane.xlu0 %4437
      %v4439 = vsel %vm2456, %v4389, -inf
      %4440 = vmax.xlane.f32.xlu0 %v4439
      %v4441 = vpop.xlane.xlu0 %4440
      %v4442 = vsel %vm2456, %v4392, -inf
      %4443 = vmax.xlane.f32.xlu0 %v4442
      %v4444 = vpop.xlane.xlu0 %4443
      %v4445 = vsel %vm2456, %v4397, -inf
      %4446 = vmax.xlane.f32.xlu0 %v4445
      %v4447 = vpop.xlane.xlu0 %4446
      %v4448 = vsel %vm2456, %v4400, -inf
      %4449 = vmax.xlane.f32.xlu0 %v4448
      %v4450 = vpop.xlane.xlu0 %4449
      %v4451 = vsub.f32 %v4341, %v4405
      %v4452 = vsub.f32 %v4344, %v4408
      %v4453 = vsub.f32 %v4349, %v4411
      %v4454 = vsub.f32 %v4352, %v4414
      %v4455 = vsub.f32 %v4357, %v4417
      %v4456 = vsub.f32 %v4360, %v4420
      %v4457 = vsub.f32 %v4365, %v4423
      %v4458 = vsub.f32 %v4368, %v4426
      %v4459 = vsub.f32 %v4373, %v4429
      %v4460 = vsub.f32 %v4376, %v4432
      %v4461 = vsub.f32 %v4381, %v4435
      %v4462 = vsub.f32 %v4384, %v4438
      %v4463 = vsub.f32 %v4389, %v4441
      %v4464 = vsub.f32 %v4392, %v4444
      %v4465 = vsub.f32 %v4397, %v4447
      %v4466 = vsub.f32 %v4400, %v4450
      %v4467 = vmul.f32 %v4451, 1.442695
      %v4468 = vpow.pop %v4467
      %v4469 = vmul.f32 %v4452, 1.442695
      %v4470 = vpow.pop %v4469
      %v4471 = vmul.f32 %v4453, 1.442695
      %v4472 = vpow.pop %v4471
      %v4473 = vmul.f32 %v4454, 1.442695
      %v4474 = vpow.pop %v4473
      %v4475 = vmul.f32 %v4455, 1.442695
      %v4476 = vpow.pop %v4475
      %v4477 = vmul.f32 %v4456, 1.442695
      %v4478 = vpow.pop %v4477
      %v4479 = vmul.f32 %v4457, 1.442695
      %v4480 = vpow.pop %v4479
      %v4481 = vmul.f32 %v4458, 1.442695
      %v4482 = vpow.pop %v4481
      %v4483 = vmul.f32 %v4459, 1.442695
      %v4484 = vpow.pop %v4483
      %v4485 = vmul.f32 %v4460, 1.442695
      %v4486 = vpow.pop %v4485
      %v4487 = vmul.f32 %v4461, 1.442695
      %v4488 = vpow.pop %v4487
      %v4489 = vmul.f32 %v4462, 1.442695
      %v4490 = vpow.pop %v4489
      %v4491 = vmul.f32 %v4463, 1.442695
      %v4492 = vpow.pop %v4491
      %v4493 = vmul.f32 %v4464, 1.442695
      %v4494 = vpow.pop %v4493
      %v4495 = vmul.f32 %v4465, 1.442695
      %v4496 = vpow.pop %v4495
      %v4497 = vmul.f32 %v4466, 1.442695
      %v4498 = vpow.pop %v4497
      %v4499 = vsel %vm2456, %v4468, 0.0
      %4500 = vadd.xlane.f32.xlu0 %v4499
      %v4501 = vpop.xlane.xlu0 %4500
      %v4502 = vsel %vm2456, %v4470, 0.0
      %4503 = vadd.xlane.f32.xlu0 %v4502
      %v4504 = vpop.xlane.xlu0 %4503
      %v4505 = vsel %vm2456, %v4472, 0.0
      %4506 = vadd.xlane.f32.xlu0 %v4505
      %v4507 = vpop.xlane.xlu0 %4506
      %v4508 = vsel %vm2456, %v4474, 0.0
      %4509 = vadd.xlane.f32.xlu0 %v4508
      %v4510 = vpop.xlane.xlu0 %4509
      %v4511 = vsel %vm2456, %v4476, 0.0
      %4512 = vadd.xlane.f32.xlu0 %v4511
      %v4513 = vpop.xlane.xlu0 %4512
      %v4514 = vsel %vm2456, %v4478, 0.0
      %4515 = vadd.xlane.f32.xlu0 %v4514
      %v4516 = vpop.xlane.xlu0 %4515
      %v4517 = vsel %vm2456, %v4480, 0.0
      %4518 = vadd.xlane.f32.xlu0 %v4517
      %v4519 = vpop.xlane.xlu0 %4518
      %v4520 = vsel %vm2456, %v4482, 0.0
      %4521 = vadd.xlane.f32.xlu0 %v4520
      %v4522 = vpop.xlane.xlu0 %4521
      %v4523 = vsel %vm2456, %v4484, 0.0
      %4524 = vadd.xlane.f32.xlu0 %v4523
      %v4525 = vpop.xlane.xlu0 %4524
      %v4526 = vsel %vm2456, %v4486, 0.0
      %4527 = vadd.xlane.f32.xlu0 %v4526
      %v4528 = vpop.xlane.xlu0 %4527
      %v4529 = vsel %vm2456, %v4488, 0.0
      %4530 = vadd.xlane.f32.xlu0 %v4529
      %v4531 = vpop.xlane.xlu0 %4530
      %v4532 = vsel %vm2456, %v4490, 0.0
      %4533 = vadd.xlane.f32.xlu0 %v4532
      %v4534 = vpop.xlane.xlu0 %4533
      %v4535 = vsel %vm2456, %v4492, 0.0
      %4536 = vadd.xlane.f32.xlu0 %v4535
      %v4537 = vpop.xlane.xlu0 %4536
      %v4538 = vsel %vm2456, %v4494, 0.0
      %4539 = vadd.xlane.f32.xlu0 %v4538
      %v4540 = vpop.xlane.xlu0 %4539
      %v4541 = vsel %vm2456, %v4496, 0.0
      %4542 = vadd.xlane.f32.xlu0 %v4541
      %v4543 = vpop.xlane.xlu0 %4542
      %v4544 = vsel %vm2456, %v4498, 0.0
      %4545 = vadd.xlane.f32.xlu0 %v4544
      %v4546 = vpop.xlane.xlu0 %4545
      %v4547 = vrcp.pop %v4501
      %v4548 = vrcp.pop %v4504
      %v4549 = vrcp.pop %v4507
      %v4550 = vrcp.pop %v4510
      %v4551 = vrcp.pop %v4513
      %v4552 = vrcp.pop %v4516
      %v4553 = vrcp.pop %v4519
      %v4554 = vrcp.pop %v4522
      %v4555 = vrcp.pop %v4525
      %v4556 = vrcp.pop %v4528
      %v4557 = vrcp.pop %v4531
      %v4558 = vrcp.pop %v4534
      %v4559 = vrcp.pop %v4537
      %v4560 = vrcp.pop %v4540
      %v4561 = vrcp.pop %v4543
      %v4562 = vrcp.pop %v4546
      %v4563 = vmul.f32 %v4468, %v4547
      %v4564 = vmul.f32 %v4470, %v4548
      %v4565 = vmul.f32 %v4472, %v4549
      %v4566 = vmul.f32 %v4474, %v4550
      %v4567 = vmul.f32 %v4476, %v4551
      %v4568 = vmul.f32 %v4478, %v4552
      %v4569 = vmul.f32 %v4480, %v4553
      %v4570 = vmul.f32 %v4482, %v4554
      %v4571 = vmul.f32 %v4484, %v4555
      %v4572 = vmul.f32 %v4486, %v4556
      %v4573 = vmul.f32 %v4488, %v4557
      %v4574 = vmul.f32 %v4490, %v4558
      %v4575 = vmul.f32 %v4492, %v4559
      %v4576 = vmul.f32 %v4494, %v4560
      %v4577 = vmul.f32 %v4496, %v4561
      %v4578 = vmul.f32 %v4498, %v4562
      %v4579 = vsel %vm2456, %v4563, 0.0
      %v4580 = vsel %vm2456, %v4564, 0.0
      %v4581 = vadd.f32 %v4579, %v4580
      %v4582 = vsel %vm2456, %v4565, 0.0
      %v4583 = vadd.f32 %v4581, %v4582
      %v4584 = vsel %vm2456, %v4566, 0.0
      %v4585 = vadd.f32 %v4583, %v4584
      %v4586 = vsel %vm2456, %v4567, 0.0
      %v4587 = vadd.f32 %v4585, %v4586
      %v4588 = vsel %vm2456, %v4568, 0.0
      %v4589 = vadd.f32 %v4587, %v4588
      %v4590 = vsel %vm2456, %v4569, 0.0
      %v4591 = vadd.f32 %v4589, %v4590
      %v4592 = vsel %vm2456, %v4570, 0.0
      %v4593 = vadd.f32 %v4591, %v4592
      %v4594 = vsel %vm2456, %v4571, 0.0
      %v4595 = vadd.f32 %v4593, %v4594
      %v4596 = vsel %vm2456, %v4572, 0.0
      %v4597 = vadd.f32 %v4595, %v4596
      %v4598 = vsel %vm2456, %v4573, 0.0
      %v4599 = vadd.f32 %v4597, %v4598
      %v4600 = vsel %vm2456, %v4574, 0.0
      %v4601 = vadd.f32 %v4599, %v4600
      %v4602 = vsel %vm2456, %v4575, 0.0
      %v4603 = vadd.f32 %v4601, %v4602
      %v4604 = vsel %vm2456, %v4576, 0.0
      %v4605 = vadd.f32 %v4603, %v4604
      %v4606 = vsel %vm2456, %v4577, 0.0
      %v4607 = vadd.f32 %v4605, %v4606
      %v4608 = vsel %vm2456, %v4578, 0.0
      %v4609 = vadd.f32 %v4607, %v4608
      %v4610 = vrot.slane %v4609, 4
      %v4611 = vadd.f32 %v4609, %v4610
      %v4612 = vrot.slane %v4611, 2
      %v4613 = vadd.f32 %v4611, %v4612
      %v4614 = vrot.slane %v4613, 1
      %v4615 = vadd.f32 %v4613, %v4614
      %v4616 = vadd.f32 %v4615, 1e-05
      %v4617 = vrcp.pop %v4616
      %v4618 = vmul.f32 %v4563, %v4617
      %v4619 = vmul.f32 %v4564, %v4617
      %v4620 = vmul.f32 %v4565, %v4617
      %v4621 = vmul.f32 %v4566, %v4617
      %v4622 = vmul.f32 %v4567, %v4617
      %v4623 = vmul.f32 %v4568, %v4617
      %v4624 = vmul.f32 %v4569, %v4617
      %v4625 = vmul.f32 %v4570, %v4617
      %v4626 = vmul.f32 %v4571, %v4617
      %v4627 = vmul.f32 %v4572, %v4617
      %v4628 = vmul.f32 %v4573, %v4617
      %v4629 = vmul.f32 %v4574, %v4617
      %v4630 = vmul.f32 %v4575, %v4617
      %v4631 = vmul.f32 %v4576, %v4617
      %v4632 = vmul.f32 %v4577, %v4617
      %v4633 = vmul.f32 %v4578, %v4617
      %v4634 = vpack.c.bf16 %v4619, %v4618
      %v4635 = vpack.c.bf16 %v4621, %v4620
      %v4636 = vpack.c.bf16 %v4623, %v4622
      %v4637 = vpack.c.bf16 %v4625, %v4624
      %v4638 = vpack.c.bf16 %v4627, %v4626
      %v4639 = vpack.c.bf16 %v4629, %v4628
      %v4640 = vpack.c.bf16 %v4631, %v4630
      %v4641 = vpack.c.bf16 %v4633, %v4632
      %4642 = vxpose.xlu0.c.b16.start [1/8] %v4634, 128
      %4643 = vxpose.xlu0.c.b16.cont [2/8] %v4635, 128
      %4644 = vxpose.xlu0.c.b16.cont [3/8] %v4636, 128
      %4645 = vxpose.xlu0.c.b16.cont [4/8] %v4637, 128
      %4646 = vxpose.xlu0.c.b16.cont [5/8] %v4638, 128
      %4647 = vxpose.xlu0.c.b16.cont [6/8] %v4639, 128
      %4648 = vxpose.xlu0.c.b16.cont [7/8] %v4640, 128
      %4649 = vxpose.xlu0.c.b16.end [8/8] %v4641, 128
      %v4650 = vpop.trf.xlu0
      %v4651 = vpop.trf.xlu0
      %v4652 = vpop.trf.xlu0
      %v4653 = vpop.trf.xlu0
      %v4654 = vpop.trf.xlu0
      %v4655 = vpop.trf.xlu0
      %v4656 = vpop.trf.xlu0
      %v4657 = vpop.trf.xlu0
      %4658 = vrot.lane.b32.xlu0 %v4233, 96
      %v4659 = vpop.permute.xlu0 %4658
      %4660 = vrot.lane.b32.xlu0 %v4234, 96
      %v4661 = vpop.permute.xlu0 %4660
      %4662 = vrot.lane.b32.xlu0 %v4235, 96
      %v4663 = vpop.permute.xlu0 %4662
      %4664 = vrot.lane.b32.xlu0 %v4236, 96
      %v4665 = vpop.permute.xlu0 %4664
      %4666 = vrot.lane.b32.xlu0 %v4237, 96
      %v4667 = vpop.permute.xlu0 %4666
      %4668 = vrot.lane.b32.xlu0 %v4238, 96
      %v4669 = vpop.permute.xlu0 %4668
      %4670 = vrot.lane.b32.xlu0 %v4239, 96
      %v4671 = vpop.permute.xlu0 %4670
      %4672 = vrot.lane.b32.xlu0 %v4240, 96
      %v4673 = vpop.permute.xlu0 %4672
      %4682 = vmatprep.subr.bf16.mxu0 0
      %4683 = vmatpush1.bf16.msra.mxu0 %v4659
      %4684 = vmatprep.subr.bf16.mxu0 0
      %4685 = vmatpush1.bf16.msra.mxu0 %v4661
      %4686 = vmatprep.subr.bf16.mxu0 0
      %4687 = vmatpush1.bf16.msra.mxu0 %v4663
      %4688 = vmatprep.subr.bf16.mxu0 0
      %4689 = vmatpush1.bf16.msra.mxu0 %v4665
      %4690 = vmatprep.subr.bf16.mxu0 0
      %4691 = vmatpush1.bf16.msra.mxu0 %v4667
      %4692 = vmatprep.subr.bf16.mxu0 0
      %4693 = vmatpush1.bf16.msra.mxu0 %v4669
      %4694 = vmatprep.subr.bf16.mxu0 0
      %4695 = vmatpush1.bf16.msra.mxu0 %v4671
      %4696 = vmatprep.subr.bf16.mxu0 0
      %4697 = vmatpush1.bf16.msra.mxu0 %v4673
      %4698 = vmatprep.subr.bf16.mxu0 0
      %4699 = vmatpush1.bf16.msra.mxu0 0
      %4700 = vmatprep.subr.bf16.mxu0 0
      %4701 = vmatpush1.bf16.msra.mxu0 0
      %4702 = vmatprep.subr.bf16.mxu0 0
      %4703 = vmatpush1.bf16.msra.mxu0 0
      %4704 = vmatprep.subr.bf16.mxu0 0
      %4705 = vmatpush1.bf16.msra.mxu0 0
      %4706 = vmatprep.subr.bf16.mxu0 0
      %4707 = vmatpush1.bf16.msra.mxu0 0
      %4708 = vmatprep.subr.bf16.mxu0 0
      %4709 = vmatpush1.bf16.msra.mxu0 0
      %4710 = vmatprep.subr.bf16.mxu0 0
      %4711 = vmatpush1.bf16.msra.mxu0 0
      %4712 = vmatprep.subr.bf16.mxu0 0
      %4713 = vmatpush1.bf16.msra.mxu0 0
      %4714 = vmatprep.mubr.bf16.mxu0 0
      %4715 = vmatmul.mubr.bf16.gmra.mrb[0].mxu0 %v4650
      %v4716 = vpop.f32.mrb[0].mxu0
      %v4717 = vadd.f32 0.0, %v4716
      %v4718 = vpop.f32.mrb[0].mxu0
      %v4719 = vpop.f32.mrb[0].mxu0
      %v4720 = vpop.f32.mrb[0].mxu0
      %4721 = vdwg.mxu0
      %v4722 = vpack.c.bf16 %v4717, %v4717
      %v4723 = vld [vmem:[%s6] sm:$0xf]
      %v4724 = vld [vmem:[%s6 + $0x4] sm:$0xf]
      %v4727 = vunpack.c.l.b16 %v4723
      %v4728 = vunpack.c.l.b16 %v4724
      %v4729 = vpack.c.b16 %v4728, %v4727
      %v4732 = vsel %vm2334, %v4722, 0
      %4734 = vmatprep.subr.bf16.mxu0 0
      %4735 = vmatpush1.bf16.msra.mxu0 %v4729
      %4736 = vmatprep.subr.bf16.mxu0 0
      %4737 = vmatpush1.bf16.msra.mxu0 0
      %4738 = vmatprep.subr.bf16.mxu0 0
      %4739 = vmatpush1.bf16.msra.mxu0 0
      %4740 = vmatprep.subr.bf16.mxu0 0
      %4741 = vmatpush1.bf16.msra.mxu0 0
      %4742 = vmatprep.subr.bf16.mxu0 0
      %4743 = vmatpush1.bf16.msra.mxu0 0
      %4744 = vmatprep.subr.bf16.mxu0 0
      %4745 = vmatpush1.bf16.msra.mxu0 0
      %4746 = vmatprep.subr.bf16.mxu0 0
      %4747 = vmatpush1.bf16.msra.mxu0 0
      %4748 = vmatprep.subr.bf16.mxu0 0
      %4749 = vmatpush1.bf16.msra.mxu0 0
      %4750 = vmatprep.subr.bf16.mxu0 0
      %4751 = vmatpush1.bf16.msra.mxu0 0
      %4752 = vmatprep.subr.bf16.mxu0 0
      %4753 = vmatpush1.bf16.msra.mxu0 0
      %4754 = vmatprep.subr.bf16.mxu0 0
      %4755 = vmatpush1.bf16.msra.mxu0 0
      %4756 = vmatprep.subr.bf16.mxu0 0
      %4757 = vmatpush1.bf16.msra.mxu0 0
      %4758 = vmatprep.subr.bf16.mxu0 0
      %4759 = vmatpush1.bf16.msra.mxu0 0
      %4760 = vmatprep.subr.bf16.mxu0 0
      %4761 = vmatpush1.bf16.msra.mxu0 0
      %4762 = vmatprep.subr.bf16.mxu0 0
      %4763 = vmatpush1.bf16.msra.mxu0 0
      %4764 = vmatprep.subr.bf16.mxu0 0
      %4765 = vmatpush1.bf16.msra.mxu0 0
      %4766 = vmatprep.mubr.bf16.mxu0 0
      %4767 = vmatmul.mubr.bf16.gmra.mrb[0].mxu0 %v4732
      %v4768 = vpop.f32.mrb[0].mxu0
      %v4769 = vadd.f32 0.0, %v4768
      %v4770 = vpop.f32.mrb[0].mxu0
      %v4771 = vpop.f32.mrb[0].mxu0
      %v4772 = vpop.f32.mrb[0].mxu0
      %4773 = vdwg.mxu0
      %4774 = vrot.lane.b32.xlu0 %v4729, 112
      %v4775 = vpop.permute.xlu0 %4774
      %4777 = vmatprep.subr.bf16.mxu0 0
      %4778 = vmatpush1.bf16.msra.mxu0 %v4775
      %4779 = vmatprep.subr.bf16.mxu0 0
      %4780 = vmatpush1.bf16.msra.mxu0 0
      %4781 = vmatprep.subr.bf16.mxu0 0
      %4782 = vmatpush1.bf16.msra.mxu0 0
      %4783 = vmatprep.subr.bf16.mxu0 0
      %4784 = vmatpush1.bf16.msra.mxu0 0
      %4785 = vmatprep.subr.bf16.mxu0 0
      %4786 = vmatpush1.bf16.msra.mxu0 0
      %4787 = vmatprep.subr.bf16.mxu0 0
      %4788 = vmatpush1.bf16.msra.mxu0 0
      %4789 = vmatprep.subr.bf16.mxu0 0
      %4790 = vmatpush1.bf16.msra.mxu0 0
      %4791 = vmatprep.subr.bf16.mxu0 0
      %4792 = vmatpush1.bf16.msra.mxu0 0
      %4793 = vmatprep.subr.bf16.mxu0 0
      %4794 = vmatpush1.bf16.msra.mxu0 0
      %4795 = vmatprep.subr.bf16.mxu0 0
      %4796 = vmatpush1.bf16.msra.mxu0 0
      %4797 = vmatprep.subr.bf16.mxu0 0
      %4798 = vmatpush1.bf16.msra.mxu0 0
      %4799 = vmatprep.subr.bf16.mxu0 0
      %4800 = vmatpush1.bf16.msra.mxu0 0
      %4801 = vmatprep.subr.bf16.mxu0 0
      %4802 = vmatpush1.bf16.msra.mxu0 0
      %4803 = vmatprep.subr.bf16.mxu0 0
      %4804 = vmatpush1.bf16.msra.mxu0 0
      %4805 = vmatprep.subr.bf16.mxu0 0
      %4806 = vmatpush1.bf16.msra.mxu0 0
      %4807 = vmatprep.subr.bf16.mxu0 0
      %4808 = vmatpush1.bf16.msra.mxu0 0
      %4809 = vmatprep.mubr.bf16.mxu0 0
      %4810 = vmatmul.mubr.bf16.gmra.mrb[0].mxu0 %v4732
      %v4811 = vpop.f32.mrb[0].mxu0
      %v4812 = vadd.f32 0.0, %v4811
      %v4813 = vpop.f32.mrb[0].mxu0
      %v4814 = vpop.f32.mrb[0].mxu0
      %v4815 = vpop.f32.mrb[0].mxu0
      %4816 = vdwg.mxu0
      %4817 = vrot.lane.b32.xlu0 %v4729, 96
      %v4818 = vpop.permute.xlu0 %4817
      %4820 = vmatprep.subr.bf16.mxu0 0
      %4821 = vmatpush1.bf16.msra.mxu0 %v4818
      %4822 = vmatprep.subr.bf16.mxu0 0
      %4823 = vmatpush1.bf16.msra.mxu0 0
      %4824 = vmatprep.subr.bf16.mxu0 0
      %4825 = vmatpush1.bf16.msra.mxu0 0
      %4826 = vmatprep.subr.bf16.mxu0 0
      %4827 = vmatpush1.bf16.msra.mxu0 0
      %4828 = vmatprep.subr.bf16.mxu0 0
      %4829 = vmatpush1.bf16.msra.mxu0 0
      %4830 = vmatprep.subr.bf16.mxu0 0
      %4831 = vmatpush1.bf16.msra.mxu0 0
      %4832 = vmatprep.subr.bf16.mxu0 0
      %4833 = vmatpush1.bf16.msra.mxu0 0
      %4834 = vmatprep.subr.bf16.mxu0 0
      %4835 = vmatpush1.bf16.msra.mxu0 0
      %4836 = vmatprep.subr.bf16.mxu0 0
      %4837 = vmatpush1.bf16.msra.mxu0 0
      %4838 = vmatprep.subr.bf16.mxu0 0
      %4839 = vmatpush1.bf16.msra.mxu0 0
      %4840 = vmatprep.subr.bf16.mxu0 0
      %4841 = vmatpush1.bf16.msra.mxu0 0
      %4842 = vmatprep.subr.bf16.mxu0 0
      %4843 = vmatpush1.bf16.msra.mxu0 0
      %4844 = vmatprep.subr.bf16.mxu0 0
      %4845 = vmatpush1.bf16.msra.mxu0 0
      %4846 = vmatprep.subr.bf16.mxu0 0
      %4847 = vmatpush1.bf16.msra.mxu0 0
      %4848 = vmatprep.subr.bf16.mxu0 0
      %4849 = vmatpush1.bf16.msra.mxu0 0
      %4850 = vmatprep.subr.bf16.mxu0 0
      %4851 = vmatpush1.bf16.msra.mxu0 0
      %4852 = vmatprep.mubr.bf16.mxu0 0
      %4853 = vmatmul.mubr.bf16.gmra.mrb[0].mxu0 %v4732
      %v4854 = vpop.f32.mrb[0].mxu0
      %v4855 = vadd.f32 0.0, %v4854
      %v4856 = vpop.f32.mrb[0].mxu0
      %v4857 = vpop.f32.mrb[0].mxu0
      %v4858 = vpop.f32.mrb[0].mxu0
      %4859 = vdwg.mxu0
      %v4861 = vsel %vm2334, %v4769, 0
      %v4864 = vsel %vm2334, %v4812, 0
      %4866 = vmatprep.subr.mxu0 0.0
      %4867 = vmatpush1.xpose.msra.mxu0 %v4864
      %4868 = vmatprep.subr.mxu0 0.0
      %4869 = vmatpush1.xpose.msra.mxu0 0.0
      %4870 = vmatprep.subr.mxu0 0.0
      %4871 = vmatpush1.xpose.msra.mxu0 0.0
      %4872 = vmatprep.subr.mxu0 0.0
      %4873 = vmatpush1.xpose.msra.mxu0 0.0
      %4874 = vmatprep.subr.mxu0 0.0
      %4875 = vmatpush1.xpose.msra.mxu0 0.0
      %4876 = vmatprep.subr.mxu0 0.0
      %4877 = vmatpush1.xpose.msra.mxu0 0.0
      %4878 = vmatprep.subr.mxu0 0.0
      %4879 = vmatpush1.xpose.msra.mxu0 0.0
      %4880 = vmatprep.subr.mxu0 0.0
      %4881 = vmatpush1.xpose.msra.mxu0 0.0
      %4882 = vmatprep.subr.mxu0 0.0
      %4883 = vmatpush1.xpose.msra.mxu0 0.0
      %4884 = vmatprep.subr.mxu0 0.0
      %4885 = vmatpush1.xpose.msra.mxu0 0.0
      %4886 = vmatprep.subr.mxu0 0.0
      %4887 = vmatpush1.xpose.msra.mxu0 0.0
      %4888 = vmatprep.subr.mxu0 0.0
      %4889 = vmatpush1.xpose.msra.mxu0 0.0
      %4890 = vmatprep.subr.mxu0 0.0
      %4891 = vmatpush1.xpose.msra.mxu0 0.0
      %4892 = vmatprep.subr.mxu0 0.0
      %4893 = vmatpush1.xpose.msra.mxu0 0.0
      %4894 = vmatprep.subr.mxu0 0.0
      %4895 = vmatpush1.xpose.msra.mxu0 0.0
      %4896 = vmatprep.subr.mxu0 0.0
      %4897 = vmatpush1.xpose.msra.mxu0 0.0
      %4898 = vmatprep.subr.mxu0 0.0
      %4899 = vmatpush1.xpose.msra.mxu0 0.0
      %4900 = vmatprep.subr.mxu0 0.0
      %4901 = vmatpush1.xpose.msra.mxu0 0.0
      %4902 = vmatprep.subr.mxu0 0.0
      %4903 = vmatpush1.xpose.msra.mxu0 0.0
      %4904 = vmatprep.subr.mxu0 0.0
      %4905 = vmatpush1.xpose.msra.mxu0 0.0
      %4906 = vmatprep.subr.mxu0 0.0
      %4907 = vmatpush1.xpose.msra.mxu0 0.0
      %4908 = vmatprep.subr.mxu0 0.0
      %4909 = vmatpush1.xpose.msra.mxu0 0.0
      %4910 = vmatprep.subr.mxu0 0.0
      %4911 = vmatpush1.xpose.msra.mxu0 0.0
      %4912 = vmatprep.subr.mxu0 0.0
      %4913 = vmatpush1.xpose.msra.mxu0 0.0
      %4914 = vmatprep.subr.mxu0 0.0
      %4915 = vmatpush1.xpose.msra.mxu0 0.0
      %4916 = vmatprep.subr.mxu0 0.0
      %4917 = vmatpush1.xpose.msra.mxu0 0.0
      %4918 = vmatprep.subr.mxu0 0.0
      %4919 = vmatpush1.xpose.msra.mxu0 0.0
      %4920 = vmatprep.subr.mxu0 0.0
      %4921 = vmatpush1.xpose.msra.mxu0 0.0
      %4922 = vmatprep.subr.mxu0 0.0
      %4923 = vmatpush1.xpose.msra.mxu0 0.0
      %4924 = vmatprep.subr.mxu0 0.0
      %4925 = vmatpush1.xpose.msra.mxu0 0.0
      %4926 = vmatprep.subr.mxu0 0.0
      %4927 = vmatpush1.xpose.msra.mxu0 0.0
      %4928 = vmatprep.subr.mxu0 0.0
      %4929 = vmatpush1.xpose.msra.mxu0 0.0
      %4930 = vmatprep.mubr.f32.mxu0 0.0
      %4931 = vmatmul.mubr.f32.gmra.mrb[0].mxu0 %v4861
      %v4932 = vpop.f32.mrb[0].mxu0
      %v4933 = vadd.f32 0.0, %v4932
      %v4934 = vpop.f32.mrb[0].mxu0
      %4935 = vdwg.mxu0
      %v4936 = vsel %vm2456, %v4933, -inf
      %4937 = vmax.xlane.f32.xlu0 %v4936
      %v4938 = vpop.xlane.xlu0 %4937
      %v4939 = vsub.f32 %v4933, %v4938
      %v4940 = vmul.f32 %v4939, 1.442695
      %v4941 = vpow.pop %v4940
      %v4942 = vsel %vm2456, %v4941, 0.0
      %4943 = vadd.xlane.f32.xlu0 %v4942
      %v4944 = vpop.xlane.xlu0 %4943
      %v4945 = vrcp.pop %v4944
      %v4946 = vmul.f32 %v4941, %v4945
      %v4948 = vsel %vm2456, %v4946, 0
      %4950 = vmatprep.subr.mxu0 0.0
      %4951 = vmatpush1.msra.mxu0 %v4855
      %4952 = vmatprep.subr.mxu0 0.0
      %4953 = vmatpush1.msra.mxu0 0.0
      %4954 = vmatprep.subr.mxu0 0.0
      %4955 = vmatpush1.msra.mxu0 0.0
      %4956 = vmatprep.subr.mxu0 0.0
      %4957 = vmatpush1.msra.mxu0 0.0
      %4958 = vmatprep.subr.mxu0 0.0
      %4959 = vmatpush1.msra.mxu0 0.0
      %4960 = vmatprep.subr.mxu0 0.0
      %4961 = vmatpush1.msra.mxu0 0.0
      %4962 = vmatprep.subr.mxu0 0.0
      %4963 = vmatpush1.msra.mxu0 0.0
      %4964 = vmatprep.subr.mxu0 0.0
      %4965 = vmatpush1.msra.mxu0 0.0
      %4966 = vmatprep.subr.mxu0 0.0
      %4967 = vmatpush1.msra.mxu0 0.0
      %4968 = vmatprep.subr.mxu0 0.0
      %4969 = vmatpush1.msra.mxu0 0.0
      %4970 = vmatprep.subr.mxu0 0.0
      %4971 = vmatpush1.msra.mxu0 0.0
      %4972 = vmatprep.subr.mxu0 0.0
      %4973 = vmatpush1.msra.mxu0 0.0
      %4974 = vmatprep.subr.mxu0 0.0
      %4975 = vmatpush1.msra.mxu0 0.0
      %4976 = vmatprep.subr.mxu0 0.0
      %4977 = vmatpush1.msra.mxu0 0.0
      %4978 = vmatprep.subr.mxu0 0.0
      %4979 = vmatpush1.msra.mxu0 0.0
      %4980 = vmatprep.subr.mxu0 0.0
      %4981 = vmatpush1.msra.mxu0 0.0
      %4982 = vmatprep.subr.mxu0 0.0
      %4983 = vmatpush1.msra.mxu0 0.0
      %4984 = vmatprep.subr.mxu0 0.0
      %4985 = vmatpush1.msra.mxu0 0.0
      %4986 = vmatprep.subr.mxu0 0.0
      %4987 = vmatpush1.msra.mxu0 0.0
      %4988 = vmatprep.subr.mxu0 0.0
      %4989 = vmatpush1.msra.mxu0 0.0
      %4990 = vmatprep.subr.mxu0 0.0
      %4991 = vmatpush1.msra.mxu0 0.0
      %4992 = vmatprep.subr.mxu0 0.0
      %4993 = vmatpush1.msra.mxu0 0.0
      %4994 = vmatprep.subr.mxu0 0.0
      %4995 = vmatpush1.msra.mxu0 0.0
      %4996 = vmatprep.subr.mxu0 0.0
      %4997 = vmatpush1.msra.mxu0 0.0
      %4998 = vmatprep.subr.mxu0 0.0
      %4999 = vmatpush1.msra.mxu0 0.0
      %5000 = vmatprep.subr.mxu0 0.0
      %5001 = vmatpush1.msra.mxu0 0.0
      %5002 = vmatprep.subr.mxu0 0.0
      %5003 = vmatpush1.msra.mxu0 0.0
      %5004 = vmatprep.subr.mxu0 0.0
      %5005 = vmatpush1.msra.mxu0 0.0
      %5006 = vmatprep.subr.mxu0 0.0
      %5007 = vmatpush1.msra.mxu0 0.0
      %5008 = vmatprep.subr.mxu0 0.0
      %5009 = vmatpush1.msra.mxu0 0.0
      %5010 = vmatprep.subr.mxu0 0.0
      %5011 = vmatpush1.msra.mxu0 0.0
      %5012 = vmatprep.subr.mxu0 0.0
      %5013 = vmatpush1.msra.mxu0 0.0
      %5014 = vmatprep.mubr.f32.mxu0 0.0
      %5015 = vmatmul.mubr.f32.gmra.mrb[0].mxu0 %v4948
      %v5016 = vpop.f32.mrb[0].mxu0
      %v5017 = vadd.f32 0.0, %v5016
      %v5018 = vpop.f32.mrb[0].mxu0
      %5019 = vdwg.mxu0
      %v5020 = vpack.c.bf16 %v4564, %v4563
      %v5021 = vpack.c.bf16 %v4566, %v4565
      %v5022 = vpack.c.bf16 %v4568, %v4567
      %v5023 = vpack.c.bf16 %v4570, %v4569
      %v5024 = vpack.c.bf16 %v4572, %v4571
      %v5025 = vpack.c.bf16 %v4574, %v4573
      %v5026 = vpack.c.bf16 %v4576, %v4575
      %v5027 = vpack.c.bf16 %v4578, %v4577
      %v5028 = vpack.c.bf16 %v5017, %v5017
      %v5030 = vsel %vm2456, %v5020, 0
      %v5033 = vsel %vm2456, %v5021, 0
      %v5036 = vsel %vm2456, %v5022, 0
      %v5039 = vsel %vm2456, %v5023, 0
      %v5042 = vsel %vm2456, %v5024, 0
      %v5045 = vsel %vm2456, %v5025, 0
      %v5048 = vsel %vm2456, %v5026, 0
      %v5051 = vsel %vm2456, %v5027, 0
      %v5054 = vsel %vm3083, %v5028, 0
      %5056 = vmatprep.subr.bf16.mxu0 0
      %5057 = vmatpush1.bf16.msra.mxu0 %v5054
      %5058 = vmatprep.subr.bf16.mxu0 0
      %5059 = vmatpush1.bf16.msra.mxu0 0
      %5060 = vmatprep.subr.bf16.mxu0 0
      %5061 = vmatpush1.bf16.msra.mxu0 0
      %5062 = vmatprep.subr.bf16.mxu0 0
      %5063 = vmatpush1.bf16.msra.mxu0 0
      %5064 = vmatprep.subr.bf16.mxu0 0
      %5065 = vmatpush1.bf16.msra.mxu0 0
      %5066 = vmatprep.subr.bf16.mxu0 0
      %5067 = vmatpush1.bf16.msra.mxu0 0
      %5068 = vmatprep.subr.bf16.mxu0 0
      %5069 = vmatpush1.bf16.msra.mxu0 0
      %5070 = vmatprep.subr.bf16.mxu0 0
      %5071 = vmatpush1.bf16.msra.mxu0 0
      %5072 = vmatprep.subr.bf16.mxu0 0
      %5073 = vmatpush1.bf16.msra.mxu0 0
      %5074 = vmatprep.subr.bf16.mxu0 0
      %5075 = vmatpush1.bf16.msra.mxu0 0
      %5076 = vmatprep.subr.bf16.mxu0 0
      %5077 = vmatpush1.bf16.msra.mxu0 0
      %5078 = vmatprep.subr.bf16.mxu0 0
      %5079 = vmatpush1.bf16.msra.mxu0 0
      %5080 = vmatprep.subr.bf16.mxu0 0
      %5081 = vmatpush1.bf16.msra.mxu0 0
      %5082 = vmatprep.subr.bf16.mxu0 0
      %5083 = vmatpush1.bf16.msra.mxu0 0
      %5084 = vmatprep.subr.bf16.mxu0 0
      %5085 = vmatpush1.bf16.msra.mxu0 0
      %5086 = vmatprep.subr.bf16.mxu0 0
      %5087 = vmatpush1.bf16.msra.mxu0 0
      %5088 = vmatprep.mubr.bf16.mxu0 0
      %5089 = vmatmul.mubr.bf16.gmra.mrb[0].mxu0 %v5030
      %v5090 = vpop.f32.mrb[0].mxu0
      %v5091 = vadd.f32 0.0, %v5090
      %v5092 = vpop.f32.mrb[0].mxu0
      %v5093 = vpop.f32.mrb[0].mxu0
      %v5094 = vadd.f32 0.0, %v5093
      %v5095 = vpop.f32.mrb[0].mxu0
      %5096 = vmatprep.mubr.bf16.mxu0 0
      %5097 = vmatmul.mubr.bf16.gmra.mrb[0].mxu0 %v5033
      %v5098 = vpop.f32.mrb[0].mxu0
      %v5099 = vadd.f32 0.0, %v5098
      %v5100 = vpop.f32.mrb[0].mxu0
      %v5101 = vpop.f32.mrb[0].mxu0
      %v5102 = vadd.f32 0.0, %v5101
      %v5103 = vpop.f32.mrb[0].mxu0
      %5104 = vmatprep.mubr.bf16.mxu0 0
      %5105 = vmatmul.mubr.bf16.gmra.mrb[0].mxu0 %v5036
      %v5106 = vpop.f32.mrb[0].mxu0
      %v5107 = vadd.f32 0.0, %v5106
      %v5108 = vpop.f32.mrb[0].mxu0
      %v5109 = vpop.f32.mrb[0].mxu0
      %v5110 = vadd.f32 0.0, %v5109
      %v5111 = vpop.f32.mrb[0].mxu0
      %5112 = vmatprep.mubr.bf16.mxu0 0
      %5113 = vmatmul.mubr.bf16.gmra.mrb[0].mxu0 %v5039
      %v5114 = vpop.f32.mrb[0].mxu0
      %v5115 = vadd.f32 0.0, %v5114
      %v5116 = vpop.f32.mrb[0].mxu0
      %v5117 = vpop.f32.mrb[0].mxu0
      %v5118 = vadd.f32 0.0, %v5117
      %v5119 = vpop.f32.mrb[0].mxu0
      %5120 = vmatprep.mubr.bf16.mxu0 0
      %5121 = vmatmul.mubr.bf16.gmra.mrb[0].mxu0 %v5042
      %v5122 = vpop.f32.mrb[0].mxu0
      %v5123 = vadd.f32 0.0, %v5122
      %v5124 = vpop.f32.mrb[0].mxu0
      %v5125 = vpop.f32.mrb[0].mxu0
      %v5126 = vadd.f32 0.0, %v5125
      %v5127 = vpop.f32.mrb[0].mxu0
      %5128 = vmatprep.mubr.bf16.mxu0 0
      %5129 = vmatmul.mubr.bf16.gmra.mrb[0].mxu0 %v5045
      %v5130 = vpop.f32.mrb[0].mxu0
      %v5131 = vadd.f32 0.0, %v5130
      %v5132 = vpop.f32.mrb[0].mxu0
      %v5133 = vpop.f32.mrb[0].mxu0
      %v5134 = vadd.f32 0.0, %v5133
      %v5135 = vpop.f32.mrb[0].mxu0
      %5136 = vmatprep.mubr.bf16.mxu0 0
      %5137 = vmatmul.mubr.bf16.gmra.mrb[0].mxu0 %v5048
      %v5138 = vpop.f32.mrb[0].mxu0
      %v5139 = vadd.f32 0.0, %v5138
      %v5140 = vpop.f32.mrb[0].mxu0
      %v5141 = vpop.f32.mrb[0].mxu0
      %v5142 = vadd.f32 0.0, %v5141
      %v5143 = vpop.f32.mrb[0].mxu0
      %5144 = vmatprep.mubr.bf16.mxu0 0
      %5145 = vmatmul.mubr.bf16.gmra.mrb[0].mxu0 %v5051
      %v5146 = vpop.f32.mrb[0].mxu0
      %v5147 = vadd.f32 0.0, %v5146
      %v5148 = vpop.f32.mrb[0].mxu0
      %v5149 = vpop.f32.mrb[0].mxu0
      %v5150 = vadd.f32 0.0, %v5149
      %v5151 = vpop.f32.mrb[0].mxu0
      %5152 = vdwg.mxu0
      %5169 = vrot.lane.b32.xlu0 %v5091, 32
      %v5170 = vpop.permute.xlu0 %5169
      %5171 = vrot.lane.b32.xlu0 %v5094, 32
      %v5172 = vpop.permute.xlu0 %5171
      %5173 = vrot.lane.b32.xlu0 %v5099, 32
      %v5174 = vpop.permute.xlu0 %5173
      %5175 = vrot.lane.b32.xlu0 %v5102, 32
      %v5176 = vpop.permute.xlu0 %5175
      %5177 = vrot.lane.b32.xlu0 %v5107, 32
      %v5178 = vpop.permute.xlu0 %5177
      %5179 = vrot.lane.b32.xlu0 %v5110, 32
      %v5180 = vpop.permute.xlu0 %5179
      %5181 = vrot.lane.b32.xlu0 %v5115, 32
      %v5182 = vpop.permute.xlu0 %5181
      %5183 = vrot.lane.b32.xlu0 %v5118, 32
      %v5184 = vpop.permute.xlu0 %5183
      %5185 = vrot.lane.b32.xlu0 %v5123, 32
      %v5186 = vpop.permute.xlu0 %5185
      %5187 = vrot.lane.b32.xlu0 %v5126, 32
      %v5188 = vpop.permute.xlu0 %5187
      %5189 = vrot.lane.b32.xlu0 %v5131, 32
      %v5190 = vpop.permute.xlu0 %5189
      %5191 = vrot.lane.b32.xlu0 %v5134, 32
      %v5192 = vpop.permute.xlu0 %5191
      %5193 = vrot.lane.b32.xlu0 %v5139, 32
      %v5194 = vpop.permute.xlu0 %5193
      %5195 = vrot.lane.b32.xlu0 %v5142, 32
      %v5196 = vpop.permute.xlu0 %5195
      %5197 = vrot.lane.b32.xlu0 %v5147, 32
      %v5198 = vpop.permute.xlu0 %5197
      %5199 = vrot.lane.b32.xlu0 %v5150, 32
      %v5200 = vpop.permute.xlu0 %5199
      %vm5217 = vcmask 392448
      %5218 = vst.msk [vmem:[#allocation4] sm:$0xff] %vm5217, %v5170
      %5219 = vst.msk [vmem:[#allocation4 + $0x8] sm:$0xff] %vm5217, %v5172
      %5220 = vst.msk [vmem:[#allocation4 + $0x10] sm:$0xff] %vm5217, %v5174
      %5221 = vst.msk [vmem:[#allocation4 + $0x18] sm:$0xff] %vm5217, %v5176
      %5222 = vst.msk [vmem:[#allocation4 + $0x20] sm:$0xff] %vm5217, %v5178
      %5223 = vst.msk [vmem:[#allocation4 + $0x28] sm:$0xff] %vm5217, %v5180
      %5224 = vst.msk [vmem:[#allocation4 + $0x30] sm:$0xff] %vm5217, %v5182
      %5225 = vst.msk [vmem:[#allocation4 + $0x38] sm:$0xff] %vm5217, %v5184
      %5226 = vst.msk [vmem:[#allocation4 + $0x40] sm:$0xff] %vm5217, %v5186
      %5227 = vst.msk [vmem:[#allocation4 + $0x48] sm:$0xff] %vm5217, %v5188
      %5228 = vst.msk [vmem:[#allocation4 + $0x50] sm:$0xff] %vm5217, %v5190
      %5229 = vst.msk [vmem:[#allocation4 + $0x58] sm:$0xff] %vm5217, %v5192
      %5230 = vst.msk [vmem:[#allocation4 + $0x60] sm:$0xff] %vm5217, %v5194
      %5231 = vst.msk [vmem:[#allocation4 + $0x68] sm:$0xff] %vm5217, %v5196
      %5232 = vst.msk [vmem:[#allocation4 + $0x70] sm:$0xff] %vm5217, %v5198
      %5233 = vst.msk [vmem:[#allocation4 + $0x78] sm:$0xff] %vm5217, %v5200
      %v5234 = vld [vmem:[#allocation3] sm:$0xff]
      %v5235 = vld [vmem:[#allocation3 + $0x8] sm:$0xff]
      %v5236 = vld [vmem:[#allocation3 + $0x10] sm:$0xff]
      %v5237 = vld [vmem:[#allocation3 + $0x18] sm:$0xff]
      %v5238 = vld [vmem:[#allocation3 + $0x20] sm:$0xff]
      %v5239 = vld [vmem:[#allocation3 + $0x28] sm:$0xff]
      %v5240 = vld [vmem:[#allocation3 + $0x30] sm:$0xff]
      %v5241 = vld [vmem:[#allocation3 + $0x38] sm:$0xff]
      %v5242 = vld [vmem:[#allocation3 + $0x40] sm:$0xff]
      %v5243 = vld [vmem:[#allocation3 + $0x48] sm:$0xff]
      %v5244 = vld [vmem:[#allocation3 + $0x50] sm:$0xff]
      %v5245 = vld [vmem:[#allocation3 + $0x58] sm:$0xff]
      %v5246 = vld [vmem:[#allocation3 + $0x60] sm:$0xff]
      %v5247 = vld [vmem:[#allocation3 + $0x68] sm:$0xff]
      %v5248 = vld [vmem:[#allocation3 + $0x70] sm:$0xff]
      %v5249 = vld [vmem:[#allocation3 + $0x78] sm:$0xff]
      %v5250 = vpack.c.bf16 %v5235, %v5234
      %v5251 = vpack.c.bf16 %v5237, %v5236
      %v5252 = vpack.c.bf16 %v5239, %v5238
      %v5253 = vpack.c.bf16 %v5241, %v5240
      %v5254 = vpack.c.bf16 %v5243, %v5242
      %v5255 = vpack.c.bf16 %v5245, %v5244
      %v5256 = vpack.c.bf16 %v5247, %v5246
      %v5257 = vpack.c.bf16 %v5249, %v5248
      %s5258 = scalar_lea.vmem %s4, 24
      %v5259 = vld [vmem:[%s5258] sm:$0xf]
      %v5260 = vld [vmem:[%s5258 + $0x4] sm:$0xf]
      %s5261 = scalar_lea.vmem %s5, 3
      %v5262 = vld [vmem:[%s5261] sm:$0x1]
      %v5264 = vlaneseq
      %v5265 = vshrl.u32 %v5264, 7
      %v5266 = vsub.s32 0, %v5265
      %v5267 = vrot.slane %v5262, %v5266
      %5277 = vrot.lane.b32.xlu0 %v5250, 16
      %v5278 = vpop.permute.xlu0 %5277
      %5279 = vrot.lane.b32.xlu0 %v5251, 16
      %v5280 = vpop.permute.xlu0 %5279
      %5281 = vrot.lane.b32.xlu0 %v5252, 16
      %v5282 = vpop.permute.xlu0 %5281
      %5283 = vrot.lane.b32.xlu0 %v5253, 16
      %v5284 = vpop.permute.xlu0 %5283
      %5285 = vrot.lane.b32.xlu0 %v5254, 16
      %v5286 = vpop.permute.xlu0 %5285
      %5287 = vrot.lane.b32.xlu0 %v5255, 16
      %v5288 = vpop.permute.xlu0 %5287
      %5289 = vrot.lane.b32.xlu0 %v5256, 16
      %v5290 = vpop.permute.xlu0 %5289
      %5291 = vrot.lane.b32.xlu0 %v5257, 16
      %v5292 = vpop.permute.xlu0 %5291
      %v5295 = vunpack.c.l.b16 %v5259
      %v5296 = vunpack.c.l.b16 %v5260
      %v5297 = vpack.c.b16 %v5296, %v5295
      %v5300 = vsel %vm2334, %v5278, 0
      %v5303 = vsel %vm2334, %v5280, 0
      %v5306 = vsel %vm2334, %v5282, 0
      %v5309 = vsel %vm2334, %v5284, 0
      %v5312 = vsel %vm2334, %v5286, 0
      %v5315 = vsel %vm2334, %v5288, 0
      %v5318 = vsel %vm2334, %v5290, 0
      %v5321 = vsel %vm2334, %v5292, 0
      %5323 = vmatprep.subr.bf16.mxu0 0
      %5324 = vmatpush1.bf16.msra.mxu0 %v5297
      %5325 = vmatprep.subr.bf16.mxu0 0
      %5326 = vmatpush1.bf16.msra.mxu0 0
      %5327 = vmatprep.subr.bf16.mxu0 0
      %5328 = vmatpush1.bf16.msra.mxu0 0
      %5329 = vmatprep.subr.bf16.mxu0 0
      %5330 = vmatpush1.bf16.msra.mxu0 0
      %5331 = vmatprep.subr.bf16.mxu0 0
      %5332 = vmatpush1.bf16.msra.mxu0 0
      %5333 = vmatprep.subr.bf16.mxu0 0
      %5334 = vmatpush1.bf16.msra.mxu0 0
      %5335 = vmatprep.subr.bf16.mxu0 0
      %5336 = vmatpush1.bf16.msra.mxu0 0
      %5337 = vmatprep.subr.bf16.mxu0 0
      %5338 = vmatpush1.bf16.msra.mxu0 0
      %5339 = vmatprep.subr.bf16.mxu0 0
      %5340 = vmatpush1.bf16.msra.mxu0 0
      %5341 = vmatprep.subr.bf16.mxu0 0
      %5342 = vmatpush1.bf16.msra.mxu0 0
      %5343 = vmatprep.subr.bf16.mxu0 0
      %5344 = vmatpush1.bf16.msra.mxu0 0
      %5345 = vmatprep.subr.bf16.mxu0 0
      %5346 = vmatpush1.bf16.msra.mxu0 0
      %5347 = vmatprep.subr.bf16.mxu0 0
      %5348 = vmatpush1.bf16.msra.mxu0 0
      %5349 = vmatprep.subr.bf16.mxu0 0
      %5350 = vmatpush1.bf16.msra.mxu0 0
      %5351 = vmatprep.subr.bf16.mxu0 0
      %5352 = vmatpush1.bf16.msra.mxu0 0
      %5353 = vmatprep.subr.bf16.mxu0 0
      %5354 = vmatpush1.bf16.msra.mxu0 0
      %5355 = vmatprep.mubr.bf16.mxu0 0
      %5356 = vmatmul.mubr.bf16.gmra.mrb[0].mxu0 %v5300
      %v5357 = vpop.f32.mrb[0].mxu0
      %v5358 = vadd.f32 %v5267, %v5357
      %v5359 = vpop.f32.mrb[0].mxu0
      %v5360 = vpop.f32.mrb[0].mxu0
      %v5361 = vadd.f32 %v5267, %v5360
      %v5362 = vpop.f32.mrb[0].mxu0
      %5363 = vmatprep.mubr.bf16.mxu0 0
      %5364 = vmatmul.mubr.bf16.gmra.mrb[0].mxu0 %v5303
      %v5365 = vpop.f32.mrb[0].mxu0
      %v5366 = vadd.f32 %v5267, %v5365
      %v5367 = vpop.f32.mrb[0].mxu0
      %v5368 = vpop.f32.mrb[0].mxu0
      %v5369 = vadd.f32 %v5267, %v5368
      %v5370 = vpop.f32.mrb[0].mxu0
      %5371 = vmatprep.mubr.bf16.mxu0 0
      %5372 = vmatmul.mubr.bf16.gmra.mrb[0].mxu0 %v5306
      %v5373 = vpop.f32.mrb[0].mxu0
      %v5374 = vadd.f32 %v5267, %v5373
      %v5375 = vpop.f32.mrb[0].mxu0
      %v5376 = vpop.f32.mrb[0].mxu0
      %v5377 = vadd.f32 %v5267, %v5376
      %v5378 = vpop.f32.mrb[0].mxu0
      %5379 = vmatprep.mubr.bf16.mxu0 0
      %5380 = vmatmul.mubr.bf16.gmra.mrb[0].mxu0 %v5309
      %v5381 = vpop.f32.mrb[0].mxu0
      %v5382 = vadd.f32 %v5267, %v5381
      %v5383 = vpop.f32.mrb[0].mxu0
      %v5384 = vpop.f32.mrb[0].mxu0
      %v5385 = vadd.f32 %v5267, %v5384
      %v5386 = vpop.f32.mrb[0].mxu0
      %5387 = vmatprep.mubr.bf16.mxu0 0
      %5388 = vmatmul.mubr.bf16.gmra.mrb[0].mxu0 %v5312
      %v5389 = vpop.f32.mrb[0].mxu0
      %v5390 = vadd.f32 %v5267, %v5389
      %v5391 = vpop.f32.mrb[0].mxu0
      %v5392 = vpop.f32.mrb[0].mxu0
      %v5393 = vadd.f32 %v5267, %v5392
      %v5394 = vpop.f32.mrb[0].mxu0
      %5395 = vmatprep.mubr.bf16.mxu0 0
      %5396 = vmatmul.mubr.bf16.gmra.mrb[0].mxu0 %v5315
      %v5397 = vpop.f32.mrb[0].mxu0
      %v5398 = vadd.f32 %v5267, %v5397
      %v5399 = vpop.f32.mrb[0].mxu0
      %v5400 = vpop.f32.mrb[0].mxu0
      %v5401 = vadd.f32 %v5267, %v5400
      %v5402 = vpop.f32.mrb[0].mxu0
      %5403 = vmatprep.mubr.bf16.mxu0 0
      %5404 = vmatmul.mubr.bf16.gmra.mrb[0].mxu0 %v5318
      %v5405 = vpop.f32.mrb[0].mxu0
      %v5406 = vadd.f32 %v5267, %v5405
      %v5407 = vpop.f32.mrb[0].mxu0
      %v5408 = vpop.f32.mrb[0].mxu0
      %v5409 = vadd.f32 %v5267, %v5408
      %v5410 = vpop.f32.mrb[0].mxu0
      %5411 = vmatprep.mubr.bf16.mxu0 0
      %5412 = vmatmul.mubr.bf16.gmra.mrb[0].mxu0 %v5321
      %v5413 = vpop.f32.mrb[0].mxu0
      %v5414 = vadd.f32 %v5267, %v5413
      %v5415 = vpop.f32.mrb[0].mxu0
      %v5416 = vpop.f32.mrb[0].mxu0
      %v5417 = vadd.f32 %v5267, %v5416
      %v5418 = vpop.f32.mrb[0].mxu0
      %5419 = vdwg.mxu0
      %v5420 = vsel %vm2456, %v5358, -inf
      %5421 = vmax.xlane.f32.xlu0 %v5420
      %v5422 = vpop.xlane.xlu0 %5421
      %v5423 = vsel %vm2456, %v5361, -inf
      %5424 = vmax.xlane.f32.xlu0 %v5423
      %v5425 = vpop.xlane.xlu0 %5424
      %v5426 = vsel %vm2456, %v5366, -inf
      %5427 = vmax.xlane.f32.xlu0 %v5426
      %v5428 = vpop.xlane.xlu0 %5427
      %v5429 = vsel %vm2456, %v5369, -inf
      %5430 = vmax.xlane.f32.xlu0 %v5429
      %v5431 = vpop.xlane.xlu0 %5430
      %v5432 = vsel %vm2456, %v5374, -inf
      %5433 = vmax.xlane.f32.xlu0 %v5432
      %v5434 = vpop.xlane.xlu0 %5433
      %v5435 = vsel %vm2456, %v5377, -inf
      %5436 = vmax.xlane.f32.xlu0 %v5435
      %v5437 = vpop.xlane.xlu0 %5436
      %v5438 = vsel %vm2456, %v5382, -inf
      %5439 = vmax.xlane.f32.xlu0 %v5438
      %v5440 = vpop.xlane.xlu0 %5439
      %v5441 = vsel %vm2456, %v5385, -inf
      %5442 = vmax.xlane.f32.xlu0 %v5441
      %v5443 = vpop.xlane.xlu0 %5442
      %v5444 = vsel %vm2456, %v5390, -inf
      %5445 = vmax.xlane.f32.xlu0 %v5444
      %v5446 = vpop.xlane.xlu0 %5445
      %v5447 = vsel %vm2456, %v5393, -inf
      %5448 = vmax.xlane.f32.xlu0 %v5447
      %v5449 = vpop.xlane.xlu0 %5448
      %v5450 = vsel %vm2456, %v5398, -inf
      %5451 = vmax.xlane.f32.xlu0 %v5450
      %v5452 = vpop.xlane.xlu0 %5451
      %v5453 = vsel %vm2456, %v5401, -inf
      %5454 = vmax.xlane.f32.xlu0 %v5453
      %v5455 = vpop.xlane.xlu0 %5454
      %v5456 = vsel %vm2456, %v5406, -inf
      %5457 = vmax.xlane.f32.xlu0 %v5456
      %v5458 = vpop.xlane.xlu0 %5457
      %v5459 = vsel %vm2456, %v5409, -inf
      %5460 = vmax.xlane.f32.xlu0 %v5459
      %v5461 = vpop.xlane.xlu0 %5460
      %v5462 = vsel %vm2456, %v5414, -inf
      %5463 = vmax.xlane.f32.xlu0 %v5462
      %v5464 = vpop.xlane.xlu0 %5463
      %v5465 = vsel %vm2456, %v5417, -inf
      %5466 = vmax.xlane.f32.xlu0 %v5465
      %v5467 = vpop.xlane.xlu0 %5466
      %v5468 = vsub.f32 %v5358, %v5422
      %v5469 = vsub.f32 %v5361, %v5425
      %v5470 = vsub.f32 %v5366, %v5428
      %v5471 = vsub.f32 %v5369, %v5431
      %v5472 = vsub.f32 %v5374, %v5434
      %v5473 = vsub.f32 %v5377, %v5437
      %v5474 = vsub.f32 %v5382, %v5440
      %v5475 = vsub.f32 %v5385, %v5443
      %v5476 = vsub.f32 %v5390, %v5446
      %v5477 = vsub.f32 %v5393, %v5449
      %v5478 = vsub.f32 %v5398, %v5452
      %v5479 = vsub.f32 %v5401, %v5455
      %v5480 = vsub.f32 %v5406, %v5458
      %v5481 = vsub.f32 %v5409, %v5461
      %v5482 = vsub.f32 %v5414, %v5464
      %v5483 = vsub.f32 %v5417, %v5467
      %v5484 = vmul.f32 %v5468, 1.442695
      %v5485 = vpow.pop %v5484
      %v5486 = vmul.f32 %v5469, 1.442695
      %v5487 = vpow.pop %v5486
      %v5488 = vmul.f32 %v5470, 1.442695
      %v5489 = vpow.pop %v5488
      %v5490 = vmul.f32 %v5471, 1.442695
      %v5491 = vpow.pop %v5490
      %v5492 = vmul.f32 %v5472, 1.442695
      %v5493 = vpow.pop %v5492
      %v5494 = vmul.f32 %v5473, 1.442695
      %v5495 = vpow.pop %v5494
      %v5496 = vmul.f32 %v5474, 1.442695
      %v5497 = vpow.pop %v5496
      %v5498 = vmul.f32 %v5475, 1.442695
      %v5499 = vpow.pop %v5498
      %v5500 = vmul.f32 %v5476, 1.442695
      %v5501 = vpow.pop %v5500
      %v5502 = vmul.f32 %v5477, 1.442695
      %v5503 = vpow.pop %v5502
      %v5504 = vmul.f32 %v5478, 1.442695
      %v5505 = vpow.pop %v5504
      %v5506 = vmul.f32 %v5479, 1.442695
      %v5507 = vpow.pop %v5506
      %v5508 = vmul.f32 %v5480, 1.442695
      %v5509 = vpow.pop %v5508
      %v5510 = vmul.f32 %v5481, 1.442695
      %v5511 = vpow.pop %v5510
      %v5512 = vmul.f32 %v5482, 1.442695
      %v5513 = vpow.pop %v5512
      %v5514 = vmul.f32 %v5483, 1.442695
      %v5515 = vpow.pop %v5514
      %v5516 = vsel %vm2456, %v5485, 0.0
      %5517 = vadd.xlane.f32.xlu0 %v5516
      %v5518 = vpop.xlane.xlu0 %5517
      %v5519 = vsel %vm2456, %v5487, 0.0
      %5520 = vadd.xlane.f32.xlu0 %v5519
      %v5521 = vpop.xlane.xlu0 %5520
      %v5522 = vsel %vm2456, %v5489, 0.0
      %5523 = vadd.xlane.f32.xlu0 %v5522
      %v5524 = vpop.xlane.xlu0 %5523
      %v5525 = vsel %vm2456, %v5491, 0.0
      %5526 = vadd.xlane.f32.xlu0 %v5525
      %v5527 = vpop.xlane.xlu0 %5526
      %v5528 = vsel %vm2456, %v5493, 0.0
      %5529 = vadd.xlane.f32.xlu0 %v5528
      %v5530 = vpop.xlane.xlu0 %5529
      %v5531 = vsel %vm2456, %v5495, 0.0
      %5532 = vadd.xlane.f32.xlu0 %v5531
      %v5533 = vpop.xlane.xlu0 %5532
      %v5534 = vsel %vm2456, %v5497, 0.0
      %5535 = vadd.xlane.f32.xlu0 %v5534
      %v5536 = vpop.xlane.xlu0 %5535
      %v5537 = vsel %vm2456, %v5499, 0.0
      %5538 = vadd.xlane.f32.xlu0 %v5537
      %v5539 = vpop.xlane.xlu0 %5538
      %v5540 = vsel %vm2456, %v5501, 0.0
      %5541 = vadd.xlane.f32.xlu0 %v5540
      %v5542 = vpop.xlane.xlu0 %5541
      %v5543 = vsel %vm2456, %v5503, 0.0
      %5544 = vadd.xlane.f32.xlu0 %v5543
      %v5545 = vpop.xlane.xlu0 %5544
      %v5546 = vsel %vm2456, %v5505, 0.0
      %5547 = vadd.xlane.f32.xlu0 %v5546
      %v5548 = vpop.xlane.xlu0 %5547
      %v5549 = vsel %vm2456, %v5507, 0.0
      %5550 = vadd.xlane.f32.xlu0 %v5549
      %v5551 = vpop.xlane.xlu0 %5550
      %v5552 = vsel %vm2456, %v5509, 0.0
      %5553 = vadd.xlane.f32.xlu0 %v5552
      %v5554 = vpop.xlane.xlu0 %5553
      %v5555 = vsel %vm2456, %v5511, 0.0
      %5556 = vadd.xlane.f32.xlu0 %v5555
      %v5557 = vpop.xlane.xlu0 %5556
      %v5558 = vsel %vm2456, %v5513, 0.0
      %5559 = vadd.xlane.f32.xlu0 %v5558
      %v5560 = vpop.xlane.xlu0 %5559
      %v5561 = vsel %vm2456, %v5515, 0.0
      %5562 = vadd.xlane.f32.xlu0 %v5561
      %v5563 = vpop.xlane.xlu0 %5562
      %v5564 = vrcp.pop %v5518
      %v5565 = vrcp.pop %v5521
      %v5566 = vrcp.pop %v5524
      %v5567 = vrcp.pop %v5527
      %v5568 = vrcp.pop %v5530
      %v5569 = vrcp.pop %v5533
      %v5570 = vrcp.pop %v5536
      %v5571 = vrcp.pop %v5539
      %v5572 = vrcp.pop %v5542
      %v5573 = vrcp.pop %v5545
      %v5574 = vrcp.pop %v5548
      %v5575 = vrcp.pop %v5551
      %v5576 = vrcp.pop %v5554
      %v5577 = vrcp.pop %v5557
      %v5578 = vrcp.pop %v5560
      %v5579 = vrcp.pop %v5563
      %v5580 = vmul.f32 %v5485, %v5564
      %v5581 = vmul.f32 %v5487, %v5565
      %v5582 = vmul.f32 %v5489, %v5566
      %v5583 = vmul.f32 %v5491, %v5567
      %v5584 = vmul.f32 %v5493, %v5568
      %v5585 = vmul.f32 %v5495, %v5569
      %v5586 = vmul.f32 %v5497, %v5570
      %v5587 = vmul.f32 %v5499, %v5571
      %v5588 = vmul.f32 %v5501, %v5572
      %v5589 = vmul.f32 %v5503, %v5573
      %v5590 = vmul.f32 %v5505, %v5574
      %v5591 = vmul.f32 %v5507, %v5575
      %v5592 = vmul.f32 %v5509, %v5576
      %v5593 = vmul.f32 %v5511, %v5577
      %v5594 = vmul.f32 %v5513, %v5578
      %v5595 = vmul.f32 %v5515, %v5579
      %v5596 = vsel %vm2456, %v5580, 0.0
      %v5597 = vsel %vm2456, %v5581, 0.0
      %v5598 = vadd.f32 %v5596, %v5597
      %v5599 = vsel %vm2456, %v5582, 0.0
      %v5600 = vadd.f32 %v5598, %v5599
      %v5601 = vsel %vm2456, %v5583, 0.0
      %v5602 = vadd.f32 %v5600, %v5601
      %v5603 = vsel %vm2456, %v5584, 0.0
      %v5604 = vadd.f32 %v5602, %v5603
      %v5605 = vsel %vm2456, %v5585, 0.0
      %v5606 = vadd.f32 %v5604, %v5605
      %v5607 = vsel %vm2456, %v5586, 0.0
      %v5608 = vadd.f32 %v5606, %v5607
      %v5609 = vsel %vm2456, %v5587, 0.0
      %v5610 = vadd.f32 %v5608, %v5609
      %v5611 = vsel %vm2456, %v5588, 0.0
      %v5612 = vadd.f32 %v5610, %v5611
      %v5613 = vsel %vm2456, %v5589, 0.0
      %v5614 = vadd.f32 %v5612, %v5613
      %v5615 = vsel %vm2456, %v5590, 0.0
      %v5616 = vadd.f32 %v5614, %v5615
      %v5617 = vsel %vm2456, %v5591, 0.0
      %v5618 = vadd.f32 %v5616, %v5617
      %v5619 = vsel %vm2456, %v5592, 0.0
      %v5620 = vadd.f32 %v5618, %v5619
      %v5621 = vsel %vm2456, %v5593, 0.0
      %v5622 = vadd.f32 %v5620, %v5621
      %v5623 = vsel %vm2456, %v5594, 0.0
      %v5624 = vadd.f32 %v5622, %v5623
      %v5625 = vsel %vm2456, %v5595, 0.0
      %v5626 = vadd.f32 %v5624, %v5625
      %v5627 = vrot.slane %v5626, 4
      %v5628 = vadd.f32 %v5626, %v5627
      %v5629 = vrot.slane %v5628, 2
      %v5630 = vadd.f32 %v5628, %v5629
      %v5631 = vrot.slane %v5630, 1
      %v5632 = vadd.f32 %v5630, %v5631
      %v5633 = vadd.f32 %v5632, 1e-05
      %v5634 = vrcp.pop %v5633
      %v5635 = vmul.f32 %v5580, %v5634
      %v5636 = vmul.f32 %v5581, %v5634
      %v5637 = vmul.f32 %v5582, %v5634
      %v5638 = vmul.f32 %v5583, %v5634
      %v5639 = vmul.f32 %v5584, %v5634
      %v5640 = vmul.f32 %v5585, %v5634
      %v5641 = vmul.f32 %v5586, %v5634
      %v5642 = vmul.f32 %v5587, %v5634
      %v5643 = vmul.f32 %v5588, %v5634
      %v5644 = vmul.f32 %v5589, %v5634
      %v5645 = vmul.f32 %v5590, %v5634
      %v5646 = vmul.f32 %v5591, %v5634
      %v5647 = vmul.f32 %v5592, %v5634
      %v5648 = vmul.f32 %v5593, %v5634
      %v5649 = vmul.f32 %v5594, %v5634
      %v5650 = vmul.f32 %v5595, %v5634
      %v5651 = vpack.c.bf16 %v5636, %v5635
      %v5652 = vpack.c.bf16 %v5638, %v5637
      %v5653 = vpack.c.bf16 %v5640, %v5639
      %v5654 = vpack.c.bf16 %v5642, %v5641
      %v5655 = vpack.c.bf16 %v5644, %v5643
      %v5656 = vpack.c.bf16 %v5646, %v5645
      %v5657 = vpack.c.bf16 %v5648, %v5647
      %v5658 = vpack.c.bf16 %v5650, %v5649
      %5659 = vxpose.xlu0.c.b16.start [1/8] %v5651, 128
      %5660 = vxpose.xlu0.c.b16.cont [2/8] %v5652, 128
      %5661 = vxpose.xlu0.c.b16.cont [3/8] %v5653, 128
      %5662 = vxpose.xlu0.c.b16.cont [4/8] %v5654, 128
      %5663 = vxpose.xlu0.c.b16.cont [5/8] %v5655, 128
      %5664 = vxpose.xlu0.c.b16.cont [6/8] %v5656, 128
      %5665 = vxpose.xlu0.c.b16.cont [7/8] %v5657, 128
      %5666 = vxpose.xlu0.c.b16.end [8/8] %v5658, 128
      %v5667 = vpop.trf.xlu0
      %v5668 = vpop.trf.xlu0
      %v5669 = vpop.trf.xlu0
      %v5670 = vpop.trf.xlu0
      %v5671 = vpop.trf.xlu0
      %v5672 = vpop.trf.xlu0
      %v5673 = vpop.trf.xlu0
      %v5674 = vpop.trf.xlu0
      %5675 = vrot.lane.b32.xlu0 %v5250, 80
      %v5676 = vpop.permute.xlu0 %5675
      %5677 = vrot.lane.b32.xlu0 %v5251, 80
      %v5678 = vpop.permute.xlu0 %5677
      %5679 = vrot.lane.b32.xlu0 %v5252, 80
      %v5680 = vpop.permute.xlu0 %5679
      %5681 = vrot.lane.b32.xlu0 %v5253, 80
      %v5682 = vpop.permute.xlu0 %5681
      %5683 = vrot.lane.b32.xlu0 %v5254, 80
      %v5684 = vpop.permute.xlu0 %5683
      %5685 = vrot.lane.b32.xlu0 %v5255, 80
      %v5686 = vpop.permute.xlu0 %5685
      %5687 = vrot.lane.b32.xlu0 %v5256, 80
      %v5688 = vpop.permute.xlu0 %5687
      %5689 = vrot.lane.b32.xlu0 %v5257, 80
      %v5690 = vpop.permute.xlu0 %5689
      %5699 = vmatprep.subr.bf16.mxu0 0
      %5700 = vmatpush1.bf16.msra.mxu0 %v5676
      %5701 = vmatprep.subr.bf16.mxu0 0
      %5702 = vmatpush1.bf16.msra.mxu0 %v5678
      %5703 = vmatprep.subr.bf16.mxu0 0
      %5704 = vmatpush1.bf16.msra.mxu0 %v5680
      %5705 = vmatprep.subr.bf16.mxu0 0
      %5706 = vmatpush1.bf16.msra.mxu0 %v5682
      %5707 = vmatprep.subr.bf16.mxu0 0
      %5708 = vmatpush1.bf16.msra.mxu0 %v5684
      %5709 = vmatprep.subr.bf16.mxu0 0
      %5710 = vmatpush1.bf16.msra.mxu0 %v5686
      %5711 = vmatprep.subr.bf16.mxu0 0
      %5712 = vmatpush1.bf16.msra.mxu0 %v5688
      %5713 = vmatprep.subr.bf16.mxu0 0
      %5714 = vmatpush1.bf16.msra.mxu0 %v5690
      %5715 = vmatprep.subr.bf16.mxu0 0
      %5716 = vmatpush1.bf16.msra.mxu0 0
      %5717 = vmatprep.subr.bf16.mxu0 0
      %5718 = vmatpush1.bf16.msra.mxu0 0
      %5719 = vmatprep.subr.bf16.mxu0 0
      %5720 = vmatpush1.bf16.msra.mxu0 0
      %5721 = vmatprep.subr.bf16.mxu0 0
      %5722 = vmatpush1.bf16.msra.mxu0 0
      %5723 = vmatprep.subr.bf16.mxu0 0
      %5724 = vmatpush1.bf16.msra.mxu0 0
      %5725 = vmatprep.subr.bf16.mxu0 0
      %5726 = vmatpush1.bf16.msra.mxu0 0
      %5727 = vmatprep.subr.bf16.mxu0 0
      %5728 = vmatpush1.bf16.msra.mxu0 0
      %5729 = vmatprep.subr.bf16.mxu0 0
      %5730 = vmatpush1.bf16.msra.mxu0 0
      %5731 = vmatprep.mubr.bf16.mxu0 0
      %5732 = vmatmul.mubr.bf16.gmra.mrb[0].mxu0 %v5667
      %v5733 = vpop.f32.mrb[0].mxu0
      %v5734 = vadd.f32 0.0, %v5733
      %v5735 = vpop.f32.mrb[0].mxu0
      %v5736 = vpop.f32.mrb[0].mxu0
      %v5737 = vpop.f32.mrb[0].mxu0
      %5738 = vdwg.mxu0
      %v5739 = vpack.c.bf16 %v5734, %v5734
      %v5740 = vld [vmem:[%s6] sm:$0xf]
      %v5741 = vld [vmem:[%s6 + $0x4] sm:$0xf]
      %v5744 = vunpack.c.l.b16 %v5740
      %v5745 = vunpack.c.l.b16 %v5741
      %v5746 = vpack.c.b16 %v5745, %v5744
      %v5749 = vsel %vm2334, %v5739, 0
      %5751 = vmatprep.subr.bf16.mxu0 0
      %5752 = vmatpush1.bf16.msra.mxu0 %v5746
      %5753 = vmatprep.subr.bf16.mxu0 0
      %5754 = vmatpush1.bf16.msra.mxu0 0
      %5755 = vmatprep.subr.bf16.mxu0 0
      %5756 = vmatpush1.bf16.msra.mxu0 0
      %5757 = vmatprep.subr.bf16.mxu0 0
      %5758 = vmatpush1.bf16.msra.mxu0 0
      %5759 = vmatprep.subr.bf16.mxu0 0
      %5760 = vmatpush1.bf16.msra.mxu0 0
      %5761 = vmatprep.subr.bf16.mxu0 0
      %5762 = vmatpush1.bf16.msra.mxu0 0
      %5763 = vmatprep.subr.bf16.mxu0 0
      %5764 = vmatpush1.bf16.msra.mxu0 0
      %5765 = vmatprep.subr.bf16.mxu0 0
      %5766 = vmatpush1.bf16.msra.mxu0 0
      %5767 = vmatprep.subr.bf16.mxu0 0
      %5768 = vmatpush1.bf16.msra.mxu0 0
      %5769 = vmatprep.subr.bf16.mxu0 0
      %5770 = vmatpush1.bf16.msra.mxu0 0
      %5771 = vmatprep.subr.bf16.mxu0 0
      %5772 = vmatpush1.bf16.msra.mxu0 0
      %5773 = vmatprep.subr.bf16.mxu0 0
      %5774 = vmatpush1.bf16.msra.mxu0 0
      %5775 = vmatprep.subr.bf16.mxu0 0
      %5776 = vmatpush1.bf16.msra.mxu0 0
      %5777 = vmatprep.subr.bf16.mxu0 0
      %5778 = vmatpush1.bf16.msra.mxu0 0
      %5779 = vmatprep.subr.bf16.mxu0 0
      %5780 = vmatpush1.bf16.msra.mxu0 0
      %5781 = vmatprep.subr.bf16.mxu0 0
      %5782 = vmatpush1.bf16.msra.mxu0 0
      %5783 = vmatprep.mubr.bf16.mxu0 0
      %5784 = vmatmul.mubr.bf16.gmra.mrb[0].mxu0 %v5749
      %v5785 = vpop.f32.mrb[0].mxu0
      %v5786 = vadd.f32 0.0, %v5785
      %v5787 = vpop.f32.mrb[0].mxu0
      %v5788 = vpop.f32.mrb[0].mxu0
      %v5789 = vpop.f32.mrb[0].mxu0
      %5790 = vdwg.mxu0
      %5791 = vrot.lane.b32.xlu0 %v5746, 112
      %v5792 = vpop.permute.xlu0 %5791
      %5794 = vmatprep.subr.bf16.mxu0 0
      %5795 = vmatpush1.bf16.msra.mxu0 %v5792
      %5796 = vmatprep.subr.bf16.mxu0 0
      %5797 = vmatpush1.bf16.msra.mxu0 0
      %5798 = vmatprep.subr.bf16.mxu0 0
      %5799 = vmatpush1.bf16.msra.mxu0 0
      %5800 = vmatprep.subr.bf16.mxu0 0
      %5801 = vmatpush1.bf16.msra.mxu0 0
      %5802 = vmatprep.subr.bf16.mxu0 0
      %5803 = vmatpush1.bf16.msra.mxu0 0
      %5804 = vmatprep.subr.bf16.mxu0 0
      %5805 = vmatpush1.bf16.msra.mxu0 0
      %5806 = vmatprep.subr.bf16.mxu0 0
      %5807 = vmatpush1.bf16.msra.mxu0 0
      %5808 = vmatprep.subr.bf16.mxu0 0
      %5809 = vmatpush1.bf16.msra.mxu0 0
      %5810 = vmatprep.subr.bf16.mxu0 0
      %5811 = vmatpush1.bf16.msra.mxu0 0
      %5812 = vmatprep.subr.bf16.mxu0 0
      %5813 = vmatpush1.bf16.msra.mxu0 0
      %5814 = vmatprep.subr.bf16.mxu0 0
      %5815 = vmatpush1.bf16.msra.mxu0 0
      %5816 = vmatprep.subr.bf16.mxu0 0
      %5817 = vmatpush1.bf16.msra.mxu0 0
      %5818 = vmatprep.subr.bf16.mxu0 0
      %5819 = vmatpush1.bf16.msra.mxu0 0
      %5820 = vmatprep.subr.bf16.mxu0 0
      %5821 = vmatpush1.bf16.msra.mxu0 0
      %5822 = vmatprep.subr.bf16.mxu0 0
      %5823 = vmatpush1.bf16.msra.mxu0 0
      %5824 = vmatprep.subr.bf16.mxu0 0
      %5825 = vmatpush1.bf16.msra.mxu0 0
      %5826 = vmatprep.mubr.bf16.mxu0 0
      %5827 = vmatmul.mubr.bf16.gmra.mrb[0].mxu0 %v5749
      %v5828 = vpop.f32.mrb[0].mxu0
      %v5829 = vadd.f32 0.0, %v5828
      %v5830 = vpop.f32.mrb[0].mxu0
      %v5831 = vpop.f32.mrb[0].mxu0
      %v5832 = vpop.f32.mrb[0].mxu0
      %5833 = vdwg.mxu0
      %5834 = vrot.lane.b32.xlu0 %v5746, 96
      %v5835 = vpop.permute.xlu0 %5834
      %5837 = vmatprep.subr.bf16.mxu0 0
      %5838 = vmatpush1.bf16.msra.mxu0 %v5835
      %5839 = vmatprep.subr.bf16.mxu0 0
      %5840 = vmatpush1.bf16.msra.mxu0 0
      %5841 = vmatprep.subr.bf16.mxu0 0
      %5842 = vmatpush1.bf16.msra.mxu0 0
      %5843 = vmatprep.subr.bf16.mxu0 0
      %5844 = vmatpush1.bf16.msra.mxu0 0
      %5845 = vmatprep.subr.bf16.mxu0 0
      %5846 = vmatpush1.bf16.msra.mxu0 0
      %5847 = vmatprep.subr.bf16.mxu0 0
      %5848 = vmatpush1.bf16.msra.mxu0 0
      %5849 = vmatprep.subr.bf16.mxu0 0
      %5850 = vmatpush1.bf16.msra.mxu0 0
      %5851 = vmatprep.subr.bf16.mxu0 0
      %5852 = vmatpush1.bf16.msra.mxu0 0
      %5853 = vmatprep.subr.bf16.mxu0 0
      %5854 = vmatpush1.bf16.msra.mxu0 0
      %5855 = vmatprep.subr.bf16.mxu0 0
      %5856 = vmatpush1.bf16.msra.mxu0 0
      %5857 = vmatprep.subr.bf16.mxu0 0
      %5858 = vmatpush1.bf16.msra.mxu0 0
      %5859 = vmatprep.subr.bf16.mxu0 0
      %5860 = vmatpush1.bf16.msra.mxu0 0
      %5861 = vmatprep.subr.bf16.mxu0 0
      %5862 = vmatpush1.bf16.msra.mxu0 0
      %5863 = vmatprep.subr.bf16.mxu0 0
      %5864 = vmatpush1.bf16.msra.mxu0 0
      %5865 = vmatprep.subr.bf16.mxu0 0
      %5866 = vmatpush1.bf16.msra.mxu0 0
      %5867 = vmatprep.subr.bf16.mxu0 0
      %5868 = vmatpush1.bf16.msra.mxu0 0
      %5869 = vmatprep.mubr.bf16.mxu0 0
      %5870 = vmatmul.mubr.bf16.gmra.mrb[0].mxu0 %v5749
      %v5871 = vpop.f32.mrb[0].mxu0
      %v5872 = vadd.f32 0.0, %v5871
      %v5873 = vpop.f32.mrb[0].mxu0
      %v5874 = vpop.f32.mrb[0].mxu0
      %v5875 = vpop.f32.mrb[0].mxu0
      %5876 = vdwg.mxu0
      %v5878 = vsel %vm2334, %v5786, 0
      %v5881 = vsel %vm2334, %v5829, 0
      %5883 = vmatprep.subr.mxu0 0.0
      %5884 = vmatpush1.xpose.msra.mxu0 %v5881
      %5885 = vmatprep.subr.mxu0 0.0
      %5886 = vmatpush1.xpose.msra.mxu0 0.0
      %5887 = vmatprep.subr.mxu0 0.0
      %5888 = vmatpush1.xpose.msra.mxu0 0.0
      %5889 = vmatprep.subr.mxu0 0.0
      %5890 = vmatpush1.xpose.msra.mxu0 0.0
      %5891 = vmatprep.subr.mxu0 0.0
      %5892 = vmatpush1.xpose.msra.mxu0 0.0
      %5893 = vmatprep.subr.mxu0 0.0
      %5894 = vmatpush1.xpose.msra.mxu0 0.0
      %5895 = vmatprep.subr.mxu0 0.0
      %5896 = vmatpush1.xpose.msra.mxu0 0.0
      %5897 = vmatprep.subr.mxu0 0.0
      %5898 = vmatpush1.xpose.msra.mxu0 0.0
      %5899 = vmatprep.subr.mxu0 0.0
      %5900 = vmatpush1.xpose.msra.mxu0 0.0
      %5901 = vmatprep.subr.mxu0 0.0
      %5902 = vmatpush1.xpose.msra.mxu0 0.0
      %5903 = vmatprep.subr.mxu0 0.0
      %5904 = vmatpush1.xpose.msra.mxu0 0.0
      %5905 = vmatprep.subr.mxu0 0.0
      %5906 = vmatpush1.xpose.msra.mxu0 0.0
      %5907 = vmatprep.subr.mxu0 0.0
      %5908 = vmatpush1.xpose.msra.mxu0 0.0
      %5909 = vmatprep.subr.mxu0 0.0
      %5910 = vmatpush1.xpose.msra.mxu0 0.0
      %5911 = vmatprep.subr.mxu0 0.0
      %5912 = vmatpush1.xpose.msra.mxu0 0.0
      %5913 = vmatprep.subr.mxu0 0.0
      %5914 = vmatpush1.xpose.msra.mxu0 0.0
      %5915 = vmatprep.subr.mxu0 0.0
      %5916 = vmatpush1.xpose.msra.mxu0 0.0
      %5917 = vmatprep.subr.mxu0 0.0
      %5918 = vmatpush1.xpose.msra.mxu0 0.0
      %5919 = vmatprep.subr.mxu0 0.0
      %5920 = vmatpush1.xpose.msra.mxu0 0.0
      %5921 = vmatprep.subr.mxu0 0.0
      %5922 = vmatpush1.xpose.msra.mxu0 0.0
      %5923 = vmatprep.subr.mxu0 0.0
      %5924 = vmatpush1.xpose.msra.mxu0 0.0
      %5925 = vmatprep.subr.mxu0 0.0
      %5926 = vmatpush1.xpose.msra.mxu0 0.0
      %5927 = vmatprep.subr.mxu0 0.0
      %5928 = vmatpush1.xpose.msra.mxu0 0.0
      %5929 = vmatprep.subr.mxu0 0.0
      %5930 = vmatpush1.xpose.msra.mxu0 0.0
      %5931 = vmatprep.subr.mxu0 0.0
      %5932 = vmatpush1.xpose.msra.mxu0 0.0
      %5933 = vmatprep.subr.mxu0 0.0
      %5934 = vmatpush1.xpose.msra.mxu0 0.0
      %5935 = vmatprep.subr.mxu0 0.0
      %5936 = vmatpush1.xpose.msra.mxu0 0.0
      %5937 = vmatprep.subr.mxu0 0.0
      %5938 = vmatpush1.xpose.msra.mxu0 0.0
      %5939 = vmatprep.subr.mxu0 0.0
      %5940 = vmatpush1.xpose.msra.mxu0 0.0
      %5941 = vmatprep.subr.mxu0 0.0
      %5942 = vmatpush1.xpose.msra.mxu0 0.0
      %5943 = vmatprep.subr.mxu0 0.0
      %5944 = vmatpush1.xpose.msra.mxu0 0.0
      %5945 = vmatprep.subr.mxu0 0.0
      %5946 = vmatpush1.xpose.msra.mxu0 0.0
      %5947 = vmatprep.mubr.f32.mxu0 0.0
      %5948 = vmatmul.mubr.f32.gmra.mrb[0].mxu0 %v5878
      %v5949 = vpop.f32.mrb[0].mxu0
      %v5950 = vadd.f32 0.0, %v5949
      %v5951 = vpop.f32.mrb[0].mxu0
      %5952 = vdwg.mxu0
      %v5953 = vsel %vm2456, %v5950, -inf
      %5954 = vmax.xlane.f32.xlu0 %v5953
      %v5955 = vpop.xlane.xlu0 %5954
      %v5956 = vsub.f32 %v5950, %v5955
      %v5957 = vmul.f32 %v5956, 1.442695
      %v5958 = vpow.pop %v5957
      %v5959 = vsel %vm2456, %v5958, 0.0
      %5960 = vadd.xlane.f32.xlu0 %v5959
      %v5961 = vpop.xlane.xlu0 %5960
      %v5962 = vrcp.pop %v5961
      %v5963 = vmul.f32 %v5958, %v5962
      %v5965 = vsel %vm2456, %v5963, 0
      %5967 = vmatprep.subr.mxu0 0.0
      %5968 = vmatpush1.msra.mxu0 %v5872
      %5969 = vmatprep.subr.mxu0 0.0
      %5970 = vmatpush1.msra.mxu0 0.0
      %5971 = vmatprep.subr.mxu0 0.0
      %5972 = vmatpush1.msra.mxu0 0.0
      %5973 = vmatprep.subr.mxu0 0.0
      %5974 = vmatpush1.msra.mxu0 0.0
      %5975 = vmatprep.subr.mxu0 0.0
      %5976 = vmatpush1.msra.mxu0 0.0
      %5977 = vmatprep.subr.mxu0 0.0
      %5978 = vmatpush1.msra.mxu0 0.0
      %5979 = vmatprep.subr.mxu0 0.0
      %5980 = vmatpush1.msra.mxu0 0.0
      %5981 = vmatprep.subr.mxu0 0.0
      %5982 = vmatpush1.msra.mxu0 0.0
      %5983 = vmatprep.subr.mxu0 0.0
      %5984 = vmatpush1.msra.mxu0 0.0
      %5985 = vmatprep.subr.mxu0 0.0
      %5986 = vmatpush1.msra.mxu0 0.0
      %5987 = vmatprep.subr.mxu0 0.0
      %5988 = vmatpush1.msra.mxu0 0.0
      %5989 = vmatprep.subr.mxu0 0.0
      %5990 = vmatpush1.msra.mxu0 0.0
      %5991 = vmatprep.subr.mxu0 0.0
      %5992 = vmatpush1.msra.mxu0 0.0
      %5993 = vmatprep.subr.mxu0 0.0
      %5994 = vmatpush1.msra.mxu0 0.0
      %5995 = vmatprep.subr.mxu0 0.0
      %5996 = vmatpush1.msra.mxu0 0.0
      %5997 = vmatprep.subr.mxu0 0.0
      %5998 = vmatpush1.msra.mxu0 0.0
      %5999 = vmatprep.subr.mxu0 0.0
      %6000 = vmatpush1.msra.mxu0 0.0
      %6001 = vmatprep.subr.mxu0 0.0
      %6002 = vmatpush1.msra.mxu0 0.0
      %6003 = vmatprep.subr.mxu0 0.0
      %6004 = vmatpush1.msra.mxu0 0.0
      %6005 = vmatprep.subr.mxu0 0.0
      %6006 = vmatpush1.msra.mxu0 0.0
      %6007 = vmatprep.subr.mxu0 0.0
      %6008 = vmatpush1.msra.mxu0 0.0
      %6009 = vmatprep.subr.mxu0 0.0
      %6010 = vmatpush1.msra.mxu0 0.0
      %6011 = vmatprep.subr.mxu0 0.0
      %6012 = vmatpush1.msra.mxu0 0.0
      %6013 = vmatprep.subr.mxu0 0.0
      %6014 = vmatpush1.msra.mxu0 0.0
      %6015 = vmatprep.subr.mxu0 0.0
      %6016 = vmatpush1.msra.mxu0 0.0
      %6017 = vmatprep.subr.mxu0 0.0
      %6018 = vmatpush1.msra.mxu0 0.0
      %6019 = vmatprep.subr.mxu0 0.0
      %6020 = vmatpush1.msra.mxu0 0.0
      %6021 = vmatprep.subr.mxu0 0.0
      %6022 = vmatpush1.msra.mxu0 0.0
      %6023 = vmatprep.subr.mxu0 0.0
      %6024 = vmatpush1.msra.mxu0 0.0
      %6025 = vmatprep.subr.mxu0 0.0
      %6026 = vmatpush1.msra.mxu0 0.0
      %6027 = vmatprep.subr.mxu0 0.0
      %6028 = vmatpush1.msra.mxu0 0.0
      %6029 = vmatprep.subr.mxu0 0.0
      %6030 = vmatpush1.msra.mxu0 0.0
      %6031 = vmatprep.mubr.f32.mxu0 0.0
      %6032 = vmatmul.mubr.f32.gmra.mrb[0].mxu0 %v5965
      %v6033 = vpop.f32.mrb[0].mxu0
      %v6034 = vadd.f32 0.0, %v6033
      %v6035 = vpop.f32.mrb[0].mxu0
      %6036 = vdwg.mxu0
      %v6037 = vpack.c.bf16 %v5581, %v5580
      %v6038 = vpack.c.bf16 %v5583, %v5582
      %v6039 = vpack.c.bf16 %v5585, %v5584
      %v6040 = vpack.c.bf16 %v5587, %v5586
      %v6041 = vpack.c.bf16 %v5589, %v5588
      %v6042 = vpack.c.bf16 %v5591, %v5590
      %v6043 = vpack.c.bf16 %v5593, %v5592
      %v6044 = vpack.c.bf16 %v5595, %v5594
      %v6045 = vpack.c.bf16 %v6034, %v6034
      %v6047 = vsel %vm2456, %v6037, 0
      %v6050 = vsel %vm2456, %v6038, 0
      %v6053 = vsel %vm2456, %v6039, 0
      %v6056 = vsel %vm2456, %v6040, 0
      %v6059 = vsel %vm2456, %v6041, 0
      %v6062 = vsel %vm2456, %v6042, 0
      %v6065 = vsel %vm2456, %v6043, 0
      %v6068 = vsel %vm2456, %v6044, 0
      %v6071 = vsel %vm3083, %v6045, 0
      %6073 = vmatprep.subr.bf16.mxu0 0
      %6074 = vmatpush1.bf16.msra.mxu0 %v6071
      %6075 = vmatprep.subr.bf16.mxu0 0
      %6076 = vmatpush1.bf16.msra.mxu0 0
      %6077 = vmatprep.subr.bf16.mxu0 0
      %6078 = vmatpush1.bf16.msra.mxu0 0
      %6079 = vmatprep.subr.bf16.mxu0 0
      %6080 = vmatpush1.bf16.msra.mxu0 0
      %6081 = vmatprep.subr.bf16.mxu0 0
      %6082 = vmatpush1.bf16.msra.mxu0 0
      %6083 = vmatprep.subr.bf16.mxu0 0
      %6084 = vmatpush1.bf16.msra.mxu0 0
      %6085 = vmatprep.subr.bf16.mxu0 0
      %6086 = vmatpush1.bf16.msra.mxu0 0
      %6087 = vmatprep.subr.bf16.mxu0 0
      %6088 = vmatpush1.bf16.msra.mxu0 0
      %6089 = vmatprep.subr.bf16.mxu0 0
      %6090 = vmatpush1.bf16.msra.mxu0 0
      %6091 = vmatprep.subr.bf16.mxu0 0
      %6092 = vmatpush1.bf16.msra.mxu0 0
      %6093 = vmatprep.subr.bf16.mxu0 0
      %6094 = vmatpush1.bf16.msra.mxu0 0
      %6095 = vmatprep.subr.bf16.mxu0 0
      %6096 = vmatpush1.bf16.msra.mxu0 0
      %6097 = vmatprep.subr.bf16.mxu0 0
      %6098 = vmatpush1.bf16.msra.mxu0 0
      %6099 = vmatprep.subr.bf16.mxu0 0
      %6100 = vmatpush1.bf16.msra.mxu0 0
      %6101 = vmatprep.subr.bf16.mxu0 0
      %6102 = vmatpush1.bf16.msra.mxu0 0
      %6103 = vmatprep.subr.bf16.mxu0 0
      %6104 = vmatpush1.bf16.msra.mxu0 0
      %6105 = vmatprep.mubr.bf16.mxu0 0
      %6106 = vmatmul.mubr.bf16.gmra.mrb[0].mxu0 %v6047
      %v6107 = vpop.f32.mrb[0].mxu0
      %v6108 = vadd.f32 0.0, %v6107
      %v6109 = vpop.f32.mrb[0].mxu0
      %v6110 = vpop.f32.mrb[0].mxu0
      %v6111 = vadd.f32 0.0, %v6110
      %v6112 = vpop.f32.mrb[0].mxu0
      %6113 = vmatprep.mubr.bf16.mxu0 0
      %6114 = vmatmul.mubr.bf16.gmra.mrb[0].mxu0 %v6050
      %v6115 = vpop.f32.mrb[0].mxu0
      %v6116 = vadd.f32 0.0, %v6115
      %v6117 = vpop.f32.mrb[0].mxu0
      %v6118 = vpop.f32.mrb[0].mxu0
      %v6119 = vadd.f32 0.0, %v6118
      %v6120 = vpop.f32.mrb[0].mxu0
      %6121 = vmatprep.mubr.bf16.mxu0 0
      %6122 = vmatmul.mubr.bf16.gmra.mrb[0].mxu0 %v6053
      %v6123 = vpop.f32.mrb[0].mxu0
      %v6124 = vadd.f32 0.0, %v6123
      %v6125 = vpop.f32.mrb[0].mxu0
      %v6126 = vpop.f32.mrb[0].mxu0
      %v6127 = vadd.f32 0.0, %v6126
      %v6128 = vpop.f32.mrb[0].mxu0
      %6129 = vmatprep.mubr.bf16.mxu0 0
      %6130 = vmatmul.mubr.bf16.gmra.mrb[0].mxu0 %v6056
      %v6131 = vpop.f32.mrb[0].mxu0
      %v6132 = vadd.f32 0.0, %v6131
      %v6133 = vpop.f32.mrb[0].mxu0
      %v6134 = vpop.f32.mrb[0].mxu0
      %v6135 = vadd.f32 0.0, %v6134
      %v6136 = vpop.f32.mrb[0].mxu0
      %6137 = vmatprep.mubr.bf16.mxu0 0
      %6138 = vmatmul.mubr.bf16.gmra.mrb[0].mxu0 %v6059
      %v6139 = vpop.f32.mrb[0].mxu0
      %v6140 = vadd.f32 0.0, %v6139
      %v6141 = vpop.f32.mrb[0].mxu0
      %v6142 = vpop.f32.mrb[0].mxu0
      %v6143 = vadd.f32 0.0, %v6142
      %v6144 = vpop.f32.mrb[0].mxu0
      %6145 = vmatprep.mubr.bf16.mxu0 0
      %6146 = vmatmul.mubr.bf16.gmra.mrb[0].mxu0 %v6062
      %v6147 = vpop.f32.mrb[0].mxu0
      %v6148 = vadd.f32 0.0, %v6147
      %v6149 = vpop.f32.mrb[0].mxu0
      %v6150 = vpop.f32.mrb[0].mxu0
      %v6151 = vadd.f32 0.0, %v6150
      %v6152 = vpop.f32.mrb[0].mxu0
      %6153 = vmatprep.mubr.bf16.mxu0 0
      %6154 = vmatmul.mubr.bf16.gmra.mrb[0].mxu0 %v6065
      %v6155 = vpop.f32.mrb[0].mxu0
      %v6156 = vadd.f32 0.0, %v6155
      %v6157 = vpop.f32.mrb[0].mxu0
      %v6158 = vpop.f32.mrb[0].mxu0
      %v6159 = vadd.f32 0.0, %v6158
      %v6160 = vpop.f32.mrb[0].mxu0
      %6161 = vmatprep.mubr.bf16.mxu0 0
      %6162 = vmatmul.mubr.bf16.gmra.mrb[0].mxu0 %v6068
      %v6163 = vpop.f32.mrb[0].mxu0
      %v6164 = vadd.f32 0.0, %v6163
      %v6165 = vpop.f32.mrb[0].mxu0
      %v6166 = vpop.f32.mrb[0].mxu0
      %v6167 = vadd.f32 0.0, %v6166
      %v6168 = vpop.f32.mrb[0].mxu0
      %6169 = vdwg.mxu0
      %6186 = vrot.lane.b32.xlu0 %v6108, 48
      %v6187 = vpop.permute.xlu0 %6186
      %6188 = vrot.lane.b32.xlu0 %v6111, 48
      %v6189 = vpop.permute.xlu0 %6188
      %6190 = vrot.lane.b32.xlu0 %v6116, 48
      %v6191 = vpop.permute.xlu0 %6190
      %6192 = vrot.lane.b32.xlu0 %v6119, 48
      %v6193 = vpop.permute.xlu0 %6192
      %6194 = vrot.lane.b32.xlu0 %v6124, 48
      %v6195 = vpop.permute.xlu0 %6194
      %6196 = vrot.lane.b32.xlu0 %v6127, 48
      %v6197 = vpop.permute.xlu0 %6196
      %6198 = vrot.lane.b32.xlu0 %v6132, 48
      %v6199 = vpop.permute.xlu0 %6198
      %6200 = vrot.lane.b32.xlu0 %v6135, 48
      %v6201 = vpop.permute.xlu0 %6200
      %6202 = vrot.lane.b32.xlu0 %v6140, 48
      %v6203 = vpop.permute.xlu0 %6202
      %6204 = vrot.lane.b32.xlu0 %v6143, 48
      %v6205 = vpop.permute.xlu0 %6204
      %6206 = vrot.lane.b32.xlu0 %v6148, 48
      %v6207 = vpop.permute.xlu0 %6206
      %6208 = vrot.lane.b32.xlu0 %v6151, 48
      %v6209 = vpop.permute.xlu0 %6208
      %6210 = vrot.lane.b32.xlu0 %v6156, 48
      %v6211 = vpop.permute.xlu0 %6210
      %6212 = vrot.lane.b32.xlu0 %v6159, 48
      %v6213 = vpop.permute.xlu0 %6212
      %6214 = vrot.lane.b32.xlu0 %v6164, 48
      %v6215 = vpop.permute.xlu0 %6214
      %6216 = vrot.lane.b32.xlu0 %v6167, 48
      %v6217 = vpop.permute.xlu0 %6216
      %vm6234 = vcmask 523648
      %6235 = vst.msk [vmem:[#allocation4] sm:$0xff] %vm6234, %v6187
      %6236 = vst.msk [vmem:[#allocation4 + $0x8] sm:$0xff] %vm6234, %v6189
      %6237 = vst.msk [vmem:[#allocation4 + $0x10] sm:$0xff] %vm6234, %v6191
      %6238 = vst.msk [vmem:[#allocation4 + $0x18] sm:$0xff] %vm6234, %v6193
      %6239 = vst.msk [vmem:[#allocation4 + $0x20] sm:$0xff] %vm6234, %v6195
      %6240 = vst.msk [vmem:[#allocation4 + $0x28] sm:$0xff] %vm6234, %v6197
      %6241 = vst.msk [vmem:[#allocation4 + $0x30] sm:$0xff] %vm6234, %v6199
      %6242 = vst.msk [vmem:[#allocation4 + $0x38] sm:$0xff] %vm6234, %v6201
      %6243 = vst.msk [vmem:[#allocation4 + $0x40] sm:$0xff] %vm6234, %v6203
      %6244 = vst.msk [vmem:[#allocation4 + $0x48] sm:$0xff] %vm6234, %v6205
      %6245 = vst.msk [vmem:[#allocation4 + $0x50] sm:$0xff] %vm6234, %v6207
      %6246 = vst.msk [vmem:[#allocation4 + $0x58] sm:$0xff] %vm6234, %v6209
      %6247 = vst.msk [vmem:[#allocation4 + $0x60] sm:$0xff] %vm6234, %v6211
      %6248 = vst.msk [vmem:[#allocation4 + $0x68] sm:$0xff] %vm6234, %v6213
      %6249 = vst.msk [vmem:[#allocation4 + $0x70] sm:$0xff] %vm6234, %v6215
      %6250 = vst.msk [vmem:[#allocation4 + $0x78] sm:$0xff] %vm6234, %v6217
      %v6251 = vld [vmem:[#allocation4] sm:$0xff]
      %v6252 = vld [vmem:[#allocation4 + $0x8] sm:$0xff]
      %v6253 = vld [vmem:[#allocation4 + $0x10] sm:$0xff]
      %v6254 = vld [vmem:[#allocation4 + $0x18] sm:$0xff]
      %v6255 = vld [vmem:[#allocation4 + $0x20] sm:$0xff]
      %v6256 = vld [vmem:[#allocation4 + $0x28] sm:$0xff]
      %v6257 = vld [vmem:[#allocation4 + $0x30] sm:$0xff]
      %v6258 = vld [vmem:[#allocation4 + $0x38] sm:$0xff]
      %v6259 = vld [vmem:[#allocation4 + $0x40] sm:$0xff]
      %v6260 = vld [vmem:[#allocation4 + $0x48] sm:$0xff]
      %v6261 = vld [vmem:[#allocation4 + $0x50] sm:$0xff]
      %v6262 = vld [vmem:[#allocation4 + $0x58] sm:$0xff]
      %v6263 = vld [vmem:[#allocation4 + $0x60] sm:$0xff]
      %v6264 = vld [vmem:[#allocation4 + $0x68] sm:$0xff]
      %v6265 = vld [vmem:[#allocation4 + $0x70] sm:$0xff]
      %v6266 = vld [vmem:[#allocation4 + $0x78] sm:$0xff]
      %v6267 = vpack.c.bf16 %v6252, %v6251
      %v6268 = vpack.c.bf16 %v6254, %v6253
      %v6269 = vpack.c.bf16 %v6256, %v6255
      %v6270 = vpack.c.bf16 %v6258, %v6257
      %v6271 = vpack.c.bf16 %v6260, %v6259
      %v6272 = vpack.c.bf16 %v6262, %v6261
      %v6273 = vpack.c.bf16 %v6264, %v6263
      %v6274 = vpack.c.bf16 %v6266, %v6265
      %v6275 = vld [vmem:[%s7] sm:$0xf]
      %v6276 = vld [vmem:[%s7 + $0x4] sm:$0xf]
      %v6277 = vld [vmem:[%s7 + $0x8] sm:$0xf]
      %v6278 = vld [vmem:[%s7 + $0xc] sm:$0xf]
      %v6279 = vld [vmem:[%s7 + $0x10] sm:$0xf]
      %v6280 = vld [vmem:[%s7 + $0x14] sm:$0xf]
      %v6281 = vld [vmem:[%s7 + $0x18] sm:$0xf]
      %v6282 = vld [vmem:[%s7 + $0x1c] sm:$0xf]
      %v6283 = vld [vmem:[%s8] sm:$0x1]
      %v6285 = vlaneseq
      %v6286 = vshrl.u32 %v6285, 7
      %v6287 = vsub.s32 0, %v6286
      %v6288 = vrot.slane %v6283, %v6287
      %v6298 = vunpack.c.l.b16 %v6275
      %v6299 = vunpack.c.l.b16 %v6276
      %v6300 = vunpack.c.l.b16 %v6277
      %v6301 = vunpack.c.l.b16 %v6278
      %v6302 = vunpack.c.l.b16 %v6279
      %v6303 = vunpack.c.l.b16 %v6280
      %v6304 = vunpack.c.l.b16 %v6281
      %v6305 = vunpack.c.l.b16 %v6282
      %v6306 = vpack.c.b16 %v6299, %v6298
      %v6307 = vpack.c.b16 %v6301, %v6300
      %v6308 = vpack.c.b16 %v6303, %v6302
      %v6309 = vpack.c.b16 %v6305, %v6304
      %vm6314 = vcmask 523264
      %v6316 = vsel %vm6314, %v6267, 0
      %v6319 = vsel %vm6314, %v6268, 0
      %v6322 = vsel %vm6314, %v6269, 0
      %v6325 = vsel %vm6314, %v6270, 0
      %v6328 = vsel %vm6314, %v6271, 0
      %v6331 = vsel %vm6314, %v6272, 0
      %v6334 = vsel %vm6314, %v6273, 0
      %v6337 = vsel %vm6314, %v6274, 0
      %6339 = vmatprep.subr.bf16.mxu0 0
      %6340 = vmatpush1.bf16.msra.mxu0 %v6306
      %6341 = vmatprep.subr.bf16.mxu0 0
      %6342 = vmatpush1.bf16.msra.mxu0 %v6307
      %6343 = vmatprep.subr.bf16.mxu0 0
      %6344 = vmatpush1.bf16.msra.mxu0 %v6308
      %6345 = vmatprep.subr.bf16.mxu0 0
      %6346 = vmatpush1.bf16.msra.mxu0 %v6309
      %6347 = vmatprep.subr.bf16.mxu0 0
      %6348 = vmatpush1.bf16.msra.mxu0 0
      %6349 = vmatprep.subr.bf16.mxu0 0
      %6350 = vmatpush1.bf16.msra.mxu0 0
      %6351 = vmatprep.subr.bf16.mxu0 0
      %6352 = vmatpush1.bf16.msra.mxu0 0
      %6353 = vmatprep.subr.bf16.mxu0 0
      %6354 = vmatpush1.bf16.msra.mxu0 0
      %6355 = vmatprep.subr.bf16.mxu0 0
      %6356 = vmatpush1.bf16.msra.mxu0 0
      %6357 = vmatprep.subr.bf16.mxu0 0
      %6358 = vmatpush1.bf16.msra.mxu0 0
      %6359 = vmatprep.subr.bf16.mxu0 0
      %6360 = vmatpush1.bf16.msra.mxu0 0
      %6361 = vmatprep.subr.bf16.mxu0 0
      %6362 = vmatpush1.bf16.msra.mxu0 0
      %6363 = vmatprep.subr.bf16.mxu0 0
      %6364 = vmatpush1.bf16.msra.mxu0 0
      %6365 = vmatprep.subr.bf16.mxu0 0
      %6366 = vmatpush1.bf16.msra.mxu0 0
      %6367 = vmatprep.subr.bf16.mxu0 0
      %6368 = vmatpush1.bf16.msra.mxu0 0
      %6369 = vmatprep.subr.bf16.mxu0 0
      %6370 = vmatpush1.bf16.msra.mxu0 0
      %6371 = vmatprep.mubr.bf16.mxu0 0
      %6372 = vmatmul.mubr.bf16.gmra.mrb[0].mxu0 %v6316
      %v6373 = vpop.f32.mrb[0].mxu0
      %v6374 = vadd.f32 %v6288, %v6373
      %v6375 = vpop.f32.mrb[0].mxu0
      %v6376 = vpop.f32.mrb[0].mxu0
      %v6377 = vadd.f32 %v6288, %v6376
      %v6378 = vpop.f32.mrb[0].mxu0
      %6379 = vmatprep.mubr.bf16.mxu0 0
      %6380 = vmatmul.mubr.bf16.gmra.mrb[0].mxu0 %v6319
      %v6381 = vpop.f32.mrb[0].mxu0
      %v6382 = vadd.f32 %v6288, %v6381
      %v6383 = vpop.f32.mrb[0].mxu0
      %v6384 = vpop.f32.mrb[0].mxu0
      %v6385 = vadd.f32 %v6288, %v6384
      %v6386 = vpop.f32.mrb[0].mxu0
      %6387 = vmatprep.mubr.bf16.mxu0 0
      %6388 = vmatmul.mubr.bf16.gmra.mrb[0].mxu0 %v6322
      %v6389 = vpop.f32.mrb[0].mxu0
      %v6390 = vadd.f32 %v6288, %v6389
      %v6391 = vpop.f32.mrb[0].mxu0
      %v6392 = vpop.f32.mrb[0].mxu0
      %v6393 = vadd.f32 %v6288, %v6392
      %v6394 = vpop.f32.mrb[0].mxu0
      %6395 = vmatprep.mubr.bf16.mxu0 0
      %6396 = vmatmul.mubr.bf16.gmra.mrb[0].mxu0 %v6325
      %v6397 = vpop.f32.mrb[0].mxu0
      %v6398 = vadd.f32 %v6288, %v6397
      %v6399 = vpop.f32.mrb[0].mxu0
      %v6400 = vpop.f32.mrb[0].mxu0
      %v6401 = vadd.f32 %v6288, %v6400
      %v6402 = vpop.f32.mrb[0].mxu0
      %6403 = vmatprep.mubr.bf16.mxu0 0
      %6404 = vmatmul.mubr.bf16.gmra.mrb[0].mxu0 %v6328
      %v6405 = vpop.f32.mrb[0].mxu0
      %v6406 = vadd.f32 %v6288, %v6405
      %v6407 = vpop.f32.mrb[0].mxu0
      %v6408 = vpop.f32.mrb[0].mxu0
      %v6409 = vadd.f32 %v6288, %v6408
      %v6410 = vpop.f32.mrb[0].mxu0
      %6411 = vmatprep.mubr.bf16.mxu0 0
      %6412 = vmatmul.mubr.bf16.gmra.mrb[0].mxu0 %v6331
      %v6413 = vpop.f32.mrb[0].mxu0
      %v6414 = vadd.f32 %v6288, %v6413
      %v6415 = vpop.f32.mrb[0].mxu0
      %v6416 = vpop.f32.mrb[0].mxu0
      %v6417 = vadd.f32 %v6288, %v6416
      %v6418 = vpop.f32.mrb[0].mxu0
      %6419 = vmatprep.mubr.bf16.mxu0 0
      %6420 = vmatmul.mubr.bf16.gmra.mrb[0].mxu0 %v6334
      %v6421 = vpop.f32.mrb[0].mxu0
      %v6422 = vadd.f32 %v6288, %v6421
      %v6423 = vpop.f32.mrb[0].mxu0
      %v6424 = vpop.f32.mrb[0].mxu0
      %v6425 = vadd.f32 %v6288, %v6424
      %v6426 = vpop.f32.mrb[0].mxu0
      %6427 = vmatprep.mubr.bf16.mxu0 0
      %6428 = vmatmul.mubr.bf16.gmra.mrb[0].mxu0 %v6337
      %v6429 = vpop.f32.mrb[0].mxu0
      %v6430 = vadd.f32 %v6288, %v6429
      %v6431 = vpop.f32.mrb[0].mxu0
      %v6432 = vpop.f32.mrb[0].mxu0
      %v6433 = vadd.f32 %v6288, %v6432
      %v6434 = vpop.f32.mrb[0].mxu0
      %6435 = vdwg.mxu0
      %6436 = vst.msk [vmem:[%s332] sm:$0xff] %vm334, %v6374
      %6437 = vst.msk [vmem:[%s332 + $0x8] sm:$0xff] %vm334, %v6377
      %6438 = vst.msk [vmem:[%s332 + $0x10] sm:$0xff] %vm334, %v6382
      %6439 = vst.msk [vmem:[%s332 + $0x18] sm:$0xff] %vm334, %v6385
      %6440 = vst.msk [vmem:[%s332 + $0x20] sm:$0xff] %vm334, %v6390
      %6441 = vst.msk [vmem:[%s332 + $0x28] sm:$0xff] %vm334, %v6393
      %6442 = vst.msk [vmem:[%s332 + $0x30] sm:$0xff] %vm334, %v6398
      %6443 = vst.msk [vmem:[%s332 + $0x38] sm:$0xff] %vm334, %v6401
      %6444 = vst.msk [vmem:[%s332 + $0x40] sm:$0xff] %vm334, %v6406
      %6445 = vst.msk [vmem:[%s332 + $0x48] sm:$0xff] %vm334, %v6409
      %6446 = vst.msk [vmem:[%s332 + $0x50] sm:$0xff] %vm334, %v6414
      %6447 = vst.msk [vmem:[%s332 + $0x58] sm:$0xff] %vm334, %v6417
      %6448 = vst.msk [vmem:[%s332 + $0x60] sm:$0xff] %vm334, %v6422
      %6449 = vst.msk [vmem:[%s332 + $0x68] sm:$0xff] %vm334, %v6425
      %6450 = vst.msk [vmem:[%s332 + $0x70] sm:$0xff] %vm334, %v6430
      %6451 = vst.msk [vmem:[%s332 + $0x78] sm:$0xff] %vm334, %v6433
      %p6452 = scmp.lt.s32.totalorder %s20, 1
      %s6453 = scalar_select %p6452, %s20, 1
      %s6454 = smul.addr %s6453, 16
      %s6455 = smul.addr %s6454, 8
      %s6456 = scalar_lea.vmem %s9, %s6455
      // Predicated region
      $region57: #{tpu_custom_call.1} parent=55 // pred_check
        %p6457 = pneg %p232
      $region58: #{tpu_custom_call.1} parent=55 // pred_check_branch
        %6459 = sbr.rel (%p6457) target = $region60
      $region59: #{tpu_custom_call.1} parent=55 // pred_region
        _
      $region60: #{tpu_custom_call.1} parent=55 // pred_fallthru
        _
    $region56: #{tpu_custom_call.1} parent=5 // pred_fallthru
      _
    %p6460 = scmp.le.s32.totalorder 2, %s15
    // Predicated region
    $region61: #{tpu_custom_call.1} parent=5 // pred_check
      %p6461 = pneg %p6460
    $region62: #{tpu_custom_call.1} parent=5 // pred_check_branch
      %6463 = sbr.rel (%p6461) target = $region64
    $region63: #{tpu_custom_call.1} parent=5 // pred_region
      %s6464 = ssub.s32 %s15, 2
      // Predicated region
      $region65: #{tpu_custom_call.1} parent=63 // pred_check
        %p6465 = pneg %p238
      $region66: #{tpu_custom_call.1} parent=63 // pred_check_branch
        %6467 = sbr.rel (%p6465) target = $region68
      $region67: #{tpu_custom_call.1} parent=63 // pred_region
        %p6468 = scmp.lt.s32.totalorder %s21, 1
        %s6469 = scalar_select %p6468, %s21, 1
        %s6470 = smul.addr %s6469, 16
        %s6471 = smul.addr %s6470, 8
        %s6472 = scalar_lea.vmem %s9, %s6471
      $region68: #{tpu_custom_call.1} parent=63 // pred_fallthru
        _
    $region64: #{tpu_custom_call.1} parent=5 // pred_fallthru
      _
  $region6: #{tpu_custom_call.1} parent=0 // loop_footer
    %s19 = sadd.s32 1, %s15
  $region7: #{tpu_custom_call.1} parent=0 // loop_footer_branch
    %14 = sbr.rel target = $region3
  $region8: #{tpu_custom_call.1} parent=0 // loop_exit
    _

</llo_original>
